<compile_context>
chip_gen: v7x
topology: tpu7x:2x2x1
jax: 0.10.0
libtpu: 0.0.40
codegen_flags: <defaults>
</compile_context>

<pallas_src>
import functools

import jax
import jax.numpy as jnp
from jax import lax
from jax.experimental import pallas as pl
from jax.experimental.pallas import tpu as pltpu


P = 128                      # lane padding: per-gate block width and state-row width
GATE_ORDER = (0, 1, 3, 2)    # PyTorch gate blocks (i, f, g, o) -> kernel (i, f, o, g)

_VMEM_SPEC = pl.BlockSpec(memory_space=pltpu.MemorySpace.VMEM)


# ----------------------------------------------------------------------------
# Fused Pallas kernel
# ----------------------------------------------------------------------------
def _fused_autoencoder_kernel(
    x_ref,                       # (T, P)  f32, x lane-padded (real feature in lane 0)
    wih1_ref, whh1_ref, b1_ref,  # enc_rnn1: (P,4P) bf16, (P,4P) bf16, (1,4P) f32
    w2_ref, b2_ref,              # enc_rnn2: stacked [wih;whh] (2P,4P) bf16, (1,4P) f32
    wih3_ref, whh3_ref, b3_ref,  # dec_rnn1: (P,4P) bf16, (P,4P) bf16, (1,4P) f32
    w4_ref, b4_ref,              # dec_rnn2: stacked [wih;whh] (2P,4P) bf16, (1,4P) f32
    wout_ref, bout_ref,          # (P, NF) f32, (1, NF) f32
    out_ref,                     # (T, NF) f32
):
    T = x_ref.shape[0]
    f32 = jnp.float32
    bf16 = jnp.bfloat16
    zero_state = jnp.zeros((1, P), f32)

    def mxu(act_f32, w_ref):
        # bf16 MXU operands, f32 accumulation; elementwise math stays f32.
        return jnp.dot(act_f32.astype(bf16), w_ref[...], preferred_element_type=f32)

    def lstm_cell(gates, c):
        # Gate order (i, f, o, g): one sigmoid over a contiguous lane-aligned
        # (.., 3P) slice and one tanh per step.  Padded lanes stay exactly zero
        # (sigmoid(0)=0.5, tanh(0)=0, c/h initialised to 0).
        sig = jax.nn.sigmoid(gates[:, : 3 * P])
        i_g = sig[:, 0 * P:1 * P]
        f_g = sig[:, 1 * P:2 * P]
        o_g = sig[:, 2 * P:3 * P]
        g_g = jnp.tanh(gates[:, 3 * P:4 * P])
        c_new = f_g * c + i_g * g_g
        h_new = o_g * jnp.tanh(c_new)
        return h_new, c_new

    # Per-gate blocks stay padded to 128 lanes so every gate slice is lane-aligned
    # (no cross-lane shuffles on the serial chain).
    # TODO(synk): evaluate packing gates into 4*H lanes (narrower MXU N) once a
    # bundle dump confirms the sub-vreg lane slices are cheaper than the extra
    # result pops.

    # ---------------- Encoder: wavefront of enc_rnn1 / enc_rnn2 ----------------
    # enc_rnn1 input projections for the whole sequence: one (T,P)x(P,4P) matmul.
    xp1 = mxu(x_ref[...], wih1_ref) + b1_ref[...]            # (T, 4P) f32
    b2 = b2_ref[...]                                          # hoisted out of loop

    h1 = c1 = h2 = c2 = zero_state
    for s in range(T + 1):   # T small & static -> full unroll (see TODO below)
        h1_prev = h1
        if s < T:            # enc_rnn1 step s
            g1 = xp1[s:s + 1, :] + mxu(h1, whh1_ref)
            h1, c1 = lstm_cell(g1, c1)
        if s >= 1:           # enc_rnn2 step s-1 (independent of enc_rnn1 step s)
            # Fused input+recurrent projection: [h1_{s-1} | h2_{s-2}] @ [wih2; whh2].
            g2 = mxu(jnp.concatenate([h1_prev, h2], axis=1), w2_ref) + b2
            h2, c2 = lstm_cell(g2, c2)
    enc = h2                 # (1, P) final enc_rnn2 hidden; padded lanes exactly 0

    # ---------------- Decoder: wavefront of dec_rnn1 / dec_rnn2 ----------------
    # dec_rnn1's input (tiled encoder state) is constant over time -> one matmul.
    xp3 = mxu(enc, wih3_ref) + b3_ref[...]                    # (1, 4P) f32
    b4 = b4_ref[...]

    h3 = c3 = h4 = c4 = zero_state
    d2_rows = []
    for s in range(T + 1):
        h3_prev = h3
        if s < T:            # dec_rnn1 step s
            g3 = xp3 + mxu(h3, whh3_ref)
            h3, c3 = lstm_cell(g3, c3)
        if s >= 1:           # dec_rnn2 step s-1
            g4 = mxu(jnp.concatenate([h3_prev, h4], axis=1), w4_ref) + b4
            h4, c4 = lstm_cell(g4, c4)
            d2_rows.append(h4)

    # ---------------- Output linear (single coalesced store) -------------------
    d2 = jnp.concatenate(d2_rows, axis=0)                     # (T, P) f32
    out_ref[...] = (jnp.dot(d2, wout_ref[...], preferred_element_type=f32)
                    + bout_ref[...])

    # TODO(synk): for seq_len >~ 32, switch the unrolled Python loops to
    # lax.fori_loop(..., unroll=k) with (h, c) carries to bound live ranges.
    # TODO(synk): if the real workload has many sequences, add a batch dim
    # (B, P) state and a "parallel" grid axis over batch (fills MXU rows and
    # v7x's second TensorCore).


# ----------------------------------------------------------------------------
# One-time parameter preparation (transpose + gate permute/pad + bf16), OUTSIDE jit
# ----------------------------------------------------------------------------
def _pad_gate_cols(w, hidden):
    """w: (rows, 4*hidden) in PyTorch gate order (i,f,g,o) ->
       (rows, 4*P) in kernel order (i,f,o,g), each gate block zero-padded to P lanes."""
    blocks = [
        jnp.pad(w[:, g * hidden:(g + 1) * hidden], ((0, 0), (0, P - hidden)))
        for g in GATE_ORDER
    ]
    return jnp.concatenate(blocks, axis=1)


def _prep_lstm(p, *, stack):
    """Transpose, permute/pad gate columns, pre-add biases, cast MXU operands to bf16.
    stack=True fuses [w_ih; w_hh] into one (2P, 4P) matrix so the consumer layer's
    step is a single [x_t | h_{t-1}] @ W matmul."""
    w_ih = jnp.asarray(p["w_ih"], jnp.float32)     # (4H, D)  PyTorch layout
    w_hh = jnp.asarray(p["w_hh"], jnp.float32)     # (4H, H)
    H = w_hh.shape[1]
    D = w_ih.shape[1]
    assert H <= P and D <= P
    wih = jnp.pad(_pad_gate_cols(w_ih.T, H), ((0, P - D), (0, 0)))   # (P, 4P)
    whh = jnp.pad(_pad_gate_cols(w_hh.T, H), ((0, P - H), (0, 0)))   # (P, 4P)
    b = (jnp.asarray(p["b_ih"], jnp.float32)
         + jnp.asarray(p["b_hh"], jnp.float32)).reshape(1, 4 * H)
    b = _pad_gate_cols(b, H)                                         # (1, 4P) f32
    if stack:
        return (jnp.concatenate([wih, whh], axis=0).astype(jnp.bfloat16), b)
    return (wih.astype(jnp.bfloat16), whh.astype(jnp.bfloat16), b)


def prepare_params(params):
    """One-time weight prep (not per forward call)."""
    w_out = jnp.asarray(params["out_w"], jnp.float32)        # (NF, 2E)
    return dict(
        l1=_prep_lstm(params["enc_rnn1"], stack=False),
        l2=_prep_lstm(params["enc_rnn2"], stack=True),
        l3=_prep_lstm(params["dec_rnn1"], stack=False),
        l4=_prep_lstm(params["dec_rnn2"], stack=True),
        wout=jnp.pad(w_out.T, ((0, P - w_out.shape[1]), (0, 0))),    # (P, NF) f32
        bout=jnp.asarray(params["out_b"], jnp.float32).reshape(1, -1),
    )


# ----------------------------------------------------------------------------
# Forward pass (single pallas_call)
# ----------------------------------------------------------------------------
@functools.partial(jax.jit, static_argnames=("seq_len", "n_features"))
def recurrent_autoencoder(x, kparams, *, seq_len, n_features):
    assert n_features == 1, "PyTorch module's reshapes require n_features == 1"
    x = jnp.asarray(x, jnp.float32).reshape(seq_len, n_features)
    x = jnp.pad(x, ((0, 0), (0, P - n_features)))   # lane-pad the feature (K) dim

    call = pl.pallas_call(
        _fused_autoencoder_kernel,
        out_shape=jax.ShapeDtypeStruct((seq_len, n_features), jnp.float32),
        in_specs=[_VMEM_SPEC] * 13,
        out_specs=_VMEM_SPEC,
    )
    return call(
        x,
        *kparams["l1"], *kparams["l2"], *kparams["l3"], *kparams["l4"],
        kparams["wout"], kparams["bout"],
    )


# ----------------------------------------------------------------------------
# Parameter construction (deterministic, PyTorch-style uniform init)
# ----------------------------------------------------------------------------
def _uniform(key, shape, bound):
    return jax.random.uniform(key, shape, jnp.float32, -bound, bound)


def _init_lstm(key, in_dim, hidden):
    k = jax.random.split(key, 4)
    bound = 1.0 / (hidden ** 0.5)
    return dict(
        w_ih=_uniform(k[0], (4 * hidden, in_dim), bound),
        w_hh=_uniform(k[1], (4 * hidden, hidden), bound),
        b_ih=_uniform(k[2], (4 * hidden,), bound),
        b_hh=_uniform(k[3], (4 * hidden,), bound),
    )


def init_params(key, seq_len, n_features, embedding_dim):
    E = embedding_dim
    ks = jax.random.split(key, 6)
    bound = 1.0 / ((2 * E) ** 0.5)
    return dict(
        enc_rnn1=_init_lstm(ks[0], n_features, 2 * E),
        enc_rnn2=_init_lstm(ks[1], 2 * E, E),
        dec_rnn1=_init_lstm(ks[2], E, E),
        dec_rnn2=_init_lstm(ks[3], E, 2 * E),
        out_w=_uniform(ks[4], (n_features, 2 * E), bound),
        out_b=_uniform(ks[5], (n_features,), bound),
    )


# ----------------------------------------------------------------------------
# Pure-JAX reference (for correctness check). bf16_matmul=True mirrors the
# kernel's precision policy (bf16 MXU operands, f32 accumulate, f32 gate math).
# ----------------------------------------------------------------------------
def _lstm_ref(x_seq, p, bf16_matmul):
    w_ih = jnp.asarray(p["w_ih"], jnp.float32)
    w_hh = jnp.asarray(p["w_hh"], jnp.float32)
    H = w_hh.shape[1]
    b = jnp.asarray(p["b_ih"], jnp.float32) + jnp.asarray(p["b_hh"], jnp.float32)
    wih_t, whh_t = w_ih.T, w_hh.T
    if bf16_matmul:
        wih_t = wih_t.astype(jnp.bfloat16)
        whh_t = whh_t.astype(jnp.bfloat16)

    def step(carry, x_t):
        h, c = carry
        gates = (jnp.dot(x_t.astype(wih_t.dtype), wih_t,
                         preferred_element_type=jnp.float32)
                 + jnp.dot(h.astype(whh_t.dtype), whh_t,
                           preferred_element_type=jnp.float32) + b)
        i = jax.nn.sigmoid(gates[0 * H:1 * H])
        f = jax.nn.sigmoid(gates[1 * H:2 * H])
        g = jnp.tanh(gates[2 * H:3 * H])
        o = jax.nn.sigmoid(gates[3 * H:4 * H])
        c = f * c + i * g
        h = o * jnp.tanh(c)
        return (h, c), h

    init = (jnp.zeros((H,), jnp.float32), jnp.zeros((H,), jnp.float32))
    _, hs = lax.scan(step, init, x_seq)
    return hs


def reference_forward(x, params, seq_len, n_features, *, bf16_matmul):
    x = x.reshape(seq_len, n_features).astype(jnp.float32)
    h1 = _lstm_ref(x, params["enc_rnn1"], bf16_matmul)
    h2 = _lstm_ref(h1, params["enc_rnn2"], bf16_matmul)
    enc = h2[-1:]
    dec_in = jnp.tile(enc, (seq_len, 1))
    d1 = _lstm_ref(dec_in, params["dec_rnn1"], bf16_matmul)
    d2 = _lstm_ref(d1, params["dec_rnn2"], bf16_matmul)
    return (d2 @ jnp.asarray(params["out_w"], jnp.float32).T
            + jnp.asarray(params["out_b"], jnp.float32))


# ----------------------------------------------------------------------------
if __name__ == "__main__":
    SEQ_LEN = 8
    N_FEATURES = 1
    EMBEDDING_DIM = 32

    key = jax.random.PRNGKey(0)
    k_params, k_x = jax.random.split(key)

    params = init_params(k_params, SEQ_LEN, N_FEATURES, EMBEDDING_DIM)
    x = jax.random.normal(k_x, (SEQ_LEN, N_FEATURES), jnp.float32)

    # One-time weight prep (transpose, gate permutation+padding, bf16 cast).
    kparams = prepare_params(params)
    kparams = jax.tree_util.tree_map(jax.block_until_ready, kparams)

    out = recurrent_autoencoder(x, kparams, seq_len=SEQ_LEN, n_features=N_FEATURES)
    out = jax.block_until_ready(out)
    assert out.shape == (SEQ_LEN, N_FEATURES), out.shape

    # 1) Tight check against a reference with the SAME precision policy
    #    (bf16 MXU operands, f32 accumulation, f32 gate math).
    ref_matched = reference_forward(x, params, SEQ_LEN, N_FEATURES, bf16_matmul=True)
    err_matched = float(jnp.max(jnp.abs(out - ref_matched)))
    assert err_matched < 5e-3, f"mismatch vs precision-matched reference: {err_matched}"

    # 2) Loose sanity check against the exact f32 PyTorch semantics
    #    (bounds the bf16-weight quantization error).
    ref_f32 = reference_forward(x, params, SEQ_LEN, N_FEATURES, bf16_matmul=False)
    err_f32 = float(jnp.max(jnp.abs(out - ref_f32)))
    assert err_f32 < 5e-2, f"bf16 quantization error vs f32 reference too large: {err_f32}"

    print("KERNEL_OK")
</pallas_src>

<mosaic_0001>
module attributes {stable_mosaic.version = 11 : i64} {
  func.func @_fused_autoencoder_kernel(%arg0: memref<8x128xf32, #tpu.memory_space<vmem>>, %arg1: memref<128x512xbf16, #tpu.memory_space<vmem>>, %arg2: memref<128x512xbf16, #tpu.memory_space<vmem>>, %arg3: memref<1x512xf32, #tpu.memory_space<vmem>>, %arg4: memref<256x512xbf16, #tpu.memory_space<vmem>>, %arg5: memref<1x512xf32, #tpu.memory_space<vmem>>, %arg6: memref<128x512xbf16, #tpu.memory_space<vmem>>, %arg7: memref<128x512xbf16, #tpu.memory_space<vmem>>, %arg8: memref<1x512xf32, #tpu.memory_space<vmem>>, %arg9: memref<256x512xbf16, #tpu.memory_space<vmem>>, %arg10: memref<1x512xf32, #tpu.memory_space<vmem>>, %arg11: memref<128x1xf32, #tpu.memory_space<vmem>>, %arg12: memref<1x1xf32, #tpu.memory_space<vmem>>, %arg13: memref<8x1xf32, #tpu.memory_space<vmem>>) attributes {dimension_semantics = [], scalar_prefetch = 0 : i64, scratch_operands = 0 : i64, tpu.core_type = #tpu.core_type<tc>} {
    %cst = arith.constant 0.000000e+00 : f32
    %0 = vector.broadcast %cst : f32 to vector<1x128xf32>
    %c0 = arith.constant 0 : index
    %c0_0 = arith.constant 0 : index
    %1 = vector.load %arg0[%c0, %c0_0] : memref<8x128xf32, #tpu.memory_space<vmem>>, vector<8x128xf32>
    %2 = arith.truncf %1 : vector<8x128xf32> to vector<8x128xbf16>
    %c0_1 = arith.constant 0 : index
    %c0_2 = arith.constant 0 : index
    %3 = vector.load %arg1[%c0_1, %c0_2] : memref<128x512xbf16, #tpu.memory_space<vmem>>, vector<128x512xbf16>
    %cst_3 = arith.constant dense<0.000000e+00> : vector<8x512xf32>
    %4 = tpu.matmul %2, %3, %cst_3 {dimension_numbers = #tpu.dot_dimension_numbers<[1], [0], [0], [1], [0, 0, 1, 1], [], []>} : vector<8x128xbf16>, vector<128x512xbf16>, vector<8x512xf32> -> vector<8x512xf32>
    %c0_4 = arith.constant 0 : index
    %c0_5 = arith.constant 0 : index
    %5 = vector.load %arg3[%c0_4, %c0_5] : memref<1x512xf32, #tpu.memory_space<vmem>>, vector<1x512xf32>
    %6 = vector.broadcast %5 : vector<1x512xf32> to vector<8x512xf32>
    %7 = arith.addf %4, %6 : vector<8x512xf32>
    %c0_6 = arith.constant 0 : index
    %c0_7 = arith.constant 0 : index
    %8 = vector.load %arg5[%c0_6, %c0_7] : memref<1x512xf32, #tpu.memory_space<vmem>>, vector<1x512xf32>
    %9 = vector.extract_strided_slice %7 {offsets = [0, 0], sizes = [1, 512], strides = [1, 1]} : vector<8x512xf32> to vector<1x512xf32>
    %10 = arith.truncf %0 : vector<1x128xf32> to vector<1x128xbf16>
    %c0_8 = arith.constant 0 : index
    %c0_9 = arith.constant 0 : index
    %11 = vector.load %arg2[%c0_8, %c0_9] : memref<128x512xbf16, #tpu.memory_space<vmem>>, vector<128x512xbf16>
    %cst_10 = arith.constant dense<0.000000e+00> : vector<1x512xf32>
    %12 = tpu.matmul %10, %11, %cst_10 {dimension_numbers = #tpu.dot_dimension_numbers<[1], [0], [0], [1], [0, 0, 1, 1], [], []>} : vector<1x128xbf16>, vector<128x512xbf16>, vector<1x512xf32> -> vector<1x512xf32>
    %13 = arith.addf %9, %12 : vector<1x512xf32>
    %14 = vector.extract_strided_slice %13 {offsets = [0, 0], sizes = [1, 384], strides = [1, 1]} : vector<1x512xf32> to vector<1x384xf32>
    %15 = arith.negf %14 : vector<1x384xf32>
    %16 = math.exp %15 : vector<1x384xf32>
    %cst_11 = arith.constant 1.000000e+00 : f32
    %17 = vector.broadcast %cst_11 : f32 to vector<1x384xf32>
    %18 = arith.addf %17, %16 : vector<1x384xf32>
    %19 = arith.divf %17, %18 : vector<1x384xf32>
    %20 = vector.extract_strided_slice %19 {offsets = [0, 0], sizes = [1, 128], strides = [1, 1]} : vector<1x384xf32> to vector<1x128xf32>
    %21 = vector.extract_strided_slice %19 {offsets = [0, 128], sizes = [1, 128], strides = [1, 1]} : vector<1x384xf32> to vector<1x128xf32>
    %22 = vector.extract_strided_slice %19 {offsets = [0, 256], sizes = [1, 128], strides = [1, 1]} : vector<1x384xf32> to vector<1x128xf32>
    %23 = vector.extract_strided_slice %13 {offsets = [0, 384], sizes = [1, 128], strides = [1, 1]} : vector<1x512xf32> to vector<1x128xf32>
    %24 = math.tanh %23 : vector<1x128xf32>
    %25 = arith.mulf %21, %0 : vector<1x128xf32>
    %26 = arith.mulf %20, %24 : vector<1x128xf32>
    %27 = arith.addf %25, %26 : vector<1x128xf32>
    %28 = math.tanh %27 : vector<1x128xf32>
    %29 = arith.mulf %22, %28 : vector<1x128xf32>
    %30 = vector.extract_strided_slice %7 {offsets = [1, 0], sizes = [1, 512], strides = [1, 1]} : vector<8x512xf32> to vector<1x512xf32>
    %31 = arith.truncf %29 : vector<1x128xf32> to vector<1x128xbf16>
    %c0_12 = arith.constant 0 : index
    %c0_13 = arith.constant 0 : index
    %32 = vector.load %arg2[%c0_12, %c0_13] : memref<128x512xbf16, #tpu.memory_space<vmem>>, vector<128x512xbf16>
    %cst_14 = arith.constant dense<0.000000e+00> : vector<1x512xf32>
    %33 = tpu.matmul %31, %32, %cst_14 {dimension_numbers = #tpu.dot_dimension_numbers<[1], [0], [0], [1], [0, 0, 1, 1], [], []>} : vector<1x128xbf16>, vector<128x512xbf16>, vector<1x512xf32> -> vector<1x512xf32>
    %34 = arith.addf %30, %33 : vector<1x512xf32>
    %35 = vector.extract_strided_slice %34 {offsets = [0, 0], sizes = [1, 384], strides = [1, 1]} : vector<1x512xf32> to vector<1x384xf32>
    %36 = arith.negf %35 : vector<1x384xf32>
    %37 = math.exp %36 : vector<1x384xf32>
    %cst_15 = arith.constant 1.000000e+00 : f32
    %38 = vector.broadcast %cst_15 : f32 to vector<1x384xf32>
    %39 = arith.addf %38, %37 : vector<1x384xf32>
    %40 = arith.divf %38, %39 : vector<1x384xf32>
    %41 = vector.extract_strided_slice %40 {offsets = [0, 0], sizes = [1, 128], strides = [1, 1]} : vector<1x384xf32> to vector<1x128xf32>
    %42 = vector.extract_strided_slice %40 {offsets = [0, 128], sizes = [1, 128], strides = [1, 1]} : vector<1x384xf32> to vector<1x128xf32>
    %43 = vector.extract_strided_slice %40 {offsets = [0, 256], sizes = [1, 128], strides = [1, 1]} : vector<1x384xf32> to vector<1x128xf32>
    %44 = vector.extract_strided_slice %34 {offsets = [0, 384], sizes = [1, 128], strides = [1, 1]} : vector<1x512xf32> to vector<1x128xf32>
    %45 = math.tanh %44 : vector<1x128xf32>
    %46 = arith.mulf %42, %27 : vector<1x128xf32>
    %47 = arith.mulf %41, %45 : vector<1x128xf32>
    %48 = arith.addf %46, %47 : vector<1x128xf32>
    %49 = math.tanh %48 : vector<1x128xf32>
    %50 = arith.mulf %43, %49 : vector<1x128xf32>
    %51 = tpu.concatenate %29, %0 in 1 : vector<1x128xf32>, vector<1x128xf32> -> vector<1x256xf32>
    %52 = arith.truncf %51 : vector<1x256xf32> to vector<1x256xbf16>
    %c0_16 = arith.constant 0 : index
    %c0_17 = arith.constant 0 : index
    %53 = vector.load %arg4[%c0_16, %c0_17] : memref<256x512xbf16, #tpu.memory_space<vmem>>, vector<256x512xbf16>
    %cst_18 = arith.constant dense<0.000000e+00> : vector<1x512xf32>
    %54 = tpu.matmul %52, %53, %cst_18 {dimension_numbers = #tpu.dot_dimension_numbers<[1], [0], [0], [1], [0, 0, 1, 1], [], []>} : vector<1x256xbf16>, vector<256x512xbf16>, vector<1x512xf32> -> vector<1x512xf32>
    %55 = arith.addf %54, %8 : vector<1x512xf32>
    %56 = vector.extract_strided_slice %55 {offsets = [0, 0], sizes = [1, 384], strides = [1, 1]} : vector<1x512xf32> to vector<1x384xf32>
    %57 = arith.negf %56 : vector<1x384xf32>
    %58 = math.exp %57 : vector<1x384xf32>
    %cst_19 = arith.constant 1.000000e+00 : f32
    %59 = vector.broadcast %cst_19 : f32 to vector<1x384xf32>
    %60 = arith.addf %59, %58 : vector<1x384xf32>
    %61 = arith.divf %59, %60 : vector<1x384xf32>
    %62 = vector.extract_strided_slice %61 {offsets = [0, 0], sizes = [1, 128], strides = [1, 1]} : vector<1x384xf32> to vector<1x128xf32>
    %63 = vector.extract_strided_slice %61 {offsets = [0, 128], sizes = [1, 128], strides = [1, 1]} : vector<1x384xf32> to vector<1x128xf32>
    %64 = vector.extract_strided_slice %61 {offsets = [0, 256], sizes = [1, 128], strides = [1, 1]} : vector<1x384xf32> to vector<1x128xf32>
    %65 = vector.extract_strided_slice %55 {offsets = [0, 384], sizes = [1, 128], strides = [1, 1]} : vector<1x512xf32> to vector<1x128xf32>
    %66 = math.tanh %65 : vector<1x128xf32>
    %67 = arith.mulf %63, %0 : vector<1x128xf32>
    %68 = arith.mulf %62, %66 : vector<1x128xf32>
    %69 = arith.addf %67, %68 : vector<1x128xf32>
    %70 = math.tanh %69 : vector<1x128xf32>
    %71 = arith.mulf %64, %70 : vector<1x128xf32>
    %72 = vector.extract_strided_slice %7 {offsets = [2, 0], sizes = [1, 512], strides = [1, 1]} : vector<8x512xf32> to vector<1x512xf32>
    %73 = arith.truncf %50 : vector<1x128xf32> to vector<1x128xbf16>
    %c0_20 = arith.constant 0 : index
    %c0_21 = arith.constant 0 : index
    %74 = vector.load %arg2[%c0_20, %c0_21] : memref<128x512xbf16, #tpu.memory_space<vmem>>, vector<128x512xbf16>
    %cst_22 = arith.constant dense<0.000000e+00> : vector<1x512xf32>
    %75 = tpu.matmul %73, %74, %cst_22 {dimension_numbers = #tpu.dot_dimension_numbers<[1], [0], [0], [1], [0, 0, 1, 1], [], []>} : vector<1x128xbf16>, vector<128x512xbf16>, vector<1x512xf32> -> vector<1x512xf32>
    %76 = arith.addf %72, %75 : vector<1x512xf32>
    %77 = vector.extract_strided_slice %76 {offsets = [0, 0], sizes = [1, 384], strides = [1, 1]} : vector<1x512xf32> to vector<1x384xf32>
    %78 = arith.negf %77 : vector<1x384xf32>
    %79 = math.exp %78 : vector<1x384xf32>
    %cst_23 = arith.constant 1.000000e+00 : f32
    %80 = vector.broadcast %cst_23 : f32 to vector<1x384xf32>
    %81 = arith.addf %80, %79 : vector<1x384xf32>
    %82 = arith.divf %80, %81 : vector<1x384xf32>
    %83 = vector.extract_strided_slice %82 {offsets = [0, 0], sizes = [1, 128], strides = [1, 1]} : vector<1x384xf32> to vector<1x128xf32>
    %84 = vector.extract_strided_slice %82 {offsets = [0, 128], sizes = [1, 128], strides = [1, 1]} : vector<1x384xf32> to vector<1x128xf32>
    %85 = vector.extract_strided_slice %82 {offsets = [0, 256], sizes = [1, 128], strides = [1, 1]} : vector<1x384xf32> to vector<1x128xf32>
    %86 = vector.extract_strided_slice %76 {offsets = [0, 384], sizes = [1, 128], strides = [1, 1]} : vector<1x512xf32> to vector<1x128xf32>
    %87 = math.tanh %86 : vector<1x128xf32>
    %88 = arith.mulf %84, %48 : vector<1x128xf32>
    %89 = arith.mulf %83, %87 : vector<1x128xf32>
    %90 = arith.addf %88, %89 : vector<1x128xf32>
    %91 = math.tanh %90 : vector<1x128xf32>
    %92 = arith.mulf %85, %91 : vector<1x128xf32>
    %93 = tpu.concatenate %50, %71 in 1 : vector<1x128xf32>, vector<1x128xf32> -> vector<1x256xf32>
    %94 = arith.truncf %93 : vector<1x256xf32> to vector<1x256xbf16>
    %c0_24 = arith.constant 0 : index
    %c0_25 = arith.constant 0 : index
    %95 = vector.load %arg4[%c0_24, %c0_25] : memref<256x512xbf16, #tpu.memory_space<vmem>>, vector<256x512xbf16>
    %cst_26 = arith.constant dense<0.000000e+00> : vector<1x512xf32>
    %96 = tpu.matmul %94, %95, %cst_26 {dimension_numbers = #tpu.dot_dimension_numbers<[1], [0], [0], [1], [0, 0, 1, 1], [], []>} : vector<1x256xbf16>, vector<256x512xbf16>, vector<1x512xf32> -> vector<1x512xf32>
    %97 = arith.addf %96, %8 : vector<1x512xf32>
    %98 = vector.extract_strided_slice %97 {offsets = [0, 0], sizes = [1, 384], strides = [1, 1]} : vector<1x512xf32> to vector<1x384xf32>
    %99 = arith.negf %98 : vector<1x384xf32>
    %100 = math.exp %99 : vector<1x384xf32>
    %cst_27 = arith.constant 1.000000e+00 : f32
    %101 = vector.broadcast %cst_27 : f32 to vector<1x384xf32>
    %102 = arith.addf %101, %100 : vector<1x384xf32>
    %103 = arith.divf %101, %102 : vector<1x384xf32>
    %104 = vector.extract_strided_slice %103 {offsets = [0, 0], sizes = [1, 128], strides = [1, 1]} : vector<1x384xf32> to vector<1x128xf32>
    %105 = vector.extract_strided_slice %103 {offsets = [0, 128], sizes = [1, 128], strides = [1, 1]} : vector<1x384xf32> to vector<1x128xf32>
    %106 = vector.extract_strided_slice %103 {offsets = [0, 256], sizes = [1, 128], strides = [1, 1]} : vector<1x384xf32> to vector<1x128xf32>
    %107 = vector.extract_strided_slice %97 {offsets = [0, 384], sizes = [1, 128], strides = [1, 1]} : vector<1x512xf32> to vector<1x128xf32>
    %108 = math.tanh %107 : vector<1x128xf32>
    %109 = arith.mulf %105, %69 : vector<1x128xf32>
    %110 = arith.mulf %104, %108 : vector<1x128xf32>
    %111 = arith.addf %109, %110 : vector<1x128xf32>
    %112 = math.tanh %111 : vector<1x128xf32>
    %113 = arith.mulf %106, %112 : vector<1x128xf32>
    %114 = vector.extract_strided_slice %7 {offsets = [3, 0], sizes = [1, 512], strides = [1, 1]} : vector<8x512xf32> to vector<1x512xf32>
    %115 = arith.truncf %92 : vector<1x128xf32> to vector<1x128xbf16>
    %c0_28 = arith.constant 0 : index
    %c0_29 = arith.constant 0 : index
    %116 = vector.load %arg2[%c0_28, %c0_29] : memref<128x512xbf16, #tpu.memory_space<vmem>>, vector<128x512xbf16>
    %cst_30 = arith.constant dense<0.000000e+00> : vector<1x512xf32>
    %117 = tpu.matmul %115, %116, %cst_30 {dimension_numbers = #tpu.dot_dimension_numbers<[1], [0], [0], [1], [0, 0, 1, 1], [], []>} : vector<1x128xbf16>, vector<128x512xbf16>, vector<1x512xf32> -> vector<1x512xf32>
    %118 = arith.addf %114, %117 : vector<1x512xf32>
    %119 = vector.extract_strided_slice %118 {offsets = [0, 0], sizes = [1, 384], strides = [1, 1]} : vector<1x512xf32> to vector<1x384xf32>
    %120 = arith.negf %119 : vector<1x384xf32>
    %121 = math.exp %120 : vector<1x384xf32>
    %cst_31 = arith.constant 1.000000e+00 : f32
    %122 = vector.broadcast %cst_31 : f32 to vector<1x384xf32>
    %123 = arith.addf %122, %121 : vector<1x384xf32>
    %124 = arith.divf %122, %123 : vector<1x384xf32>
    %125 = vector.extract_strided_slice %124 {offsets = [0, 0], sizes = [1, 128], strides = [1, 1]} : vector<1x384xf32> to vector<1x128xf32>
    %126 = vector.extract_strided_slice %124 {offsets = [0, 128], sizes = [1, 128], strides = [1, 1]} : vector<1x384xf32> to vector<1x128xf32>
    %127 = vector.extract_strided_slice %124 {offsets = [0, 256], sizes = [1, 128], strides = [1, 1]} : vector<1x384xf32> to vector<1x128xf32>
    %128 = vector.extract_strided_slice %118 {offsets = [0, 384], sizes = [1, 128], strides = [1, 1]} : vector<1x512xf32> to vector<1x128xf32>
    %129 = math.tanh %128 : vector<1x128xf32>
    %130 = arith.mulf %126, %90 : vector<1x128xf32>
    %131 = arith.mulf %125, %129 : vector<1x128xf32>
    %132 = arith.addf %130, %131 : vector<1x128xf32>
    %133 = math.tanh %132 : vector<1x128xf32>
    %134 = arith.mulf %127, %133 : vector<1x128xf32>
    %135 = tpu.concatenate %92, %113 in 1 : vector<1x128xf32>, vector<1x128xf32> -> vector<1x256xf32>
    %136 = arith.truncf %135 : vector<1x256xf32> to vector<1x256xbf16>
    %c0_32 = arith.constant 0 : index
    %c0_33 = arith.constant 0 : index
    %137 = vector.load %arg4[%c0_32, %c0_33] : memref<256x512xbf16, #tpu.memory_space<vmem>>, vector<256x512xbf16>
    %cst_34 = arith.constant dense<0.000000e+00> : vector<1x512xf32>
    %138 = tpu.matmul %136, %137, %cst_34 {dimension_numbers = #tpu.dot_dimension_numbers<[1], [0], [0], [1], [0, 0, 1, 1], [], []>} : vector<1x256xbf16>, vector<256x512xbf16>, vector<1x512xf32> -> vector<1x512xf32>
    %139 = arith.addf %138, %8 : vector<1x512xf32>
    %140 = vector.extract_strided_slice %139 {offsets = [0, 0], sizes = [1, 384], strides = [1, 1]} : vector<1x512xf32> to vector<1x384xf32>
    %141 = arith.negf %140 : vector<1x384xf32>
    %142 = math.exp %141 : vector<1x384xf32>
    %cst_35 = arith.constant 1.000000e+00 : f32
    %143 = vector.broadcast %cst_35 : f32 to vector<1x384xf32>
    %144 = arith.addf %143, %142 : vector<1x384xf32>
    %145 = arith.divf %143, %144 : vector<1x384xf32>
    %146 = vector.extract_strided_slice %145 {offsets = [0, 0], sizes = [1, 128], strides = [1, 1]} : vector<1x384xf32> to vector<1x128xf32>
    %147 = vector.extract_strided_slice %145 {offsets = [0, 128], sizes = [1, 128], strides = [1, 1]} : vector<1x384xf32> to vector<1x128xf32>
    %148 = vector.extract_strided_slice %145 {offsets = [0, 256], sizes = [1, 128], strides = [1, 1]} : vector<1x384xf32> to vector<1x128xf32>
    %149 = vector.extract_strided_slice %139 {offsets = [0, 384], sizes = [1, 128], strides = [1, 1]} : vector<1x512xf32> to vector<1x128xf32>
    %150 = math.tanh %149 : vector<1x128xf32>
    %151 = arith.mulf %147, %111 : vector<1x128xf32>
    %152 = arith.mulf %146, %150 : vector<1x128xf32>
    %153 = arith.addf %151, %152 : vector<1x128xf32>
    %154 = math.tanh %153 : vector<1x128xf32>
    %155 = arith.mulf %148, %154 : vector<1x128xf32>
    %156 = vector.extract_strided_slice %7 {offsets = [4, 0], sizes = [1, 512], strides = [1, 1]} : vector<8x512xf32> to vector<1x512xf32>
    %157 = arith.truncf %134 : vector<1x128xf32> to vector<1x128xbf16>
    %c0_36 = arith.constant 0 : index
    %c0_37 = arith.constant 0 : index
    %158 = vector.load %arg2[%c0_36, %c0_37] : memref<128x512xbf16, #tpu.memory_space<vmem>>, vector<128x512xbf16>
    %cst_38 = arith.constant dense<0.000000e+00> : vector<1x512xf32>
    %159 = tpu.matmul %157, %158, %cst_38 {dimension_numbers = #tpu.dot_dimension_numbers<[1], [0], [0], [1], [0, 0, 1, 1], [], []>} : vector<1x128xbf16>, vector<128x512xbf16>, vector<1x512xf32> -> vector<1x512xf32>
    %160 = arith.addf %156, %159 : vector<1x512xf32>
    %161 = vector.extract_strided_slice %160 {offsets = [0, 0], sizes = [1, 384], strides = [1, 1]} : vector<1x512xf32> to vector<1x384xf32>
    %162 = arith.negf %161 : vector<1x384xf32>
    %163 = math.exp %162 : vector<1x384xf32>
    %cst_39 = arith.constant 1.000000e+00 : f32
    %164 = vector.broadcast %cst_39 : f32 to vector<1x384xf32>
    %165 = arith.addf %164, %163 : vector<1x384xf32>
    %166 = arith.divf %164, %165 : vector<1x384xf32>
    %167 = vector.extract_strided_slice %166 {offsets = [0, 0], sizes = [1, 128], strides = [1, 1]} : vector<1x384xf32> to vector<1x128xf32>
    %168 = vector.extract_strided_slice %166 {offsets = [0, 128], sizes = [1, 128], strides = [1, 1]} : vector<1x384xf32> to vector<1x128xf32>
    %169 = vector.extract_strided_slice %166 {offsets = [0, 256], sizes = [1, 128], strides = [1, 1]} : vector<1x384xf32> to vector<1x128xf32>
    %170 = vector.extract_strided_slice %160 {offsets = [0, 384], sizes = [1, 128], strides = [1, 1]} : vector<1x512xf32> to vector<1x128xf32>
    %171 = math.tanh %170 : vector<1x128xf32>
    %172 = arith.mulf %168, %132 : vector<1x128xf32>
    %173 = arith.mulf %167, %171 : vector<1x128xf32>
    %174 = arith.addf %172, %173 : vector<1x128xf32>
    %175 = math.tanh %174 : vector<1x128xf32>
    %176 = arith.mulf %169, %175 : vector<1x128xf32>
    %177 = tpu.concatenate %134, %155 in 1 : vector<1x128xf32>, vector<1x128xf32> -> vector<1x256xf32>
    %178 = arith.truncf %177 : vector<1x256xf32> to vector<1x256xbf16>
    %c0_40 = arith.constant 0 : index
    %c0_41 = arith.constant 0 : index
    %179 = vector.load %arg4[%c0_40, %c0_41] : memref<256x512xbf16, #tpu.memory_space<vmem>>, vector<256x512xbf16>
    %cst_42 = arith.constant dense<0.000000e+00> : vector<1x512xf32>
    %180 = tpu.matmul %178, %179, %cst_42 {dimension_numbers = #tpu.dot_dimension_numbers<[1], [0], [0], [1], [0, 0, 1, 1], [], []>} : vector<1x256xbf16>, vector<256x512xbf16>, vector<1x512xf32> -> vector<1x512xf32>
    %181 = arith.addf %180, %8 : vector<1x512xf32>
    %182 = vector.extract_strided_slice %181 {offsets = [0, 0], sizes = [1, 384], strides = [1, 1]} : vector<1x512xf32> to vector<1x384xf32>
    %183 = arith.negf %182 : vector<1x384xf32>
    %184 = math.exp %183 : vector<1x384xf32>
    %cst_43 = arith.constant 1.000000e+00 : f32
    %185 = vector.broadcast %cst_43 : f32 to vector<1x384xf32>
    %186 = arith.addf %185, %184 : vector<1x384xf32>
    %187 = arith.divf %185, %186 : vector<1x384xf32>
    %188 = vector.extract_strided_slice %187 {offsets = [0, 0], sizes = [1, 128], strides = [1, 1]} : vector<1x384xf32> to vector<1x128xf32>
    %189 = vector.extract_strided_slice %187 {offsets = [0, 128], sizes = [1, 128], strides = [1, 1]} : vector<1x384xf32> to vector<1x128xf32>
    %190 = vector.extract_strided_slice %187 {offsets = [0, 256], sizes = [1, 128], strides = [1, 1]} : vector<1x384xf32> to vector<1x128xf32>
    %191 = vector.extract_strided_slice %181 {offsets = [0, 384], sizes = [1, 128], strides = [1, 1]} : vector<1x512xf32> to vector<1x128xf32>
    %192 = math.tanh %191 : vector<1x128xf32>
    %193 = arith.mulf %189, %153 : vector<1x128xf32>
    %194 = arith.mulf %188, %192 : vector<1x128xf32>
    %195 = arith.addf %193, %194 : vector<1x128xf32>
    %196 = math.tanh %195 : vector<1x128xf32>
    %197 = arith.mulf %190, %196 : vector<1x128xf32>
    %198 = vector.extract_strided_slice %7 {offsets = [5, 0], sizes = [1, 512], strides = [1, 1]} : vector<8x512xf32> to vector<1x512xf32>
    %199 = arith.truncf %176 : vector<1x128xf32> to vector<1x128xbf16>
    %c0_44 = arith.constant 0 : index
    %c0_45 = arith.constant 0 : index
    %200 = vector.load %arg2[%c0_44, %c0_45] : memref<128x512xbf16, #tpu.memory_space<vmem>>, vector<128x512xbf16>
    %cst_46 = arith.constant dense<0.000000e+00> : vector<1x512xf32>
    %201 = tpu.matmul %199, %200, %cst_46 {dimension_numbers = #tpu.dot_dimension_numbers<[1], [0], [0], [1], [0, 0, 1, 1], [], []>} : vector<1x128xbf16>, vector<128x512xbf16>, vector<1x512xf32> -> vector<1x512xf32>
    %202 = arith.addf %198, %201 : vector<1x512xf32>
    %203 = vector.extract_strided_slice %202 {offsets = [0, 0], sizes = [1, 384], strides = [1, 1]} : vector<1x512xf32> to vector<1x384xf32>
    %204 = arith.negf %203 : vector<1x384xf32>
    %205 = math.exp %204 : vector<1x384xf32>
    %cst_47 = arith.constant 1.000000e+00 : f32
    %206 = vector.broadcast %cst_47 : f32 to vector<1x384xf32>
    %207 = arith.addf %206, %205 : vector<1x384xf32>
    %208 = arith.divf %206, %207 : vector<1x384xf32>
    %209 = vector.extract_strided_slice %208 {offsets = [0, 0], sizes = [1, 128], strides = [1, 1]} : vector<1x384xf32> to vector<1x128xf32>
    %210 = vector.extract_strided_slice %208 {offsets = [0, 128], sizes = [1, 128], strides = [1, 1]} : vector<1x384xf32> to vector<1x128xf32>
    %211 = vector.extract_strided_slice %208 {offsets = [0, 256], sizes = [1, 128], strides = [1, 1]} : vector<1x384xf32> to vector<1x128xf32>
    %212 = vector.extract_strided_slice %202 {offsets = [0, 384], sizes = [1, 128], strides = [1, 1]} : vector<1x512xf32> to vector<1x128xf32>
    %213 = math.tanh %212 : vector<1x128xf32>
    %214 = arith.mulf %210, %174 : vector<1x128xf32>
    %215 = arith.mulf %209, %213 : vector<1x128xf32>
    %216 = arith.addf %214, %215 : vector<1x128xf32>
    %217 = math.tanh %216 : vector<1x128xf32>
    %218 = arith.mulf %211, %217 : vector<1x128xf32>
    %219 = tpu.concatenate %176, %197 in 1 : vector<1x128xf32>, vector<1x128xf32> -> vector<1x256xf32>
    %220 = arith.truncf %219 : vector<1x256xf32> to vector<1x256xbf16>
    %c0_48 = arith.constant 0 : index
    %c0_49 = arith.constant 0 : index
    %221 = vector.load %arg4[%c0_48, %c0_49] : memref<256x512xbf16, #tpu.memory_space<vmem>>, vector<256x512xbf16>
    %cst_50 = arith.constant dense<0.000000e+00> : vector<1x512xf32>
    %222 = tpu.matmul %220, %221, %cst_50 {dimension_numbers = #tpu.dot_dimension_numbers<[1], [0], [0], [1], [0, 0, 1, 1], [], []>} : vector<1x256xbf16>, vector<256x512xbf16>, vector<1x512xf32> -> vector<1x512xf32>
    %223 = arith.addf %222, %8 : vector<1x512xf32>
    %224 = vector.extract_strided_slice %223 {offsets = [0, 0], sizes = [1, 384], strides = [1, 1]} : vector<1x512xf32> to vector<1x384xf32>
    %225 = arith.negf %224 : vector<1x384xf32>
    %226 = math.exp %225 : vector<1x384xf32>
    %cst_51 = arith.constant 1.000000e+00 : f32
    %227 = vector.broadcast %cst_51 : f32 to vector<1x384xf32>
    %228 = arith.addf %227, %226 : vector<1x384xf32>
    %229 = arith.divf %227, %228 : vector<1x384xf32>
    %230 = vector.extract_strided_slice %229 {offsets = [0, 0], sizes = [1, 128], strides = [1, 1]} : vector<1x384xf32> to vector<1x128xf32>
    %231 = vector.extract_strided_slice %229 {offsets = [0, 128], sizes = [1, 128], strides = [1, 1]} : vector<1x384xf32> to vector<1x128xf32>
    %232 = vector.extract_strided_slice %229 {offsets = [0, 256], sizes = [1, 128], strides = [1, 1]} : vector<1x384xf32> to vector<1x128xf32>
    %233 = vector.extract_strided_slice %223 {offsets = [0, 384], sizes = [1, 128], strides = [1, 1]} : vector<1x512xf32> to vector<1x128xf32>
    %234 = math.tanh %233 : vector<1x128xf32>
    %235 = arith.mulf %231, %195 : vector<1x128xf32>
    %236 = arith.mulf %230, %234 : vector<1x128xf32>
    %237 = arith.addf %235, %236 : vector<1x128xf32>
    %238 = math.tanh %237 : vector<1x128xf32>
    %239 = arith.mulf %232, %238 : vector<1x128xf32>
    %240 = vector.extract_strided_slice %7 {offsets = [6, 0], sizes = [1, 512], strides = [1, 1]} : vector<8x512xf32> to vector<1x512xf32>
    %241 = arith.truncf %218 : vector<1x128xf32> to vector<1x128xbf16>
    %c0_52 = arith.constant 0 : index
    %c0_53 = arith.constant 0 : index
    %242 = vector.load %arg2[%c0_52, %c0_53] : memref<128x512xbf16, #tpu.memory_space<vmem>>, vector<128x512xbf16>
    %cst_54 = arith.constant dense<0.000000e+00> : vector<1x512xf32>
    %243 = tpu.matmul %241, %242, %cst_54 {dimension_numbers = #tpu.dot_dimension_numbers<[1], [0], [0], [1], [0, 0, 1, 1], [], []>} : vector<1x128xbf16>, vector<128x512xbf16>, vector<1x512xf32> -> vector<1x512xf32>
    %244 = arith.addf %240, %243 : vector<1x512xf32>
    %245 = vector.extract_strided_slice %244 {offsets = [0, 0], sizes = [1, 384], strides = [1, 1]} : vector<1x512xf32> to vector<1x384xf32>
    %246 = arith.negf %245 : vector<1x384xf32>
    %247 = math.exp %246 : vector<1x384xf32>
    %cst_55 = arith.constant 1.000000e+00 : f32
    %248 = vector.broadcast %cst_55 : f32 to vector<1x384xf32>
    %249 = arith.addf %248, %247 : vector<1x384xf32>
    %250 = arith.divf %248, %249 : vector<1x384xf32>
    %251 = vector.extract_strided_slice %250 {offsets = [0, 0], sizes = [1, 128], strides = [1, 1]} : vector<1x384xf32> to vector<1x128xf32>
    %252 = vector.extract_strided_slice %250 {offsets = [0, 128], sizes = [1, 128], strides = [1, 1]} : vector<1x384xf32> to vector<1x128xf32>
    %253 = vector.extract_strided_slice %250 {offsets = [0, 256], sizes = [1, 128], strides = [1, 1]} : vector<1x384xf32> to vector<1x128xf32>
    %254 = vector.extract_strided_slice %244 {offsets = [0, 384], sizes = [1, 128], strides = [1, 1]} : vector<1x512xf32> to vector<1x128xf32>
    %255 = math.tanh %254 : vector<1x128xf32>
    %256 = arith.mulf %252, %216 : vector<1x128xf32>
    %257 = arith.mulf %251, %255 : vector<1x128xf32>
    %258 = arith.addf %256, %257 : vector<1x128xf32>
    %259 = math.tanh %258 : vector<1x128xf32>
    %260 = arith.mulf %253, %259 : vector<1x128xf32>
    %261 = tpu.concatenate %218, %239 in 1 : vector<1x128xf32>, vector<1x128xf32> -> vector<1x256xf32>
    %262 = arith.truncf %261 : vector<1x256xf32> to vector<1x256xbf16>
    %c0_56 = arith.constant 0 : index
    %c0_57 = arith.constant 0 : index
    %263 = vector.load %arg4[%c0_56, %c0_57] : memref<256x512xbf16, #tpu.memory_space<vmem>>, vector<256x512xbf16>
    %cst_58 = arith.constant dense<0.000000e+00> : vector<1x512xf32>
    %264 = tpu.matmul %262, %263, %cst_58 {dimension_numbers = #tpu.dot_dimension_numbers<[1], [0], [0], [1], [0, 0, 1, 1], [], []>} : vector<1x256xbf16>, vector<256x512xbf16>, vector<1x512xf32> -> vector<1x512xf32>
    %265 = arith.addf %264, %8 : vector<1x512xf32>
    %266 = vector.extract_strided_slice %265 {offsets = [0, 0], sizes = [1, 384], strides = [1, 1]} : vector<1x512xf32> to vector<1x384xf32>
    %267 = arith.negf %266 : vector<1x384xf32>
    %268 = math.exp %267 : vector<1x384xf32>
    %cst_59 = arith.constant 1.000000e+00 : f32
    %269 = vector.broadcast %cst_59 : f32 to vector<1x384xf32>
    %270 = arith.addf %269, %268 : vector<1x384xf32>
    %271 = arith.divf %269, %270 : vector<1x384xf32>
    %272 = vector.extract_strided_slice %271 {offsets = [0, 0], sizes = [1, 128], strides = [1, 1]} : vector<1x384xf32> to vector<1x128xf32>
    %273 = vector.extract_strided_slice %271 {offsets = [0, 128], sizes = [1, 128], strides = [1, 1]} : vector<1x384xf32> to vector<1x128xf32>
    %274 = vector.extract_strided_slice %271 {offsets = [0, 256], sizes = [1, 128], strides = [1, 1]} : vector<1x384xf32> to vector<1x128xf32>
    %275 = vector.extract_strided_slice %265 {offsets = [0, 384], sizes = [1, 128], strides = [1, 1]} : vector<1x512xf32> to vector<1x128xf32>
    %276 = math.tanh %275 : vector<1x128xf32>
    %277 = arith.mulf %273, %237 : vector<1x128xf32>
    %278 = arith.mulf %272, %276 : vector<1x128xf32>
    %279 = arith.addf %277, %278 : vector<1x128xf32>
    %280 = math.tanh %279 : vector<1x128xf32>
    %281 = arith.mulf %274, %280 : vector<1x128xf32>
    %282 = vector.extract_strided_slice %7 {offsets = [7, 0], sizes = [1, 512], strides = [1, 1]} : vector<8x512xf32> to vector<1x512xf32>
    %283 = arith.truncf %260 : vector<1x128xf32> to vector<1x128xbf16>
    %c0_60 = arith.constant 0 : index
    %c0_61 = arith.constant 0 : index
    %284 = vector.load %arg2[%c0_60, %c0_61] : memref<128x512xbf16, #tpu.memory_space<vmem>>, vector<128x512xbf16>
    %cst_62 = arith.constant dense<0.000000e+00> : vector<1x512xf32>
    %285 = tpu.matmul %283, %284, %cst_62 {dimension_numbers = #tpu.dot_dimension_numbers<[1], [0], [0], [1], [0, 0, 1, 1], [], []>} : vector<1x128xbf16>, vector<128x512xbf16>, vector<1x512xf32> -> vector<1x512xf32>
    %286 = arith.addf %282, %285 : vector<1x512xf32>
    %287 = vector.extract_strided_slice %286 {offsets = [0, 0], sizes = [1, 384], strides = [1, 1]} : vector<1x512xf32> to vector<1x384xf32>
    %288 = arith.negf %287 : vector<1x384xf32>
    %289 = math.exp %288 : vector<1x384xf32>
    %cst_63 = arith.constant 1.000000e+00 : f32
    %290 = vector.broadcast %cst_63 : f32 to vector<1x384xf32>
    %291 = arith.addf %290, %289 : vector<1x384xf32>
    %292 = arith.divf %290, %291 : vector<1x384xf32>
    %293 = vector.extract_strided_slice %292 {offsets = [0, 0], sizes = [1, 128], strides = [1, 1]} : vector<1x384xf32> to vector<1x128xf32>
    %294 = vector.extract_strided_slice %292 {offsets = [0, 128], sizes = [1, 128], strides = [1, 1]} : vector<1x384xf32> to vector<1x128xf32>
    %295 = vector.extract_strided_slice %292 {offsets = [0, 256], sizes = [1, 128], strides = [1, 1]} : vector<1x384xf32> to vector<1x128xf32>
    %296 = vector.extract_strided_slice %286 {offsets = [0, 384], sizes = [1, 128], strides = [1, 1]} : vector<1x512xf32> to vector<1x128xf32>
    %297 = math.tanh %296 : vector<1x128xf32>
    %298 = arith.mulf %294, %258 : vector<1x128xf32>
    %299 = arith.mulf %293, %297 : vector<1x128xf32>
    %300 = arith.addf %298, %299 : vector<1x128xf32>
    %301 = math.tanh %300 : vector<1x128xf32>
    %302 = arith.mulf %295, %301 : vector<1x128xf32>
    %303 = tpu.concatenate %260, %281 in 1 : vector<1x128xf32>, vector<1x128xf32> -> vector<1x256xf32>
    %304 = arith.truncf %303 : vector<1x256xf32> to vector<1x256xbf16>
    %c0_64 = arith.constant 0 : index
    %c0_65 = arith.constant 0 : index
    %305 = vector.load %arg4[%c0_64, %c0_65] : memref<256x512xbf16, #tpu.memory_space<vmem>>, vector<256x512xbf16>
    %cst_66 = arith.constant dense<0.000000e+00> : vector<1x512xf32>
    %306 = tpu.matmul %304, %305, %cst_66 {dimension_numbers = #tpu.dot_dimension_numbers<[1], [0], [0], [1], [0, 0, 1, 1], [], []>} : vector<1x256xbf16>, vector<256x512xbf16>, vector<1x512xf32> -> vector<1x512xf32>
    %307 = arith.addf %306, %8 : vector<1x512xf32>
    %308 = vector.extract_strided_slice %307 {offsets = [0, 0], sizes = [1, 384], strides = [1, 1]} : vector<1x512xf32> to vector<1x384xf32>
    %309 = arith.negf %308 : vector<1x384xf32>
    %310 = math.exp %309 : vector<1x384xf32>
    %cst_67 = arith.constant 1.000000e+00 : f32
    %311 = vector.broadcast %cst_67 : f32 to vector<1x384xf32>
    %312 = arith.addf %311, %310 : vector<1x384xf32>
    %313 = arith.divf %311, %312 : vector<1x384xf32>
    %314 = vector.extract_strided_slice %313 {offsets = [0, 0], sizes = [1, 128], strides = [1, 1]} : vector<1x384xf32> to vector<1x128xf32>
    %315 = vector.extract_strided_slice %313 {offsets = [0, 128], sizes = [1, 128], strides = [1, 1]} : vector<1x384xf32> to vector<1x128xf32>
    %316 = vector.extract_strided_slice %313 {offsets = [0, 256], sizes = [1, 128], strides = [1, 1]} : vector<1x384xf32> to vector<1x128xf32>
    %317 = vector.extract_strided_slice %307 {offsets = [0, 384], sizes = [1, 128], strides = [1, 1]} : vector<1x512xf32> to vector<1x128xf32>
    %318 = math.tanh %317 : vector<1x128xf32>
    %319 = arith.mulf %315, %279 : vector<1x128xf32>
    %320 = arith.mulf %314, %318 : vector<1x128xf32>
    %321 = arith.addf %319, %320 : vector<1x128xf32>
    %322 = math.tanh %321 : vector<1x128xf32>
    %323 = arith.mulf %316, %322 : vector<1x128xf32>
    %324 = tpu.concatenate %302, %323 in 1 : vector<1x128xf32>, vector<1x128xf32> -> vector<1x256xf32>
    %325 = arith.truncf %324 : vector<1x256xf32> to vector<1x256xbf16>
    %c0_68 = arith.constant 0 : index
    %c0_69 = arith.constant 0 : index
    %326 = vector.load %arg4[%c0_68, %c0_69] : memref<256x512xbf16, #tpu.memory_space<vmem>>, vector<256x512xbf16>
    %cst_70 = arith.constant dense<0.000000e+00> : vector<1x512xf32>
    %327 = tpu.matmul %325, %326, %cst_70 {dimension_numbers = #tpu.dot_dimension_numbers<[1], [0], [0], [1], [0, 0, 1, 1], [], []>} : vector<1x256xbf16>, vector<256x512xbf16>, vector<1x512xf32> -> vector<1x512xf32>
    %328 = arith.addf %327, %8 : vector<1x512xf32>
    %329 = vector.extract_strided_slice %328 {offsets = [0, 0], sizes = [1, 384], strides = [1, 1]} : vector<1x512xf32> to vector<1x384xf32>
    %330 = arith.negf %329 : vector<1x384xf32>
    %331 = math.exp %330 : vector<1x384xf32>
    %cst_71 = arith.constant 1.000000e+00 : f32
    %332 = vector.broadcast %cst_71 : f32 to vector<1x384xf32>
    %333 = arith.addf %332, %331 : vector<1x384xf32>
    %334 = arith.divf %332, %333 : vector<1x384xf32>
    %335 = vector.extract_strided_slice %334 {offsets = [0, 0], sizes = [1, 128], strides = [1, 1]} : vector<1x384xf32> to vector<1x128xf32>
    %336 = vector.extract_strided_slice %334 {offsets = [0, 128], sizes = [1, 128], strides = [1, 1]} : vector<1x384xf32> to vector<1x128xf32>
    %337 = vector.extract_strided_slice %334 {offsets = [0, 256], sizes = [1, 128], strides = [1, 1]} : vector<1x384xf32> to vector<1x128xf32>
    %338 = vector.extract_strided_slice %328 {offsets = [0, 384], sizes = [1, 128], strides = [1, 1]} : vector<1x512xf32> to vector<1x128xf32>
    %339 = math.tanh %338 : vector<1x128xf32>
    %340 = arith.mulf %336, %321 : vector<1x128xf32>
    %341 = arith.mulf %335, %339 : vector<1x128xf32>
    %342 = arith.addf %340, %341 : vector<1x128xf32>
    %343 = math.tanh %342 : vector<1x128xf32>
    %344 = arith.mulf %337, %343 : vector<1x128xf32>
    %345 = arith.truncf %344 : vector<1x128xf32> to vector<1x128xbf16>
    %c0_72 = arith.constant 0 : index
    %c0_73 = arith.constant 0 : index
    %346 = vector.load %arg6[%c0_72, %c0_73] : memref<128x512xbf16, #tpu.memory_space<vmem>>, vector<128x512xbf16>
    %cst_74 = arith.constant dense<0.000000e+00> : vector<1x512xf32>
    %347 = tpu.matmul %345, %346, %cst_74 {dimension_numbers = #tpu.dot_dimension_numbers<[1], [0], [0], [1], [0, 0, 1, 1], [], []>} : vector<1x128xbf16>, vector<128x512xbf16>, vector<1x512xf32> -> vector<1x512xf32>
    %c0_75 = arith.constant 0 : index
    %c0_76 = arith.constant 0 : index
    %348 = vector.load %arg8[%c0_75, %c0_76] : memref<1x512xf32, #tpu.memory_space<vmem>>, vector<1x512xf32>
    %349 = arith.addf %347, %348 : vector<1x512xf32>
    %c0_77 = arith.constant 0 : index
    %c0_78 = arith.constant 0 : index
    %350 = vector.load %arg10[%c0_77, %c0_78] : memref<1x512xf32, #tpu.memory_space<vmem>>, vector<1x512xf32>
    %351 = arith.truncf %0 : vector<1x128xf32> to vector<1x128xbf16>
    %c0_79 = arith.constant 0 : index
    %c0_80 = arith.constant 0 : index
    %352 = vector.load %arg7[%c0_79, %c0_80] : memref<128x512xbf16, #tpu.memory_space<vmem>>, vector<128x512xbf16>
    %cst_81 = arith.constant dense<0.000000e+00> : vector<1x512xf32>
    %353 = tpu.matmul %351, %352, %cst_81 {dimension_numbers = #tpu.dot_dimension_numbers<[1], [0], [0], [1], [0, 0, 1, 1], [], []>} : vector<1x128xbf16>, vector<128x512xbf16>, vector<1x512xf32> -> vector<1x512xf32>
    %354 = arith.addf %349, %353 : vector<1x512xf32>
    %355 = vector.extract_strided_slice %354 {offsets = [0, 0], sizes = [1, 384], strides = [1, 1]} : vector<1x512xf32> to vector<1x384xf32>
    %356 = arith.negf %355 : vector<1x384xf32>
    %357 = math.exp %356 : vector<1x384xf32>
    %cst_82 = arith.constant 1.000000e+00 : f32
    %358 = vector.broadcast %cst_82 : f32 to vector<1x384xf32>
    %359 = arith.addf %358, %357 : vector<1x384xf32>
    %360 = arith.divf %358, %359 : vector<1x384xf32>
    %361 = vector.extract_strided_slice %360 {offsets = [0, 0], sizes = [1, 128], strides = [1, 1]} : vector<1x384xf32> to vector<1x128xf32>
    %362 = vector.extract_strided_slice %360 {offsets = [0, 128], sizes = [1, 128], strides = [1, 1]} : vector<1x384xf32> to vector<1x128xf32>
    %363 = vector.extract_strided_slice %360 {offsets = [0, 256], sizes = [1, 128], strides = [1, 1]} : vector<1x384xf32> to vector<1x128xf32>
    %364 = vector.extract_strided_slice %354 {offsets = [0, 384], sizes = [1, 128], strides = [1, 1]} : vector<1x512xf32> to vector<1x128xf32>
    %365 = math.tanh %364 : vector<1x128xf32>
    %366 = arith.mulf %362, %0 : vector<1x128xf32>
    %367 = arith.mulf %361, %365 : vector<1x128xf32>
    %368 = arith.addf %366, %367 : vector<1x128xf32>
    %369 = math.tanh %368 : vector<1x128xf32>
    %370 = arith.mulf %363, %369 : vector<1x128xf32>
    %371 = arith.truncf %370 : vector<1x128xf32> to vector<1x128xbf16>
    %c0_83 = arith.constant 0 : index
    %c0_84 = arith.constant 0 : index
    %372 = vector.load %arg7[%c0_83, %c0_84] : memref<128x512xbf16, #tpu.memory_space<vmem>>, vector<128x512xbf16>
    %cst_85 = arith.constant dense<0.000000e+00> : vector<1x512xf32>
    %373 = tpu.matmul %371, %372, %cst_85 {dimension_numbers = #tpu.dot_dimension_numbers<[1], [0], [0], [1], [0, 0, 1, 1], [], []>} : vector<1x128xbf16>, vector<128x512xbf16>, vector<1x512xf32> -> vector<1x512xf32>
    %374 = arith.addf %349, %373 : vector<1x512xf32>
    %375 = vector.extract_strided_slice %374 {offsets = [0, 0], sizes = [1, 384], strides = [1, 1]} : vector<1x512xf32> to vector<1x384xf32>
    %376 = arith.negf %375 : vector<1x384xf32>
    %377 = math.exp %376 : vector<1x384xf32>
    %cst_86 = arith.constant 1.000000e+00 : f32
    %378 = vector.broadcast %cst_86 : f32 to vector<1x384xf32>
    %379 = arith.addf %378, %377 : vector<1x384xf32>
    %380 = arith.divf %378, %379 : vector<1x384xf32>
    %381 = vector.extract_strided_slice %380 {offsets = [0, 0], sizes = [1, 128], strides = [1, 1]} : vector<1x384xf32> to vector<1x128xf32>
    %382 = vector.extract_strided_slice %380 {offsets = [0, 128], sizes = [1, 128], strides = [1, 1]} : vector<1x384xf32> to vector<1x128xf32>
    %383 = vector.extract_strided_slice %380 {offsets = [0, 256], sizes = [1, 128], strides = [1, 1]} : vector<1x384xf32> to vector<1x128xf32>
    %384 = vector.extract_strided_slice %374 {offsets = [0, 384], sizes = [1, 128], strides = [1, 1]} : vector<1x512xf32> to vector<1x128xf32>
    %385 = math.tanh %384 : vector<1x128xf32>
    %386 = arith.mulf %382, %368 : vector<1x128xf32>
    %387 = arith.mulf %381, %385 : vector<1x128xf32>
    %388 = arith.addf %386, %387 : vector<1x128xf32>
    %389 = math.tanh %388 : vector<1x128xf32>
    %390 = arith.mulf %383, %389 : vector<1x128xf32>
    %391 = tpu.concatenate %370, %0 in 1 : vector<1x128xf32>, vector<1x128xf32> -> vector<1x256xf32>
    %392 = arith.truncf %391 : vector<1x256xf32> to vector<1x256xbf16>
    %c0_87 = arith.constant 0 : index
    %c0_88 = arith.constant 0 : index
    %393 = vector.load %arg9[%c0_87, %c0_88] : memref<256x512xbf16, #tpu.memory_space<vmem>>, vector<256x512xbf16>
    %cst_89 = arith.constant dense<0.000000e+00> : vector<1x512xf32>
    %394 = tpu.matmul %392, %393, %cst_89 {dimension_numbers = #tpu.dot_dimension_numbers<[1], [0], [0], [1], [0, 0, 1, 1], [], []>} : vector<1x256xbf16>, vector<256x512xbf16>, vector<1x512xf32> -> vector<1x512xf32>
    %395 = arith.addf %394, %350 : vector<1x512xf32>
    %396 = vector.extract_strided_slice %395 {offsets = [0, 0], sizes = [1, 384], strides = [1, 1]} : vector<1x512xf32> to vector<1x384xf32>
    %397 = arith.negf %396 : vector<1x384xf32>
    %398 = math.exp %397 : vector<1x384xf32>
    %cst_90 = arith.constant 1.000000e+00 : f32
    %399 = vector.broadcast %cst_90 : f32 to vector<1x384xf32>
    %400 = arith.addf %399, %398 : vector<1x384xf32>
    %401 = arith.divf %399, %400 : vector<1x384xf32>
    %402 = vector.extract_strided_slice %401 {offsets = [0, 0], sizes = [1, 128], strides = [1, 1]} : vector<1x384xf32> to vector<1x128xf32>
    %403 = vector.extract_strided_slice %401 {offsets = [0, 128], sizes = [1, 128], strides = [1, 1]} : vector<1x384xf32> to vector<1x128xf32>
    %404 = vector.extract_strided_slice %401 {offsets = [0, 256], sizes = [1, 128], strides = [1, 1]} : vector<1x384xf32> to vector<1x128xf32>
    %405 = vector.extract_strided_slice %395 {offsets = [0, 384], sizes = [1, 128], strides = [1, 1]} : vector<1x512xf32> to vector<1x128xf32>
    %406 = math.tanh %405 : vector<1x128xf32>
    %407 = arith.mulf %403, %0 : vector<1x128xf32>
    %408 = arith.mulf %402, %406 : vector<1x128xf32>
    %409 = arith.addf %407, %408 : vector<1x128xf32>
    %410 = math.tanh %409 : vector<1x128xf32>
    %411 = arith.mulf %404, %410 : vector<1x128xf32>
    %412 = arith.truncf %390 : vector<1x128xf32> to vector<1x128xbf16>
    %c0_91 = arith.constant 0 : index
    %c0_92 = arith.constant 0 : index
    %413 = vector.load %arg7[%c0_91, %c0_92] : memref<128x512xbf16, #tpu.memory_space<vmem>>, vector<128x512xbf16>
    %cst_93 = arith.constant dense<0.000000e+00> : vector<1x512xf32>
    %414 = tpu.matmul %412, %413, %cst_93 {dimension_numbers = #tpu.dot_dimension_numbers<[1], [0], [0], [1], [0, 0, 1, 1], [], []>} : vector<1x128xbf16>, vector<128x512xbf16>, vector<1x512xf32> -> vector<1x512xf32>
    %415 = arith.addf %349, %414 : vector<1x512xf32>
    %416 = vector.extract_strided_slice %415 {offsets = [0, 0], sizes = [1, 384], strides = [1, 1]} : vector<1x512xf32> to vector<1x384xf32>
    %417 = arith.negf %416 : vector<1x384xf32>
    %418 = math.exp %417 : vector<1x384xf32>
    %cst_94 = arith.constant 1.000000e+00 : f32
    %419 = vector.broadcast %cst_94 : f32 to vector<1x384xf32>
    %420 = arith.addf %419, %418 : vector<1x384xf32>
    %421 = arith.divf %419, %420 : vector<1x384xf32>
    %422 = vector.extract_strided_slice %421 {offsets = [0, 0], sizes = [1, 128], strides = [1, 1]} : vector<1x384xf32> to vector<1x128xf32>
    %423 = vector.extract_strided_slice %421 {offsets = [0, 128], sizes = [1, 128], strides = [1, 1]} : vector<1x384xf32> to vector<1x128xf32>
    %424 = vector.extract_strided_slice %421 {offsets = [0, 256], sizes = [1, 128], strides = [1, 1]} : vector<1x384xf32> to vector<1x128xf32>
    %425 = vector.extract_strided_slice %415 {offsets = [0, 384], sizes = [1, 128], strides = [1, 1]} : vector<1x512xf32> to vector<1x128xf32>
    %426 = math.tanh %425 : vector<1x128xf32>
    %427 = arith.mulf %423, %388 : vector<1x128xf32>
    %428 = arith.mulf %422, %426 : vector<1x128xf32>
    %429 = arith.addf %427, %428 : vector<1x128xf32>
    %430 = math.tanh %429 : vector<1x128xf32>
    %431 = arith.mulf %424, %430 : vector<1x128xf32>
    %432 = tpu.concatenate %390, %411 in 1 : vector<1x128xf32>, vector<1x128xf32> -> vector<1x256xf32>
    %433 = arith.truncf %432 : vector<1x256xf32> to vector<1x256xbf16>
    %c0_95 = arith.constant 0 : index
    %c0_96 = arith.constant 0 : index
    %434 = vector.load %arg9[%c0_95, %c0_96] : memref<256x512xbf16, #tpu.memory_space<vmem>>, vector<256x512xbf16>
    %cst_97 = arith.constant dense<0.000000e+00> : vector<1x512xf32>
    %435 = tpu.matmul %433, %434, %cst_97 {dimension_numbers = #tpu.dot_dimension_numbers<[1], [0], [0], [1], [0, 0, 1, 1], [], []>} : vector<1x256xbf16>, vector<256x512xbf16>, vector<1x512xf32> -> vector<1x512xf32>
    %436 = arith.addf %435, %350 : vector<1x512xf32>
    %437 = vector.extract_strided_slice %436 {offsets = [0, 0], sizes = [1, 384], strides = [1, 1]} : vector<1x512xf32> to vector<1x384xf32>
    %438 = arith.negf %437 : vector<1x384xf32>
    %439 = math.exp %438 : vector<1x384xf32>
    %cst_98 = arith.constant 1.000000e+00 : f32
    %440 = vector.broadcast %cst_98 : f32 to vector<1x384xf32>
    %441 = arith.addf %440, %439 : vector<1x384xf32>
    %442 = arith.divf %440, %441 : vector<1x384xf32>
    %443 = vector.extract_strided_slice %442 {offsets = [0, 0], sizes = [1, 128], strides = [1, 1]} : vector<1x384xf32> to vector<1x128xf32>
    %444 = vector.extract_strided_slice %442 {offsets = [0, 128], sizes = [1, 128], strides = [1, 1]} : vector<1x384xf32> to vector<1x128xf32>
    %445 = vector.extract_strided_slice %442 {offsets = [0, 256], sizes = [1, 128], strides = [1, 1]} : vector<1x384xf32> to vector<1x128xf32>
    %446 = vector.extract_strided_slice %436 {offsets = [0, 384], sizes = [1, 128], strides = [1, 1]} : vector<1x512xf32> to vector<1x128xf32>
    %447 = math.tanh %446 : vector<1x128xf32>
    %448 = arith.mulf %444, %409 : vector<1x128xf32>
    %449 = arith.mulf %443, %447 : vector<1x128xf32>
    %450 = arith.addf %448, %449 : vector<1x128xf32>
    %451 = math.tanh %450 : vector<1x128xf32>
    %452 = arith.mulf %445, %451 : vector<1x128xf32>
    %453 = arith.truncf %431 : vector<1x128xf32> to vector<1x128xbf16>
    %c0_99 = arith.constant 0 : index
    %c0_100 = arith.constant 0 : index
    %454 = vector.load %arg7[%c0_99, %c0_100] : memref<128x512xbf16, #tpu.memory_space<vmem>>, vector<128x512xbf16>
    %cst_101 = arith.constant dense<0.000000e+00> : vector<1x512xf32>
    %455 = tpu.matmul %453, %454, %cst_101 {dimension_numbers = #tpu.dot_dimension_numbers<[1], [0], [0], [1], [0, 0, 1, 1], [], []>} : vector<1x128xbf16>, vector<128x512xbf16>, vector<1x512xf32> -> vector<1x512xf32>
    %456 = arith.addf %349, %455 : vector<1x512xf32>
    %457 = vector.extract_strided_slice %456 {offsets = [0, 0], sizes = [1, 384], strides = [1, 1]} : vector<1x512xf32> to vector<1x384xf32>
    %458 = arith.negf %457 : vector<1x384xf32>
    %459 = math.exp %458 : vector<1x384xf32>
    %cst_102 = arith.constant 1.000000e+00 : f32
    %460 = vector.broadcast %cst_102 : f32 to vector<1x384xf32>
    %461 = arith.addf %460, %459 : vector<1x384xf32>
    %462 = arith.divf %460, %461 : vector<1x384xf32>
    %463 = vector.extract_strided_slice %462 {offsets = [0, 0], sizes = [1, 128], strides = [1, 1]} : vector<1x384xf32> to vector<1x128xf32>
    %464 = vector.extract_strided_slice %462 {offsets = [0, 128], sizes = [1, 128], strides = [1, 1]} : vector<1x384xf32> to vector<1x128xf32>
    %465 = vector.extract_strided_slice %462 {offsets = [0, 256], sizes = [1, 128], strides = [1, 1]} : vector<1x384xf32> to vector<1x128xf32>
    %466 = vector.extract_strided_slice %456 {offsets = [0, 384], sizes = [1, 128], strides = [1, 1]} : vector<1x512xf32> to vector<1x128xf32>
    %467 = math.tanh %466 : vector<1x128xf32>
    %468 = arith.mulf %464, %429 : vector<1x128xf32>
    %469 = arith.mulf %463, %467 : vector<1x128xf32>
    %470 = arith.addf %468, %469 : vector<1x128xf32>
    %471 = math.tanh %470 : vector<1x128xf32>
    %472 = arith.mulf %465, %471 : vector<1x128xf32>
    %473 = tpu.concatenate %431, %452 in 1 : vector<1x128xf32>, vector<1x128xf32> -> vector<1x256xf32>
    %474 = arith.truncf %473 : vector<1x256xf32> to vector<1x256xbf16>
    %c0_103 = arith.constant 0 : index
    %c0_104 = arith.constant 0 : index
    %475 = vector.load %arg9[%c0_103, %c0_104] : memref<256x512xbf16, #tpu.memory_space<vmem>>, vector<256x512xbf16>
    %cst_105 = arith.constant dense<0.000000e+00> : vector<1x512xf32>
    %476 = tpu.matmul %474, %475, %cst_105 {dimension_numbers = #tpu.dot_dimension_numbers<[1], [0], [0], [1], [0, 0, 1, 1], [], []>} : vector<1x256xbf16>, vector<256x512xbf16>, vector<1x512xf32> -> vector<1x512xf32>
    %477 = arith.addf %476, %350 : vector<1x512xf32>
    %478 = vector.extract_strided_slice %477 {offsets = [0, 0], sizes = [1, 384], strides = [1, 1]} : vector<1x512xf32> to vector<1x384xf32>
    %479 = arith.negf %478 : vector<1x384xf32>
    %480 = math.exp %479 : vector<1x384xf32>
    %cst_106 = arith.constant 1.000000e+00 : f32
    %481 = vector.broadcast %cst_106 : f32 to vector<1x384xf32>
    %482 = arith.addf %481, %480 : vector<1x384xf32>
    %483 = arith.divf %481, %482 : vector<1x384xf32>
    %484 = vector.extract_strided_slice %483 {offsets = [0, 0], sizes = [1, 128], strides = [1, 1]} : vector<1x384xf32> to vector<1x128xf32>
    %485 = vector.extract_strided_slice %483 {offsets = [0, 128], sizes = [1, 128], strides = [1, 1]} : vector<1x384xf32> to vector<1x128xf32>
    %486 = vector.extract_strided_slice %483 {offsets = [0, 256], sizes = [1, 128], strides = [1, 1]} : vector<1x384xf32> to vector<1x128xf32>
    %487 = vector.extract_strided_slice %477 {offsets = [0, 384], sizes = [1, 128], strides = [1, 1]} : vector<1x512xf32> to vector<1x128xf32>
    %488 = math.tanh %487 : vector<1x128xf32>
    %489 = arith.mulf %485, %450 : vector<1x128xf32>
    %490 = arith.mulf %484, %488 : vector<1x128xf32>
    %491 = arith.addf %489, %490 : vector<1x128xf32>
    %492 = math.tanh %491 : vector<1x128xf32>
    %493 = arith.mulf %486, %492 : vector<1x128xf32>
    %494 = arith.truncf %472 : vector<1x128xf32> to vector<1x128xbf16>
    %c0_107 = arith.constant 0 : index
    %c0_108 = arith.constant 0 : index
    %495 = vector.load %arg7[%c0_107, %c0_108] : memref<128x512xbf16, #tpu.memory_space<vmem>>, vector<128x512xbf16>
    %cst_109 = arith.constant dense<0.000000e+00> : vector<1x512xf32>
    %496 = tpu.matmul %494, %495, %cst_109 {dimension_numbers = #tpu.dot_dimension_numbers<[1], [0], [0], [1], [0, 0, 1, 1], [], []>} : vector<1x128xbf16>, vector<128x512xbf16>, vector<1x512xf32> -> vector<1x512xf32>
    %497 = arith.addf %349, %496 : vector<1x512xf32>
    %498 = vector.extract_strided_slice %497 {offsets = [0, 0], sizes = [1, 384], strides = [1, 1]} : vector<1x512xf32> to vector<1x384xf32>
    %499 = arith.negf %498 : vector<1x384xf32>
    %500 = math.exp %499 : vector<1x384xf32>
    %cst_110 = arith.constant 1.000000e+00 : f32
    %501 = vector.broadcast %cst_110 : f32 to vector<1x384xf32>
    %502 = arith.addf %501, %500 : vector<1x384xf32>
    %503 = arith.divf %501, %502 : vector<1x384xf32>
    %504 = vector.extract_strided_slice %503 {offsets = [0, 0], sizes = [1, 128], strides = [1, 1]} : vector<1x384xf32> to vector<1x128xf32>
    %505 = vector.extract_strided_slice %503 {offsets = [0, 128], sizes = [1, 128], strides = [1, 1]} : vector<1x384xf32> to vector<1x128xf32>
    %506 = vector.extract_strided_slice %503 {offsets = [0, 256], sizes = [1, 128], strides = [1, 1]} : vector<1x384xf32> to vector<1x128xf32>
    %507 = vector.extract_strided_slice %497 {offsets = [0, 384], sizes = [1, 128], strides = [1, 1]} : vector<1x512xf32> to vector<1x128xf32>
    %508 = math.tanh %507 : vector<1x128xf32>
    %509 = arith.mulf %505, %470 : vector<1x128xf32>
    %510 = arith.mulf %504, %508 : vector<1x128xf32>
    %511 = arith.addf %509, %510 : vector<1x128xf32>
    %512 = math.tanh %511 : vector<1x128xf32>
    %513 = arith.mulf %506, %512 : vector<1x128xf32>
    %514 = tpu.concatenate %472, %493 in 1 : vector<1x128xf32>, vector<1x128xf32> -> vector<1x256xf32>
    %515 = arith.truncf %514 : vector<1x256xf32> to vector<1x256xbf16>
    %c0_111 = arith.constant 0 : index
    %c0_112 = arith.constant 0 : index
    %516 = vector.load %arg9[%c0_111, %c0_112] : memref<256x512xbf16, #tpu.memory_space<vmem>>, vector<256x512xbf16>
    %cst_113 = arith.constant dense<0.000000e+00> : vector<1x512xf32>
    %517 = tpu.matmul %515, %516, %cst_113 {dimension_numbers = #tpu.dot_dimension_numbers<[1], [0], [0], [1], [0, 0, 1, 1], [], []>} : vector<1x256xbf16>, vector<256x512xbf16>, vector<1x512xf32> -> vector<1x512xf32>
    %518 = arith.addf %517, %350 : vector<1x512xf32>
    %519 = vector.extract_strided_slice %518 {offsets = [0, 0], sizes = [1, 384], strides = [1, 1]} : vector<1x512xf32> to vector<1x384xf32>
    %520 = arith.negf %519 : vector<1x384xf32>
    %521 = math.exp %520 : vector<1x384xf32>
    %cst_114 = arith.constant 1.000000e+00 : f32
    %522 = vector.broadcast %cst_114 : f32 to vector<1x384xf32>
    %523 = arith.addf %522, %521 : vector<1x384xf32>
    %524 = arith.divf %522, %523 : vector<1x384xf32>
    %525 = vector.extract_strided_slice %524 {offsets = [0, 0], sizes = [1, 128], strides = [1, 1]} : vector<1x384xf32> to vector<1x128xf32>
    %526 = vector.extract_strided_slice %524 {offsets = [0, 128], sizes = [1, 128], strides = [1, 1]} : vector<1x384xf32> to vector<1x128xf32>
    %527 = vector.extract_strided_slice %524 {offsets = [0, 256], sizes = [1, 128], strides = [1, 1]} : vector<1x384xf32> to vector<1x128xf32>
    %528 = vector.extract_strided_slice %518 {offsets = [0, 384], sizes = [1, 128], strides = [1, 1]} : vector<1x512xf32> to vector<1x128xf32>
    %529 = math.tanh %528 : vector<1x128xf32>
    %530 = arith.mulf %526, %491 : vector<1x128xf32>
    %531 = arith.mulf %525, %529 : vector<1x128xf32>
    %532 = arith.addf %530, %531 : vector<1x128xf32>
    %533 = math.tanh %532 : vector<1x128xf32>
    %534 = arith.mulf %527, %533 : vector<1x128xf32>
    %535 = arith.truncf %513 : vector<1x128xf32> to vector<1x128xbf16>
    %c0_115 = arith.constant 0 : index
    %c0_116 = arith.constant 0 : index
    %536 = vector.load %arg7[%c0_115, %c0_116] : memref<128x512xbf16, #tpu.memory_space<vmem>>, vector<128x512xbf16>
    %cst_117 = arith.constant dense<0.000000e+00> : vector<1x512xf32>
    %537 = tpu.matmul %535, %536, %cst_117 {dimension_numbers = #tpu.dot_dimension_numbers<[1], [0], [0], [1], [0, 0, 1, 1], [], []>} : vector<1x128xbf16>, vector<128x512xbf16>, vector<1x512xf32> -> vector<1x512xf32>
    %538 = arith.addf %349, %537 : vector<1x512xf32>
    %539 = vector.extract_strided_slice %538 {offsets = [0, 0], sizes = [1, 384], strides = [1, 1]} : vector<1x512xf32> to vector<1x384xf32>
    %540 = arith.negf %539 : vector<1x384xf32>
    %541 = math.exp %540 : vector<1x384xf32>
    %cst_118 = arith.constant 1.000000e+00 : f32
    %542 = vector.broadcast %cst_118 : f32 to vector<1x384xf32>
    %543 = arith.addf %542, %541 : vector<1x384xf32>
    %544 = arith.divf %542, %543 : vector<1x384xf32>
    %545 = vector.extract_strided_slice %544 {offsets = [0, 0], sizes = [1, 128], strides = [1, 1]} : vector<1x384xf32> to vector<1x128xf32>
    %546 = vector.extract_strided_slice %544 {offsets = [0, 128], sizes = [1, 128], strides = [1, 1]} : vector<1x384xf32> to vector<1x128xf32>
    %547 = vector.extract_strided_slice %544 {offsets = [0, 256], sizes = [1, 128], strides = [1, 1]} : vector<1x384xf32> to vector<1x128xf32>
    %548 = vector.extract_strided_slice %538 {offsets = [0, 384], sizes = [1, 128], strides = [1, 1]} : vector<1x512xf32> to vector<1x128xf32>
    %549 = math.tanh %548 : vector<1x128xf32>
    %550 = arith.mulf %546, %511 : vector<1x128xf32>
    %551 = arith.mulf %545, %549 : vector<1x128xf32>
    %552 = arith.addf %550, %551 : vector<1x128xf32>
    %553 = math.tanh %552 : vector<1x128xf32>
    %554 = arith.mulf %547, %553 : vector<1x128xf32>
    %555 = tpu.concatenate %513, %534 in 1 : vector<1x128xf32>, vector<1x128xf32> -> vector<1x256xf32>
    %556 = arith.truncf %555 : vector<1x256xf32> to vector<1x256xbf16>
    %c0_119 = arith.constant 0 : index
    %c0_120 = arith.constant 0 : index
    %557 = vector.load %arg9[%c0_119, %c0_120] : memref<256x512xbf16, #tpu.memory_space<vmem>>, vector<256x512xbf16>
    %cst_121 = arith.constant dense<0.000000e+00> : vector<1x512xf32>
    %558 = tpu.matmul %556, %557, %cst_121 {dimension_numbers = #tpu.dot_dimension_numbers<[1], [0], [0], [1], [0, 0, 1, 1], [], []>} : vector<1x256xbf16>, vector<256x512xbf16>, vector<1x512xf32> -> vector<1x512xf32>
    %559 = arith.addf %558, %350 : vector<1x512xf32>
    %560 = vector.extract_strided_slice %559 {offsets = [0, 0], sizes = [1, 384], strides = [1, 1]} : vector<1x512xf32> to vector<1x384xf32>
    %561 = arith.negf %560 : vector<1x384xf32>
    %562 = math.exp %561 : vector<1x384xf32>
    %cst_122 = arith.constant 1.000000e+00 : f32
    %563 = vector.broadcast %cst_122 : f32 to vector<1x384xf32>
    %564 = arith.addf %563, %562 : vector<1x384xf32>
    %565 = arith.divf %563, %564 : vector<1x384xf32>
    %566 = vector.extract_strided_slice %565 {offsets = [0, 0], sizes = [1, 128], strides = [1, 1]} : vector<1x384xf32> to vector<1x128xf32>
    %567 = vector.extract_strided_slice %565 {offsets = [0, 128], sizes = [1, 128], strides = [1, 1]} : vector<1x384xf32> to vector<1x128xf32>
    %568 = vector.extract_strided_slice %565 {offsets = [0, 256], sizes = [1, 128], strides = [1, 1]} : vector<1x384xf32> to vector<1x128xf32>
    %569 = vector.extract_strided_slice %559 {offsets = [0, 384], sizes = [1, 128], strides = [1, 1]} : vector<1x512xf32> to vector<1x128xf32>
    %570 = math.tanh %569 : vector<1x128xf32>
    %571 = arith.mulf %567, %532 : vector<1x128xf32>
    %572 = arith.mulf %566, %570 : vector<1x128xf32>
    %573 = arith.addf %571, %572 : vector<1x128xf32>
    %574 = math.tanh %573 : vector<1x128xf32>
    %575 = arith.mulf %568, %574 : vector<1x128xf32>
    %576 = arith.truncf %554 : vector<1x128xf32> to vector<1x128xbf16>
    %c0_123 = arith.constant 0 : index
    %c0_124 = arith.constant 0 : index
    %577 = vector.load %arg7[%c0_123, %c0_124] : memref<128x512xbf16, #tpu.memory_space<vmem>>, vector<128x512xbf16>
    %cst_125 = arith.constant dense<0.000000e+00> : vector<1x512xf32>
    %578 = tpu.matmul %576, %577, %cst_125 {dimension_numbers = #tpu.dot_dimension_numbers<[1], [0], [0], [1], [0, 0, 1, 1], [], []>} : vector<1x128xbf16>, vector<128x512xbf16>, vector<1x512xf32> -> vector<1x512xf32>
    %579 = arith.addf %349, %578 : vector<1x512xf32>
    %580 = vector.extract_strided_slice %579 {offsets = [0, 0], sizes = [1, 384], strides = [1, 1]} : vector<1x512xf32> to vector<1x384xf32>
    %581 = arith.negf %580 : vector<1x384xf32>
    %582 = math.exp %581 : vector<1x384xf32>
    %cst_126 = arith.constant 1.000000e+00 : f32
    %583 = vector.broadcast %cst_126 : f32 to vector<1x384xf32>
    %584 = arith.addf %583, %582 : vector<1x384xf32>
    %585 = arith.divf %583, %584 : vector<1x384xf32>
    %586 = vector.extract_strided_slice %585 {offsets = [0, 0], sizes = [1, 128], strides = [1, 1]} : vector<1x384xf32> to vector<1x128xf32>
    %587 = vector.extract_strided_slice %585 {offsets = [0, 128], sizes = [1, 128], strides = [1, 1]} : vector<1x384xf32> to vector<1x128xf32>
    %588 = vector.extract_strided_slice %585 {offsets = [0, 256], sizes = [1, 128], strides = [1, 1]} : vector<1x384xf32> to vector<1x128xf32>
    %589 = vector.extract_strided_slice %579 {offsets = [0, 384], sizes = [1, 128], strides = [1, 1]} : vector<1x512xf32> to vector<1x128xf32>
    %590 = math.tanh %589 : vector<1x128xf32>
    %591 = arith.mulf %587, %552 : vector<1x128xf32>
    %592 = arith.mulf %586, %590 : vector<1x128xf32>
    %593 = arith.addf %591, %592 : vector<1x128xf32>
    %594 = math.tanh %593 : vector<1x128xf32>
    %595 = arith.mulf %588, %594 : vector<1x128xf32>
    %596 = tpu.concatenate %554, %575 in 1 : vector<1x128xf32>, vector<1x128xf32> -> vector<1x256xf32>
    %597 = arith.truncf %596 : vector<1x256xf32> to vector<1x256xbf16>
    %c0_127 = arith.constant 0 : index
    %c0_128 = arith.constant 0 : index
    %598 = vector.load %arg9[%c0_127, %c0_128] : memref<256x512xbf16, #tpu.memory_space<vmem>>, vector<256x512xbf16>
    %cst_129 = arith.constant dense<0.000000e+00> : vector<1x512xf32>
    %599 = tpu.matmul %597, %598, %cst_129 {dimension_numbers = #tpu.dot_dimension_numbers<[1], [0], [0], [1], [0, 0, 1, 1], [], []>} : vector<1x256xbf16>, vector<256x512xbf16>, vector<1x512xf32> -> vector<1x512xf32>
    %600 = arith.addf %599, %350 : vector<1x512xf32>
    %601 = vector.extract_strided_slice %600 {offsets = [0, 0], sizes = [1, 384], strides = [1, 1]} : vector<1x512xf32> to vector<1x384xf32>
    %602 = arith.negf %601 : vector<1x384xf32>
    %603 = math.exp %602 : vector<1x384xf32>
    %cst_130 = arith.constant 1.000000e+00 : f32
    %604 = vector.broadcast %cst_130 : f32 to vector<1x384xf32>
    %605 = arith.addf %604, %603 : vector<1x384xf32>
    %606 = arith.divf %604, %605 : vector<1x384xf32>
    %607 = vector.extract_strided_slice %606 {offsets = [0, 0], sizes = [1, 128], strides = [1, 1]} : vector<1x384xf32> to vector<1x128xf32>
    %608 = vector.extract_strided_slice %606 {offsets = [0, 128], sizes = [1, 128], strides = [1, 1]} : vector<1x384xf32> to vector<1x128xf32>
    %609 = vector.extract_strided_slice %606 {offsets = [0, 256], sizes = [1, 128], strides = [1, 1]} : vector<1x384xf32> to vector<1x128xf32>
    %610 = vector.extract_strided_slice %600 {offsets = [0, 384], sizes = [1, 128], strides = [1, 1]} : vector<1x512xf32> to vector<1x128xf32>
    %611 = math.tanh %610 : vector<1x128xf32>
    %612 = arith.mulf %608, %573 : vector<1x128xf32>
    %613 = arith.mulf %607, %611 : vector<1x128xf32>
    %614 = arith.addf %612, %613 : vector<1x128xf32>
    %615 = math.tanh %614 : vector<1x128xf32>
    %616 = arith.mulf %609, %615 : vector<1x128xf32>
    %617 = arith.truncf %595 : vector<1x128xf32> to vector<1x128xbf16>
    %c0_131 = arith.constant 0 : index
    %c0_132 = arith.constant 0 : index
    %618 = vector.load %arg7[%c0_131, %c0_132] : memref<128x512xbf16, #tpu.memory_space<vmem>>, vector<128x512xbf16>
    %cst_133 = arith.constant dense<0.000000e+00> : vector<1x512xf32>
    %619 = tpu.matmul %617, %618, %cst_133 {dimension_numbers = #tpu.dot_dimension_numbers<[1], [0], [0], [1], [0, 0, 1, 1], [], []>} : vector<1x128xbf16>, vector<128x512xbf16>, vector<1x512xf32> -> vector<1x512xf32>
    %620 = arith.addf %349, %619 : vector<1x512xf32>
    %621 = vector.extract_strided_slice %620 {offsets = [0, 0], sizes = [1, 384], strides = [1, 1]} : vector<1x512xf32> to vector<1x384xf32>
    %622 = arith.negf %621 : vector<1x384xf32>
    %623 = math.exp %622 : vector<1x384xf32>
    %cst_134 = arith.constant 1.000000e+00 : f32
    %624 = vector.broadcast %cst_134 : f32 to vector<1x384xf32>
    %625 = arith.addf %624, %623 : vector<1x384xf32>
    %626 = arith.divf %624, %625 : vector<1x384xf32>
    %627 = vector.extract_strided_slice %626 {offsets = [0, 0], sizes = [1, 128], strides = [1, 1]} : vector<1x384xf32> to vector<1x128xf32>
    %628 = vector.extract_strided_slice %626 {offsets = [0, 128], sizes = [1, 128], strides = [1, 1]} : vector<1x384xf32> to vector<1x128xf32>
    %629 = vector.extract_strided_slice %626 {offsets = [0, 256], sizes = [1, 128], strides = [1, 1]} : vector<1x384xf32> to vector<1x128xf32>
    %630 = vector.extract_strided_slice %620 {offsets = [0, 384], sizes = [1, 128], strides = [1, 1]} : vector<1x512xf32> to vector<1x128xf32>
    %631 = math.tanh %630 : vector<1x128xf32>
    %632 = arith.mulf %628, %593 : vector<1x128xf32>
    %633 = arith.mulf %627, %631 : vector<1x128xf32>
    %634 = arith.addf %632, %633 : vector<1x128xf32>
    %635 = math.tanh %634 : vector<1x128xf32>
    %636 = arith.mulf %629, %635 : vector<1x128xf32>
    %637 = tpu.concatenate %595, %616 in 1 : vector<1x128xf32>, vector<1x128xf32> -> vector<1x256xf32>
    %638 = arith.truncf %637 : vector<1x256xf32> to vector<1x256xbf16>
    %c0_135 = arith.constant 0 : index
    %c0_136 = arith.constant 0 : index
    %639 = vector.load %arg9[%c0_135, %c0_136] : memref<256x512xbf16, #tpu.memory_space<vmem>>, vector<256x512xbf16>
    %cst_137 = arith.constant dense<0.000000e+00> : vector<1x512xf32>
    %640 = tpu.matmul %638, %639, %cst_137 {dimension_numbers = #tpu.dot_dimension_numbers<[1], [0], [0], [1], [0, 0, 1, 1], [], []>} : vector<1x256xbf16>, vector<256x512xbf16>, vector<1x512xf32> -> vector<1x512xf32>
    %641 = arith.addf %640, %350 : vector<1x512xf32>
    %642 = vector.extract_strided_slice %641 {offsets = [0, 0], sizes = [1, 384], strides = [1, 1]} : vector<1x512xf32> to vector<1x384xf32>
    %643 = arith.negf %642 : vector<1x384xf32>
    %644 = math.exp %643 : vector<1x384xf32>
    %cst_138 = arith.constant 1.000000e+00 : f32
    %645 = vector.broadcast %cst_138 : f32 to vector<1x384xf32>
    %646 = arith.addf %645, %644 : vector<1x384xf32>
    %647 = arith.divf %645, %646 : vector<1x384xf32>
    %648 = vector.extract_strided_slice %647 {offsets = [0, 0], sizes = [1, 128], strides = [1, 1]} : vector<1x384xf32> to vector<1x128xf32>
    %649 = vector.extract_strided_slice %647 {offsets = [0, 128], sizes = [1, 128], strides = [1, 1]} : vector<1x384xf32> to vector<1x128xf32>
    %650 = vector.extract_strided_slice %647 {offsets = [0, 256], sizes = [1, 128], strides = [1, 1]} : vector<1x384xf32> to vector<1x128xf32>
    %651 = vector.extract_strided_slice %641 {offsets = [0, 384], sizes = [1, 128], strides = [1, 1]} : vector<1x512xf32> to vector<1x128xf32>
    %652 = math.tanh %651 : vector<1x128xf32>
    %653 = arith.mulf %649, %614 : vector<1x128xf32>
    %654 = arith.mulf %648, %652 : vector<1x128xf32>
    %655 = arith.addf %653, %654 : vector<1x128xf32>
    %656 = math.tanh %655 : vector<1x128xf32>
    %657 = arith.mulf %650, %656 : vector<1x128xf32>
    %658 = tpu.concatenate %636, %657 in 1 : vector<1x128xf32>, vector<1x128xf32> -> vector<1x256xf32>
    %659 = arith.truncf %658 : vector<1x256xf32> to vector<1x256xbf16>
    %c0_139 = arith.constant 0 : index
    %c0_140 = arith.constant 0 : index
    %660 = vector.load %arg9[%c0_139, %c0_140] : memref<256x512xbf16, #tpu.memory_space<vmem>>, vector<256x512xbf16>
    %cst_141 = arith.constant dense<0.000000e+00> : vector<1x512xf32>
    %661 = tpu.matmul %659, %660, %cst_141 {dimension_numbers = #tpu.dot_dimension_numbers<[1], [0], [0], [1], [0, 0, 1, 1], [], []>} : vector<1x256xbf16>, vector<256x512xbf16>, vector<1x512xf32> -> vector<1x512xf32>
    %662 = arith.addf %661, %350 : vector<1x512xf32>
    %663 = vector.extract_strided_slice %662 {offsets = [0, 0], sizes = [1, 384], strides = [1, 1]} : vector<1x512xf32> to vector<1x384xf32>
    %664 = arith.negf %663 : vector<1x384xf32>
    %665 = math.exp %664 : vector<1x384xf32>
    %cst_142 = arith.constant 1.000000e+00 : f32
    %666 = vector.broadcast %cst_142 : f32 to vector<1x384xf32>
    %667 = arith.addf %666, %665 : vector<1x384xf32>
    %668 = arith.divf %666, %667 : vector<1x384xf32>
    %669 = vector.extract_strided_slice %668 {offsets = [0, 0], sizes = [1, 128], strides = [1, 1]} : vector<1x384xf32> to vector<1x128xf32>
    %670 = vector.extract_strided_slice %668 {offsets = [0, 128], sizes = [1, 128], strides = [1, 1]} : vector<1x384xf32> to vector<1x128xf32>
    %671 = vector.extract_strided_slice %668 {offsets = [0, 256], sizes = [1, 128], strides = [1, 1]} : vector<1x384xf32> to vector<1x128xf32>
    %672 = vector.extract_strided_slice %662 {offsets = [0, 384], sizes = [1, 128], strides = [1, 1]} : vector<1x512xf32> to vector<1x128xf32>
    %673 = math.tanh %672 : vector<1x128xf32>
    %674 = arith.mulf %670, %655 : vector<1x128xf32>
    %675 = arith.mulf %669, %673 : vector<1x128xf32>
    %676 = arith.addf %674, %675 : vector<1x128xf32>
    %677 = math.tanh %676 : vector<1x128xf32>
    %678 = arith.mulf %671, %677 : vector<1x128xf32>
    %679 = tpu.concatenate %411, %452, %493, %534, %575, %616, %657, %678 in 0 : vector<1x128xf32>, vector<1x128xf32>, vector<1x128xf32>, vector<1x128xf32>, vector<1x128xf32>, vector<1x128xf32>, vector<1x128xf32>, vector<1x128xf32> -> vector<8x128xf32>
    %c0_143 = arith.constant 0 : index
    %c0_144 = arith.constant 0 : index
    %680 = vector.load %arg11[%c0_143, %c0_144] : memref<128x1xf32, #tpu.memory_space<vmem>>, vector<128x1xf32>
    %cst_145 = arith.constant dense<0.000000e+00> : vector<8x1xf32>
    %681 = tpu.matmul %679, %680, %cst_145 {dimension_numbers = #tpu.dot_dimension_numbers<[1], [0], [0], [1], [0, 0, 1, 1], [], []>} : vector<8x128xf32>, vector<128x1xf32>, vector<8x1xf32> -> vector<8x1xf32>
    %c0_146 = arith.constant 0 : index
    %c0_147 = arith.constant 0 : index
    %682 = vector.load %arg12[%c0_146, %c0_147] : memref<1x1xf32, #tpu.memory_space<vmem>>, vector<1x1xf32>
    %683 = vector.broadcast %682 : vector<1x1xf32> to vector<8x1xf32>
    %684 = arith.addf %681, %683 : vector<8x1xf32>
    %c0_148 = arith.constant 0 : index
    %c0_149 = arith.constant 0 : index
    %685 = vector.load %arg13[%c0_148, %c0_149] : memref<8x1xf32, #tpu.memory_space<vmem>>, vector<8x1xf32>
    tpu.vector_store %arg13[%c0_148, %c0_149], %684 {strides = array<i32>} : memref<8x1xf32, #tpu.memory_space<vmem>>, vector<8x1xf32>,
    return
  }
}

</mosaic_0001>

<llo_original>
// kernel: recurrent_autoencoder.1
$region0: #{recurrent_autoencoder.1}
  #allocation0 [shape = 'u32[]', space=smem, size = 0x4, offset = 0x4, fixed_abs, tag = 'smem constant byte address 0x4 - core index']
  #allocation1 [shape = 'u32[144,128]{1,0:T(1,128)}', space=vmem, size = 0x12000, scoped, tag = 'internal scratch']
  #allocation2 [shape = 'f32[1,1]{1,0:T(1,128)S(1)}', space=vmem, size = 0x200, scoped, tag = 'scoped memory for recurrent_autoencoder.1']
  %s0 = inlined_call_operand.vmem [shape: f32[8,128], index: 0, kind: input, shape index: {}]
  %s1 = inlined_call_operand.hbm [shape: bf16[128,512], index: 1, kind: input, shape index: {}]
  %s2 = inlined_call_operand.hbm [shape: bf16[128,512], index: 2, kind: input, shape index: {}]
  %s3 = inlined_call_operand.vmem [shape: f32[1,512], index: 3, kind: input, shape index: {}]
  %s4 = inlined_call_operand.hbm [shape: bf16[256,512], index: 4, kind: input, shape index: {}]
  %s5 = inlined_call_operand.vmem [shape: f32[1,512], index: 5, kind: input, shape index: {}]
  %s6 = inlined_call_operand.hbm [shape: bf16[128,512], index: 6, kind: input, shape index: {}]
  %s7 = inlined_call_operand.hbm [shape: bf16[128,512], index: 7, kind: input, shape index: {}]
  %s8 = inlined_call_operand.vmem [shape: f32[1,512], index: 8, kind: input, shape index: {}]
  %s9 = inlined_call_operand.hbm [shape: bf16[256,512], index: 9, kind: input, shape index: {}]
  %s10 = inlined_call_operand.vmem [shape: f32[1,512], index: 10, kind: input, shape index: {}]
  %s11 = inlined_call_operand.vmem [shape: f32[128,1], index: 11, kind: input, shape index: {}]
  %s12 = inlined_call_operand.<no memory space> [shape: f32[1,1], index: 12, kind: input, shape index: {}]
  %s13 = inlined_call_operand.vmem [shape: f32[8,1], index: 13, kind: output, shape index: {}]
  %s14 = sld [smem:[#allocation0]]
  $region86: #{recurrent_autoencoder.1} parent=0
    _
  %s16 = ssub.s32 1, %s14
  %s17 = scalar_select 0, %s16, %s14
  %v18 = vstv %s12
  %19 = vst [vmem:[#allocation2] sm:$0x1] %v18
  $region1: #{recurrent_autoencoder.1} parent=0
    #allocation3 [shape = 'u8[131072]{0}', space=vmem, size = 0x20000, scoped, tag = 'input window, operand 1, single buffered']
    #allocation4 [shape = 's32[1]{0}', space=sflag, size = 0x4, scoped, tag = 'scoped memory for recurrent_autoencoder.1']
    #allocation5 [shape = 'u8[131072]{0}', space=vmem, size = 0x20000, scoped, tag = 'input window, operand 2, single buffered']
    #allocation6 [shape = 's32[1]{0}', space=sflag, size = 0x4, scoped, tag = 'scoped memory for recurrent_autoencoder.1']
    #allocation7 [shape = 'u8[262144]{0}', space=vmem, size = 0x40000, scoped, tag = 'input window, operand 4, single buffered']
    #allocation8 [shape = 'u8[131072]{0}', space=vmem, size = 0x20000, scoped, tag = 'input window, operand 6, single buffered']
    #allocation9 [shape = 's32[1]{0}', space=sflag, size = 0x4, scoped, tag = 'scoped memory for recurrent_autoencoder.1']
    #allocation10 [shape = 'u8[131072]{0}', space=vmem, size = 0x20000, scoped, tag = 'input window, operand 7, single buffered']
    #allocation11 [shape = 'u8[262144]{0}', space=vmem, size = 0x40000, scoped, tag = 'input window, operand 9, single buffered']
    #allocation12 [shape = 's32[1]{0}', space=sflag, size = 0x4, scoped, tag = 'scoped memory for recurrent_autoencoder.1']
    %20 = vsyncpa [#allocation4], 0
    %21 = vsyncpa [#allocation6], 0
    %22 = vsyncpa [#allocation9], 0
    %23 = vsyncpa [#allocation12], 0
    // Predicated region
    $region2: #{recurrent_autoencoder.1} parent=1 // pred_check
      _
    $region3: #{recurrent_autoencoder.1} parent=1 // pred_check_branch
      %25 = sbr.rel (0) target = $region5
    $region4: #{recurrent_autoencoder.1} parent=1 // pred_region
      _
    $region5: #{recurrent_autoencoder.1} parent=1 // pred_fallthru
      _
    // Predicated region
    $region6: #{recurrent_autoencoder.1} parent=1 // pred_check
      _
    $region7: #{recurrent_autoencoder.1} parent=1 // pred_check_branch
      %27 = sbr.rel (0) target = $region9
    $region8: #{recurrent_autoencoder.1} parent=1 // pred_region
      %s29 = ssub.s32 4096, 4096
      %30 = vsyncadd [#allocation4], %s29
      %s31 = sshll.u32 [#allocation3], 4
      %s32 = int_to_ptr.vmem [resolvable:$true] %s31
      %37 = dma.hbm_to_vmem [thread:$0]  %s1, 4096, %s32, [#allocation4], 256, 256, 16
    $region9: #{recurrent_autoencoder.1} parent=1 // pred_fallthru
      _
    // Predicated region
    $region10: #{recurrent_autoencoder.1} parent=1 // pred_check
      _
    $region11: #{recurrent_autoencoder.1} parent=1 // pred_check_branch
      %39 = sbr.rel (0) target = $region13
    $region12: #{recurrent_autoencoder.1} parent=1 // pred_region
      %s41 = ssub.s32 4096, 4096
      %42 = vsyncadd [#allocation6], %s41
      %s43 = sshll.u32 [#allocation5], 4
      %s44 = int_to_ptr.vmem [resolvable:$true] %s43
      %49 = dma.hbm_to_vmem [thread:$0]  %s2, 4096, %s44, [#allocation6], 256, 256, 16
    $region13: #{recurrent_autoencoder.1} parent=1 // pred_fallthru
      _
    // Predicated region
    $region14: #{recurrent_autoencoder.1} parent=1 // pred_check
      _
    $region15: #{recurrent_autoencoder.1} parent=1 // pred_check_branch
      %51 = sbr.rel (0) target = $region17
    $region16: #{recurrent_autoencoder.1} parent=1 // pred_region
      _
    $region17: #{recurrent_autoencoder.1} parent=1 // pred_fallthru
      _
    // Predicated region
    $region18: #{recurrent_autoencoder.1} parent=1 // pred_check
      _
    $region19: #{recurrent_autoencoder.1} parent=1 // pred_check_branch
      %53 = sbr.rel (0) target = $region21
    $region20: #{recurrent_autoencoder.1} parent=1 // pred_region
      %s55 = ssub.s32 8192, 8192
      %56 = vsyncadd [#allocation6], %s55
      %s57 = sshll.u32 [#allocation7], 4
      %s58 = int_to_ptr.vmem [resolvable:$true] %s57
      %63 = dma.hbm_to_vmem [thread:$0]  %s4, 8192, %s58, [#allocation6], 256, 256, 16
    $region21: #{recurrent_autoencoder.1} parent=1 // pred_fallthru
      _
    // Predicated region
    $region22: #{recurrent_autoencoder.1} parent=1 // pred_check
      _
    $region23: #{recurrent_autoencoder.1} parent=1 // pred_check_branch
      %65 = sbr.rel (0) target = $region25
    $region24: #{recurrent_autoencoder.1} parent=1 // pred_region
      _
    $region25: #{recurrent_autoencoder.1} parent=1 // pred_fallthru
      _
    // Predicated region
    $region26: #{recurrent_autoencoder.1} parent=1 // pred_check
      _
    $region27: #{recurrent_autoencoder.1} parent=1 // pred_check_branch
      %67 = sbr.rel (0) target = $region29
    $region28: #{recurrent_autoencoder.1} parent=1 // pred_region
      %s69 = ssub.s32 4096, 4096
      %70 = vsyncadd [#allocation9], %s69
      %s71 = sshll.u32 [#allocation8], 4
      %s72 = int_to_ptr.vmem [resolvable:$true] %s71
      %77 = dma.hbm_to_vmem [thread:$0]  %s6, 4096, %s72, [#allocation9], 256, 256, 16
    $region29: #{recurrent_autoencoder.1} parent=1 // pred_fallthru
      _
    // Predicated region
    $region30: #{recurrent_autoencoder.1} parent=1 // pred_check
      _
    $region31: #{recurrent_autoencoder.1} parent=1 // pred_check_branch
      %79 = sbr.rel (0) target = $region33
    $region32: #{recurrent_autoencoder.1} parent=1 // pred_region
      %s81 = ssub.s32 4096, 4096
      %82 = vsyncadd [#allocation9], %s81
      %s83 = sshll.u32 [#allocation10], 4
      %s84 = int_to_ptr.vmem [resolvable:$true] %s83
      %89 = dma.hbm_to_vmem [thread:$0]  %s7, 4096, %s84, [#allocation9], 256, 256, 16
    $region33: #{recurrent_autoencoder.1} parent=1 // pred_fallthru
      _
    // Predicated region
    $region34: #{recurrent_autoencoder.1} parent=1 // pred_check
      _
    $region35: #{recurrent_autoencoder.1} parent=1 // pred_check_branch
      %91 = sbr.rel (0) target = $region37
    $region36: #{recurrent_autoencoder.1} parent=1 // pred_region
      _
    $region37: #{recurrent_autoencoder.1} parent=1 // pred_fallthru
      _
    // Predicated region
    $region38: #{recurrent_autoencoder.1} parent=1 // pred_check
      _
    $region39: #{recurrent_autoencoder.1} parent=1 // pred_check_branch
      %93 = sbr.rel (0) target = $region41
    $region40: #{recurrent_autoencoder.1} parent=1 // pred_region
      %s95 = ssub.s32 8192, 8192
      %96 = vsyncadd [#allocation12], %s95
      %s97 = sshll.u32 [#allocation11], 4
      %s98 = int_to_ptr.vmem [resolvable:$true] %s97
      %103 = dma.hbm_to_vmem [thread:$0]  %s9, 8192, %s98, [#allocation12], 256, 256, 16
    $region41: #{recurrent_autoencoder.1} parent=1 // pred_fallthru
      _
    // Predicated region
    $region42: #{recurrent_autoencoder.1} parent=1 // pred_check
      _
    $region43: #{recurrent_autoencoder.1} parent=1 // pred_check_branch
      %105 = sbr.rel (0) target = $region45
    $region44: #{recurrent_autoencoder.1} parent=1 // pred_region
      _
    $region45: #{recurrent_autoencoder.1} parent=1 // pred_fallthru
      _
    // Predicated region
    $region46: #{recurrent_autoencoder.1} parent=1 // pred_check
      _
    $region47: #{recurrent_autoencoder.1} parent=1 // pred_check_branch
      %107 = sbr.rel (0) target = $region49
    $region48: #{recurrent_autoencoder.1} parent=1 // pred_region
      _
    $region49: #{recurrent_autoencoder.1} parent=1 // pred_fallthru
      _
    // Predicated region
    $region50: #{recurrent_autoencoder.1} parent=1 // pred_check
      _
    $region51: #{recurrent_autoencoder.1} parent=1 // pred_check_branch
      %109 = sbr.rel (0) target = $region53
    $region52: #{recurrent_autoencoder.1} parent=1 // pred_region
      _
    $region53: #{recurrent_autoencoder.1} parent=1 // pred_fallthru
      _
    // Predicated region
    $region54: #{recurrent_autoencoder.1} parent=1 // pred_check
      _
    $region55: #{recurrent_autoencoder.1} parent=1 // pred_check_branch
      %111 = sbr.rel (0) target = $region57
    $region56: #{recurrent_autoencoder.1} parent=1 // pred_region
      %112 = dma.done [#allocation4], 4096
    $region57: #{recurrent_autoencoder.1} parent=1 // pred_fallthru
      _
    // Predicated region
    $region58: #{recurrent_autoencoder.1} parent=1 // pred_check
      _
    $region59: #{recurrent_autoencoder.1} parent=1 // pred_check_branch
      %114 = sbr.rel (0) target = $region61
    $region60: #{recurrent_autoencoder.1} parent=1 // pred_region
      %115 = dma.done [#allocation6], 4096
    $region61: #{recurrent_autoencoder.1} parent=1 // pred_fallthru
      _
    // Predicated region
    $region62: #{recurrent_autoencoder.1} parent=1 // pred_check
      _
    $region63: #{recurrent_autoencoder.1} parent=1 // pred_check_branch
      %117 = sbr.rel (0) target = $region65
    $region64: #{recurrent_autoencoder.1} parent=1 // pred_region
      %118 = dma.done [#allocation6], 8192
    $region65: #{recurrent_autoencoder.1} parent=1 // pred_fallthru
      _
    // Predicated region
    $region66: #{recurrent_autoencoder.1} parent=1 // pred_check
      _
    $region67: #{recurrent_autoencoder.1} parent=1 // pred_check_branch
      %120 = sbr.rel (0) target = $region69
    $region68: #{recurrent_autoencoder.1} parent=1 // pred_region
      %121 = dma.done [#allocation9], 4096
    $region69: #{recurrent_autoencoder.1} parent=1 // pred_fallthru
      _
    // Predicated region
    $region70: #{recurrent_autoencoder.1} parent=1 // pred_check
      _
    $region71: #{recurrent_autoencoder.1} parent=1 // pred_check_branch
      %123 = sbr.rel (0) target = $region73
    $region72: #{recurrent_autoencoder.1} parent=1 // pred_region
      %124 = dma.done [#allocation9], 4096
    $region73: #{recurrent_autoencoder.1} parent=1 // pred_fallthru
      _
    // Predicated region
    $region74: #{recurrent_autoencoder.1} parent=1 // pred_check
      _
    $region75: #{recurrent_autoencoder.1} parent=1 // pred_check_branch
      %126 = sbr.rel (0) target = $region77
    $region76: #{recurrent_autoencoder.1} parent=1 // pred_region
      %127 = dma.done [#allocation12], 8192
    $region77: #{recurrent_autoencoder.1} parent=1 // pred_fallthru
      _
    %v129 = vld [vmem:[%s0] sm:$0xff]
    %v130 = vpack.c.bf16 %v129, %v129
    %v131 = vld [vmem:[#allocation3] sm:$0xff]
    %v132 = vld [vmem:[#allocation3 + $0x8] sm:$0xff]
    %v133 = vld [vmem:[#allocation3 + $0x10] sm:$0xff]
    %v134 = vld [vmem:[#allocation3 + $0x18] sm:$0xff]
    %v135 = vld [vmem:[#allocation3 + $0x20] sm:$0xff]
    %v136 = vld [vmem:[#allocation3 + $0x28] sm:$0xff]
    %v137 = vld [vmem:[#allocation3 + $0x30] sm:$0xff]
    %v138 = vld [vmem:[#allocation3 + $0x38] sm:$0xff]
    %v139 = vld [vmem:[#allocation3 + $0x40] sm:$0xff]
    %v140 = vld [vmem:[#allocation3 + $0x48] sm:$0xff]
    %v141 = vld [vmem:[#allocation3 + $0x50] sm:$0xff]
    %v142 = vld [vmem:[#allocation3 + $0x58] sm:$0xff]
    %v143 = vld [vmem:[#allocation3 + $0x60] sm:$0xff]
    %v144 = vld [vmem:[#allocation3 + $0x68] sm:$0xff]
    %v145 = vld [vmem:[#allocation3 + $0x70] sm:$0xff]
    %v146 = vld [vmem:[#allocation3 + $0x78] sm:$0xff]
    %v147 = vld [vmem:[#allocation3 + $0x80] sm:$0xff]
    %v148 = vld [vmem:[#allocation3 + $0x88] sm:$0xff]
    %v149 = vld [vmem:[#allocation3 + $0x90] sm:$0xff]
    %v150 = vld [vmem:[#allocation3 + $0x98] sm:$0xff]
    %v151 = vld [vmem:[#allocation3 + $0xa0] sm:$0xff]
    %v152 = vld [vmem:[#allocation3 + $0xa8] sm:$0xff]
    %v153 = vld [vmem:[#allocation3 + $0xb0] sm:$0xff]
    %v154 = vld [vmem:[#allocation3 + $0xb8] sm:$0xff]
    %v155 = vld [vmem:[#allocation3 + $0xc0] sm:$0xff]
    %v156 = vld [vmem:[#allocation3 + $0xc8] sm:$0xff]
    %v157 = vld [vmem:[#allocation3 + $0xd0] sm:$0xff]
    %v158 = vld [vmem:[#allocation3 + $0xd8] sm:$0xff]
    %v159 = vld [vmem:[#allocation3 + $0xe0] sm:$0xff]
    %v160 = vld [vmem:[#allocation3 + $0xe8] sm:$0xff]
    %v161 = vld [vmem:[#allocation3 + $0xf0] sm:$0xff]
    %v162 = vld [vmem:[#allocation3 + $0xf8] sm:$0xff]
    %v163 = vld [vmem:[%s3] sm:$0xf]
    %v165 = vlaneseq
    %v166 = vshrl.u32 %v165, 7
    %v167 = vsub.s32 0, %v166
    %v168 = vrot.slane %v163, %v167
    %v169 = vlaneseq
    %v170 = vshrl.u32 %v169, 7
    %v171 = vsub.s32 1, %v170
    %v172 = vrot.slane %v163, %v171
    %v173 = vlaneseq
    %v174 = vshrl.u32 %v173, 7
    %v175 = vsub.s32 2, %v174
    %v176 = vrot.slane %v163, %v175
    %v177 = vlaneseq
    %v178 = vshrl.u32 %v177, 7
    %v179 = vsub.s32 3, %v178
    %v180 = vrot.slane %v163, %v179
    %v217 = vunpack.c.l.b16 %v131
    %v218 = vunpack.c.h.b16 %v131
    %v219 = vunpack.c.l.b16 %v132
    %v220 = vunpack.c.h.b16 %v132
    %v221 = vunpack.c.l.b16 %v133
    %v222 = vunpack.c.h.b16 %v133
    %v223 = vunpack.c.l.b16 %v134
    %v224 = vunpack.c.h.b16 %v134
    %v225 = vunpack.c.l.b16 %v135
    %v226 = vunpack.c.h.b16 %v135
    %v227 = vunpack.c.l.b16 %v136
    %v228 = vunpack.c.h.b16 %v136
    %v229 = vunpack.c.l.b16 %v137
    %v230 = vunpack.c.h.b16 %v137
    %v231 = vunpack.c.l.b16 %v138
    %v232 = vunpack.c.h.b16 %v138
    %v233 = vunpack.c.l.b16 %v139
    %v234 = vunpack.c.h.b16 %v139
    %v235 = vunpack.c.l.b16 %v140
    %v236 = vunpack.c.h.b16 %v140
    %v237 = vunpack.c.l.b16 %v141
    %v238 = vunpack.c.h.b16 %v141
    %v239 = vunpack.c.l.b16 %v142
    %v240 = vunpack.c.h.b16 %v142
    %v241 = vunpack.c.l.b16 %v143
    %v242 = vunpack.c.h.b16 %v143
    %v243 = vunpack.c.l.b16 %v144
    %v244 = vunpack.c.h.b16 %v144
    %v245 = vunpack.c.l.b16 %v145
    %v246 = vunpack.c.h.b16 %v145
    %v247 = vunpack.c.l.b16 %v146
    %v248 = vunpack.c.h.b16 %v146
    %v249 = vunpack.c.l.b16 %v147
    %v250 = vunpack.c.h.b16 %v147
    %v251 = vunpack.c.l.b16 %v148
    %v252 = vunpack.c.h.b16 %v148
    %v253 = vunpack.c.l.b16 %v149
    %v254 = vunpack.c.h.b16 %v149
    %v255 = vunpack.c.l.b16 %v150
    %v256 = vunpack.c.h.b16 %v150
    %v257 = vunpack.c.l.b16 %v151
    %v258 = vunpack.c.h.b16 %v151
    %v259 = vunpack.c.l.b16 %v152
    %v260 = vunpack.c.h.b16 %v152
    %v261 = vunpack.c.l.b16 %v153
    %v262 = vunpack.c.h.b16 %v153
    %v263 = vunpack.c.l.b16 %v154
    %v264 = vunpack.c.h.b16 %v154
    %v265 = vunpack.c.l.b16 %v155
    %v266 = vunpack.c.h.b16 %v155
    %v267 = vunpack.c.l.b16 %v156
    %v268 = vunpack.c.h.b16 %v156
    %v269 = vunpack.c.l.b16 %v157
    %v270 = vunpack.c.h.b16 %v157
    %v271 = vunpack.c.l.b16 %v158
    %v272 = vunpack.c.h.b16 %v158
    %v273 = vunpack.c.l.b16 %v159
    %v274 = vunpack.c.h.b16 %v159
    %v275 = vunpack.c.l.b16 %v160
    %v276 = vunpack.c.h.b16 %v160
    %v277 = vunpack.c.l.b16 %v161
    %v278 = vunpack.c.h.b16 %v161
    %v279 = vunpack.c.l.b16 %v162
    %v280 = vunpack.c.h.b16 %v162
    %v281 = vpack.c.b16 %v221, %v217
    %v282 = vpack.c.b16 %v222, %v218
    %v283 = vpack.c.b16 %v223, %v219
    %v284 = vpack.c.b16 %v224, %v220
    %v285 = vpack.c.b16 %v229, %v225
    %v286 = vpack.c.b16 %v230, %v226
    %v287 = vpack.c.b16 %v231, %v227
    %v288 = vpack.c.b16 %v232, %v228
    %v289 = vpack.c.b16 %v237, %v233
    %v290 = vpack.c.b16 %v238, %v234
    %v291 = vpack.c.b16 %v239, %v235
    %v292 = vpack.c.b16 %v240, %v236
    %v293 = vpack.c.b16 %v245, %v241
    %v294 = vpack.c.b16 %v246, %v242
    %v295 = vpack.c.b16 %v247, %v243
    %v296 = vpack.c.b16 %v248, %v244
    %v297 = vpack.c.b16 %v253, %v249
    %v298 = vpack.c.b16 %v254, %v250
    %v299 = vpack.c.b16 %v255, %v251
    %v300 = vpack.c.b16 %v256, %v252
    %v301 = vpack.c.b16 %v261, %v257
    %v302 = vpack.c.b16 %v262, %v258
    %v303 = vpack.c.b16 %v263, %v259
    %v304 = vpack.c.b16 %v264, %v260
    %v305 = vpack.c.b16 %v269, %v265
    %v306 = vpack.c.b16 %v270, %v266
    %v307 = vpack.c.b16 %v271, %v267
    %v308 = vpack.c.b16 %v272, %v268
    %v309 = vpack.c.b16 %v277, %v273
    %v310 = vpack.c.b16 %v278, %v274
    %v311 = vpack.c.b16 %v279, %v275
    %v312 = vpack.c.b16 %v280, %v276
    %345 = vmatprep.subr.bf16.mxu0 %v282
    %346 = vmatpush1.bf16.msra.mxu0 %v281
    %347 = vmatprep.subr.bf16.mxu0 %v286
    %348 = vmatpush1.bf16.msra.mxu0 %v285
    %349 = vmatprep.subr.bf16.mxu0 %v290
    %350 = vmatpush1.bf16.msra.mxu0 %v289
    %351 = vmatprep.subr.bf16.mxu0 %v294
    %352 = vmatpush1.bf16.msra.mxu0 %v293
    %353 = vmatprep.subr.bf16.mxu0 %v298
    %354 = vmatpush1.bf16.msra.mxu0 %v297
    %355 = vmatprep.subr.bf16.mxu0 %v302
    %356 = vmatpush1.bf16.msra.mxu0 %v301
    %357 = vmatprep.subr.bf16.mxu0 %v306
    %358 = vmatpush1.bf16.msra.mxu0 %v305
    %359 = vmatprep.subr.bf16.mxu0 %v310
    %360 = vmatpush1.bf16.msra.mxu0 %v309
    %361 = vmatprep.subr.bf16.mxu0 0
    %362 = vmatpush1.bf16.msra.mxu0 0
    %363 = vmatprep.subr.bf16.mxu0 0
    %364 = vmatpush1.bf16.msra.mxu0 0
    %365 = vmatprep.subr.bf16.mxu0 0
    %366 = vmatpush1.bf16.msra.mxu0 0
    %367 = vmatprep.subr.bf16.mxu0 0
    %368 = vmatpush1.bf16.msra.mxu0 0
    %369 = vmatprep.subr.bf16.mxu0 0
    %370 = vmatpush1.bf16.msra.mxu0 0
    %371 = vmatprep.subr.bf16.mxu0 0
    %372 = vmatpush1.bf16.msra.mxu0 0
    %373 = vmatprep.subr.bf16.mxu0 0
    %374 = vmatpush1.bf16.msra.mxu0 0
    %375 = vmatprep.subr.bf16.mxu0 0
    %376 = vmatpush1.bf16.msra.mxu0 0
    %377 = vmatprep.mubr.bf16.mxu0 0
    %378 = vmatmul.mubr.bf16.gmra.mrb[0].mxu0 %v130
    %v379 = vpop.f32.mrb[0].mxu0
    %v380 = vadd.f32 %v168, %v379
    %v381 = vpop.f32.mrb[0].mxu0
    %v382 = vadd.f32 %v172, %v381
    %v383 = vpop.f32.mrb[0].mxu0
    %v384 = vpop.f32.mrb[0].mxu0
    %385 = vdwg.mxu0
    %386 = vmatprep.subr.bf16.mxu0 %v284
    %387 = vmatpush1.bf16.msra.mxu0 %v283
    %388 = vmatprep.subr.bf16.mxu0 %v288
    %389 = vmatpush1.bf16.msra.mxu0 %v287
    %390 = vmatprep.subr.bf16.mxu0 %v292
    %391 = vmatpush1.bf16.msra.mxu0 %v291
    %392 = vmatprep.subr.bf16.mxu0 %v296
    %393 = vmatpush1.bf16.msra.mxu0 %v295
    %394 = vmatprep.subr.bf16.mxu0 %v300
    %395 = vmatpush1.bf16.msra.mxu0 %v299
    %396 = vmatprep.subr.bf16.mxu0 %v304
    %397 = vmatpush1.bf16.msra.mxu0 %v303
    %398 = vmatprep.subr.bf16.mxu0 %v308
    %399 = vmatpush1.bf16.msra.mxu0 %v307
    %400 = vmatprep.subr.bf16.mxu0 %v312
    %401 = vmatpush1.bf16.msra.mxu0 %v311
    %402 = vmatprep.subr.bf16.mxu0 0
    %403 = vmatpush1.bf16.msra.mxu0 0
    %404 = vmatprep.subr.bf16.mxu0 0
    %405 = vmatpush1.bf16.msra.mxu0 0
    %406 = vmatprep.subr.bf16.mxu0 0
    %407 = vmatpush1.bf16.msra.mxu0 0
    %408 = vmatprep.subr.bf16.mxu0 0
    %409 = vmatpush1.bf16.msra.mxu0 0
    %410 = vmatprep.subr.bf16.mxu0 0
    %411 = vmatpush1.bf16.msra.mxu0 0
    %412 = vmatprep.subr.bf16.mxu0 0
    %413 = vmatpush1.bf16.msra.mxu0 0
    %414 = vmatprep.subr.bf16.mxu0 0
    %415 = vmatpush1.bf16.msra.mxu0 0
    %416 = vmatprep.subr.bf16.mxu0 0
    %417 = vmatpush1.bf16.msra.mxu0 0
    %418 = vmatprep.mubr.bf16.mxu0 0
    %419 = vmatmul.mubr.bf16.gmra.mrb[0].mxu0 %v130
    %v420 = vpop.f32.mrb[0].mxu0
    %v421 = vadd.f32 %v176, %v420
    %v422 = vpop.f32.mrb[0].mxu0
    %v423 = vadd.f32 %v180, %v422
    %v424 = vpop.f32.mrb[0].mxu0
    %v425 = vpop.f32.mrb[0].mxu0
    %426 = vdwg.mxu0
    %v427 = vld [vmem:[%s5] sm:$0xf]
    %v428 = vld [vmem:[#allocation5] sm:$0xff]
    %v429 = vld [vmem:[#allocation5 + $0x8] sm:$0xff]
    %v430 = vld [vmem:[#allocation5 + $0x10] sm:$0xff]
    %v431 = vld [vmem:[#allocation5 + $0x18] sm:$0xff]
    %v432 = vld [vmem:[#allocation5 + $0x20] sm:$0xff]
    %v433 = vld [vmem:[#allocation5 + $0x28] sm:$0xff]
    %v434 = vld [vmem:[#allocation5 + $0x30] sm:$0xff]
    %v435 = vld [vmem:[#allocation5 + $0x38] sm:$0xff]
    %v436 = vld [vmem:[#allocation5 + $0x40] sm:$0xff]
    %v437 = vld [vmem:[#allocation5 + $0x48] sm:$0xff]
    %v438 = vld [vmem:[#allocation5 + $0x50] sm:$0xff]
    %v439 = vld [vmem:[#allocation5 + $0x58] sm:$0xff]
    %v440 = vld [vmem:[#allocation5 + $0x60] sm:$0xff]
    %v441 = vld [vmem:[#allocation5 + $0x68] sm:$0xff]
    %v442 = vld [vmem:[#allocation5 + $0x70] sm:$0xff]
    %v443 = vld [vmem:[#allocation5 + $0x78] sm:$0xff]
    %v444 = vld [vmem:[#allocation5 + $0x80] sm:$0xff]
    %v445 = vld [vmem:[#allocation5 + $0x88] sm:$0xff]
    %v446 = vld [vmem:[#allocation5 + $0x90] sm:$0xff]
    %v447 = vld [vmem:[#allocation5 + $0x98] sm:$0xff]
    %v448 = vld [vmem:[#allocation5 + $0xa0] sm:$0xff]
    %v449 = vld [vmem:[#allocation5 + $0xa8] sm:$0xff]
    %v450 = vld [vmem:[#allocation5 + $0xb0] sm:$0xff]
    %v451 = vld [vmem:[#allocation5 + $0xb8] sm:$0xff]
    %v452 = vld [vmem:[#allocation5 + $0xc0] sm:$0xff]
    %v453 = vld [vmem:[#allocation5 + $0xc8] sm:$0xff]
    %v454 = vld [vmem:[#allocation5 + $0xd0] sm:$0xff]
    %v455 = vld [vmem:[#allocation5 + $0xd8] sm:$0xff]
    %v456 = vld [vmem:[#allocation5 + $0xe0] sm:$0xff]
    %v457 = vld [vmem:[#allocation5 + $0xe8] sm:$0xff]
    %v458 = vld [vmem:[#allocation5 + $0xf0] sm:$0xff]
    %v459 = vld [vmem:[#allocation5 + $0xf8] sm:$0xff]
    %v492 = vunpack.c.l.b16 %v428
    %v493 = vunpack.c.h.b16 %v428
    %v494 = vunpack.c.l.b16 %v429
    %v495 = vunpack.c.h.b16 %v429
    %v496 = vunpack.c.l.b16 %v430
    %v497 = vunpack.c.h.b16 %v430
    %v498 = vunpack.c.l.b16 %v431
    %v499 = vunpack.c.h.b16 %v431
    %v500 = vunpack.c.l.b16 %v432
    %v501 = vunpack.c.h.b16 %v432
    %v502 = vunpack.c.l.b16 %v433
    %v503 = vunpack.c.h.b16 %v433
    %v504 = vunpack.c.l.b16 %v434
    %v505 = vunpack.c.h.b16 %v434
    %v506 = vunpack.c.l.b16 %v435
    %v507 = vunpack.c.h.b16 %v435
    %v508 = vunpack.c.l.b16 %v436
    %v509 = vunpack.c.h.b16 %v436
    %v510 = vunpack.c.l.b16 %v437
    %v511 = vunpack.c.h.b16 %v437
    %v512 = vunpack.c.l.b16 %v438
    %v513 = vunpack.c.h.b16 %v438
    %v514 = vunpack.c.l.b16 %v439
    %v515 = vunpack.c.h.b16 %v439
    %v516 = vunpack.c.l.b16 %v440
    %v517 = vunpack.c.h.b16 %v440
    %v518 = vunpack.c.l.b16 %v441
    %v519 = vunpack.c.h.b16 %v441
    %v520 = vunpack.c.l.b16 %v442
    %v521 = vunpack.c.h.b16 %v442
    %v522 = vunpack.c.l.b16 %v443
    %v523 = vunpack.c.h.b16 %v443
    %v524 = vunpack.c.l.b16 %v444
    %v525 = vunpack.c.h.b16 %v444
    %v526 = vunpack.c.l.b16 %v445
    %v527 = vunpack.c.h.b16 %v445
    %v528 = vunpack.c.l.b16 %v446
    %v529 = vunpack.c.h.b16 %v446
    %v530 = vunpack.c.l.b16 %v447
    %v531 = vunpack.c.h.b16 %v447
    %v532 = vunpack.c.l.b16 %v448
    %v533 = vunpack.c.h.b16 %v448
    %v534 = vunpack.c.l.b16 %v449
    %v535 = vunpack.c.h.b16 %v449
    %v536 = vunpack.c.l.b16 %v450
    %v537 = vunpack.c.h.b16 %v450
    %v538 = vunpack.c.l.b16 %v451
    %v539 = vunpack.c.h.b16 %v451
    %v540 = vunpack.c.l.b16 %v452
    %v541 = vunpack.c.h.b16 %v452
    %v542 = vunpack.c.l.b16 %v453
    %v543 = vunpack.c.h.b16 %v453
    %v544 = vunpack.c.l.b16 %v454
    %v545 = vunpack.c.h.b16 %v454
    %v546 = vunpack.c.l.b16 %v455
    %v547 = vunpack.c.h.b16 %v455
    %v548 = vunpack.c.l.b16 %v456
    %v549 = vunpack.c.h.b16 %v456
    %v550 = vunpack.c.l.b16 %v457
    %v551 = vunpack.c.h.b16 %v457
    %v552 = vunpack.c.l.b16 %v458
    %v553 = vunpack.c.h.b16 %v458
    %v554 = vunpack.c.l.b16 %v459
    %v555 = vunpack.c.h.b16 %v459
    %v556 = vpack.c.b16 %v496, %v492
    %v557 = vpack.c.b16 %v497, %v493
    %v558 = vpack.c.b16 %v498, %v494
    %v559 = vpack.c.b16 %v499, %v495
    %v560 = vpack.c.b16 %v504, %v500
    %v561 = vpack.c.b16 %v505, %v501
    %v562 = vpack.c.b16 %v506, %v502
    %v563 = vpack.c.b16 %v507, %v503
    %v564 = vpack.c.b16 %v512, %v508
    %v565 = vpack.c.b16 %v513, %v509
    %v566 = vpack.c.b16 %v514, %v510
    %v567 = vpack.c.b16 %v515, %v511
    %v568 = vpack.c.b16 %v520, %v516
    %v569 = vpack.c.b16 %v521, %v517
    %v570 = vpack.c.b16 %v522, %v518
    %v571 = vpack.c.b16 %v523, %v519
    %v572 = vpack.c.b16 %v528, %v524
    %v573 = vpack.c.b16 %v529, %v525
    %v574 = vpack.c.b16 %v530, %v526
    %v575 = vpack.c.b16 %v531, %v527
    %v576 = vpack.c.b16 %v536, %v532
    %v577 = vpack.c.b16 %v537, %v533
    %v578 = vpack.c.b16 %v538, %v534
    %v579 = vpack.c.b16 %v539, %v535
    %v580 = vpack.c.b16 %v544, %v540
    %v581 = vpack.c.b16 %v545, %v541
    %v582 = vpack.c.b16 %v546, %v542
    %v583 = vpack.c.b16 %v547, %v543
    %v584 = vpack.c.b16 %v552, %v548
    %v585 = vpack.c.b16 %v553, %v549
    %v586 = vpack.c.b16 %v554, %v550
    %v587 = vpack.c.b16 %v555, %v551
    %620 = vmatprep.subr.bf16.mxu0 %v557
    %621 = vmatpush1.bf16.msra.mxu0 %v556
    %622 = vmatprep.subr.bf16.mxu0 %v561
    %623 = vmatpush1.bf16.msra.mxu0 %v560
    %624 = vmatprep.subr.bf16.mxu0 %v565
    %625 = vmatpush1.bf16.msra.mxu0 %v564
    %626 = vmatprep.subr.bf16.mxu0 %v569
    %627 = vmatpush1.bf16.msra.mxu0 %v568
    %628 = vmatprep.subr.bf16.mxu0 %v573
    %629 = vmatpush1.bf16.msra.mxu0 %v572
    %630 = vmatprep.subr.bf16.mxu0 %v577
    %631 = vmatpush1.bf16.msra.mxu0 %v576
    %632 = vmatprep.subr.bf16.mxu0 %v581
    %633 = vmatpush1.bf16.msra.mxu0 %v580
    %634 = vmatprep.subr.bf16.mxu0 %v585
    %635 = vmatpush1.bf16.msra.mxu0 %v584
    %636 = vmatprep.subr.bf16.mxu0 0
    %637 = vmatpush1.bf16.msra.mxu0 0
    %638 = vmatprep.subr.bf16.mxu0 0
    %639 = vmatpush1.bf16.msra.mxu0 0
    %640 = vmatprep.subr.bf16.mxu0 0
    %641 = vmatpush1.bf16.msra.mxu0 0
    %642 = vmatprep.subr.bf16.mxu0 0
    %643 = vmatpush1.bf16.msra.mxu0 0
    %644 = vmatprep.subr.bf16.mxu0 0
    %645 = vmatpush1.bf16.msra.mxu0 0
    %646 = vmatprep.subr.bf16.mxu0 0
    %647 = vmatpush1.bf16.msra.mxu0 0
    %648 = vmatprep.subr.bf16.mxu0 0
    %649 = vmatpush1.bf16.msra.mxu0 0
    %650 = vmatprep.subr.bf16.mxu0 0
    %651 = vmatpush1.bf16.msra.mxu0 0
    %652 = vmatprep.mubr.bf16.mxu0 0
    %653 = vmatmul.mubr.bf16.gmra.mrb[0].mxu0 0
    %v654 = vpop.f32.mrb[0].mxu0
    %v655 = vadd.f32 0.0, %v654
    %v656 = vpop.f32.mrb[0].mxu0
    %v657 = vadd.f32 0.0, %v656
    %v658 = vpop.f32.mrb[0].mxu0
    %v659 = vpop.f32.mrb[0].mxu0
    %660 = vdwg.mxu0
    %661 = vmatprep.subr.bf16.mxu0 %v559
    %662 = vmatpush1.bf16.msra.mxu0 %v558
    %663 = vmatprep.subr.bf16.mxu0 %v563
    %664 = vmatpush1.bf16.msra.mxu0 %v562
    %665 = vmatprep.subr.bf16.mxu0 %v567
    %666 = vmatpush1.bf16.msra.mxu0 %v566
    %667 = vmatprep.subr.bf16.mxu0 %v571
    %668 = vmatpush1.bf16.msra.mxu0 %v570
    %669 = vmatprep.subr.bf16.mxu0 %v575
    %670 = vmatpush1.bf16.msra.mxu0 %v574
    %671 = vmatprep.subr.bf16.mxu0 %v579
    %672 = vmatpush1.bf16.msra.mxu0 %v578
    %673 = vmatprep.subr.bf16.mxu0 %v583
    %674 = vmatpush1.bf16.msra.mxu0 %v582
    %675 = vmatprep.subr.bf16.mxu0 %v587
    %676 = vmatpush1.bf16.msra.mxu0 %v586
    %677 = vmatprep.subr.bf16.mxu0 0
    %678 = vmatpush1.bf16.msra.mxu0 0
    %679 = vmatprep.subr.bf16.mxu0 0
    %680 = vmatpush1.bf16.msra.mxu0 0
    %681 = vmatprep.subr.bf16.mxu0 0
    %682 = vmatpush1.bf16.msra.mxu0 0
    %683 = vmatprep.subr.bf16.mxu0 0
    %684 = vmatpush1.bf16.msra.mxu0 0
    %685 = vmatprep.subr.bf16.mxu0 0
    %686 = vmatpush1.bf16.msra.mxu0 0
    %687 = vmatprep.subr.bf16.mxu0 0
    %688 = vmatpush1.bf16.msra.mxu0 0
    %689 = vmatprep.subr.bf16.mxu0 0
    %690 = vmatpush1.bf16.msra.mxu0 0
    %691 = vmatprep.subr.bf16.mxu0 0
    %692 = vmatpush1.bf16.msra.mxu0 0
    %693 = vmatprep.mubr.bf16.mxu0 0
    %694 = vmatmul.mubr.bf16.gmra.mrb[0].mxu0 0
    %v695 = vpop.f32.mrb[0].mxu0
    %v696 = vadd.f32 0.0, %v695
    %v697 = vpop.f32.mrb[0].mxu0
    %v698 = vadd.f32 0.0, %v697
    %v699 = vpop.f32.mrb[0].mxu0
    %v700 = vpop.f32.mrb[0].mxu0
    %701 = vdwg.mxu0
    %v702 = vadd.f32 %v380, %v655
    %v703 = vadd.f32 %v382, %v657
    %v704 = vadd.f32 %v421, %v696
    %v705 = vadd.f32 %v423, %v698
    %v706 = vxor.u32 %v702, 2147483648
    %v707 = vxor.u32 %v703, 2147483648
    %v708 = vxor.u32 %v704, 2147483648
    %v709 = vmul.f32 %v706, 1.442695
    %v710 = vpow.pop %v709
    %v711 = vmul.f32 %v707, 1.442695
    %v712 = vpow.pop %v711
    %v713 = vmul.f32 %v708, 1.442695
    %v714 = vpow.pop %v713
    %v715 = vadd.f32 %v710, 1.0
    %v716 = vadd.f32 %v712, 1.0
    %v717 = vadd.f32 %v714, 1.0
    %v718 = vrcp.pop %v715
    %v719 = vmul.f32 1.0, %v718
    %v720 = vrcp.pop %v716
    %v721 = vmul.f32 1.0, %v720
    %v722 = vrcp.pop %v717
    %v723 = vmul.f32 1.0, %v722
    %v724 = vtanh.pop %v705
    %v725 = vmul.f32 %v721, 0.0
    %v726 = vmul.f32 %v719, %v724
    %v727 = vadd.f32 %v725, %v726
    %v728 = vtanh.pop %v727
    %v729 = vmul.f32 %v723, %v728
    %v730 = vpack.c.bf16 %v729, %v729
    %731 = vmatprep.subr.bf16.mxu0 %v557
    %732 = vmatpush1.bf16.msra.mxu0 %v556
    %733 = vmatprep.subr.bf16.mxu0 %v561
    %734 = vmatpush1.bf16.msra.mxu0 %v560
    %735 = vmatprep.subr.bf16.mxu0 %v565
    %736 = vmatpush1.bf16.msra.mxu0 %v564
    %737 = vmatprep.subr.bf16.mxu0 %v569
    %738 = vmatpush1.bf16.msra.mxu0 %v568
    %739 = vmatprep.subr.bf16.mxu0 %v573
    %740 = vmatpush1.bf16.msra.mxu0 %v572
    %741 = vmatprep.subr.bf16.mxu0 %v577
    %742 = vmatpush1.bf16.msra.mxu0 %v576
    %743 = vmatprep.subr.bf16.mxu0 %v581
    %744 = vmatpush1.bf16.msra.mxu0 %v580
    %745 = vmatprep.subr.bf16.mxu0 %v585
    %746 = vmatpush1.bf16.msra.mxu0 %v584
    %747 = vmatprep.subr.bf16.mxu0 0
    %748 = vmatpush1.bf16.msra.mxu0 0
    %749 = vmatprep.subr.bf16.mxu0 0
    %750 = vmatpush1.bf16.msra.mxu0 0
    %751 = vmatprep.subr.bf16.mxu0 0
    %752 = vmatpush1.bf16.msra.mxu0 0
    %753 = vmatprep.subr.bf16.mxu0 0
    %754 = vmatpush1.bf16.msra.mxu0 0
    %755 = vmatprep.subr.bf16.mxu0 0
    %756 = vmatpush1.bf16.msra.mxu0 0
    %757 = vmatprep.subr.bf16.mxu0 0
    %758 = vmatpush1.bf16.msra.mxu0 0
    %759 = vmatprep.subr.bf16.mxu0 0
    %760 = vmatpush1.bf16.msra.mxu0 0
    %761 = vmatprep.subr.bf16.mxu0 0
    %762 = vmatpush1.bf16.msra.mxu0 0
    %763 = vmatprep.mubr.bf16.mxu0 0
    %764 = vmatmul.mubr.bf16.gmra.mrb[0].mxu0 %v730
    %v765 = vpop.f32.mrb[0].mxu0
    %v766 = vadd.f32 0.0, %v765
    %v767 = vpop.f32.mrb[0].mxu0
    %v768 = vadd.f32 0.0, %v767
    %v769 = vpop.f32.mrb[0].mxu0
    %v770 = vpop.f32.mrb[0].mxu0
    %771 = vdwg.mxu0
    %772 = vmatprep.subr.bf16.mxu0 %v559
    %773 = vmatpush1.bf16.msra.mxu0 %v558
    %774 = vmatprep.subr.bf16.mxu0 %v563
    %775 = vmatpush1.bf16.msra.mxu0 %v562
    %776 = vmatprep.subr.bf16.mxu0 %v567
    %777 = vmatpush1.bf16.msra.mxu0 %v566
    %778 = vmatprep.subr.bf16.mxu0 %v571
    %779 = vmatpush1.bf16.msra.mxu0 %v570
    %780 = vmatprep.subr.bf16.mxu0 %v575
    %781 = vmatpush1.bf16.msra.mxu0 %v574
    %782 = vmatprep.subr.bf16.mxu0 %v579
    %783 = vmatpush1.bf16.msra.mxu0 %v578
    %784 = vmatprep.subr.bf16.mxu0 %v583
    %785 = vmatpush1.bf16.msra.mxu0 %v582
    %786 = vmatprep.subr.bf16.mxu0 %v587
    %787 = vmatpush1.bf16.msra.mxu0 %v586
    %788 = vmatprep.subr.bf16.mxu0 0
    %789 = vmatpush1.bf16.msra.mxu0 0
    %790 = vmatprep.subr.bf16.mxu0 0
    %791 = vmatpush1.bf16.msra.mxu0 0
    %792 = vmatprep.subr.bf16.mxu0 0
    %793 = vmatpush1.bf16.msra.mxu0 0
    %794 = vmatprep.subr.bf16.mxu0 0
    %795 = vmatpush1.bf16.msra.mxu0 0
    %796 = vmatprep.subr.bf16.mxu0 0
    %797 = vmatpush1.bf16.msra.mxu0 0
    %798 = vmatprep.subr.bf16.mxu0 0
    %799 = vmatpush1.bf16.msra.mxu0 0
    %800 = vmatprep.subr.bf16.mxu0 0
    %801 = vmatpush1.bf16.msra.mxu0 0
    %802 = vmatprep.subr.bf16.mxu0 0
    %803 = vmatpush1.bf16.msra.mxu0 0
    %804 = vmatprep.mubr.bf16.mxu0 0
    %805 = vmatmul.mubr.bf16.gmra.mrb[0].mxu0 %v730
    %v806 = vpop.f32.mrb[0].mxu0
    %v807 = vadd.f32 0.0, %v806
    %v808 = vpop.f32.mrb[0].mxu0
    %v809 = vadd.f32 0.0, %v808
    %v810 = vpop.f32.mrb[0].mxu0
    %v811 = vpop.f32.mrb[0].mxu0
    %812 = vdwg.mxu0
    %v817 = vrot.slane %v766, 7
    %v818 = vrot.slane %v768, 7
    %v819 = vrot.slane %v807, 7
    %v820 = vrot.slane %v809, 7
    %v825 = vadd.f32 %v380, %v817
    %v826 = vadd.f32 %v382, %v818
    %v827 = vadd.f32 %v421, %v819
    %v828 = vadd.f32 %v423, %v820
    %v829 = vxor.u32 %v825, 2147483648
    %v830 = vxor.u32 %v826, 2147483648
    %v831 = vxor.u32 %v827, 2147483648
    %v832 = vmul.f32 %v829, 1.442695
    %v833 = vpow.pop %v832
    %v834 = vmul.f32 %v830, 1.442695
    %v835 = vpow.pop %v834
    %v836 = vmul.f32 %v831, 1.442695
    %v837 = vpow.pop %v836
    %v838 = vadd.f32 %v833, 1.0
    %v839 = vadd.f32 %v835, 1.0
    %v840 = vadd.f32 %v837, 1.0
    %v841 = vrcp.pop %v838
    %v842 = vmul.f32 1.0, %v841
    %v843 = vrcp.pop %v839
    %v844 = vmul.f32 1.0, %v843
    %v845 = vrcp.pop %v840
    %v846 = vmul.f32 1.0, %v845
    %v847 = vtanh.pop %v828
    %v849 = vrot.slane %v727, 7
    %v851 = vmul.f32 %v844, %v849
    %v852 = vmul.f32 %v842, %v847
    %v853 = vadd.f32 %v851, %v852
    %v854 = vtanh.pop %v853
    %v855 = vmul.f32 %v846, %v854
    %v856 = vpack.c.bf16 0.0, 0.0
    %v857 = vld [vmem:[#allocation7] sm:$0xff]
    %v858 = vld [vmem:[#allocation7 + $0x8] sm:$0xff]
    %v859 = vld [vmem:[#allocation7 + $0x10] sm:$0xff]
    %v860 = vld [vmem:[#allocation7 + $0x18] sm:$0xff]
    %v861 = vld [vmem:[#allocation7 + $0x20] sm:$0xff]
    %v862 = vld [vmem:[#allocation7 + $0x28] sm:$0xff]
    %v863 = vld [vmem:[#allocation7 + $0x30] sm:$0xff]
    %v864 = vld [vmem:[#allocation7 + $0x38] sm:$0xff]
    %v865 = vld [vmem:[#allocation7 + $0x40] sm:$0xff]
    %v866 = vld [vmem:[#allocation7 + $0x48] sm:$0xff]
    %v867 = vld [vmem:[#allocation7 + $0x50] sm:$0xff]
    %v868 = vld [vmem:[#allocation7 + $0x58] sm:$0xff]
    %v869 = vld [vmem:[#allocation7 + $0x60] sm:$0xff]
    %v870 = vld [vmem:[#allocation7 + $0x68] sm:$0xff]
    %v871 = vld [vmem:[#allocation7 + $0x70] sm:$0xff]
    %v872 = vld [vmem:[#allocation7 + $0x78] sm:$0xff]
    %v873 = vld [vmem:[#allocation7 + $0x80] sm:$0xff]
    %v874 = vld [vmem:[#allocation7 + $0x88] sm:$0xff]
    %v875 = vld [vmem:[#allocation7 + $0x90] sm:$0xff]
    %v876 = vld [vmem:[#allocation7 + $0x98] sm:$0xff]
    %v877 = vld [vmem:[#allocation7 + $0xa0] sm:$0xff]
    %v878 = vld [vmem:[#allocation7 + $0xa8] sm:$0xff]
    %v879 = vld [vmem:[#allocation7 + $0xb0] sm:$0xff]
    %v880 = vld [vmem:[#allocation7 + $0xb8] sm:$0xff]
    %v881 = vld [vmem:[#allocation7 + $0xc0] sm:$0xff]
    %v882 = vld [vmem:[#allocation7 + $0xc8] sm:$0xff]
    %v883 = vld [vmem:[#allocation7 + $0xd0] sm:$0xff]
    %v884 = vld [vmem:[#allocation7 + $0xd8] sm:$0xff]
    %v885 = vld [vmem:[#allocation7 + $0xe0] sm:$0xff]
    %v886 = vld [vmem:[#allocation7 + $0xe8] sm:$0xff]
    %v887 = vld [vmem:[#allocation7 + $0xf0] sm:$0xff]
    %v888 = vld [vmem:[#allocation7 + $0xf8] sm:$0xff]
    %v889 = vld [vmem:[#allocation7 + $0x100] sm:$0xff]
    %v890 = vld [vmem:[#allocation7 + $0x108] sm:$0xff]
    %v891 = vld [vmem:[#allocation7 + $0x110] sm:$0xff]
    %v892 = vld [vmem:[#allocation7 + $0x118] sm:$0xff]
    %v893 = vld [vmem:[#allocation7 + $0x120] sm:$0xff]
    %v894 = vld [vmem:[#allocation7 + $0x128] sm:$0xff]
    %v895 = vld [vmem:[#allocation7 + $0x130] sm:$0xff]
    %v896 = vld [vmem:[#allocation7 + $0x138] sm:$0xff]
    %v897 = vld [vmem:[#allocation7 + $0x140] sm:$0xff]
    %v898 = vld [vmem:[#allocation7 + $0x148] sm:$0xff]
    %v899 = vld [vmem:[#allocation7 + $0x150] sm:$0xff]
    %v900 = vld [vmem:[#allocation7 + $0x158] sm:$0xff]
    %v901 = vld [vmem:[#allocation7 + $0x160] sm:$0xff]
    %v902 = vld [vmem:[#allocation7 + $0x168] sm:$0xff]
    %v903 = vld [vmem:[#allocation7 + $0x170] sm:$0xff]
    %v904 = vld [vmem:[#allocation7 + $0x178] sm:$0xff]
    %v905 = vld [vmem:[#allocation7 + $0x180] sm:$0xff]
    %v906 = vld [vmem:[#allocation7 + $0x188] sm:$0xff]
    %v907 = vld [vmem:[#allocation7 + $0x190] sm:$0xff]
    %v908 = vld [vmem:[#allocation7 + $0x198] sm:$0xff]
    %v909 = vld [vmem:[#allocation7 + $0x1a0] sm:$0xff]
    %v910 = vld [vmem:[#allocation7 + $0x1a8] sm:$0xff]
    %v911 = vld [vmem:[#allocation7 + $0x1b0] sm:$0xff]
    %v912 = vld [vmem:[#allocation7 + $0x1b8] sm:$0xff]
    %v913 = vld [vmem:[#allocation7 + $0x1c0] sm:$0xff]
    %v914 = vld [vmem:[#allocation7 + $0x1c8] sm:$0xff]
    %v915 = vld [vmem:[#allocation7 + $0x1d0] sm:$0xff]
    %v916 = vld [vmem:[#allocation7 + $0x1d8] sm:$0xff]
    %v917 = vld [vmem:[#allocation7 + $0x1e0] sm:$0xff]
    %v918 = vld [vmem:[#allocation7 + $0x1e8] sm:$0xff]
    %v919 = vld [vmem:[#allocation7 + $0x1f0] sm:$0xff]
    %v920 = vld [vmem:[#allocation7 + $0x1f8] sm:$0xff]
    %v985 = vunpack.c.l.b16 %v857
    %v986 = vunpack.c.h.b16 %v857
    %v987 = vunpack.c.l.b16 %v858
    %v988 = vunpack.c.h.b16 %v858
    %v989 = vunpack.c.l.b16 %v859
    %v990 = vunpack.c.h.b16 %v859
    %v991 = vunpack.c.l.b16 %v860
    %v992 = vunpack.c.h.b16 %v860
    %v993 = vunpack.c.l.b16 %v861
    %v994 = vunpack.c.h.b16 %v861
    %v995 = vunpack.c.l.b16 %v862
    %v996 = vunpack.c.h.b16 %v862
    %v997 = vunpack.c.l.b16 %v863
    %v998 = vunpack.c.h.b16 %v863
    %v999 = vunpack.c.l.b16 %v864
    %v1000 = vunpack.c.h.b16 %v864
    %v1001 = vunpack.c.l.b16 %v865
    %v1002 = vunpack.c.h.b16 %v865
    %v1003 = vunpack.c.l.b16 %v866
    %v1004 = vunpack.c.h.b16 %v866
    %v1005 = vunpack.c.l.b16 %v867
    %v1006 = vunpack.c.h.b16 %v867
    %v1007 = vunpack.c.l.b16 %v868
    %v1008 = vunpack.c.h.b16 %v868
    %v1009 = vunpack.c.l.b16 %v869
    %v1010 = vunpack.c.h.b16 %v869
    %v1011 = vunpack.c.l.b16 %v870
    %v1012 = vunpack.c.h.b16 %v870
    %v1013 = vunpack.c.l.b16 %v871
    %v1014 = vunpack.c.h.b16 %v871
    %v1015 = vunpack.c.l.b16 %v872
    %v1016 = vunpack.c.h.b16 %v872
    %v1017 = vunpack.c.l.b16 %v873
    %v1018 = vunpack.c.h.b16 %v873
    %v1019 = vunpack.c.l.b16 %v874
    %v1020 = vunpack.c.h.b16 %v874
    %v1021 = vunpack.c.l.b16 %v875
    %v1022 = vunpack.c.h.b16 %v875
    %v1023 = vunpack.c.l.b16 %v876
    %v1024 = vunpack.c.h.b16 %v876
    %v1025 = vunpack.c.l.b16 %v877
    %v1026 = vunpack.c.h.b16 %v877
    %v1027 = vunpack.c.l.b16 %v878
    %v1028 = vunpack.c.h.b16 %v878
    %v1029 = vunpack.c.l.b16 %v879
    %v1030 = vunpack.c.h.b16 %v879
    %v1031 = vunpack.c.l.b16 %v880
    %v1032 = vunpack.c.h.b16 %v880
    %v1033 = vunpack.c.l.b16 %v881
    %v1034 = vunpack.c.h.b16 %v881
    %v1035 = vunpack.c.l.b16 %v882
    %v1036 = vunpack.c.h.b16 %v882
    %v1037 = vunpack.c.l.b16 %v883
    %v1038 = vunpack.c.h.b16 %v883
    %v1039 = vunpack.c.l.b16 %v884
    %v1040 = vunpack.c.h.b16 %v884
    %v1041 = vunpack.c.l.b16 %v885
    %v1042 = vunpack.c.h.b16 %v885
    %v1043 = vunpack.c.l.b16 %v886
    %v1044 = vunpack.c.h.b16 %v886
    %v1045 = vunpack.c.l.b16 %v887
    %v1046 = vunpack.c.h.b16 %v887
    %v1047 = vunpack.c.l.b16 %v888
    %v1048 = vunpack.c.h.b16 %v888
    %v1049 = vunpack.c.l.b16 %v889
    %v1050 = vunpack.c.h.b16 %v889
    %v1051 = vunpack.c.l.b16 %v890
    %v1052 = vunpack.c.h.b16 %v890
    %v1053 = vunpack.c.l.b16 %v891
    %v1054 = vunpack.c.h.b16 %v891
    %v1055 = vunpack.c.l.b16 %v892
    %v1056 = vunpack.c.h.b16 %v892
    %v1057 = vunpack.c.l.b16 %v893
    %v1058 = vunpack.c.h.b16 %v893
    %v1059 = vunpack.c.l.b16 %v894
    %v1060 = vunpack.c.h.b16 %v894
    %v1061 = vunpack.c.l.b16 %v895
    %v1062 = vunpack.c.h.b16 %v895
    %v1063 = vunpack.c.l.b16 %v896
    %v1064 = vunpack.c.h.b16 %v896
    %v1065 = vunpack.c.l.b16 %v897
    %v1066 = vunpack.c.h.b16 %v897
    %v1067 = vunpack.c.l.b16 %v898
    %v1068 = vunpack.c.h.b16 %v898
    %v1069 = vunpack.c.l.b16 %v899
    %v1070 = vunpack.c.h.b16 %v899
    %v1071 = vunpack.c.l.b16 %v900
    %v1072 = vunpack.c.h.b16 %v900
    %v1073 = vunpack.c.l.b16 %v901
    %v1074 = vunpack.c.h.b16 %v901
    %v1075 = vunpack.c.l.b16 %v902
    %v1076 = vunpack.c.h.b16 %v902
    %v1077 = vunpack.c.l.b16 %v903
    %v1078 = vunpack.c.h.b16 %v903
    %v1079 = vunpack.c.l.b16 %v904
    %v1080 = vunpack.c.h.b16 %v904
    %v1081 = vunpack.c.l.b16 %v905
    %v1082 = vunpack.c.h.b16 %v905
    %v1083 = vunpack.c.l.b16 %v906
    %v1084 = vunpack.c.h.b16 %v906
    %v1085 = vunpack.c.l.b16 %v907
    %v1086 = vunpack.c.h.b16 %v907
    %v1087 = vunpack.c.l.b16 %v908
    %v1088 = vunpack.c.h.b16 %v908
    %v1089 = vunpack.c.l.b16 %v909
    %v1090 = vunpack.c.h.b16 %v909
    %v1091 = vunpack.c.l.b16 %v910
    %v1092 = vunpack.c.h.b16 %v910
    %v1093 = vunpack.c.l.b16 %v911
    %v1094 = vunpack.c.h.b16 %v911
    %v1095 = vunpack.c.l.b16 %v912
    %v1096 = vunpack.c.h.b16 %v912
    %v1097 = vunpack.c.l.b16 %v913
    %v1098 = vunpack.c.h.b16 %v913
    %v1099 = vunpack.c.l.b16 %v914
    %v1100 = vunpack.c.h.b16 %v914
    %v1101 = vunpack.c.l.b16 %v915
    %v1102 = vunpack.c.h.b16 %v915
    %v1103 = vunpack.c.l.b16 %v916
    %v1104 = vunpack.c.h.b16 %v916
    %v1105 = vunpack.c.l.b16 %v917
    %v1106 = vunpack.c.h.b16 %v917
    %v1107 = vunpack.c.l.b16 %v918
    %v1108 = vunpack.c.h.b16 %v918
    %v1109 = vunpack.c.l.b16 %v919
    %v1110 = vunpack.c.h.b16 %v919
    %v1111 = vunpack.c.l.b16 %v920
    %v1112 = vunpack.c.h.b16 %v920
    %v1113 = vpack.c.b16 %v989, %v985
    %v1114 = vpack.c.b16 %v990, %v986
    %v1115 = vpack.c.b16 %v991, %v987
    %v1116 = vpack.c.b16 %v992, %v988
    %v1117 = vpack.c.b16 %v997, %v993
    %v1118 = vpack.c.b16 %v998, %v994
    %v1119 = vpack.c.b16 %v999, %v995
    %v1120 = vpack.c.b16 %v1000, %v996
    %v1121 = vpack.c.b16 %v1005, %v1001
    %v1122 = vpack.c.b16 %v1006, %v1002
    %v1123 = vpack.c.b16 %v1007, %v1003
    %v1124 = vpack.c.b16 %v1008, %v1004
    %v1125 = vpack.c.b16 %v1013, %v1009
    %v1126 = vpack.c.b16 %v1014, %v1010
    %v1127 = vpack.c.b16 %v1015, %v1011
    %v1128 = vpack.c.b16 %v1016, %v1012
    %v1129 = vpack.c.b16 %v1021, %v1017
    %v1130 = vpack.c.b16 %v1022, %v1018
    %v1131 = vpack.c.b16 %v1023, %v1019
    %v1132 = vpack.c.b16 %v1024, %v1020
    %v1133 = vpack.c.b16 %v1029, %v1025
    %v1134 = vpack.c.b16 %v1030, %v1026
    %v1135 = vpack.c.b16 %v1031, %v1027
    %v1136 = vpack.c.b16 %v1032, %v1028
    %v1137 = vpack.c.b16 %v1037, %v1033
    %v1138 = vpack.c.b16 %v1038, %v1034
    %v1139 = vpack.c.b16 %v1039, %v1035
    %v1140 = vpack.c.b16 %v1040, %v1036
    %v1141 = vpack.c.b16 %v1045, %v1041
    %v1142 = vpack.c.b16 %v1046, %v1042
    %v1143 = vpack.c.b16 %v1047, %v1043
    %v1144 = vpack.c.b16 %v1048, %v1044
    %v1145 = vpack.c.b16 %v1053, %v1049
    %v1146 = vpack.c.b16 %v1054, %v1050
    %v1147 = vpack.c.b16 %v1055, %v1051
    %v1148 = vpack.c.b16 %v1056, %v1052
    %v1149 = vpack.c.b16 %v1061, %v1057
    %v1150 = vpack.c.b16 %v1062, %v1058
    %v1151 = vpack.c.b16 %v1063, %v1059
    %v1152 = vpack.c.b16 %v1064, %v1060
    %v1153 = vpack.c.b16 %v1069, %v1065
    %v1154 = vpack.c.b16 %v1070, %v1066
    %v1155 = vpack.c.b16 %v1071, %v1067
    %v1156 = vpack.c.b16 %v1072, %v1068
    %v1157 = vpack.c.b16 %v1077, %v1073
    %v1158 = vpack.c.b16 %v1078, %v1074
    %v1159 = vpack.c.b16 %v1079, %v1075
    %v1160 = vpack.c.b16 %v1080, %v1076
    %v1161 = vpack.c.b16 %v1085, %v1081
    %v1162 = vpack.c.b16 %v1086, %v1082
    %v1163 = vpack.c.b16 %v1087, %v1083
    %v1164 = vpack.c.b16 %v1088, %v1084
    %v1165 = vpack.c.b16 %v1093, %v1089
    %v1166 = vpack.c.b16 %v1094, %v1090
    %v1167 = vpack.c.b16 %v1095, %v1091
    %v1168 = vpack.c.b16 %v1096, %v1092
    %v1169 = vpack.c.b16 %v1101, %v1097
    %v1170 = vpack.c.b16 %v1102, %v1098
    %v1171 = vpack.c.b16 %v1103, %v1099
    %v1172 = vpack.c.b16 %v1104, %v1100
    %v1173 = vpack.c.b16 %v1109, %v1105
    %v1174 = vpack.c.b16 %v1110, %v1106
    %v1175 = vpack.c.b16 %v1111, %v1107
    %v1176 = vpack.c.b16 %v1112, %v1108
    %v1242 = vlaneseq
    %v1243 = vshrl.u32 %v1242, 7
    %v1244 = vsub.s32 0, %v1243
    %v1245 = vrot.slane %v427, %v1244
    %v1246 = vlaneseq
    %v1247 = vshrl.u32 %v1246, 7
    %v1248 = vsub.s32 1, %v1247
    %v1249 = vrot.slane %v427, %v1248
    %v1250 = vlaneseq
    %v1251 = vshrl.u32 %v1250, 7
    %v1252 = vsub.s32 2, %v1251
    %v1253 = vrot.slane %v427, %v1252
    %v1254 = vlaneseq
    %v1255 = vshrl.u32 %v1254, 7
    %v1256 = vsub.s32 3, %v1255
    %v1257 = vrot.slane %v427, %v1256
    %1262 = vmatprep.subr.bf16.mxu0 %v1114
    %1263 = vmatpush1.bf16.msra.mxu0 %v1113
    %1264 = vmatprep.subr.bf16.mxu0 %v1118
    %1265 = vmatpush1.bf16.msra.mxu0 %v1117
    %1266 = vmatprep.subr.bf16.mxu0 %v1122
    %1267 = vmatpush1.bf16.msra.mxu0 %v1121
    %1268 = vmatprep.subr.bf16.mxu0 %v1126
    %1269 = vmatpush1.bf16.msra.mxu0 %v1125
    %1270 = vmatprep.subr.bf16.mxu0 %v1130
    %1271 = vmatpush1.bf16.msra.mxu0 %v1129
    %1272 = vmatprep.subr.bf16.mxu0 %v1134
    %1273 = vmatpush1.bf16.msra.mxu0 %v1133
    %1274 = vmatprep.subr.bf16.mxu0 %v1138
    %1275 = vmatpush1.bf16.msra.mxu0 %v1137
    %1276 = vmatprep.subr.bf16.mxu0 %v1142
    %1277 = vmatpush1.bf16.msra.mxu0 %v1141
    %1278 = vmatprep.subr.bf16.mxu0 %v1146
    %1279 = vmatpush1.bf16.msra.mxu0 %v1145
    %1280 = vmatprep.subr.bf16.mxu0 %v1150
    %1281 = vmatpush1.bf16.msra.mxu0 %v1149
    %1282 = vmatprep.subr.bf16.mxu0 %v1154
    %1283 = vmatpush1.bf16.msra.mxu0 %v1153
    %1284 = vmatprep.subr.bf16.mxu0 %v1158
    %1285 = vmatpush1.bf16.msra.mxu0 %v1157
    %1286 = vmatprep.subr.bf16.mxu0 %v1162
    %1287 = vmatpush1.bf16.msra.mxu0 %v1161
    %1288 = vmatprep.subr.bf16.mxu0 %v1166
    %1289 = vmatpush1.bf16.msra.mxu0 %v1165
    %1290 = vmatprep.subr.bf16.mxu0 %v1170
    %1291 = vmatpush1.bf16.msra.mxu0 %v1169
    %1292 = vmatprep.subr.bf16.mxu0 %v1174
    %1293 = vmatpush1.bf16.msra.mxu0 %v1173
    %1294 = vmatprep.mubr.bf16.mxu0 %v856
    %1295 = vmatmul.mubr.bf16.gmra.mrb[0].mxu0 %v730
    %v1296 = vpop.f32.mrb[0].mxu0
    %v1297 = vadd.f32 %v1245, %v1296
    %v1298 = vpop.f32.mrb[0].mxu0
    %v1299 = vadd.f32 %v1249, %v1298
    %v1300 = vpop.f32.mrb[0].mxu0
    %v1301 = vpop.f32.mrb[0].mxu0
    %1302 = vdwg.mxu0
    %1303 = vmatprep.subr.bf16.mxu0 %v1116
    %1304 = vmatpush1.bf16.msra.mxu0 %v1115
    %1305 = vmatprep.subr.bf16.mxu0 %v1120
    %1306 = vmatpush1.bf16.msra.mxu0 %v1119
    %1307 = vmatprep.subr.bf16.mxu0 %v1124
    %1308 = vmatpush1.bf16.msra.mxu0 %v1123
    %1309 = vmatprep.subr.bf16.mxu0 %v1128
    %1310 = vmatpush1.bf16.msra.mxu0 %v1127
    %1311 = vmatprep.subr.bf16.mxu0 %v1132
    %1312 = vmatpush1.bf16.msra.mxu0 %v1131
    %1313 = vmatprep.subr.bf16.mxu0 %v1136
    %1314 = vmatpush1.bf16.msra.mxu0 %v1135
    %1315 = vmatprep.subr.bf16.mxu0 %v1140
    %1316 = vmatpush1.bf16.msra.mxu0 %v1139
    %1317 = vmatprep.subr.bf16.mxu0 %v1144
    %1318 = vmatpush1.bf16.msra.mxu0 %v1143
    %1319 = vmatprep.subr.bf16.mxu0 %v1148
    %1320 = vmatpush1.bf16.msra.mxu0 %v1147
    %1321 = vmatprep.subr.bf16.mxu0 %v1152
    %1322 = vmatpush1.bf16.msra.mxu0 %v1151
    %1323 = vmatprep.subr.bf16.mxu0 %v1156
    %1324 = vmatpush1.bf16.msra.mxu0 %v1155
    %1325 = vmatprep.subr.bf16.mxu0 %v1160
    %1326 = vmatpush1.bf16.msra.mxu0 %v1159
    %1327 = vmatprep.subr.bf16.mxu0 %v1164
    %1328 = vmatpush1.bf16.msra.mxu0 %v1163
    %1329 = vmatprep.subr.bf16.mxu0 %v1168
    %1330 = vmatpush1.bf16.msra.mxu0 %v1167
    %1331 = vmatprep.subr.bf16.mxu0 %v1172
    %1332 = vmatpush1.bf16.msra.mxu0 %v1171
    %1333 = vmatprep.subr.bf16.mxu0 %v1176
    %1334 = vmatpush1.bf16.msra.mxu0 %v1175
    %1335 = vmatprep.mubr.bf16.mxu0 %v856
    %1336 = vmatmul.mubr.bf16.gmra.mrb[0].mxu0 %v730
    %v1337 = vpop.f32.mrb[0].mxu0
    %v1338 = vadd.f32 %v1253, %v1337
    %v1339 = vpop.f32.mrb[0].mxu0
    %v1340 = vadd.f32 %v1257, %v1339
    %v1341 = vpop.f32.mrb[0].mxu0
    %v1342 = vpop.f32.mrb[0].mxu0
    %1343 = vdwg.mxu0
    %v1344 = vxor.u32 %v1297, 2147483648
    %v1345 = vxor.u32 %v1299, 2147483648
    %v1346 = vxor.u32 %v1338, 2147483648
    %v1347 = vmul.f32 %v1344, 1.442695
    %v1348 = vpow.pop %v1347
    %v1349 = vmul.f32 %v1345, 1.442695
    %v1350 = vpow.pop %v1349
    %v1351 = vmul.f32 %v1346, 1.442695
    %v1352 = vpow.pop %v1351
    %v1353 = vadd.f32 %v1348, 1.0
    %v1354 = vadd.f32 %v1350, 1.0
    %v1355 = vadd.f32 %v1352, 1.0
    %v1356 = vrcp.pop %v1353
    %v1357 = vmul.f32 1.0, %v1356
    %v1358 = vrcp.pop %v1354
    %v1359 = vmul.f32 1.0, %v1358
    %v1360 = vrcp.pop %v1355
    %v1361 = vmul.f32 1.0, %v1360
    %v1362 = vtanh.pop %v1340
    %v1363 = vmul.f32 %v1359, 0.0
    %v1364 = vmul.f32 %v1357, %v1362
    %v1365 = vadd.f32 %v1363, %v1364
    %v1366 = vtanh.pop %v1365
    %v1367 = vmul.f32 %v1361, %v1366
    %v1368 = vpack.c.bf16 %v855, %v855
    %v1370 = vshrl.u32 %v1368, 16
    %1373 = vmatprep.subr.bf16.mxu0 %v557
    %1374 = vmatpush1.bf16.msra.mxu0 %v556
    %1375 = vmatprep.subr.bf16.mxu0 %v561
    %1376 = vmatpush1.bf16.msra.mxu0 %v560
    %1377 = vmatprep.subr.bf16.mxu0 %v565
    %1378 = vmatpush1.bf16.msra.mxu0 %v564
    %1379 = vmatprep.subr.bf16.mxu0 %v569
    %1380 = vmatpush1.bf16.msra.mxu0 %v568
    %1381 = vmatprep.subr.bf16.mxu0 %v573
    %1382 = vmatpush1.bf16.msra.mxu0 %v572
    %1383 = vmatprep.subr.bf16.mxu0 %v577
    %1384 = vmatpush1.bf16.msra.mxu0 %v576
    %1385 = vmatprep.subr.bf16.mxu0 %v581
    %1386 = vmatpush1.bf16.msra.mxu0 %v580
    %1387 = vmatprep.subr.bf16.mxu0 %v585
    %1388 = vmatpush1.bf16.msra.mxu0 %v584
    %1389 = vmatprep.subr.bf16.mxu0 0
    %1390 = vmatpush1.bf16.msra.mxu0 0
    %1391 = vmatprep.subr.bf16.mxu0 0
    %1392 = vmatpush1.bf16.msra.mxu0 0
    %1393 = vmatprep.subr.bf16.mxu0 0
    %1394 = vmatpush1.bf16.msra.mxu0 0
    %1395 = vmatprep.subr.bf16.mxu0 0
    %1396 = vmatpush1.bf16.msra.mxu0 0
    %1397 = vmatprep.subr.bf16.mxu0 0
    %1398 = vmatpush1.bf16.msra.mxu0 0
    %1399 = vmatprep.subr.bf16.mxu0 0
    %1400 = vmatpush1.bf16.msra.mxu0 0
    %1401 = vmatprep.subr.bf16.mxu0 0
    %1402 = vmatpush1.bf16.msra.mxu0 0
    %1403 = vmatprep.subr.bf16.mxu0 0
    %1404 = vmatpush1.bf16.msra.mxu0 0
    %1405 = vmatprep.mubr.bf16.mxu0 0
    %1406 = vmatmul.mubr.bf16.gmra.mrb[0].mxu0 %v1370
    %v1407 = vpop.f32.mrb[0].mxu0
    %v1408 = vadd.f32 0.0, %v1407
    %v1409 = vpop.f32.mrb[0].mxu0
    %v1410 = vadd.f32 0.0, %v1409
    %v1411 = vpop.f32.mrb[0].mxu0
    %v1412 = vpop.f32.mrb[0].mxu0
    %1413 = vdwg.mxu0
    %1414 = vmatprep.subr.bf16.mxu0 %v559
    %1415 = vmatpush1.bf16.msra.mxu0 %v558
    %1416 = vmatprep.subr.bf16.mxu0 %v563
    %1417 = vmatpush1.bf16.msra.mxu0 %v562
    %1418 = vmatprep.subr.bf16.mxu0 %v567
    %1419 = vmatpush1.bf16.msra.mxu0 %v566
    %1420 = vmatprep.subr.bf16.mxu0 %v571
    %1421 = vmatpush1.bf16.msra.mxu0 %v570
    %1422 = vmatprep.subr.bf16.mxu0 %v575
    %1423 = vmatpush1.bf16.msra.mxu0 %v574
    %1424 = vmatprep.subr.bf16.mxu0 %v579
    %1425 = vmatpush1.bf16.msra.mxu0 %v578
    %1426 = vmatprep.subr.bf16.mxu0 %v583
    %1427 = vmatpush1.bf16.msra.mxu0 %v582
    %1428 = vmatprep.subr.bf16.mxu0 %v587
    %1429 = vmatpush1.bf16.msra.mxu0 %v586
    %1430 = vmatprep.subr.bf16.mxu0 0
    %1431 = vmatpush1.bf16.msra.mxu0 0
    %1432 = vmatprep.subr.bf16.mxu0 0
    %1433 = vmatpush1.bf16.msra.mxu0 0
    %1434 = vmatprep.subr.bf16.mxu0 0
    %1435 = vmatpush1.bf16.msra.mxu0 0
    %1436 = vmatprep.subr.bf16.mxu0 0
    %1437 = vmatpush1.bf16.msra.mxu0 0
    %1438 = vmatprep.subr.bf16.mxu0 0
    %1439 = vmatpush1.bf16.msra.mxu0 0
    %1440 = vmatprep.subr.bf16.mxu0 0
    %1441 = vmatpush1.bf16.msra.mxu0 0
    %1442 = vmatprep.subr.bf16.mxu0 0
    %1443 = vmatpush1.bf16.msra.mxu0 0
    %1444 = vmatprep.subr.bf16.mxu0 0
    %1445 = vmatpush1.bf16.msra.mxu0 0
    %1446 = vmatprep.mubr.bf16.mxu0 0
    %1447 = vmatmul.mubr.bf16.gmra.mrb[0].mxu0 %v1370
    %v1448 = vpop.f32.mrb[0].mxu0
    %v1449 = vadd.f32 0.0, %v1448
    %v1450 = vpop.f32.mrb[0].mxu0
    %v1451 = vadd.f32 0.0, %v1450
    %v1452 = vpop.f32.mrb[0].mxu0
    %v1453 = vpop.f32.mrb[0].mxu0
    %1454 = vdwg.mxu0
    %v1459 = vrot.slane %v1408, 6
    %v1460 = vrot.slane %v1410, 6
    %v1461 = vrot.slane %v1449, 6
    %v1462 = vrot.slane %v1451, 6
    %v1467 = vadd.f32 %v380, %v1459
    %v1468 = vadd.f32 %v382, %v1460
    %v1469 = vadd.f32 %v421, %v1461
    %v1470 = vadd.f32 %v423, %v1462
    %v1471 = vxor.u32 %v1467, 2147483648
    %v1472 = vxor.u32 %v1468, 2147483648
    %v1473 = vxor.u32 %v1469, 2147483648
    %v1474 = vmul.f32 %v1471, 1.442695
    %v1475 = vpow.pop %v1474
    %v1476 = vmul.f32 %v1472, 1.442695
    %v1477 = vpow.pop %v1476
    %v1478 = vmul.f32 %v1473, 1.442695
    %v1479 = vpow.pop %v1478
    %v1480 = vadd.f32 %v1475, 1.0
    %v1481 = vadd.f32 %v1477, 1.0
    %v1482 = vadd.f32 %v1479, 1.0
    %v1483 = vrcp.pop %v1480
    %v1484 = vmul.f32 1.0, %v1483
    %v1485 = vrcp.pop %v1481
    %v1486 = vmul.f32 1.0, %v1485
    %v1487 = vrcp.pop %v1482
    %v1488 = vmul.f32 1.0, %v1487
    %v1489 = vtanh.pop %v1470
    %v1491 = vrot.slane %v853, 7
    %v1493 = vmul.f32 %v1486, %v1491
    %v1494 = vmul.f32 %v1484, %v1489
    %v1495 = vadd.f32 %v1493, %v1494
    %v1496 = vtanh.pop %v1495
    %v1497 = vmul.f32 %v1488, %v1496
    %v1499 = vrot.slane %v1367, 7
    %v1501 = vpack.c.bf16 %v1499, %v1499
    %v1503 = vshrl.u32 %v1501, 16
    %1506 = vmatprep.subr.bf16.mxu0 %v1114
    %1507 = vmatpush1.bf16.msra.mxu0 %v1113
    %1508 = vmatprep.subr.bf16.mxu0 %v1118
    %1509 = vmatpush1.bf16.msra.mxu0 %v1117
    %1510 = vmatprep.subr.bf16.mxu0 %v1122
    %1511 = vmatpush1.bf16.msra.mxu0 %v1121
    %1512 = vmatprep.subr.bf16.mxu0 %v1126
    %1513 = vmatpush1.bf16.msra.mxu0 %v1125
    %1514 = vmatprep.subr.bf16.mxu0 %v1130
    %1515 = vmatpush1.bf16.msra.mxu0 %v1129
    %1516 = vmatprep.subr.bf16.mxu0 %v1134
    %1517 = vmatpush1.bf16.msra.mxu0 %v1133
    %1518 = vmatprep.subr.bf16.mxu0 %v1138
    %1519 = vmatpush1.bf16.msra.mxu0 %v1137
    %1520 = vmatprep.subr.bf16.mxu0 %v1142
    %1521 = vmatpush1.bf16.msra.mxu0 %v1141
    %1522 = vmatprep.subr.bf16.mxu0 %v1146
    %1523 = vmatpush1.bf16.msra.mxu0 %v1145
    %1524 = vmatprep.subr.bf16.mxu0 %v1150
    %1525 = vmatpush1.bf16.msra.mxu0 %v1149
    %1526 = vmatprep.subr.bf16.mxu0 %v1154
    %1527 = vmatpush1.bf16.msra.mxu0 %v1153
    %1528 = vmatprep.subr.bf16.mxu0 %v1158
    %1529 = vmatpush1.bf16.msra.mxu0 %v1157
    %1530 = vmatprep.subr.bf16.mxu0 %v1162
    %1531 = vmatpush1.bf16.msra.mxu0 %v1161
    %1532 = vmatprep.subr.bf16.mxu0 %v1166
    %1533 = vmatpush1.bf16.msra.mxu0 %v1165
    %1534 = vmatprep.subr.bf16.mxu0 %v1170
    %1535 = vmatpush1.bf16.msra.mxu0 %v1169
    %1536 = vmatprep.subr.bf16.mxu0 %v1174
    %1537 = vmatpush1.bf16.msra.mxu0 %v1173
    %1538 = vmatprep.mubr.bf16.mxu0 %v1503
    %1539 = vmatmul.mubr.bf16.gmra.mrb[0].mxu0 %v1370
    %v1540 = vpop.f32.mrb[0].mxu0
    %v1541 = vadd.f32 %v1245, %v1540
    %v1542 = vpop.f32.mrb[0].mxu0
    %v1543 = vadd.f32 %v1249, %v1542
    %v1544 = vpop.f32.mrb[0].mxu0
    %v1545 = vpop.f32.mrb[0].mxu0
    %1546 = vdwg.mxu0
    %1547 = vmatprep.subr.bf16.mxu0 %v1116
    %1548 = vmatpush1.bf16.msra.mxu0 %v1115
    %1549 = vmatprep.subr.bf16.mxu0 %v1120
    %1550 = vmatpush1.bf16.msra.mxu0 %v1119
    %1551 = vmatprep.subr.bf16.mxu0 %v1124
    %1552 = vmatpush1.bf16.msra.mxu0 %v1123
    %1553 = vmatprep.subr.bf16.mxu0 %v1128
    %1554 = vmatpush1.bf16.msra.mxu0 %v1127
    %1555 = vmatprep.subr.bf16.mxu0 %v1132
    %1556 = vmatpush1.bf16.msra.mxu0 %v1131
    %1557 = vmatprep.subr.bf16.mxu0 %v1136
    %1558 = vmatpush1.bf16.msra.mxu0 %v1135
    %1559 = vmatprep.subr.bf16.mxu0 %v1140
    %1560 = vmatpush1.bf16.msra.mxu0 %v1139
    %1561 = vmatprep.subr.bf16.mxu0 %v1144
    %1562 = vmatpush1.bf16.msra.mxu0 %v1143
    %1563 = vmatprep.subr.bf16.mxu0 %v1148
    %1564 = vmatpush1.bf16.msra.mxu0 %v1147
    %1565 = vmatprep.subr.bf16.mxu0 %v1152
    %1566 = vmatpush1.bf16.msra.mxu0 %v1151
    %1567 = vmatprep.subr.bf16.mxu0 %v1156
    %1568 = vmatpush1.bf16.msra.mxu0 %v1155
    %1569 = vmatprep.subr.bf16.mxu0 %v1160
    %1570 = vmatpush1.bf16.msra.mxu0 %v1159
    %1571 = vmatprep.subr.bf16.mxu0 %v1164
    %1572 = vmatpush1.bf16.msra.mxu0 %v1163
    %1573 = vmatprep.subr.bf16.mxu0 %v1168
    %1574 = vmatpush1.bf16.msra.mxu0 %v1167
    %1575 = vmatprep.subr.bf16.mxu0 %v1172
    %1576 = vmatpush1.bf16.msra.mxu0 %v1171
    %1577 = vmatprep.subr.bf16.mxu0 %v1176
    %1578 = vmatpush1.bf16.msra.mxu0 %v1175
    %1579 = vmatprep.mubr.bf16.mxu0 %v1503
    %1580 = vmatmul.mubr.bf16.gmra.mrb[0].mxu0 %v1370
    %v1581 = vpop.f32.mrb[0].mxu0
    %v1582 = vadd.f32 %v1253, %v1581
    %v1583 = vpop.f32.mrb[0].mxu0
    %v1584 = vadd.f32 %v1257, %v1583
    %v1585 = vpop.f32.mrb[0].mxu0
    %v1586 = vpop.f32.mrb[0].mxu0
    %1587 = vdwg.mxu0
    %v1588 = vxor.u32 %v1541, 2147483648
    %v1589 = vxor.u32 %v1543, 2147483648
    %v1590 = vxor.u32 %v1582, 2147483648
    %v1591 = vmul.f32 %v1588, 1.442695
    %v1592 = vpow.pop %v1591
    %v1593 = vmul.f32 %v1589, 1.442695
    %v1594 = vpow.pop %v1593
    %v1595 = vmul.f32 %v1590, 1.442695
    %v1596 = vpow.pop %v1595
    %v1597 = vadd.f32 %v1592, 1.0
    %v1598 = vadd.f32 %v1594, 1.0
    %v1599 = vadd.f32 %v1596, 1.0
    %v1600 = vrcp.pop %v1597
    %v1601 = vmul.f32 1.0, %v1600
    %v1602 = vrcp.pop %v1598
    %v1603 = vmul.f32 1.0, %v1602
    %v1604 = vrcp.pop %v1599
    %v1605 = vmul.f32 1.0, %v1604
    %v1606 = vtanh.pop %v1584
    %v1607 = vmul.f32 %v1603, %v1365
    %v1608 = vmul.f32 %v1601, %v1606
    %v1609 = vadd.f32 %v1607, %v1608
    %v1610 = vtanh.pop %v1609
    %v1611 = vmul.f32 %v1605, %v1610
    %v1612 = vpack.c.bf16 %v1497, %v1497
    %v1614 = vrot.slane %v1612, 1
    %1616 = vmatprep.subr.bf16.mxu0 %v557
    %1617 = vmatpush1.bf16.msra.mxu0 %v556
    %1618 = vmatprep.subr.bf16.mxu0 %v561
    %1619 = vmatpush1.bf16.msra.mxu0 %v560
    %1620 = vmatprep.subr.bf16.mxu0 %v565
    %1621 = vmatpush1.bf16.msra.mxu0 %v564
    %1622 = vmatprep.subr.bf16.mxu0 %v569
    %1623 = vmatpush1.bf16.msra.mxu0 %v568
    %1624 = vmatprep.subr.bf16.mxu0 %v573
    %1625 = vmatpush1.bf16.msra.mxu0 %v572
    %1626 = vmatprep.subr.bf16.mxu0 %v577
    %1627 = vmatpush1.bf16.msra.mxu0 %v576
    %1628 = vmatprep.subr.bf16.mxu0 %v581
    %1629 = vmatpush1.bf16.msra.mxu0 %v580
    %1630 = vmatprep.subr.bf16.mxu0 %v585
    %1631 = vmatpush1.bf16.msra.mxu0 %v584
    %1632 = vmatprep.subr.bf16.mxu0 0
    %1633 = vmatpush1.bf16.msra.mxu0 0
    %1634 = vmatprep.subr.bf16.mxu0 0
    %1635 = vmatpush1.bf16.msra.mxu0 0
    %1636 = vmatprep.subr.bf16.mxu0 0
    %1637 = vmatpush1.bf16.msra.mxu0 0
    %1638 = vmatprep.subr.bf16.mxu0 0
    %1639 = vmatpush1.bf16.msra.mxu0 0
    %1640 = vmatprep.subr.bf16.mxu0 0
    %1641 = vmatpush1.bf16.msra.mxu0 0
    %1642 = vmatprep.subr.bf16.mxu0 0
    %1643 = vmatpush1.bf16.msra.mxu0 0
    %1644 = vmatprep.subr.bf16.mxu0 0
    %1645 = vmatpush1.bf16.msra.mxu0 0
    %1646 = vmatprep.subr.bf16.mxu0 0
    %1647 = vmatpush1.bf16.msra.mxu0 0
    %1648 = vmatprep.mubr.bf16.mxu0 0
    %1649 = vmatmul.mubr.bf16.gmra.mrb[0].mxu0 %v1614
    %v1650 = vpop.f32.mrb[0].mxu0
    %v1651 = vadd.f32 0.0, %v1650
    %v1652 = vpop.f32.mrb[0].mxu0
    %v1653 = vadd.f32 0.0, %v1652
    %v1654 = vpop.f32.mrb[0].mxu0
    %v1655 = vpop.f32.mrb[0].mxu0
    %1656 = vdwg.mxu0
    %1657 = vmatprep.subr.bf16.mxu0 %v559
    %1658 = vmatpush1.bf16.msra.mxu0 %v558
    %1659 = vmatprep.subr.bf16.mxu0 %v563
    %1660 = vmatpush1.bf16.msra.mxu0 %v562
    %1661 = vmatprep.subr.bf16.mxu0 %v567
    %1662 = vmatpush1.bf16.msra.mxu0 %v566
    %1663 = vmatprep.subr.bf16.mxu0 %v571
    %1664 = vmatpush1.bf16.msra.mxu0 %v570
    %1665 = vmatprep.subr.bf16.mxu0 %v575
    %1666 = vmatpush1.bf16.msra.mxu0 %v574
    %1667 = vmatprep.subr.bf16.mxu0 %v579
    %1668 = vmatpush1.bf16.msra.mxu0 %v578
    %1669 = vmatprep.subr.bf16.mxu0 %v583
    %1670 = vmatpush1.bf16.msra.mxu0 %v582
    %1671 = vmatprep.subr.bf16.mxu0 %v587
    %1672 = vmatpush1.bf16.msra.mxu0 %v586
    %1673 = vmatprep.subr.bf16.mxu0 0
    %1674 = vmatpush1.bf16.msra.mxu0 0
    %1675 = vmatprep.subr.bf16.mxu0 0
    %1676 = vmatpush1.bf16.msra.mxu0 0
    %1677 = vmatprep.subr.bf16.mxu0 0
    %1678 = vmatpush1.bf16.msra.mxu0 0
    %1679 = vmatprep.subr.bf16.mxu0 0
    %1680 = vmatpush1.bf16.msra.mxu0 0
    %1681 = vmatprep.subr.bf16.mxu0 0
    %1682 = vmatpush1.bf16.msra.mxu0 0
    %1683 = vmatprep.subr.bf16.mxu0 0
    %1684 = vmatpush1.bf16.msra.mxu0 0
    %1685 = vmatprep.subr.bf16.mxu0 0
    %1686 = vmatpush1.bf16.msra.mxu0 0
    %1687 = vmatprep.subr.bf16.mxu0 0
    %1688 = vmatpush1.bf16.msra.mxu0 0
    %1689 = vmatprep.mubr.bf16.mxu0 0
    %1690 = vmatmul.mubr.bf16.gmra.mrb[0].mxu0 %v1614
    %v1691 = vpop.f32.mrb[0].mxu0
    %v1692 = vadd.f32 0.0, %v1691
    %v1693 = vpop.f32.mrb[0].mxu0
    %v1694 = vadd.f32 0.0, %v1693
    %v1695 = vpop.f32.mrb[0].mxu0
    %v1696 = vpop.f32.mrb[0].mxu0
    %1697 = vdwg.mxu0
    %v1702 = vrot.slane %v1651, 5
    %v1703 = vrot.slane %v1653, 5
    %v1704 = vrot.slane %v1692, 5
    %v1705 = vrot.slane %v1694, 5
    %v1710 = vadd.f32 %v380, %v1702
    %v1711 = vadd.f32 %v382, %v1703
    %v1712 = vadd.f32 %v421, %v1704
    %v1713 = vadd.f32 %v423, %v1705
    %v1714 = vxor.u32 %v1710, 2147483648
    %v1715 = vxor.u32 %v1711, 2147483648
    %v1716 = vxor.u32 %v1712, 2147483648
    %v1717 = vmul.f32 %v1714, 1.442695
    %v1718 = vpow.pop %v1717
    %v1719 = vmul.f32 %v1715, 1.442695
    %v1720 = vpow.pop %v1719
    %v1721 = vmul.f32 %v1716, 1.442695
    %v1722 = vpow.pop %v1721
    %v1723 = vadd.f32 %v1718, 1.0
    %v1724 = vadd.f32 %v1720, 1.0
    %v1725 = vadd.f32 %v1722, 1.0
    %v1726 = vrcp.pop %v1723
    %v1727 = vmul.f32 1.0, %v1726
    %v1728 = vrcp.pop %v1724
    %v1729 = vmul.f32 1.0, %v1728
    %v1730 = vrcp.pop %v1725
    %v1731 = vmul.f32 1.0, %v1730
    %v1732 = vtanh.pop %v1713
    %v1734 = vrot.slane %v1495, 7
    %v1736 = vmul.f32 %v1729, %v1734
    %v1737 = vmul.f32 %v1727, %v1732
    %v1738 = vadd.f32 %v1736, %v1737
    %v1739 = vtanh.pop %v1738
    %v1740 = vmul.f32 %v1731, %v1739
    %v1742 = vrot.slane %v1611, 6
    %v1744 = vpack.c.bf16 %v1742, %v1742
    %v1746 = vrot.slane %v1744, 1
    %1748 = vmatprep.subr.bf16.mxu0 %v1114
    %1749 = vmatpush1.bf16.msra.mxu0 %v1113
    %1750 = vmatprep.subr.bf16.mxu0 %v1118
    %1751 = vmatpush1.bf16.msra.mxu0 %v1117
    %1752 = vmatprep.subr.bf16.mxu0 %v1122
    %1753 = vmatpush1.bf16.msra.mxu0 %v1121
    %1754 = vmatprep.subr.bf16.mxu0 %v1126
    %1755 = vmatpush1.bf16.msra.mxu0 %v1125
    %1756 = vmatprep.subr.bf16.mxu0 %v1130
    %1757 = vmatpush1.bf16.msra.mxu0 %v1129
    %1758 = vmatprep.subr.bf16.mxu0 %v1134
    %1759 = vmatpush1.bf16.msra.mxu0 %v1133
    %1760 = vmatprep.subr.bf16.mxu0 %v1138
    %1761 = vmatpush1.bf16.msra.mxu0 %v1137
    %1762 = vmatprep.subr.bf16.mxu0 %v1142
    %1763 = vmatpush1.bf16.msra.mxu0 %v1141
    %1764 = vmatprep.subr.bf16.mxu0 %v1146
    %1765 = vmatpush1.bf16.msra.mxu0 %v1145
    %1766 = vmatprep.subr.bf16.mxu0 %v1150
    %1767 = vmatpush1.bf16.msra.mxu0 %v1149
    %1768 = vmatprep.subr.bf16.mxu0 %v1154
    %1769 = vmatpush1.bf16.msra.mxu0 %v1153
    %1770 = vmatprep.subr.bf16.mxu0 %v1158
    %1771 = vmatpush1.bf16.msra.mxu0 %v1157
    %1772 = vmatprep.subr.bf16.mxu0 %v1162
    %1773 = vmatpush1.bf16.msra.mxu0 %v1161
    %1774 = vmatprep.subr.bf16.mxu0 %v1166
    %1775 = vmatpush1.bf16.msra.mxu0 %v1165
    %1776 = vmatprep.subr.bf16.mxu0 %v1170
    %1777 = vmatpush1.bf16.msra.mxu0 %v1169
    %1778 = vmatprep.subr.bf16.mxu0 %v1174
    %1779 = vmatpush1.bf16.msra.mxu0 %v1173
    %1780 = vmatprep.mubr.bf16.mxu0 %v1746
    %1781 = vmatmul.mubr.bf16.gmra.mrb[0].mxu0 %v1614
    %v1782 = vpop.f32.mrb[0].mxu0
    %v1783 = vadd.f32 %v1245, %v1782
    %v1784 = vpop.f32.mrb[0].mxu0
    %v1785 = vadd.f32 %v1249, %v1784
    %v1786 = vpop.f32.mrb[0].mxu0
    %v1787 = vpop.f32.mrb[0].mxu0
    %1788 = vdwg.mxu0
    %1789 = vmatprep.subr.bf16.mxu0 %v1116
    %1790 = vmatpush1.bf16.msra.mxu0 %v1115
    %1791 = vmatprep.subr.bf16.mxu0 %v1120
    %1792 = vmatpush1.bf16.msra.mxu0 %v1119
    %1793 = vmatprep.subr.bf16.mxu0 %v1124
    %1794 = vmatpush1.bf16.msra.mxu0 %v1123
    %1795 = vmatprep.subr.bf16.mxu0 %v1128
    %1796 = vmatpush1.bf16.msra.mxu0 %v1127
    %1797 = vmatprep.subr.bf16.mxu0 %v1132
    %1798 = vmatpush1.bf16.msra.mxu0 %v1131
    %1799 = vmatprep.subr.bf16.mxu0 %v1136
    %1800 = vmatpush1.bf16.msra.mxu0 %v1135
    %1801 = vmatprep.subr.bf16.mxu0 %v1140
    %1802 = vmatpush1.bf16.msra.mxu0 %v1139
    %1803 = vmatprep.subr.bf16.mxu0 %v1144
    %1804 = vmatpush1.bf16.msra.mxu0 %v1143
    %1805 = vmatprep.subr.bf16.mxu0 %v1148
    %1806 = vmatpush1.bf16.msra.mxu0 %v1147
    %1807 = vmatprep.subr.bf16.mxu0 %v1152
    %1808 = vmatpush1.bf16.msra.mxu0 %v1151
    %1809 = vmatprep.subr.bf16.mxu0 %v1156
    %1810 = vmatpush1.bf16.msra.mxu0 %v1155
    %1811 = vmatprep.subr.bf16.mxu0 %v1160
    %1812 = vmatpush1.bf16.msra.mxu0 %v1159
    %1813 = vmatprep.subr.bf16.mxu0 %v1164
    %1814 = vmatpush1.bf16.msra.mxu0 %v1163
    %1815 = vmatprep.subr.bf16.mxu0 %v1168
    %1816 = vmatpush1.bf16.msra.mxu0 %v1167
    %1817 = vmatprep.subr.bf16.mxu0 %v1172
    %1818 = vmatpush1.bf16.msra.mxu0 %v1171
    %1819 = vmatprep.subr.bf16.mxu0 %v1176
    %1820 = vmatpush1.bf16.msra.mxu0 %v1175
    %1821 = vmatprep.mubr.bf16.mxu0 %v1746
    %1822 = vmatmul.mubr.bf16.gmra.mrb[0].mxu0 %v1614
    %v1823 = vpop.f32.mrb[0].mxu0
    %v1824 = vadd.f32 %v1253, %v1823
    %v1825 = vpop.f32.mrb[0].mxu0
    %v1826 = vadd.f32 %v1257, %v1825
    %v1827 = vpop.f32.mrb[0].mxu0
    %v1828 = vpop.f32.mrb[0].mxu0
    %1829 = vdwg.mxu0
    %v1830 = vxor.u32 %v1783, 2147483648
    %v1831 = vxor.u32 %v1785, 2147483648
    %v1832 = vxor.u32 %v1824, 2147483648
    %v1833 = vmul.f32 %v1830, 1.442695
    %v1834 = vpow.pop %v1833
    %v1835 = vmul.f32 %v1831, 1.442695
    %v1836 = vpow.pop %v1835
    %v1837 = vmul.f32 %v1832, 1.442695
    %v1838 = vpow.pop %v1837
    %v1839 = vadd.f32 %v1834, 1.0
    %v1840 = vadd.f32 %v1836, 1.0
    %v1841 = vadd.f32 %v1838, 1.0
    %v1842 = vrcp.pop %v1839
    %v1843 = vmul.f32 1.0, %v1842
    %v1844 = vrcp.pop %v1840
    %v1845 = vmul.f32 1.0, %v1844
    %v1846 = vrcp.pop %v1841
    %v1847 = vmul.f32 1.0, %v1846
    %v1848 = vtanh.pop %v1826
    %v1849 = vmul.f32 %v1845, %v1609
    %v1850 = vmul.f32 %v1843, %v1848
    %v1851 = vadd.f32 %v1849, %v1850
    %v1852 = vtanh.pop %v1851
    %v1853 = vmul.f32 %v1847, %v1852
    %v1854 = vpack.c.bf16 %v1740, %v1740
    %v1856 = vshrl.u32 %v1854, 16
    %v1858 = vrot.slane %v1856, 1
    %1860 = vmatprep.subr.bf16.mxu0 %v557
    %1861 = vmatpush1.bf16.msra.mxu0 %v556
    %1862 = vmatprep.subr.bf16.mxu0 %v561
    %1863 = vmatpush1.bf16.msra.mxu0 %v560
    %1864 = vmatprep.subr.bf16.mxu0 %v565
    %1865 = vmatpush1.bf16.msra.mxu0 %v564
    %1866 = vmatprep.subr.bf16.mxu0 %v569
    %1867 = vmatpush1.bf16.msra.mxu0 %v568
    %1868 = vmatprep.subr.bf16.mxu0 %v573
    %1869 = vmatpush1.bf16.msra.mxu0 %v572
    %1870 = vmatprep.subr.bf16.mxu0 %v577
    %1871 = vmatpush1.bf16.msra.mxu0 %v576
    %1872 = vmatprep.subr.bf16.mxu0 %v581
    %1873 = vmatpush1.bf16.msra.mxu0 %v580
    %1874 = vmatprep.subr.bf16.mxu0 %v585
    %1875 = vmatpush1.bf16.msra.mxu0 %v584
    %1876 = vmatprep.subr.bf16.mxu0 0
    %1877 = vmatpush1.bf16.msra.mxu0 0
    %1878 = vmatprep.subr.bf16.mxu0 0
    %1879 = vmatpush1.bf16.msra.mxu0 0
    %1880 = vmatprep.subr.bf16.mxu0 0
    %1881 = vmatpush1.bf16.msra.mxu0 0
    %1882 = vmatprep.subr.bf16.mxu0 0
    %1883 = vmatpush1.bf16.msra.mxu0 0
    %1884 = vmatprep.subr.bf16.mxu0 0
    %1885 = vmatpush1.bf16.msra.mxu0 0
    %1886 = vmatprep.subr.bf16.mxu0 0
    %1887 = vmatpush1.bf16.msra.mxu0 0
    %1888 = vmatprep.subr.bf16.mxu0 0
    %1889 = vmatpush1.bf16.msra.mxu0 0
    %1890 = vmatprep.subr.bf16.mxu0 0
    %1891 = vmatpush1.bf16.msra.mxu0 0
    %1892 = vmatprep.mubr.bf16.mxu0 0
    %1893 = vmatmul.mubr.bf16.gmra.mrb[0].mxu0 %v1858
    %v1894 = vpop.f32.mrb[0].mxu0
    %v1895 = vadd.f32 0.0, %v1894
    %v1896 = vpop.f32.mrb[0].mxu0
    %v1897 = vadd.f32 0.0, %v1896
    %v1898 = vpop.f32.mrb[0].mxu0
    %v1899 = vpop.f32.mrb[0].mxu0
    %1900 = vdwg.mxu0
    %1901 = vmatprep.subr.bf16.mxu0 %v559
    %1902 = vmatpush1.bf16.msra.mxu0 %v558
    %1903 = vmatprep.subr.bf16.mxu0 %v563
    %1904 = vmatpush1.bf16.msra.mxu0 %v562
    %1905 = vmatprep.subr.bf16.mxu0 %v567
    %1906 = vmatpush1.bf16.msra.mxu0 %v566
    %1907 = vmatprep.subr.bf16.mxu0 %v571
    %1908 = vmatpush1.bf16.msra.mxu0 %v570
    %1909 = vmatprep.subr.bf16.mxu0 %v575
    %1910 = vmatpush1.bf16.msra.mxu0 %v574
    %1911 = vmatprep.subr.bf16.mxu0 %v579
    %1912 = vmatpush1.bf16.msra.mxu0 %v578
    %1913 = vmatprep.subr.bf16.mxu0 %v583
    %1914 = vmatpush1.bf16.msra.mxu0 %v582
    %1915 = vmatprep.subr.bf16.mxu0 %v587
    %1916 = vmatpush1.bf16.msra.mxu0 %v586
    %1917 = vmatprep.subr.bf16.mxu0 0
    %1918 = vmatpush1.bf16.msra.mxu0 0
    %1919 = vmatprep.subr.bf16.mxu0 0
    %1920 = vmatpush1.bf16.msra.mxu0 0
    %1921 = vmatprep.subr.bf16.mxu0 0
    %1922 = vmatpush1.bf16.msra.mxu0 0
    %1923 = vmatprep.subr.bf16.mxu0 0
    %1924 = vmatpush1.bf16.msra.mxu0 0
    %1925 = vmatprep.subr.bf16.mxu0 0
    %1926 = vmatpush1.bf16.msra.mxu0 0
    %1927 = vmatprep.subr.bf16.mxu0 0
    %1928 = vmatpush1.bf16.msra.mxu0 0
    %1929 = vmatprep.subr.bf16.mxu0 0
    %1930 = vmatpush1.bf16.msra.mxu0 0
    %1931 = vmatprep.subr.bf16.mxu0 0
    %1932 = vmatpush1.bf16.msra.mxu0 0
    %1933 = vmatprep.mubr.bf16.mxu0 0
    %1934 = vmatmul.mubr.bf16.gmra.mrb[0].mxu0 %v1858
    %v1935 = vpop.f32.mrb[0].mxu0
    %v1936 = vadd.f32 0.0, %v1935
    %v1937 = vpop.f32.mrb[0].mxu0
    %v1938 = vadd.f32 0.0, %v1937
    %v1939 = vpop.f32.mrb[0].mxu0
    %v1940 = vpop.f32.mrb[0].mxu0
    %1941 = vdwg.mxu0
    %v1946 = vrot.slane %v1895, 4
    %v1947 = vrot.slane %v1897, 4
    %v1948 = vrot.slane %v1936, 4
    %v1949 = vrot.slane %v1938, 4
    %v1954 = vadd.f32 %v380, %v1946
    %v1955 = vadd.f32 %v382, %v1947
    %v1956 = vadd.f32 %v421, %v1948
    %v1957 = vadd.f32 %v423, %v1949
    %v1958 = vxor.u32 %v1954, 2147483648
    %v1959 = vxor.u32 %v1955, 2147483648
    %v1960 = vxor.u32 %v1956, 2147483648
    %v1961 = vmul.f32 %v1958, 1.442695
    %v1962 = vpow.pop %v1961
    %v1963 = vmul.f32 %v1959, 1.442695
    %v1964 = vpow.pop %v1963
    %v1965 = vmul.f32 %v1960, 1.442695
    %v1966 = vpow.pop %v1965
    %v1967 = vadd.f32 %v1962, 1.0
    %v1968 = vadd.f32 %v1964, 1.0
    %v1969 = vadd.f32 %v1966, 1.0
    %v1970 = vrcp.pop %v1967
    %v1971 = vmul.f32 1.0, %v1970
    %v1972 = vrcp.pop %v1968
    %v1973 = vmul.f32 1.0, %v1972
    %v1974 = vrcp.pop %v1969
    %v1975 = vmul.f32 1.0, %v1974
    %v1976 = vtanh.pop %v1957
    %v1978 = vrot.slane %v1738, 7
    %v1980 = vmul.f32 %v1973, %v1978
    %v1981 = vmul.f32 %v1971, %v1976
    %v1982 = vadd.f32 %v1980, %v1981
    %v1983 = vtanh.pop %v1982
    %v1984 = vmul.f32 %v1975, %v1983
    %v1986 = vrot.slane %v1853, 5
    %v1988 = vpack.c.bf16 %v1986, %v1986
    %v1990 = vshrl.u32 %v1988, 16
    %v1992 = vrot.slane %v1990, 1
    %1994 = vmatprep.subr.bf16.mxu0 %v1114
    %1995 = vmatpush1.bf16.msra.mxu0 %v1113
    %1996 = vmatprep.subr.bf16.mxu0 %v1118
    %1997 = vmatpush1.bf16.msra.mxu0 %v1117
    %1998 = vmatprep.subr.bf16.mxu0 %v1122
    %1999 = vmatpush1.bf16.msra.mxu0 %v1121
    %2000 = vmatprep.subr.bf16.mxu0 %v1126
    %2001 = vmatpush1.bf16.msra.mxu0 %v1125
    %2002 = vmatprep.subr.bf16.mxu0 %v1130
    %2003 = vmatpush1.bf16.msra.mxu0 %v1129
    %2004 = vmatprep.subr.bf16.mxu0 %v1134
    %2005 = vmatpush1.bf16.msra.mxu0 %v1133
    %2006 = vmatprep.subr.bf16.mxu0 %v1138
    %2007 = vmatpush1.bf16.msra.mxu0 %v1137
    %2008 = vmatprep.subr.bf16.mxu0 %v1142
    %2009 = vmatpush1.bf16.msra.mxu0 %v1141
    %2010 = vmatprep.subr.bf16.mxu0 %v1146
    %2011 = vmatpush1.bf16.msra.mxu0 %v1145
    %2012 = vmatprep.subr.bf16.mxu0 %v1150
    %2013 = vmatpush1.bf16.msra.mxu0 %v1149
    %2014 = vmatprep.subr.bf16.mxu0 %v1154
    %2015 = vmatpush1.bf16.msra.mxu0 %v1153
    %2016 = vmatprep.subr.bf16.mxu0 %v1158
    %2017 = vmatpush1.bf16.msra.mxu0 %v1157
    %2018 = vmatprep.subr.bf16.mxu0 %v1162
    %2019 = vmatpush1.bf16.msra.mxu0 %v1161
    %2020 = vmatprep.subr.bf16.mxu0 %v1166
    %2021 = vmatpush1.bf16.msra.mxu0 %v1165
    %2022 = vmatprep.subr.bf16.mxu0 %v1170
    %2023 = vmatpush1.bf16.msra.mxu0 %v1169
    %2024 = vmatprep.subr.bf16.mxu0 %v1174
    %2025 = vmatpush1.bf16.msra.mxu0 %v1173
    %2026 = vmatprep.mubr.bf16.mxu0 %v1992
    %2027 = vmatmul.mubr.bf16.gmra.mrb[0].mxu0 %v1858
    %v2028 = vpop.f32.mrb[0].mxu0
    %v2029 = vadd.f32 %v1245, %v2028
    %v2030 = vpop.f32.mrb[0].mxu0
    %v2031 = vadd.f32 %v1249, %v2030
    %v2032 = vpop.f32.mrb[0].mxu0
    %v2033 = vpop.f32.mrb[0].mxu0
    %2034 = vdwg.mxu0
    %2035 = vmatprep.subr.bf16.mxu0 %v1116
    %2036 = vmatpush1.bf16.msra.mxu0 %v1115
    %2037 = vmatprep.subr.bf16.mxu0 %v1120
    %2038 = vmatpush1.bf16.msra.mxu0 %v1119
    %2039 = vmatprep.subr.bf16.mxu0 %v1124
    %2040 = vmatpush1.bf16.msra.mxu0 %v1123
    %2041 = vmatprep.subr.bf16.mxu0 %v1128
    %2042 = vmatpush1.bf16.msra.mxu0 %v1127
    %2043 = vmatprep.subr.bf16.mxu0 %v1132
    %2044 = vmatpush1.bf16.msra.mxu0 %v1131
    %2045 = vmatprep.subr.bf16.mxu0 %v1136
    %2046 = vmatpush1.bf16.msra.mxu0 %v1135
    %2047 = vmatprep.subr.bf16.mxu0 %v1140
    %2048 = vmatpush1.bf16.msra.mxu0 %v1139
    %2049 = vmatprep.subr.bf16.mxu0 %v1144
    %2050 = vmatpush1.bf16.msra.mxu0 %v1143
    %2051 = vmatprep.subr.bf16.mxu0 %v1148
    %2052 = vmatpush1.bf16.msra.mxu0 %v1147
    %2053 = vmatprep.subr.bf16.mxu0 %v1152
    %2054 = vmatpush1.bf16.msra.mxu0 %v1151
    %2055 = vmatprep.subr.bf16.mxu0 %v1156
    %2056 = vmatpush1.bf16.msra.mxu0 %v1155
    %2057 = vmatprep.subr.bf16.mxu0 %v1160
    %2058 = vmatpush1.bf16.msra.mxu0 %v1159
    %2059 = vmatprep.subr.bf16.mxu0 %v1164
    %2060 = vmatpush1.bf16.msra.mxu0 %v1163
    %2061 = vmatprep.subr.bf16.mxu0 %v1168
    %2062 = vmatpush1.bf16.msra.mxu0 %v1167
    %2063 = vmatprep.subr.bf16.mxu0 %v1172
    %2064 = vmatpush1.bf16.msra.mxu0 %v1171
    %2065 = vmatprep.subr.bf16.mxu0 %v1176
    %2066 = vmatpush1.bf16.msra.mxu0 %v1175
    %2067 = vmatprep.mubr.bf16.mxu0 %v1992
    %2068 = vmatmul.mubr.bf16.gmra.mrb[0].mxu0 %v1858
    %v2069 = vpop.f32.mrb[0].mxu0
    %v2070 = vadd.f32 %v1253, %v2069
    %v2071 = vpop.f32.mrb[0].mxu0
    %v2072 = vadd.f32 %v1257, %v2071
    %v2073 = vpop.f32.mrb[0].mxu0
    %v2074 = vpop.f32.mrb[0].mxu0
    %2075 = vdwg.mxu0
    %v2076 = vxor.u32 %v2029, 2147483648
    %v2077 = vxor.u32 %v2031, 2147483648
    %v2078 = vxor.u32 %v2070, 2147483648
    %v2079 = vmul.f32 %v2076, 1.442695
    %v2080 = vpow.pop %v2079
    %v2081 = vmul.f32 %v2077, 1.442695
    %v2082 = vpow.pop %v2081
    %v2083 = vmul.f32 %v2078, 1.442695
    %v2084 = vpow.pop %v2083
    %v2085 = vadd.f32 %v2080, 1.0
    %v2086 = vadd.f32 %v2082, 1.0
    %v2087 = vadd.f32 %v2084, 1.0
    %v2088 = vrcp.pop %v2085
    %v2089 = vmul.f32 1.0, %v2088
    %v2090 = vrcp.pop %v2086
    %v2091 = vmul.f32 1.0, %v2090
    %v2092 = vrcp.pop %v2087
    %v2093 = vmul.f32 1.0, %v2092
    %v2094 = vtanh.pop %v2072
    %v2095 = vmul.f32 %v2091, %v1851
    %v2096 = vmul.f32 %v2089, %v2094
    %v2097 = vadd.f32 %v2095, %v2096
    %v2098 = vtanh.pop %v2097
    %v2099 = vmul.f32 %v2093, %v2098
    %v2100 = vpack.c.bf16 %v1984, %v1984
    %v2102 = vrot.slane %v2100, 2
    %2104 = vmatprep.subr.bf16.mxu0 %v557
    %2105 = vmatpush1.bf16.msra.mxu0 %v556
    %2106 = vmatprep.subr.bf16.mxu0 %v561
    %2107 = vmatpush1.bf16.msra.mxu0 %v560
    %2108 = vmatprep.subr.bf16.mxu0 %v565
    %2109 = vmatpush1.bf16.msra.mxu0 %v564
    %2110 = vmatprep.subr.bf16.mxu0 %v569
    %2111 = vmatpush1.bf16.msra.mxu0 %v568
    %2112 = vmatprep.subr.bf16.mxu0 %v573
    %2113 = vmatpush1.bf16.msra.mxu0 %v572
    %2114 = vmatprep.subr.bf16.mxu0 %v577
    %2115 = vmatpush1.bf16.msra.mxu0 %v576
    %2116 = vmatprep.subr.bf16.mxu0 %v581
    %2117 = vmatpush1.bf16.msra.mxu0 %v580
    %2118 = vmatprep.subr.bf16.mxu0 %v585
    %2119 = vmatpush1.bf16.msra.mxu0 %v584
    %2120 = vmatprep.subr.bf16.mxu0 0
    %2121 = vmatpush1.bf16.msra.mxu0 0
    %2122 = vmatprep.subr.bf16.mxu0 0
    %2123 = vmatpush1.bf16.msra.mxu0 0
    %2124 = vmatprep.subr.bf16.mxu0 0
    %2125 = vmatpush1.bf16.msra.mxu0 0
    %2126 = vmatprep.subr.bf16.mxu0 0
    %2127 = vmatpush1.bf16.msra.mxu0 0
    %2128 = vmatprep.subr.bf16.mxu0 0
    %2129 = vmatpush1.bf16.msra.mxu0 0
    %2130 = vmatprep.subr.bf16.mxu0 0
    %2131 = vmatpush1.bf16.msra.mxu0 0
    %2132 = vmatprep.subr.bf16.mxu0 0
    %2133 = vmatpush1.bf16.msra.mxu0 0
    %2134 = vmatprep.subr.bf16.mxu0 0
    %2135 = vmatpush1.bf16.msra.mxu0 0
    %2136 = vmatprep.mubr.bf16.mxu0 0
    %2137 = vmatmul.mubr.bf16.gmra.mrb[0].mxu0 %v2102
    %v2138 = vpop.f32.mrb[0].mxu0
    %v2139 = vadd.f32 0.0, %v2138
    %v2140 = vpop.f32.mrb[0].mxu0
    %v2141 = vadd.f32 0.0, %v2140
    %v2142 = vpop.f32.mrb[0].mxu0
    %v2143 = vpop.f32.mrb[0].mxu0
    %2144 = vdwg.mxu0
    %2145 = vmatprep.subr.bf16.mxu0 %v559
    %2146 = vmatpush1.bf16.msra.mxu0 %v558
    %2147 = vmatprep.subr.bf16.mxu0 %v563
    %2148 = vmatpush1.bf16.msra.mxu0 %v562
    %2149 = vmatprep.subr.bf16.mxu0 %v567
    %2150 = vmatpush1.bf16.msra.mxu0 %v566
    %2151 = vmatprep.subr.bf16.mxu0 %v571
    %2152 = vmatpush1.bf16.msra.mxu0 %v570
    %2153 = vmatprep.subr.bf16.mxu0 %v575
    %2154 = vmatpush1.bf16.msra.mxu0 %v574
    %2155 = vmatprep.subr.bf16.mxu0 %v579
    %2156 = vmatpush1.bf16.msra.mxu0 %v578
    %2157 = vmatprep.subr.bf16.mxu0 %v583
    %2158 = vmatpush1.bf16.msra.mxu0 %v582
    %2159 = vmatprep.subr.bf16.mxu0 %v587
    %2160 = vmatpush1.bf16.msra.mxu0 %v586
    %2161 = vmatprep.subr.bf16.mxu0 0
    %2162 = vmatpush1.bf16.msra.mxu0 0
    %2163 = vmatprep.subr.bf16.mxu0 0
    %2164 = vmatpush1.bf16.msra.mxu0 0
    %2165 = vmatprep.subr.bf16.mxu0 0
    %2166 = vmatpush1.bf16.msra.mxu0 0
    %2167 = vmatprep.subr.bf16.mxu0 0
    %2168 = vmatpush1.bf16.msra.mxu0 0
    %2169 = vmatprep.subr.bf16.mxu0 0
    %2170 = vmatpush1.bf16.msra.mxu0 0
    %2171 = vmatprep.subr.bf16.mxu0 0
    %2172 = vmatpush1.bf16.msra.mxu0 0
    %2173 = vmatprep.subr.bf16.mxu0 0
    %2174 = vmatpush1.bf16.msra.mxu0 0
    %2175 = vmatprep.subr.bf16.mxu0 0
    %2176 = vmatpush1.bf16.msra.mxu0 0
    %2177 = vmatprep.mubr.bf16.mxu0 0
    %2178 = vmatmul.mubr.bf16.gmra.mrb[0].mxu0 %v2102
    %v2179 = vpop.f32.mrb[0].mxu0
    %v2180 = vadd.f32 0.0, %v2179
    %v2181 = vpop.f32.mrb[0].mxu0
    %v2182 = vadd.f32 0.0, %v2181
    %v2183 = vpop.f32.mrb[0].mxu0
    %v2184 = vpop.f32.mrb[0].mxu0
    %2185 = vdwg.mxu0
    %v2190 = vrot.slane %v2139, 3
    %v2191 = vrot.slane %v2141, 3
    %v2192 = vrot.slane %v2180, 3
    %v2193 = vrot.slane %v2182, 3
    %v2198 = vadd.f32 %v380, %v2190
    %v2199 = vadd.f32 %v382, %v2191
    %v2200 = vadd.f32 %v421, %v2192
    %v2201 = vadd.f32 %v423, %v2193
    %v2202 = vxor.u32 %v2198, 2147483648
    %v2203 = vxor.u32 %v2199, 2147483648
    %v2204 = vxor.u32 %v2200, 2147483648
    %v2205 = vmul.f32 %v2202, 1.442695
    %v2206 = vpow.pop %v2205
    %v2207 = vmul.f32 %v2203, 1.442695
    %v2208 = vpow.pop %v2207
    %v2209 = vmul.f32 %v2204, 1.442695
    %v2210 = vpow.pop %v2209
    %v2211 = vadd.f32 %v2206, 1.0
    %v2212 = vadd.f32 %v2208, 1.0
    %v2213 = vadd.f32 %v2210, 1.0
    %v2214 = vrcp.pop %v2211
    %v2215 = vmul.f32 1.0, %v2214
    %v2216 = vrcp.pop %v2212
    %v2217 = vmul.f32 1.0, %v2216
    %v2218 = vrcp.pop %v2213
    %v2219 = vmul.f32 1.0, %v2218
    %v2220 = vtanh.pop %v2201
    %v2222 = vrot.slane %v1982, 7
    %v2224 = vmul.f32 %v2217, %v2222
    %v2225 = vmul.f32 %v2215, %v2220
    %v2226 = vadd.f32 %v2224, %v2225
    %v2227 = vtanh.pop %v2226
    %v2228 = vmul.f32 %v2219, %v2227
    %v2230 = vrot.slane %v2099, 4
    %v2232 = vpack.c.bf16 %v2230, %v2230
    %v2234 = vrot.slane %v2232, 2
    %2236 = vmatprep.subr.bf16.mxu0 %v1114
    %2237 = vmatpush1.bf16.msra.mxu0 %v1113
    %2238 = vmatprep.subr.bf16.mxu0 %v1118
    %2239 = vmatpush1.bf16.msra.mxu0 %v1117
    %2240 = vmatprep.subr.bf16.mxu0 %v1122
    %2241 = vmatpush1.bf16.msra.mxu0 %v1121
    %2242 = vmatprep.subr.bf16.mxu0 %v1126
    %2243 = vmatpush1.bf16.msra.mxu0 %v1125
    %2244 = vmatprep.subr.bf16.mxu0 %v1130
    %2245 = vmatpush1.bf16.msra.mxu0 %v1129
    %2246 = vmatprep.subr.bf16.mxu0 %v1134
    %2247 = vmatpush1.bf16.msra.mxu0 %v1133
    %2248 = vmatprep.subr.bf16.mxu0 %v1138
    %2249 = vmatpush1.bf16.msra.mxu0 %v1137
    %2250 = vmatprep.subr.bf16.mxu0 %v1142
    %2251 = vmatpush1.bf16.msra.mxu0 %v1141
    %2252 = vmatprep.subr.bf16.mxu0 %v1146
    %2253 = vmatpush1.bf16.msra.mxu0 %v1145
    %2254 = vmatprep.subr.bf16.mxu0 %v1150
    %2255 = vmatpush1.bf16.msra.mxu0 %v1149
    %2256 = vmatprep.subr.bf16.mxu0 %v1154
    %2257 = vmatpush1.bf16.msra.mxu0 %v1153
    %2258 = vmatprep.subr.bf16.mxu0 %v1158
    %2259 = vmatpush1.bf16.msra.mxu0 %v1157
    %2260 = vmatprep.subr.bf16.mxu0 %v1162
    %2261 = vmatpush1.bf16.msra.mxu0 %v1161
    %2262 = vmatprep.subr.bf16.mxu0 %v1166
    %2263 = vmatpush1.bf16.msra.mxu0 %v1165
    %2264 = vmatprep.subr.bf16.mxu0 %v1170
    %2265 = vmatpush1.bf16.msra.mxu0 %v1169
    %2266 = vmatprep.subr.bf16.mxu0 %v1174
    %2267 = vmatpush1.bf16.msra.mxu0 %v1173
    %2268 = vmatprep.mubr.bf16.mxu0 %v2234
    %2269 = vmatmul.mubr.bf16.gmra.mrb[0].mxu0 %v2102
    %v2270 = vpop.f32.mrb[0].mxu0
    %v2271 = vadd.f32 %v1245, %v2270
    %v2272 = vpop.f32.mrb[0].mxu0
    %v2273 = vadd.f32 %v1249, %v2272
    %v2274 = vpop.f32.mrb[0].mxu0
    %v2275 = vpop.f32.mrb[0].mxu0
    %2276 = vdwg.mxu0
    %2277 = vmatprep.subr.bf16.mxu0 %v1116
    %2278 = vmatpush1.bf16.msra.mxu0 %v1115
    %2279 = vmatprep.subr.bf16.mxu0 %v1120
    %2280 = vmatpush1.bf16.msra.mxu0 %v1119
    %2281 = vmatprep.subr.bf16.mxu0 %v1124
    %2282 = vmatpush1.bf16.msra.mxu0 %v1123
    %2283 = vmatprep.subr.bf16.mxu0 %v1128
    %2284 = vmatpush1.bf16.msra.mxu0 %v1127
    %2285 = vmatprep.subr.bf16.mxu0 %v1132
    %2286 = vmatpush1.bf16.msra.mxu0 %v1131
    %2287 = vmatprep.subr.bf16.mxu0 %v1136
    %2288 = vmatpush1.bf16.msra.mxu0 %v1135
    %2289 = vmatprep.subr.bf16.mxu0 %v1140
    %2290 = vmatpush1.bf16.msra.mxu0 %v1139
    %2291 = vmatprep.subr.bf16.mxu0 %v1144
    %2292 = vmatpush1.bf16.msra.mxu0 %v1143
    %2293 = vmatprep.subr.bf16.mxu0 %v1148
    %2294 = vmatpush1.bf16.msra.mxu0 %v1147
    %2295 = vmatprep.subr.bf16.mxu0 %v1152
    %2296 = vmatpush1.bf16.msra.mxu0 %v1151
    %2297 = vmatprep.subr.bf16.mxu0 %v1156
    %2298 = vmatpush1.bf16.msra.mxu0 %v1155
    %2299 = vmatprep.subr.bf16.mxu0 %v1160
    %2300 = vmatpush1.bf16.msra.mxu0 %v1159
    %2301 = vmatprep.subr.bf16.mxu0 %v1164
    %2302 = vmatpush1.bf16.msra.mxu0 %v1163
    %2303 = vmatprep.subr.bf16.mxu0 %v1168
    %2304 = vmatpush1.bf16.msra.mxu0 %v1167
    %2305 = vmatprep.subr.bf16.mxu0 %v1172
    %2306 = vmatpush1.bf16.msra.mxu0 %v1171
    %2307 = vmatprep.subr.bf16.mxu0 %v1176
    %2308 = vmatpush1.bf16.msra.mxu0 %v1175
    %2309 = vmatprep.mubr.bf16.mxu0 %v2234
    %2310 = vmatmul.mubr.bf16.gmra.mrb[0].mxu0 %v2102
    %v2311 = vpop.f32.mrb[0].mxu0
    %v2312 = vadd.f32 %v1253, %v2311
    %v2313 = vpop.f32.mrb[0].mxu0
    %v2314 = vadd.f32 %v1257, %v2313
    %v2315 = vpop.f32.mrb[0].mxu0
    %v2316 = vpop.f32.mrb[0].mxu0
    %2317 = vdwg.mxu0
    %v2318 = vxor.u32 %v2271, 2147483648
    %v2319 = vxor.u32 %v2273, 2147483648
    %v2320 = vxor.u32 %v2312, 2147483648
    %v2321 = vmul.f32 %v2318, 1.442695
    %v2322 = vpow.pop %v2321
    %v2323 = vmul.f32 %v2319, 1.442695
    %v2324 = vpow.pop %v2323
    %v2325 = vmul.f32 %v2320, 1.442695
    %v2326 = vpow.pop %v2325
    %v2327 = vadd.f32 %v2322, 1.0
    %v2328 = vadd.f32 %v2324, 1.0
    %v2329 = vadd.f32 %v2326, 1.0
    %v2330 = vrcp.pop %v2327
    %v2331 = vmul.f32 1.0, %v2330
    %v2332 = vrcp.pop %v2328
    %v2333 = vmul.f32 1.0, %v2332
    %v2334 = vrcp.pop %v2329
    %v2335 = vmul.f32 1.0, %v2334
    %v2336 = vtanh.pop %v2314
    %v2337 = vmul.f32 %v2333, %v2097
    %v2338 = vmul.f32 %v2331, %v2336
    %v2339 = vadd.f32 %v2337, %v2338
    %v2340 = vtanh.pop %v2339
    %v2341 = vmul.f32 %v2335, %v2340
    %v2342 = vpack.c.bf16 %v2228, %v2228
    %v2344 = vshrl.u32 %v2342, 16
    %v2346 = vrot.slane %v2344, 2
    %2348 = vmatprep.subr.bf16.mxu0 %v557
    %2349 = vmatpush1.bf16.msra.mxu0 %v556
    %2350 = vmatprep.subr.bf16.mxu0 %v561
    %2351 = vmatpush1.bf16.msra.mxu0 %v560
    %2352 = vmatprep.subr.bf16.mxu0 %v565
    %2353 = vmatpush1.bf16.msra.mxu0 %v564
    %2354 = vmatprep.subr.bf16.mxu0 %v569
    %2355 = vmatpush1.bf16.msra.mxu0 %v568
    %2356 = vmatprep.subr.bf16.mxu0 %v573
    %2357 = vmatpush1.bf16.msra.mxu0 %v572
    %2358 = vmatprep.subr.bf16.mxu0 %v577
    %2359 = vmatpush1.bf16.msra.mxu0 %v576
    %2360 = vmatprep.subr.bf16.mxu0 %v581
    %2361 = vmatpush1.bf16.msra.mxu0 %v580
    %2362 = vmatprep.subr.bf16.mxu0 %v585
    %2363 = vmatpush1.bf16.msra.mxu0 %v584
    %2364 = vmatprep.subr.bf16.mxu0 0
    %2365 = vmatpush1.bf16.msra.mxu0 0
    %2366 = vmatprep.subr.bf16.mxu0 0
    %2367 = vmatpush1.bf16.msra.mxu0 0
    %2368 = vmatprep.subr.bf16.mxu0 0
    %2369 = vmatpush1.bf16.msra.mxu0 0
    %2370 = vmatprep.subr.bf16.mxu0 0
    %2371 = vmatpush1.bf16.msra.mxu0 0
    %2372 = vmatprep.subr.bf16.mxu0 0
    %2373 = vmatpush1.bf16.msra.mxu0 0
    %2374 = vmatprep.subr.bf16.mxu0 0
    %2375 = vmatpush1.bf16.msra.mxu0 0
    %2376 = vmatprep.subr.bf16.mxu0 0
    %2377 = vmatpush1.bf16.msra.mxu0 0
    %2378 = vmatprep.subr.bf16.mxu0 0
    %2379 = vmatpush1.bf16.msra.mxu0 0
    %2380 = vmatprep.mubr.bf16.mxu0 0
    %2381 = vmatmul.mubr.bf16.gmra.mrb[0].mxu0 %v2346
    %v2382 = vpop.f32.mrb[0].mxu0
    %v2383 = vadd.f32 0.0, %v2382
    %v2384 = vpop.f32.mrb[0].mxu0
    %v2385 = vadd.f32 0.0, %v2384
    %v2386 = vpop.f32.mrb[0].mxu0
    %v2387 = vpop.f32.mrb[0].mxu0
    %2388 = vdwg.mxu0
    %2389 = vmatprep.subr.bf16.mxu0 %v559
    %2390 = vmatpush1.bf16.msra.mxu0 %v558
    %2391 = vmatprep.subr.bf16.mxu0 %v563
    %2392 = vmatpush1.bf16.msra.mxu0 %v562
    %2393 = vmatprep.subr.bf16.mxu0 %v567
    %2394 = vmatpush1.bf16.msra.mxu0 %v566
    %2395 = vmatprep.subr.bf16.mxu0 %v571
    %2396 = vmatpush1.bf16.msra.mxu0 %v570
    %2397 = vmatprep.subr.bf16.mxu0 %v575
    %2398 = vmatpush1.bf16.msra.mxu0 %v574
    %2399 = vmatprep.subr.bf16.mxu0 %v579
    %2400 = vmatpush1.bf16.msra.mxu0 %v578
    %2401 = vmatprep.subr.bf16.mxu0 %v583
    %2402 = vmatpush1.bf16.msra.mxu0 %v582
    %2403 = vmatprep.subr.bf16.mxu0 %v587
    %2404 = vmatpush1.bf16.msra.mxu0 %v586
    %2405 = vmatprep.subr.bf16.mxu0 0
    %2406 = vmatpush1.bf16.msra.mxu0 0
    %2407 = vmatprep.subr.bf16.mxu0 0
    %2408 = vmatpush1.bf16.msra.mxu0 0
    %2409 = vmatprep.subr.bf16.mxu0 0
    %2410 = vmatpush1.bf16.msra.mxu0 0
    %2411 = vmatprep.subr.bf16.mxu0 0
    %2412 = vmatpush1.bf16.msra.mxu0 0
    %2413 = vmatprep.subr.bf16.mxu0 0
    %2414 = vmatpush1.bf16.msra.mxu0 0
    %2415 = vmatprep.subr.bf16.mxu0 0
    %2416 = vmatpush1.bf16.msra.mxu0 0
    %2417 = vmatprep.subr.bf16.mxu0 0
    %2418 = vmatpush1.bf16.msra.mxu0 0
    %2419 = vmatprep.subr.bf16.mxu0 0
    %2420 = vmatpush1.bf16.msra.mxu0 0
    %2421 = vmatprep.mubr.bf16.mxu0 0
    %2422 = vmatmul.mubr.bf16.gmra.mrb[0].mxu0 %v2346
    %v2423 = vpop.f32.mrb[0].mxu0
    %v2424 = vadd.f32 0.0, %v2423
    %v2425 = vpop.f32.mrb[0].mxu0
    %v2426 = vadd.f32 0.0, %v2425
    %v2427 = vpop.f32.mrb[0].mxu0
    %v2428 = vpop.f32.mrb[0].mxu0
    %2429 = vdwg.mxu0
    %v2434 = vrot.slane %v2383, 2
    %v2435 = vrot.slane %v2385, 2
    %v2436 = vrot.slane %v2424, 2
    %v2437 = vrot.slane %v2426, 2
    %v2442 = vadd.f32 %v380, %v2434
    %v2443 = vadd.f32 %v382, %v2435
    %v2444 = vadd.f32 %v421, %v2436
    %v2445 = vadd.f32 %v423, %v2437
    %v2446 = vxor.u32 %v2442, 2147483648
    %v2447 = vxor.u32 %v2443, 2147483648
    %v2448 = vxor.u32 %v2444, 2147483648
    %v2449 = vmul.f32 %v2446, 1.442695
    %v2450 = vpow.pop %v2449
    %v2451 = vmul.f32 %v2447, 1.442695
    %v2452 = vpow.pop %v2451
    %v2453 = vmul.f32 %v2448, 1.442695
    %v2454 = vpow.pop %v2453
    %v2455 = vadd.f32 %v2450, 1.0
    %v2456 = vadd.f32 %v2452, 1.0
    %v2457 = vadd.f32 %v2454, 1.0
    %v2458 = vrcp.pop %v2455
    %v2459 = vmul.f32 1.0, %v2458
    %v2460 = vrcp.pop %v2456
    %v2461 = vmul.f32 1.0, %v2460
    %v2462 = vrcp.pop %v2457
    %v2463 = vmul.f32 1.0, %v2462
    %v2464 = vtanh.pop %v2445
    %v2466 = vrot.slane %v2226, 7
    %v2468 = vmul.f32 %v2461, %v2466
    %v2469 = vmul.f32 %v2459, %v2464
    %v2470 = vadd.f32 %v2468, %v2469
    %v2471 = vtanh.pop %v2470
    %v2472 = vmul.f32 %v2463, %v2471
    %v2474 = vrot.slane %v2341, 3
    %v2476 = vpack.c.bf16 %v2474, %v2474
    %v2478 = vshrl.u32 %v2476, 16
    %v2480 = vrot.slane %v2478, 2
    %2482 = vmatprep.subr.bf16.mxu0 %v1114
    %2483 = vmatpush1.bf16.msra.mxu0 %v1113
    %2484 = vmatprep.subr.bf16.mxu0 %v1118
    %2485 = vmatpush1.bf16.msra.mxu0 %v1117
    %2486 = vmatprep.subr.bf16.mxu0 %v1122
    %2487 = vmatpush1.bf16.msra.mxu0 %v1121
    %2488 = vmatprep.subr.bf16.mxu0 %v1126
    %2489 = vmatpush1.bf16.msra.mxu0 %v1125
    %2490 = vmatprep.subr.bf16.mxu0 %v1130
    %2491 = vmatpush1.bf16.msra.mxu0 %v1129
    %2492 = vmatprep.subr.bf16.mxu0 %v1134
    %2493 = vmatpush1.bf16.msra.mxu0 %v1133
    %2494 = vmatprep.subr.bf16.mxu0 %v1138
    %2495 = vmatpush1.bf16.msra.mxu0 %v1137
    %2496 = vmatprep.subr.bf16.mxu0 %v1142
    %2497 = vmatpush1.bf16.msra.mxu0 %v1141
    %2498 = vmatprep.subr.bf16.mxu0 %v1146
    %2499 = vmatpush1.bf16.msra.mxu0 %v1145
    %2500 = vmatprep.subr.bf16.mxu0 %v1150
    %2501 = vmatpush1.bf16.msra.mxu0 %v1149
    %2502 = vmatprep.subr.bf16.mxu0 %v1154
    %2503 = vmatpush1.bf16.msra.mxu0 %v1153
    %2504 = vmatprep.subr.bf16.mxu0 %v1158
    %2505 = vmatpush1.bf16.msra.mxu0 %v1157
    %2506 = vmatprep.subr.bf16.mxu0 %v1162
    %2507 = vmatpush1.bf16.msra.mxu0 %v1161
    %2508 = vmatprep.subr.bf16.mxu0 %v1166
    %2509 = vmatpush1.bf16.msra.mxu0 %v1165
    %2510 = vmatprep.subr.bf16.mxu0 %v1170
    %2511 = vmatpush1.bf16.msra.mxu0 %v1169
    %2512 = vmatprep.subr.bf16.mxu0 %v1174
    %2513 = vmatpush1.bf16.msra.mxu0 %v1173
    %2514 = vmatprep.mubr.bf16.mxu0 %v2480
    %2515 = vmatmul.mubr.bf16.gmra.mrb[0].mxu0 %v2346
    %v2516 = vpop.f32.mrb[0].mxu0
    %v2517 = vadd.f32 %v1245, %v2516
    %v2518 = vpop.f32.mrb[0].mxu0
    %v2519 = vadd.f32 %v1249, %v2518
    %v2520 = vpop.f32.mrb[0].mxu0
    %v2521 = vpop.f32.mrb[0].mxu0
    %2522 = vdwg.mxu0
    %2523 = vmatprep.subr.bf16.mxu0 %v1116
    %2524 = vmatpush1.bf16.msra.mxu0 %v1115
    %2525 = vmatprep.subr.bf16.mxu0 %v1120
    %2526 = vmatpush1.bf16.msra.mxu0 %v1119
    %2527 = vmatprep.subr.bf16.mxu0 %v1124
    %2528 = vmatpush1.bf16.msra.mxu0 %v1123
    %2529 = vmatprep.subr.bf16.mxu0 %v1128
    %2530 = vmatpush1.bf16.msra.mxu0 %v1127
    %2531 = vmatprep.subr.bf16.mxu0 %v1132
    %2532 = vmatpush1.bf16.msra.mxu0 %v1131
    %2533 = vmatprep.subr.bf16.mxu0 %v1136
    %2534 = vmatpush1.bf16.msra.mxu0 %v1135
    %2535 = vmatprep.subr.bf16.mxu0 %v1140
    %2536 = vmatpush1.bf16.msra.mxu0 %v1139
    %2537 = vmatprep.subr.bf16.mxu0 %v1144
    %2538 = vmatpush1.bf16.msra.mxu0 %v1143
    %2539 = vmatprep.subr.bf16.mxu0 %v1148
    %2540 = vmatpush1.bf16.msra.mxu0 %v1147
    %2541 = vmatprep.subr.bf16.mxu0 %v1152
    %2542 = vmatpush1.bf16.msra.mxu0 %v1151
    %2543 = vmatprep.subr.bf16.mxu0 %v1156
    %2544 = vmatpush1.bf16.msra.mxu0 %v1155
    %2545 = vmatprep.subr.bf16.mxu0 %v1160
    %2546 = vmatpush1.bf16.msra.mxu0 %v1159
    %2547 = vmatprep.subr.bf16.mxu0 %v1164
    %2548 = vmatpush1.bf16.msra.mxu0 %v1163
    %2549 = vmatprep.subr.bf16.mxu0 %v1168
    %2550 = vmatpush1.bf16.msra.mxu0 %v1167
    %2551 = vmatprep.subr.bf16.mxu0 %v1172
    %2552 = vmatpush1.bf16.msra.mxu0 %v1171
    %2553 = vmatprep.subr.bf16.mxu0 %v1176
    %2554 = vmatpush1.bf16.msra.mxu0 %v1175
    %2555 = vmatprep.mubr.bf16.mxu0 %v2480
    %2556 = vmatmul.mubr.bf16.gmra.mrb[0].mxu0 %v2346
    %v2557 = vpop.f32.mrb[0].mxu0
    %v2558 = vadd.f32 %v1253, %v2557
    %v2559 = vpop.f32.mrb[0].mxu0
    %v2560 = vadd.f32 %v1257, %v2559
    %v2561 = vpop.f32.mrb[0].mxu0
    %v2562 = vpop.f32.mrb[0].mxu0
    %2563 = vdwg.mxu0
    %v2564 = vxor.u32 %v2517, 2147483648
    %v2565 = vxor.u32 %v2519, 2147483648
    %v2566 = vxor.u32 %v2558, 2147483648
    %v2567 = vmul.f32 %v2564, 1.442695
    %v2568 = vpow.pop %v2567
    %v2569 = vmul.f32 %v2565, 1.442695
    %v2570 = vpow.pop %v2569
    %v2571 = vmul.f32 %v2566, 1.442695
    %v2572 = vpow.pop %v2571
    %v2573 = vadd.f32 %v2568, 1.0
    %v2574 = vadd.f32 %v2570, 1.0
    %v2575 = vadd.f32 %v2572, 1.0
    %v2576 = vrcp.pop %v2573
    %v2577 = vmul.f32 1.0, %v2576
    %v2578 = vrcp.pop %v2574
    %v2579 = vmul.f32 1.0, %v2578
    %v2580 = vrcp.pop %v2575
    %v2581 = vmul.f32 1.0, %v2580
    %v2582 = vtanh.pop %v2560
    %v2583 = vmul.f32 %v2579, %v2339
    %v2584 = vmul.f32 %v2577, %v2582
    %v2585 = vadd.f32 %v2583, %v2584
    %v2586 = vtanh.pop %v2585
    %v2587 = vmul.f32 %v2581, %v2586
    %v2588 = vpack.c.bf16 %v2472, %v2472
    %v2590 = vrot.slane %v2588, 3
    %2592 = vmatprep.subr.bf16.mxu0 %v557
    %2593 = vmatpush1.bf16.msra.mxu0 %v556
    %2594 = vmatprep.subr.bf16.mxu0 %v561
    %2595 = vmatpush1.bf16.msra.mxu0 %v560
    %2596 = vmatprep.subr.bf16.mxu0 %v565
    %2597 = vmatpush1.bf16.msra.mxu0 %v564
    %2598 = vmatprep.subr.bf16.mxu0 %v569
    %2599 = vmatpush1.bf16.msra.mxu0 %v568
    %2600 = vmatprep.subr.bf16.mxu0 %v573
    %2601 = vmatpush1.bf16.msra.mxu0 %v572
    %2602 = vmatprep.subr.bf16.mxu0 %v577
    %2603 = vmatpush1.bf16.msra.mxu0 %v576
    %2604 = vmatprep.subr.bf16.mxu0 %v581
    %2605 = vmatpush1.bf16.msra.mxu0 %v580
    %2606 = vmatprep.subr.bf16.mxu0 %v585
    %2607 = vmatpush1.bf16.msra.mxu0 %v584
    %2608 = vmatprep.subr.bf16.mxu0 0
    %2609 = vmatpush1.bf16.msra.mxu0 0
    %2610 = vmatprep.subr.bf16.mxu0 0
    %2611 = vmatpush1.bf16.msra.mxu0 0
    %2612 = vmatprep.subr.bf16.mxu0 0
    %2613 = vmatpush1.bf16.msra.mxu0 0
    %2614 = vmatprep.subr.bf16.mxu0 0
    %2615 = vmatpush1.bf16.msra.mxu0 0
    %2616 = vmatprep.subr.bf16.mxu0 0
    %2617 = vmatpush1.bf16.msra.mxu0 0
    %2618 = vmatprep.subr.bf16.mxu0 0
    %2619 = vmatpush1.bf16.msra.mxu0 0
    %2620 = vmatprep.subr.bf16.mxu0 0
    %2621 = vmatpush1.bf16.msra.mxu0 0
    %2622 = vmatprep.subr.bf16.mxu0 0
    %2623 = vmatpush1.bf16.msra.mxu0 0
    %2624 = vmatprep.mubr.bf16.mxu0 0
    %2625 = vmatmul.mubr.bf16.gmra.mrb[0].mxu0 %v2590
    %v2626 = vpop.f32.mrb[0].mxu0
    %v2627 = vadd.f32 0.0, %v2626
    %v2628 = vpop.f32.mrb[0].mxu0
    %v2629 = vadd.f32 0.0, %v2628
    %v2630 = vpop.f32.mrb[0].mxu0
    %v2631 = vpop.f32.mrb[0].mxu0
    %2632 = vdwg.mxu0
    %2633 = vmatprep.subr.bf16.mxu0 %v559
    %2634 = vmatpush1.bf16.msra.mxu0 %v558
    %2635 = vmatprep.subr.bf16.mxu0 %v563
    %2636 = vmatpush1.bf16.msra.mxu0 %v562
    %2637 = vmatprep.subr.bf16.mxu0 %v567
    %2638 = vmatpush1.bf16.msra.mxu0 %v566
    %2639 = vmatprep.subr.bf16.mxu0 %v571
    %2640 = vmatpush1.bf16.msra.mxu0 %v570
    %2641 = vmatprep.subr.bf16.mxu0 %v575
    %2642 = vmatpush1.bf16.msra.mxu0 %v574
    %2643 = vmatprep.subr.bf16.mxu0 %v579
    %2644 = vmatpush1.bf16.msra.mxu0 %v578
    %2645 = vmatprep.subr.bf16.mxu0 %v583
    %2646 = vmatpush1.bf16.msra.mxu0 %v582
    %2647 = vmatprep.subr.bf16.mxu0 %v587
    %2648 = vmatpush1.bf16.msra.mxu0 %v586
    %2649 = vmatprep.subr.bf16.mxu0 0
    %2650 = vmatpush1.bf16.msra.mxu0 0
    %2651 = vmatprep.subr.bf16.mxu0 0
    %2652 = vmatpush1.bf16.msra.mxu0 0
    %2653 = vmatprep.subr.bf16.mxu0 0
    %2654 = vmatpush1.bf16.msra.mxu0 0
    %2655 = vmatprep.subr.bf16.mxu0 0
    %2656 = vmatpush1.bf16.msra.mxu0 0
    %2657 = vmatprep.subr.bf16.mxu0 0
    %2658 = vmatpush1.bf16.msra.mxu0 0
    %2659 = vmatprep.subr.bf16.mxu0 0
    %2660 = vmatpush1.bf16.msra.mxu0 0
    %2661 = vmatprep.subr.bf16.mxu0 0
    %2662 = vmatpush1.bf16.msra.mxu0 0
    %2663 = vmatprep.subr.bf16.mxu0 0
    %2664 = vmatpush1.bf16.msra.mxu0 0
    %2665 = vmatprep.mubr.bf16.mxu0 0
    %2666 = vmatmul.mubr.bf16.gmra.mrb[0].mxu0 %v2590
    %v2667 = vpop.f32.mrb[0].mxu0
    %v2668 = vadd.f32 0.0, %v2667
    %v2669 = vpop.f32.mrb[0].mxu0
    %v2670 = vadd.f32 0.0, %v2669
    %v2671 = vpop.f32.mrb[0].mxu0
    %v2672 = vpop.f32.mrb[0].mxu0
    %2673 = vdwg.mxu0
    %v2678 = vrot.slane %v2627, 1
    %v2679 = vrot.slane %v2629, 1
    %v2680 = vrot.slane %v2668, 1
    %v2681 = vrot.slane %v2670, 1
    %v2686 = vadd.f32 %v380, %v2678
    %v2687 = vadd.f32 %v382, %v2679
    %v2688 = vadd.f32 %v421, %v2680
    %v2689 = vadd.f32 %v423, %v2681
    %v2690 = vxor.u32 %v2686, 2147483648
    %v2691 = vxor.u32 %v2687, 2147483648
    %v2692 = vxor.u32 %v2688, 2147483648
    %v2693 = vmul.f32 %v2690, 1.442695
    %v2694 = vpow.pop %v2693
    %v2695 = vmul.f32 %v2691, 1.442695
    %v2696 = vpow.pop %v2695
    %v2697 = vmul.f32 %v2692, 1.442695
    %v2698 = vpow.pop %v2697
    %v2699 = vadd.f32 %v2694, 1.0
    %v2700 = vadd.f32 %v2696, 1.0
    %v2701 = vadd.f32 %v2698, 1.0
    %v2702 = vrcp.pop %v2699
    %v2703 = vmul.f32 1.0, %v2702
    %v2704 = vrcp.pop %v2700
    %v2705 = vmul.f32 1.0, %v2704
    %v2706 = vrcp.pop %v2701
    %v2707 = vmul.f32 1.0, %v2706
    %v2708 = vtanh.pop %v2689
    %v2710 = vrot.slane %v2470, 7
    %v2712 = vmul.f32 %v2705, %v2710
    %v2713 = vmul.f32 %v2703, %v2708
    %v2714 = vadd.f32 %v2712, %v2713
    %v2715 = vtanh.pop %v2714
    %v2716 = vmul.f32 %v2707, %v2715
    %v2718 = vrot.slane %v2587, 2
    %v2720 = vpack.c.bf16 %v2718, %v2718
    %v2722 = vrot.slane %v2720, 3
    %2724 = vmatprep.subr.bf16.mxu0 %v1114
    %2725 = vmatpush1.bf16.msra.mxu0 %v1113
    %2726 = vmatprep.subr.bf16.mxu0 %v1118
    %2727 = vmatpush1.bf16.msra.mxu0 %v1117
    %2728 = vmatprep.subr.bf16.mxu0 %v1122
    %2729 = vmatpush1.bf16.msra.mxu0 %v1121
    %2730 = vmatprep.subr.bf16.mxu0 %v1126
    %2731 = vmatpush1.bf16.msra.mxu0 %v1125
    %2732 = vmatprep.subr.bf16.mxu0 %v1130
    %2733 = vmatpush1.bf16.msra.mxu0 %v1129
    %2734 = vmatprep.subr.bf16.mxu0 %v1134
    %2735 = vmatpush1.bf16.msra.mxu0 %v1133
    %2736 = vmatprep.subr.bf16.mxu0 %v1138
    %2737 = vmatpush1.bf16.msra.mxu0 %v1137
    %2738 = vmatprep.subr.bf16.mxu0 %v1142
    %2739 = vmatpush1.bf16.msra.mxu0 %v1141
    %2740 = vmatprep.subr.bf16.mxu0 %v1146
    %2741 = vmatpush1.bf16.msra.mxu0 %v1145
    %2742 = vmatprep.subr.bf16.mxu0 %v1150
    %2743 = vmatpush1.bf16.msra.mxu0 %v1149
    %2744 = vmatprep.subr.bf16.mxu0 %v1154
    %2745 = vmatpush1.bf16.msra.mxu0 %v1153
    %2746 = vmatprep.subr.bf16.mxu0 %v1158
    %2747 = vmatpush1.bf16.msra.mxu0 %v1157
    %2748 = vmatprep.subr.bf16.mxu0 %v1162
    %2749 = vmatpush1.bf16.msra.mxu0 %v1161
    %2750 = vmatprep.subr.bf16.mxu0 %v1166
    %2751 = vmatpush1.bf16.msra.mxu0 %v1165
    %2752 = vmatprep.subr.bf16.mxu0 %v1170
    %2753 = vmatpush1.bf16.msra.mxu0 %v1169
    %2754 = vmatprep.subr.bf16.mxu0 %v1174
    %2755 = vmatpush1.bf16.msra.mxu0 %v1173
    %2756 = vmatprep.mubr.bf16.mxu0 %v2722
    %2757 = vmatmul.mubr.bf16.gmra.mrb[0].mxu0 %v2590
    %v2758 = vpop.f32.mrb[0].mxu0
    %v2759 = vadd.f32 %v1245, %v2758
    %v2760 = vpop.f32.mrb[0].mxu0
    %v2761 = vadd.f32 %v1249, %v2760
    %v2762 = vpop.f32.mrb[0].mxu0
    %v2763 = vpop.f32.mrb[0].mxu0
    %2764 = vdwg.mxu0
    %2765 = vmatprep.subr.bf16.mxu0 %v1116
    %2766 = vmatpush1.bf16.msra.mxu0 %v1115
    %2767 = vmatprep.subr.bf16.mxu0 %v1120
    %2768 = vmatpush1.bf16.msra.mxu0 %v1119
    %2769 = vmatprep.subr.bf16.mxu0 %v1124
    %2770 = vmatpush1.bf16.msra.mxu0 %v1123
    %2771 = vmatprep.subr.bf16.mxu0 %v1128
    %2772 = vmatpush1.bf16.msra.mxu0 %v1127
    %2773 = vmatprep.subr.bf16.mxu0 %v1132
    %2774 = vmatpush1.bf16.msra.mxu0 %v1131
    %2775 = vmatprep.subr.bf16.mxu0 %v1136
    %2776 = vmatpush1.bf16.msra.mxu0 %v1135
    %2777 = vmatprep.subr.bf16.mxu0 %v1140
    %2778 = vmatpush1.bf16.msra.mxu0 %v1139
    %2779 = vmatprep.subr.bf16.mxu0 %v1144
    %2780 = vmatpush1.bf16.msra.mxu0 %v1143
    %2781 = vmatprep.subr.bf16.mxu0 %v1148
    %2782 = vmatpush1.bf16.msra.mxu0 %v1147
    %2783 = vmatprep.subr.bf16.mxu0 %v1152
    %2784 = vmatpush1.bf16.msra.mxu0 %v1151
    %2785 = vmatprep.subr.bf16.mxu0 %v1156
    %2786 = vmatpush1.bf16.msra.mxu0 %v1155
    %2787 = vmatprep.subr.bf16.mxu0 %v1160
    %2788 = vmatpush1.bf16.msra.mxu0 %v1159
    %2789 = vmatprep.subr.bf16.mxu0 %v1164
    %2790 = vmatpush1.bf16.msra.mxu0 %v1163
    %2791 = vmatprep.subr.bf16.mxu0 %v1168
    %2792 = vmatpush1.bf16.msra.mxu0 %v1167
    %2793 = vmatprep.subr.bf16.mxu0 %v1172
    %2794 = vmatpush1.bf16.msra.mxu0 %v1171
    %2795 = vmatprep.subr.bf16.mxu0 %v1176
    %2796 = vmatpush1.bf16.msra.mxu0 %v1175
    %2797 = vmatprep.mubr.bf16.mxu0 %v2722
    %2798 = vmatmul.mubr.bf16.gmra.mrb[0].mxu0 %v2590
    %v2799 = vpop.f32.mrb[0].mxu0
    %v2800 = vadd.f32 %v1253, %v2799
    %v2801 = vpop.f32.mrb[0].mxu0
    %v2802 = vadd.f32 %v1257, %v2801
    %v2803 = vpop.f32.mrb[0].mxu0
    %v2804 = vpop.f32.mrb[0].mxu0
    %2805 = vdwg.mxu0
    %v2806 = vxor.u32 %v2759, 2147483648
    %v2807 = vxor.u32 %v2761, 2147483648
    %v2808 = vxor.u32 %v2800, 2147483648
    %v2809 = vmul.f32 %v2806, 1.442695
    %v2810 = vpow.pop %v2809
    %v2811 = vmul.f32 %v2807, 1.442695
    %v2812 = vpow.pop %v2811
    %v2813 = vmul.f32 %v2808, 1.442695
    %v2814 = vpow.pop %v2813
    %v2815 = vadd.f32 %v2810, 1.0
    %v2816 = vadd.f32 %v2812, 1.0
    %v2817 = vadd.f32 %v2814, 1.0
    %v2818 = vrcp.pop %v2815
    %v2819 = vmul.f32 1.0, %v2818
    %v2820 = vrcp.pop %v2816
    %v2821 = vmul.f32 1.0, %v2820
    %v2822 = vrcp.pop %v2817
    %v2823 = vmul.f32 1.0, %v2822
    %v2824 = vtanh.pop %v2802
    %v2825 = vmul.f32 %v2821, %v2585
    %v2826 = vmul.f32 %v2819, %v2824
    %v2827 = vadd.f32 %v2825, %v2826
    %v2828 = vtanh.pop %v2827
    %v2829 = vmul.f32 %v2823, %v2828
    %v2831 = vrot.slane %v2829, 1
    %v2833 = vpack.c.bf16 %v2716, %v2716
    %v2834 = vpack.c.bf16 %v2831, %v2831
    %v2836 = vshrl.u32 %v2833, 16
    %v2838 = vrot.slane %v2836, 3
    %v2840 = vshrl.u32 %v2834, 16
    %v2842 = vrot.slane %v2840, 3
    %2845 = vmatprep.subr.bf16.mxu0 %v1114
    %2846 = vmatpush1.bf16.msra.mxu0 %v1113
    %2847 = vmatprep.subr.bf16.mxu0 %v1118
    %2848 = vmatpush1.bf16.msra.mxu0 %v1117
    %2849 = vmatprep.subr.bf16.mxu0 %v1122
    %2850 = vmatpush1.bf16.msra.mxu0 %v1121
    %2851 = vmatprep.subr.bf16.mxu0 %v1126
    %2852 = vmatpush1.bf16.msra.mxu0 %v1125
    %2853 = vmatprep.subr.bf16.mxu0 %v1130
    %2854 = vmatpush1.bf16.msra.mxu0 %v1129
    %2855 = vmatprep.subr.bf16.mxu0 %v1134
    %2856 = vmatpush1.bf16.msra.mxu0 %v1133
    %2857 = vmatprep.subr.bf16.mxu0 %v1138
    %2858 = vmatpush1.bf16.msra.mxu0 %v1137
    %2859 = vmatprep.subr.bf16.mxu0 %v1142
    %2860 = vmatpush1.bf16.msra.mxu0 %v1141
    %2861 = vmatprep.subr.bf16.mxu0 %v1146
    %2862 = vmatpush1.bf16.msra.mxu0 %v1145
    %2863 = vmatprep.subr.bf16.mxu0 %v1150
    %2864 = vmatpush1.bf16.msra.mxu0 %v1149
    %2865 = vmatprep.subr.bf16.mxu0 %v1154
    %2866 = vmatpush1.bf16.msra.mxu0 %v1153
    %2867 = vmatprep.subr.bf16.mxu0 %v1158
    %2868 = vmatpush1.bf16.msra.mxu0 %v1157
    %2869 = vmatprep.subr.bf16.mxu0 %v1162
    %2870 = vmatpush1.bf16.msra.mxu0 %v1161
    %2871 = vmatprep.subr.bf16.mxu0 %v1166
    %2872 = vmatpush1.bf16.msra.mxu0 %v1165
    %2873 = vmatprep.subr.bf16.mxu0 %v1170
    %2874 = vmatpush1.bf16.msra.mxu0 %v1169
    %2875 = vmatprep.subr.bf16.mxu0 %v1174
    %2876 = vmatpush1.bf16.msra.mxu0 %v1173
    %2877 = vmatprep.mubr.bf16.mxu0 %v2842
    %2878 = vmatmul.mubr.bf16.gmra.mrb[0].mxu0 %v2838
    %v2879 = vpop.f32.mrb[0].mxu0
    %v2880 = vadd.f32 %v1245, %v2879
    %v2881 = vpop.f32.mrb[0].mxu0
    %v2882 = vadd.f32 %v1249, %v2881
    %v2883 = vpop.f32.mrb[0].mxu0
    %v2884 = vpop.f32.mrb[0].mxu0
    %2885 = vdwg.mxu0
    %2886 = vmatprep.subr.bf16.mxu0 %v1116
    %2887 = vmatpush1.bf16.msra.mxu0 %v1115
    %2888 = vmatprep.subr.bf16.mxu0 %v1120
    %2889 = vmatpush1.bf16.msra.mxu0 %v1119
    %2890 = vmatprep.subr.bf16.mxu0 %v1124
    %2891 = vmatpush1.bf16.msra.mxu0 %v1123
    %2892 = vmatprep.subr.bf16.mxu0 %v1128
    %2893 = vmatpush1.bf16.msra.mxu0 %v1127
    %2894 = vmatprep.subr.bf16.mxu0 %v1132
    %2895 = vmatpush1.bf16.msra.mxu0 %v1131
    %2896 = vmatprep.subr.bf16.mxu0 %v1136
    %2897 = vmatpush1.bf16.msra.mxu0 %v1135
    %2898 = vmatprep.subr.bf16.mxu0 %v1140
    %2899 = vmatpush1.bf16.msra.mxu0 %v1139
    %2900 = vmatprep.subr.bf16.mxu0 %v1144
    %2901 = vmatpush1.bf16.msra.mxu0 %v1143
    %2902 = vmatprep.subr.bf16.mxu0 %v1148
    %2903 = vmatpush1.bf16.msra.mxu0 %v1147
    %2904 = vmatprep.subr.bf16.mxu0 %v1152
    %2905 = vmatpush1.bf16.msra.mxu0 %v1151
    %2906 = vmatprep.subr.bf16.mxu0 %v1156
    %2907 = vmatpush1.bf16.msra.mxu0 %v1155
    %2908 = vmatprep.subr.bf16.mxu0 %v1160
    %2909 = vmatpush1.bf16.msra.mxu0 %v1159
    %2910 = vmatprep.subr.bf16.mxu0 %v1164
    %2911 = vmatpush1.bf16.msra.mxu0 %v1163
    %2912 = vmatprep.subr.bf16.mxu0 %v1168
    %2913 = vmatpush1.bf16.msra.mxu0 %v1167
    %2914 = vmatprep.subr.bf16.mxu0 %v1172
    %2915 = vmatpush1.bf16.msra.mxu0 %v1171
    %2916 = vmatprep.subr.bf16.mxu0 %v1176
    %2917 = vmatpush1.bf16.msra.mxu0 %v1175
    %2918 = vmatprep.mubr.bf16.mxu0 %v2842
    %2919 = vmatmul.mubr.bf16.gmra.mrb[0].mxu0 %v2838
    %v2920 = vpop.f32.mrb[0].mxu0
    %v2921 = vadd.f32 %v1253, %v2920
    %v2922 = vpop.f32.mrb[0].mxu0
    %v2923 = vadd.f32 %v1257, %v2922
    %v2924 = vpop.f32.mrb[0].mxu0
    %v2925 = vpop.f32.mrb[0].mxu0
    %2926 = vdwg.mxu0
    %v2927 = vxor.u32 %v2880, 2147483648
    %v2928 = vxor.u32 %v2882, 2147483648
    %v2929 = vxor.u32 %v2921, 2147483648
    %v2930 = vmul.f32 %v2927, 1.442695
    %v2931 = vpow.pop %v2930
    %v2932 = vmul.f32 %v2928, 1.442695
    %v2933 = vpow.pop %v2932
    %v2934 = vmul.f32 %v2929, 1.442695
    %v2935 = vpow.pop %v2934
    %v2936 = vadd.f32 %v2931, 1.0
    %v2937 = vadd.f32 %v2933, 1.0
    %v2938 = vadd.f32 %v2935, 1.0
    %v2939 = vrcp.pop %v2936
    %v2940 = vmul.f32 1.0, %v2939
    %v2941 = vrcp.pop %v2937
    %v2942 = vmul.f32 1.0, %v2941
    %v2943 = vrcp.pop %v2938
    %v2944 = vmul.f32 1.0, %v2943
    %v2945 = vtanh.pop %v2923
    %v2946 = vmul.f32 %v2942, %v2827
    %v2947 = vmul.f32 %v2940, %v2945
    %v2948 = vadd.f32 %v2946, %v2947
    %v2949 = vtanh.pop %v2948
    %v2950 = vmul.f32 %v2944, %v2949
    %v2951 = vpack.c.bf16 %v2950, %v2950
    %v2952 = vld [vmem:[#allocation8] sm:$0xff]
    %v2953 = vld [vmem:[#allocation8 + $0x8] sm:$0xff]
    %v2954 = vld [vmem:[#allocation8 + $0x10] sm:$0xff]
    %v2955 = vld [vmem:[#allocation8 + $0x18] sm:$0xff]
    %v2956 = vld [vmem:[#allocation8 + $0x20] sm:$0xff]
    %v2957 = vld [vmem:[#allocation8 + $0x28] sm:$0xff]
    %v2958 = vld [vmem:[#allocation8 + $0x30] sm:$0xff]
    %v2959 = vld [vmem:[#allocation8 + $0x38] sm:$0xff]
    %v2960 = vld [vmem:[#allocation8 + $0x40] sm:$0xff]
    %v2961 = vld [vmem:[#allocation8 + $0x48] sm:$0xff]
    %v2962 = vld [vmem:[#allocation8 + $0x50] sm:$0xff]
    %v2963 = vld [vmem:[#allocation8 + $0x58] sm:$0xff]
    %v2964 = vld [vmem:[#allocation8 + $0x60] sm:$0xff]
    %v2965 = vld [vmem:[#allocation8 + $0x68] sm:$0xff]
    %v2966 = vld [vmem:[#allocation8 + $0x70] sm:$0xff]
    %v2967 = vld [vmem:[#allocation8 + $0x78] sm:$0xff]
    %v2968 = vld [vmem:[#allocation8 + $0x80] sm:$0xff]
    %v2969 = vld [vmem:[#allocation8 + $0x88] sm:$0xff]
    %v2970 = vld [vmem:[#allocation8 + $0x90] sm:$0xff]
    %v2971 = vld [vmem:[#allocation8 + $0x98] sm:$0xff]
    %v2972 = vld [vmem:[#allocation8 + $0xa0] sm:$0xff]
    %v2973 = vld [vmem:[#allocation8 + $0xa8] sm:$0xff]
    %v2974 = vld [vmem:[#allocation8 + $0xb0] sm:$0xff]
    %v2975 = vld [vmem:[#allocation8 + $0xb8] sm:$0xff]
    %v2976 = vld [vmem:[#allocation8 + $0xc0] sm:$0xff]
    %v2977 = vld [vmem:[#allocation8 + $0xc8] sm:$0xff]
    %v2978 = vld [vmem:[#allocation8 + $0xd0] sm:$0xff]
    %v2979 = vld [vmem:[#allocation8 + $0xd8] sm:$0xff]
    %v2980 = vld [vmem:[#allocation8 + $0xe0] sm:$0xff]
    %v2981 = vld [vmem:[#allocation8 + $0xe8] sm:$0xff]
    %v2982 = vld [vmem:[#allocation8 + $0xf0] sm:$0xff]
    %v2983 = vld [vmem:[#allocation8 + $0xf8] sm:$0xff]
    %v2984 = vld [vmem:[%s8] sm:$0xf]
    %v3017 = vunpack.c.l.b16 %v2952
    %v3018 = vunpack.c.h.b16 %v2952
    %v3019 = vunpack.c.l.b16 %v2953
    %v3020 = vunpack.c.h.b16 %v2953
    %v3021 = vunpack.c.l.b16 %v2954
    %v3022 = vunpack.c.h.b16 %v2954
    %v3023 = vunpack.c.l.b16 %v2955
    %v3024 = vunpack.c.h.b16 %v2955
    %v3025 = vunpack.c.l.b16 %v2956
    %v3026 = vunpack.c.h.b16 %v2956
    %v3027 = vunpack.c.l.b16 %v2957
    %v3028 = vunpack.c.h.b16 %v2957
    %v3029 = vunpack.c.l.b16 %v2958
    %v3030 = vunpack.c.h.b16 %v2958
    %v3031 = vunpack.c.l.b16 %v2959
    %v3032 = vunpack.c.h.b16 %v2959
    %v3033 = vunpack.c.l.b16 %v2960
    %v3034 = vunpack.c.h.b16 %v2960
    %v3035 = vunpack.c.l.b16 %v2961
    %v3036 = vunpack.c.h.b16 %v2961
    %v3037 = vunpack.c.l.b16 %v2962
    %v3038 = vunpack.c.h.b16 %v2962
    %v3039 = vunpack.c.l.b16 %v2963
    %v3040 = vunpack.c.h.b16 %v2963
    %v3041 = vunpack.c.l.b16 %v2964
    %v3042 = vunpack.c.h.b16 %v2964
    %v3043 = vunpack.c.l.b16 %v2965
    %v3044 = vunpack.c.h.b16 %v2965
    %v3045 = vunpack.c.l.b16 %v2966
    %v3046 = vunpack.c.h.b16 %v2966
    %v3047 = vunpack.c.l.b16 %v2967
    %v3048 = vunpack.c.h.b16 %v2967
    %v3049 = vunpack.c.l.b16 %v2968
    %v3050 = vunpack.c.h.b16 %v2968
    %v3051 = vunpack.c.l.b16 %v2969
    %v3052 = vunpack.c.h.b16 %v2969
    %v3053 = vunpack.c.l.b16 %v2970
    %v3054 = vunpack.c.h.b16 %v2970
    %v3055 = vunpack.c.l.b16 %v2971
    %v3056 = vunpack.c.h.b16 %v2971
    %v3057 = vunpack.c.l.b16 %v2972
    %v3058 = vunpack.c.h.b16 %v2972
    %v3059 = vunpack.c.l.b16 %v2973
    %v3060 = vunpack.c.h.b16 %v2973
    %v3061 = vunpack.c.l.b16 %v2974
    %v3062 = vunpack.c.h.b16 %v2974
    %v3063 = vunpack.c.l.b16 %v2975
    %v3064 = vunpack.c.h.b16 %v2975
    %v3065 = vunpack.c.l.b16 %v2976
    %v3066 = vunpack.c.h.b16 %v2976
    %v3067 = vunpack.c.l.b16 %v2977
    %v3068 = vunpack.c.h.b16 %v2977
    %v3069 = vunpack.c.l.b16 %v2978
    %v3070 = vunpack.c.h.b16 %v2978
    %v3071 = vunpack.c.l.b16 %v2979
    %v3072 = vunpack.c.h.b16 %v2979
    %v3073 = vunpack.c.l.b16 %v2980
    %v3074 = vunpack.c.h.b16 %v2980
    %v3075 = vunpack.c.l.b16 %v2981
    %v3076 = vunpack.c.h.b16 %v2981
    %v3077 = vunpack.c.l.b16 %v2982
    %v3078 = vunpack.c.h.b16 %v2982
    %v3079 = vunpack.c.l.b16 %v2983
    %v3080 = vunpack.c.h.b16 %v2983
    %v3081 = vpack.c.b16 %v3021, %v3017
    %v3082 = vpack.c.b16 %v3022, %v3018
    %v3083 = vpack.c.b16 %v3023, %v3019
    %v3084 = vpack.c.b16 %v3024, %v3020
    %v3085 = vpack.c.b16 %v3029, %v3025
    %v3086 = vpack.c.b16 %v3030, %v3026
    %v3087 = vpack.c.b16 %v3031, %v3027
    %v3088 = vpack.c.b16 %v3032, %v3028
    %v3089 = vpack.c.b16 %v3037, %v3033
    %v3090 = vpack.c.b16 %v3038, %v3034
    %v3091 = vpack.c.b16 %v3039, %v3035
    %v3092 = vpack.c.b16 %v3040, %v3036
    %v3093 = vpack.c.b16 %v3045, %v3041
    %v3094 = vpack.c.b16 %v3046, %v3042
    %v3095 = vpack.c.b16 %v3047, %v3043
    %v3096 = vpack.c.b16 %v3048, %v3044
    %v3097 = vpack.c.b16 %v3053, %v3049
    %v3098 = vpack.c.b16 %v3054, %v3050
    %v3099 = vpack.c.b16 %v3055, %v3051
    %v3100 = vpack.c.b16 %v3056, %v3052
    %v3101 = vpack.c.b16 %v3061, %v3057
    %v3102 = vpack.c.b16 %v3062, %v3058
    %v3103 = vpack.c.b16 %v3063, %v3059
    %v3104 = vpack.c.b16 %v3064, %v3060
    %v3105 = vpack.c.b16 %v3069, %v3065
    %v3106 = vpack.c.b16 %v3070, %v3066
    %v3107 = vpack.c.b16 %v3071, %v3067
    %v3108 = vpack.c.b16 %v3072, %v3068
    %v3109 = vpack.c.b16 %v3077, %v3073
    %v3110 = vpack.c.b16 %v3078, %v3074
    %v3111 = vpack.c.b16 %v3079, %v3075
    %v3112 = vpack.c.b16 %v3080, %v3076
    %v3146 = vlaneseq
    %v3147 = vshrl.u32 %v3146, 7
    %v3148 = vsub.s32 0, %v3147
    %v3149 = vrot.slane %v2984, %v3148
    %v3150 = vlaneseq
    %v3151 = vshrl.u32 %v3150, 7
    %v3152 = vsub.s32 1, %v3151
    %v3153 = vrot.slane %v2984, %v3152
    %v3154 = vlaneseq
    %v3155 = vshrl.u32 %v3154, 7
    %v3156 = vsub.s32 2, %v3155
    %v3157 = vrot.slane %v2984, %v3156
    %v3158 = vlaneseq
    %v3159 = vshrl.u32 %v3158, 7
    %v3160 = vsub.s32 3, %v3159
    %v3161 = vrot.slane %v2984, %v3160
    %3166 = vmatprep.subr.bf16.mxu0 %v3082
    %3167 = vmatpush1.bf16.msra.mxu0 %v3081
    %3168 = vmatprep.subr.bf16.mxu0 %v3086
    %3169 = vmatpush1.bf16.msra.mxu0 %v3085
    %3170 = vmatprep.subr.bf16.mxu0 %v3090
    %3171 = vmatpush1.bf16.msra.mxu0 %v3089
    %3172 = vmatprep.subr.bf16.mxu0 %v3094
    %3173 = vmatpush1.bf16.msra.mxu0 %v3093
    %3174 = vmatprep.subr.bf16.mxu0 %v3098
    %3175 = vmatpush1.bf16.msra.mxu0 %v3097
    %3176 = vmatprep.subr.bf16.mxu0 %v3102
    %3177 = vmatpush1.bf16.msra.mxu0 %v3101
    %3178 = vmatprep.subr.bf16.mxu0 %v3106
    %3179 = vmatpush1.bf16.msra.mxu0 %v3105
    %3180 = vmatprep.subr.bf16.mxu0 %v3110
    %3181 = vmatpush1.bf16.msra.mxu0 %v3109
    %3182 = vmatprep.subr.bf16.mxu0 0
    %3183 = vmatpush1.bf16.msra.mxu0 0
    %3184 = vmatprep.subr.bf16.mxu0 0
    %3185 = vmatpush1.bf16.msra.mxu0 0
    %3186 = vmatprep.subr.bf16.mxu0 0
    %3187 = vmatpush1.bf16.msra.mxu0 0
    %3188 = vmatprep.subr.bf16.mxu0 0
    %3189 = vmatpush1.bf16.msra.mxu0 0
    %3190 = vmatprep.subr.bf16.mxu0 0
    %3191 = vmatpush1.bf16.msra.mxu0 0
    %3192 = vmatprep.subr.bf16.mxu0 0
    %3193 = vmatpush1.bf16.msra.mxu0 0
    %3194 = vmatprep.subr.bf16.mxu0 0
    %3195 = vmatpush1.bf16.msra.mxu0 0
    %3196 = vmatprep.subr.bf16.mxu0 0
    %3197 = vmatpush1.bf16.msra.mxu0 0
    %3198 = vmatprep.mubr.bf16.mxu0 0
    %3199 = vmatmul.mubr.bf16.gmra.mrb[0].mxu0 %v2951
    %v3200 = vpop.f32.mrb[0].mxu0
    %v3201 = vadd.f32 %v3149, %v3200
    %v3202 = vpop.f32.mrb[0].mxu0
    %v3203 = vadd.f32 %v3153, %v3202
    %v3204 = vpop.f32.mrb[0].mxu0
    %v3205 = vpop.f32.mrb[0].mxu0
    %3206 = vdwg.mxu0
    %3207 = vmatprep.subr.bf16.mxu0 %v3084
    %3208 = vmatpush1.bf16.msra.mxu0 %v3083
    %3209 = vmatprep.subr.bf16.mxu0 %v3088
    %3210 = vmatpush1.bf16.msra.mxu0 %v3087
    %3211 = vmatprep.subr.bf16.mxu0 %v3092
    %3212 = vmatpush1.bf16.msra.mxu0 %v3091
    %3213 = vmatprep.subr.bf16.mxu0 %v3096
    %3214 = vmatpush1.bf16.msra.mxu0 %v3095
    %3215 = vmatprep.subr.bf16.mxu0 %v3100
    %3216 = vmatpush1.bf16.msra.mxu0 %v3099
    %3217 = vmatprep.subr.bf16.mxu0 %v3104
    %3218 = vmatpush1.bf16.msra.mxu0 %v3103
    %3219 = vmatprep.subr.bf16.mxu0 %v3108
    %3220 = vmatpush1.bf16.msra.mxu0 %v3107
    %3221 = vmatprep.subr.bf16.mxu0 %v3112
    %3222 = vmatpush1.bf16.msra.mxu0 %v3111
    %3223 = vmatprep.subr.bf16.mxu0 0
    %3224 = vmatpush1.bf16.msra.mxu0 0
    %3225 = vmatprep.subr.bf16.mxu0 0
    %3226 = vmatpush1.bf16.msra.mxu0 0
    %3227 = vmatprep.subr.bf16.mxu0 0
    %3228 = vmatpush1.bf16.msra.mxu0 0
    %3229 = vmatprep.subr.bf16.mxu0 0
    %3230 = vmatpush1.bf16.msra.mxu0 0
    %3231 = vmatprep.subr.bf16.mxu0 0
    %3232 = vmatpush1.bf16.msra.mxu0 0
    %3233 = vmatprep.subr.bf16.mxu0 0
    %3234 = vmatpush1.bf16.msra.mxu0 0
    %3235 = vmatprep.subr.bf16.mxu0 0
    %3236 = vmatpush1.bf16.msra.mxu0 0
    %3237 = vmatprep.subr.bf16.mxu0 0
    %3238 = vmatpush1.bf16.msra.mxu0 0
    %3239 = vmatprep.mubr.bf16.mxu0 0
    %3240 = vmatmul.mubr.bf16.gmra.mrb[0].mxu0 %v2951
    %v3241 = vpop.f32.mrb[0].mxu0
    %v3242 = vadd.f32 %v3157, %v3241
    %v3243 = vpop.f32.mrb[0].mxu0
    %v3244 = vadd.f32 %v3161, %v3243
    %v3245 = vpop.f32.mrb[0].mxu0
    %v3246 = vpop.f32.mrb[0].mxu0
    %3247 = vdwg.mxu0
    %v3248 = vld [vmem:[%s10] sm:$0xf]
    %v3249 = vld [vmem:[#allocation10] sm:$0xff]
    %v3250 = vld [vmem:[#allocation10 + $0x8] sm:$0xff]
    %v3251 = vld [vmem:[#allocation10 + $0x10] sm:$0xff]
    %v3252 = vld [vmem:[#allocation10 + $0x18] sm:$0xff]
    %v3253 = vld [vmem:[#allocation10 + $0x20] sm:$0xff]
    %v3254 = vld [vmem:[#allocation10 + $0x28] sm:$0xff]
    %v3255 = vld [vmem:[#allocation10 + $0x30] sm:$0xff]
    %v3256 = vld [vmem:[#allocation10 + $0x38] sm:$0xff]
    %v3257 = vld [vmem:[#allocation10 + $0x40] sm:$0xff]
    %v3258 = vld [vmem:[#allocation10 + $0x48] sm:$0xff]
    %v3259 = vld [vmem:[#allocation10 + $0x50] sm:$0xff]
    %v3260 = vld [vmem:[#allocation10 + $0x58] sm:$0xff]
    %v3261 = vld [vmem:[#allocation10 + $0x60] sm:$0xff]
    %v3262 = vld [vmem:[#allocation10 + $0x68] sm:$0xff]
    %v3263 = vld [vmem:[#allocation10 + $0x70] sm:$0xff]
    %v3264 = vld [vmem:[#allocation10 + $0x78] sm:$0xff]
    %v3265 = vld [vmem:[#allocation10 + $0x80] sm:$0xff]
    %v3266 = vld [vmem:[#allocation10 + $0x88] sm:$0xff]
    %v3267 = vld [vmem:[#allocation10 + $0x90] sm:$0xff]
    %v3268 = vld [vmem:[#allocation10 + $0x98] sm:$0xff]
    %v3269 = vld [vmem:[#allocation10 + $0xa0] sm:$0xff]
    %v3270 = vld [vmem:[#allocation10 + $0xa8] sm:$0xff]
    %v3271 = vld [vmem:[#allocation10 + $0xb0] sm:$0xff]
    %v3272 = vld [vmem:[#allocation10 + $0xb8] sm:$0xff]
    %v3273 = vld [vmem:[#allocation10 + $0xc0] sm:$0xff]
    %v3274 = vld [vmem:[#allocation10 + $0xc8] sm:$0xff]
    %v3275 = vld [vmem:[#allocation10 + $0xd0] sm:$0xff]
    %v3276 = vld [vmem:[#allocation10 + $0xd8] sm:$0xff]
    %v3277 = vld [vmem:[#allocation10 + $0xe0] sm:$0xff]
    %v3278 = vld [vmem:[#allocation10 + $0xe8] sm:$0xff]
    %v3279 = vld [vmem:[#allocation10 + $0xf0] sm:$0xff]
    %v3280 = vld [vmem:[#allocation10 + $0xf8] sm:$0xff]
    %v3313 = vunpack.c.l.b16 %v3249
    %v3314 = vunpack.c.h.b16 %v3249
    %v3315 = vunpack.c.l.b16 %v3250
    %v3316 = vunpack.c.h.b16 %v3250
    %v3317 = vunpack.c.l.b16 %v3251
    %v3318 = vunpack.c.h.b16 %v3251
    %v3319 = vunpack.c.l.b16 %v3252
    %v3320 = vunpack.c.h.b16 %v3252
    %v3321 = vunpack.c.l.b16 %v3253
    %v3322 = vunpack.c.h.b16 %v3253
    %v3323 = vunpack.c.l.b16 %v3254
    %v3324 = vunpack.c.h.b16 %v3254
    %v3325 = vunpack.c.l.b16 %v3255
    %v3326 = vunpack.c.h.b16 %v3255
    %v3327 = vunpack.c.l.b16 %v3256
    %v3328 = vunpack.c.h.b16 %v3256
    %v3329 = vunpack.c.l.b16 %v3257
    %v3330 = vunpack.c.h.b16 %v3257
    %v3331 = vunpack.c.l.b16 %v3258
    %v3332 = vunpack.c.h.b16 %v3258
    %v3333 = vunpack.c.l.b16 %v3259
    %v3334 = vunpack.c.h.b16 %v3259
    %v3335 = vunpack.c.l.b16 %v3260
    %v3336 = vunpack.c.h.b16 %v3260
    %v3337 = vunpack.c.l.b16 %v3261
    %v3338 = vunpack.c.h.b16 %v3261
    %v3339 = vunpack.c.l.b16 %v3262
    %v3340 = vunpack.c.h.b16 %v3262
    %v3341 = vunpack.c.l.b16 %v3263
    %v3342 = vunpack.c.h.b16 %v3263
    %v3343 = vunpack.c.l.b16 %v3264
    %v3344 = vunpack.c.h.b16 %v3264
    %v3345 = vunpack.c.l.b16 %v3265
    %v3346 = vunpack.c.h.b16 %v3265
    %v3347 = vunpack.c.l.b16 %v3266
    %v3348 = vunpack.c.h.b16 %v3266
    %v3349 = vunpack.c.l.b16 %v3267
    %v3350 = vunpack.c.h.b16 %v3267
    %v3351 = vunpack.c.l.b16 %v3268
    %v3352 = vunpack.c.h.b16 %v3268
    %v3353 = vunpack.c.l.b16 %v3269
    %v3354 = vunpack.c.h.b16 %v3269
    %v3355 = vunpack.c.l.b16 %v3270
    %v3356 = vunpack.c.h.b16 %v3270
    %v3357 = vunpack.c.l.b16 %v3271
    %v3358 = vunpack.c.h.b16 %v3271
    %v3359 = vunpack.c.l.b16 %v3272
    %v3360 = vunpack.c.h.b16 %v3272
    %v3361 = vunpack.c.l.b16 %v3273
    %v3362 = vunpack.c.h.b16 %v3273
    %v3363 = vunpack.c.l.b16 %v3274
    %v3364 = vunpack.c.h.b16 %v3274
    %v3365 = vunpack.c.l.b16 %v3275
    %v3366 = vunpack.c.h.b16 %v3275
    %v3367 = vunpack.c.l.b16 %v3276
    %v3368 = vunpack.c.h.b16 %v3276
    %v3369 = vunpack.c.l.b16 %v3277
    %v3370 = vunpack.c.h.b16 %v3277
    %v3371 = vunpack.c.l.b16 %v3278
    %v3372 = vunpack.c.h.b16 %v3278
    %v3373 = vunpack.c.l.b16 %v3279
    %v3374 = vunpack.c.h.b16 %v3279
    %v3375 = vunpack.c.l.b16 %v3280
    %v3376 = vunpack.c.h.b16 %v3280
    %v3377 = vpack.c.b16 %v3317, %v3313
    %v3378 = vpack.c.b16 %v3318, %v3314
    %v3379 = vpack.c.b16 %v3319, %v3315
    %v3380 = vpack.c.b16 %v3320, %v3316
    %v3381 = vpack.c.b16 %v3325, %v3321
    %v3382 = vpack.c.b16 %v3326, %v3322
    %v3383 = vpack.c.b16 %v3327, %v3323
    %v3384 = vpack.c.b16 %v3328, %v3324
    %v3385 = vpack.c.b16 %v3333, %v3329
    %v3386 = vpack.c.b16 %v3334, %v3330
    %v3387 = vpack.c.b16 %v3335, %v3331
    %v3388 = vpack.c.b16 %v3336, %v3332
    %v3389 = vpack.c.b16 %v3341, %v3337
    %v3390 = vpack.c.b16 %v3342, %v3338
    %v3391 = vpack.c.b16 %v3343, %v3339
    %v3392 = vpack.c.b16 %v3344, %v3340
    %v3393 = vpack.c.b16 %v3349, %v3345
    %v3394 = vpack.c.b16 %v3350, %v3346
    %v3395 = vpack.c.b16 %v3351, %v3347
    %v3396 = vpack.c.b16 %v3352, %v3348
    %v3397 = vpack.c.b16 %v3357, %v3353
    %v3398 = vpack.c.b16 %v3358, %v3354
    %v3399 = vpack.c.b16 %v3359, %v3355
    %v3400 = vpack.c.b16 %v3360, %v3356
    %v3401 = vpack.c.b16 %v3365, %v3361
    %v3402 = vpack.c.b16 %v3366, %v3362
    %v3403 = vpack.c.b16 %v3367, %v3363
    %v3404 = vpack.c.b16 %v3368, %v3364
    %v3405 = vpack.c.b16 %v3373, %v3369
    %v3406 = vpack.c.b16 %v3374, %v3370
    %v3407 = vpack.c.b16 %v3375, %v3371
    %v3408 = vpack.c.b16 %v3376, %v3372
    %3441 = vmatprep.subr.bf16.mxu0 %v3378
    %3442 = vmatpush1.bf16.msra.mxu0 %v3377
    %3443 = vmatprep.subr.bf16.mxu0 %v3382
    %3444 = vmatpush1.bf16.msra.mxu0 %v3381
    %3445 = vmatprep.subr.bf16.mxu0 %v3386
    %3446 = vmatpush1.bf16.msra.mxu0 %v3385
    %3447 = vmatprep.subr.bf16.mxu0 %v3390
    %3448 = vmatpush1.bf16.msra.mxu0 %v3389
    %3449 = vmatprep.subr.bf16.mxu0 %v3394
    %3450 = vmatpush1.bf16.msra.mxu0 %v3393
    %3451 = vmatprep.subr.bf16.mxu0 %v3398
    %3452 = vmatpush1.bf16.msra.mxu0 %v3397
    %3453 = vmatprep.subr.bf16.mxu0 %v3402
    %3454 = vmatpush1.bf16.msra.mxu0 %v3401
    %3455 = vmatprep.subr.bf16.mxu0 %v3406
    %3456 = vmatpush1.bf16.msra.mxu0 %v3405
    %3457 = vmatprep.subr.bf16.mxu0 0
    %3458 = vmatpush1.bf16.msra.mxu0 0
    %3459 = vmatprep.subr.bf16.mxu0 0
    %3460 = vmatpush1.bf16.msra.mxu0 0
    %3461 = vmatprep.subr.bf16.mxu0 0
    %3462 = vmatpush1.bf16.msra.mxu0 0
    %3463 = vmatprep.subr.bf16.mxu0 0
    %3464 = vmatpush1.bf16.msra.mxu0 0
    %3465 = vmatprep.subr.bf16.mxu0 0
    %3466 = vmatpush1.bf16.msra.mxu0 0
    %3467 = vmatprep.subr.bf16.mxu0 0
    %3468 = vmatpush1.bf16.msra.mxu0 0
    %3469 = vmatprep.subr.bf16.mxu0 0
    %3470 = vmatpush1.bf16.msra.mxu0 0
    %3471 = vmatprep.subr.bf16.mxu0 0
    %3472 = vmatpush1.bf16.msra.mxu0 0
    %3473 = vmatprep.mubr.bf16.mxu0 0
    %3474 = vmatmul.mubr.bf16.gmra.mrb[0].mxu0 0
    %v3475 = vpop.f32.mrb[0].mxu0
    %v3476 = vadd.f32 0.0, %v3475
    %v3477 = vpop.f32.mrb[0].mxu0
    %v3478 = vadd.f32 0.0, %v3477
    %v3479 = vpop.f32.mrb[0].mxu0
    %v3480 = vpop.f32.mrb[0].mxu0
    %3481 = vdwg.mxu0
    %3482 = vmatprep.subr.bf16.mxu0 %v3380
    %3483 = vmatpush1.bf16.msra.mxu0 %v3379
    %3484 = vmatprep.subr.bf16.mxu0 %v3384
    %3485 = vmatpush1.bf16.msra.mxu0 %v3383
    %3486 = vmatprep.subr.bf16.mxu0 %v3388
    %3487 = vmatpush1.bf16.msra.mxu0 %v3387
    %3488 = vmatprep.subr.bf16.mxu0 %v3392
    %3489 = vmatpush1.bf16.msra.mxu0 %v3391
    %3490 = vmatprep.subr.bf16.mxu0 %v3396
    %3491 = vmatpush1.bf16.msra.mxu0 %v3395
    %3492 = vmatprep.subr.bf16.mxu0 %v3400
    %3493 = vmatpush1.bf16.msra.mxu0 %v3399
    %3494 = vmatprep.subr.bf16.mxu0 %v3404
    %3495 = vmatpush1.bf16.msra.mxu0 %v3403
    %3496 = vmatprep.subr.bf16.mxu0 %v3408
    %3497 = vmatpush1.bf16.msra.mxu0 %v3407
    %3498 = vmatprep.subr.bf16.mxu0 0
    %3499 = vmatpush1.bf16.msra.mxu0 0
    %3500 = vmatprep.subr.bf16.mxu0 0
    %3501 = vmatpush1.bf16.msra.mxu0 0
    %3502 = vmatprep.subr.bf16.mxu0 0
    %3503 = vmatpush1.bf16.msra.mxu0 0
    %3504 = vmatprep.subr.bf16.mxu0 0
    %3505 = vmatpush1.bf16.msra.mxu0 0
    %3506 = vmatprep.subr.bf16.mxu0 0
    %3507 = vmatpush1.bf16.msra.mxu0 0
    %3508 = vmatprep.subr.bf16.mxu0 0
    %3509 = vmatpush1.bf16.msra.mxu0 0
    %3510 = vmatprep.subr.bf16.mxu0 0
    %3511 = vmatpush1.bf16.msra.mxu0 0
    %3512 = vmatprep.subr.bf16.mxu0 0
    %3513 = vmatpush1.bf16.msra.mxu0 0
    %3514 = vmatprep.mubr.bf16.mxu0 0
    %3515 = vmatmul.mubr.bf16.gmra.mrb[0].mxu0 0
    %v3516 = vpop.f32.mrb[0].mxu0
    %v3517 = vadd.f32 0.0, %v3516
    %v3518 = vpop.f32.mrb[0].mxu0
    %v3519 = vadd.f32 0.0, %v3518
    %v3520 = vpop.f32.mrb[0].mxu0
    %v3521 = vpop.f32.mrb[0].mxu0
    %3522 = vdwg.mxu0
    %v3523 = vadd.f32 %v3201, %v3476
    %v3524 = vadd.f32 %v3203, %v3478
    %v3525 = vadd.f32 %v3242, %v3517
    %v3526 = vadd.f32 %v3244, %v3519
    %v3527 = vxor.u32 %v3523, 2147483648
    %v3528 = vxor.u32 %v3524, 2147483648
    %v3529 = vxor.u32 %v3525, 2147483648
    %v3530 = vmul.f32 %v3527, 1.442695
    %v3531 = vpow.pop %v3530
    %v3532 = vmul.f32 %v3528, 1.442695
    %v3533 = vpow.pop %v3532
    %v3534 = vmul.f32 %v3529, 1.442695
    %v3535 = vpow.pop %v3534
    %v3536 = vadd.f32 %v3531, 1.0
    %v3537 = vadd.f32 %v3533, 1.0
    %v3538 = vadd.f32 %v3535, 1.0
    %v3539 = vrcp.pop %v3536
    %v3540 = vmul.f32 1.0, %v3539
    %v3541 = vrcp.pop %v3537
    %v3542 = vmul.f32 1.0, %v3541
    %v3543 = vrcp.pop %v3538
    %v3544 = vmul.f32 1.0, %v3543
    %v3545 = vtanh.pop %v3526
    %v3546 = vmul.f32 %v3542, 0.0
    %v3547 = vmul.f32 %v3540, %v3545
    %v3548 = vadd.f32 %v3546, %v3547
    %v3549 = vtanh.pop %v3548
    %v3550 = vmul.f32 %v3544, %v3549
    %v3551 = vpack.c.bf16 %v3550, %v3550
    %3552 = vmatprep.subr.bf16.mxu0 %v3378
    %3553 = vmatpush1.bf16.msra.mxu0 %v3377
    %3554 = vmatprep.subr.bf16.mxu0 %v3382
    %3555 = vmatpush1.bf16.msra.mxu0 %v3381
    %3556 = vmatprep.subr.bf16.mxu0 %v3386
    %3557 = vmatpush1.bf16.msra.mxu0 %v3385
    %3558 = vmatprep.subr.bf16.mxu0 %v3390
    %3559 = vmatpush1.bf16.msra.mxu0 %v3389
    %3560 = vmatprep.subr.bf16.mxu0 %v3394
    %3561 = vmatpush1.bf16.msra.mxu0 %v3393
    %3562 = vmatprep.subr.bf16.mxu0 %v3398
    %3563 = vmatpush1.bf16.msra.mxu0 %v3397
    %3564 = vmatprep.subr.bf16.mxu0 %v3402
    %3565 = vmatpush1.bf16.msra.mxu0 %v3401
    %3566 = vmatprep.subr.bf16.mxu0 %v3406
    %3567 = vmatpush1.bf16.msra.mxu0 %v3405
    %3568 = vmatprep.subr.bf16.mxu0 0
    %3569 = vmatpush1.bf16.msra.mxu0 0
    %3570 = vmatprep.subr.bf16.mxu0 0
    %3571 = vmatpush1.bf16.msra.mxu0 0
    %3572 = vmatprep.subr.bf16.mxu0 0
    %3573 = vmatpush1.bf16.msra.mxu0 0
    %3574 = vmatprep.subr.bf16.mxu0 0
    %3575 = vmatpush1.bf16.msra.mxu0 0
    %3576 = vmatprep.subr.bf16.mxu0 0
    %3577 = vmatpush1.bf16.msra.mxu0 0
    %3578 = vmatprep.subr.bf16.mxu0 0
    %3579 = vmatpush1.bf16.msra.mxu0 0
    %3580 = vmatprep.subr.bf16.mxu0 0
    %3581 = vmatpush1.bf16.msra.mxu0 0
    %3582 = vmatprep.subr.bf16.mxu0 0
    %3583 = vmatpush1.bf16.msra.mxu0 0
    %3584 = vmatprep.mubr.bf16.mxu0 0
    %3585 = vmatmul.mubr.bf16.gmra.mrb[0].mxu0 %v3551
    %v3586 = vpop.f32.mrb[0].mxu0
    %v3587 = vadd.f32 0.0, %v3586
    %v3588 = vpop.f32.mrb[0].mxu0
    %v3589 = vadd.f32 0.0, %v3588
    %v3590 = vpop.f32.mrb[0].mxu0
    %v3591 = vpop.f32.mrb[0].mxu0
    %3592 = vdwg.mxu0
    %3593 = vmatprep.subr.bf16.mxu0 %v3380
    %3594 = vmatpush1.bf16.msra.mxu0 %v3379
    %3595 = vmatprep.subr.bf16.mxu0 %v3384
    %3596 = vmatpush1.bf16.msra.mxu0 %v3383
    %3597 = vmatprep.subr.bf16.mxu0 %v3388
    %3598 = vmatpush1.bf16.msra.mxu0 %v3387
    %3599 = vmatprep.subr.bf16.mxu0 %v3392
    %3600 = vmatpush1.bf16.msra.mxu0 %v3391
    %3601 = vmatprep.subr.bf16.mxu0 %v3396
    %3602 = vmatpush1.bf16.msra.mxu0 %v3395
    %3603 = vmatprep.subr.bf16.mxu0 %v3400
    %3604 = vmatpush1.bf16.msra.mxu0 %v3399
    %3605 = vmatprep.subr.bf16.mxu0 %v3404
    %3606 = vmatpush1.bf16.msra.mxu0 %v3403
    %3607 = vmatprep.subr.bf16.mxu0 %v3408
    %3608 = vmatpush1.bf16.msra.mxu0 %v3407
    %3609 = vmatprep.subr.bf16.mxu0 0
    %3610 = vmatpush1.bf16.msra.mxu0 0
    %3611 = vmatprep.subr.bf16.mxu0 0
    %3612 = vmatpush1.bf16.msra.mxu0 0
    %3613 = vmatprep.subr.bf16.mxu0 0
    %3614 = vmatpush1.bf16.msra.mxu0 0
    %3615 = vmatprep.subr.bf16.mxu0 0
    %3616 = vmatpush1.bf16.msra.mxu0 0
    %3617 = vmatprep.subr.bf16.mxu0 0
    %3618 = vmatpush1.bf16.msra.mxu0 0
    %3619 = vmatprep.subr.bf16.mxu0 0
    %3620 = vmatpush1.bf16.msra.mxu0 0
    %3621 = vmatprep.subr.bf16.mxu0 0
    %3622 = vmatpush1.bf16.msra.mxu0 0
    %3623 = vmatprep.subr.bf16.mxu0 0
    %3624 = vmatpush1.bf16.msra.mxu0 0
    %3625 = vmatprep.mubr.bf16.mxu0 0
    %3626 = vmatmul.mubr.bf16.gmra.mrb[0].mxu0 %v3551
    %v3627 = vpop.f32.mrb[0].mxu0
    %v3628 = vadd.f32 0.0, %v3627
    %v3629 = vpop.f32.mrb[0].mxu0
    %v3630 = vadd.f32 0.0, %v3629
    %v3631 = vpop.f32.mrb[0].mxu0
    %v3632 = vpop.f32.mrb[0].mxu0
    %3633 = vdwg.mxu0
    %v3634 = vadd.f32 %v3201, %v3587
    %v3635 = vadd.f32 %v3203, %v3589
    %v3636 = vadd.f32 %v3242, %v3628
    %v3637 = vadd.f32 %v3244, %v3630
    %v3638 = vxor.u32 %v3634, 2147483648
    %v3639 = vxor.u32 %v3635, 2147483648
    %v3640 = vxor.u32 %v3636, 2147483648
    %v3641 = vmul.f32 %v3638, 1.442695
    %v3642 = vpow.pop %v3641
    %v3643 = vmul.f32 %v3639, 1.442695
    %v3644 = vpow.pop %v3643
    %v3645 = vmul.f32 %v3640, 1.442695
    %v3646 = vpow.pop %v3645
    %v3647 = vadd.f32 %v3642, 1.0
    %v3648 = vadd.f32 %v3644, 1.0
    %v3649 = vadd.f32 %v3646, 1.0
    %v3650 = vrcp.pop %v3647
    %v3651 = vmul.f32 1.0, %v3650
    %v3652 = vrcp.pop %v3648
    %v3653 = vmul.f32 1.0, %v3652
    %v3654 = vrcp.pop %v3649
    %v3655 = vmul.f32 1.0, %v3654
    %v3656 = vtanh.pop %v3637
    %v3657 = vmul.f32 %v3653, %v3548
    %v3658 = vmul.f32 %v3651, %v3656
    %v3659 = vadd.f32 %v3657, %v3658
    %v3660 = vtanh.pop %v3659
    %v3661 = vmul.f32 %v3655, %v3660
    %v3662 = vld [vmem:[#allocation11] sm:$0xff]
    %v3663 = vld [vmem:[#allocation11 + $0x8] sm:$0xff]
    %v3664 = vld [vmem:[#allocation11 + $0x10] sm:$0xff]
    %v3665 = vld [vmem:[#allocation11 + $0x18] sm:$0xff]
    %v3666 = vld [vmem:[#allocation11 + $0x20] sm:$0xff]
    %v3667 = vld [vmem:[#allocation11 + $0x28] sm:$0xff]
    %v3668 = vld [vmem:[#allocation11 + $0x30] sm:$0xff]
    %v3669 = vld [vmem:[#allocation11 + $0x38] sm:$0xff]
    %v3670 = vld [vmem:[#allocation11 + $0x40] sm:$0xff]
    %v3671 = vld [vmem:[#allocation11 + $0x48] sm:$0xff]
    %v3672 = vld [vmem:[#allocation11 + $0x50] sm:$0xff]
    %v3673 = vld [vmem:[#allocation11 + $0x58] sm:$0xff]
    %v3674 = vld [vmem:[#allocation11 + $0x60] sm:$0xff]
    %v3675 = vld [vmem:[#allocation11 + $0x68] sm:$0xff]
    %v3676 = vld [vmem:[#allocation11 + $0x70] sm:$0xff]
    %v3677 = vld [vmem:[#allocation11 + $0x78] sm:$0xff]
    %v3678 = vld [vmem:[#allocation11 + $0x80] sm:$0xff]
    %v3679 = vld [vmem:[#allocation11 + $0x88] sm:$0xff]
    %v3680 = vld [vmem:[#allocation11 + $0x90] sm:$0xff]
    %v3681 = vld [vmem:[#allocation11 + $0x98] sm:$0xff]
    %v3682 = vld [vmem:[#allocation11 + $0xa0] sm:$0xff]
    %v3683 = vld [vmem:[#allocation11 + $0xa8] sm:$0xff]
    %v3684 = vld [vmem:[#allocation11 + $0xb0] sm:$0xff]
    %v3685 = vld [vmem:[#allocation11 + $0xb8] sm:$0xff]
    %v3686 = vld [vmem:[#allocation11 + $0xc0] sm:$0xff]
    %v3687 = vld [vmem:[#allocation11 + $0xc8] sm:$0xff]
    %v3688 = vld [vmem:[#allocation11 + $0xd0] sm:$0xff]
    %v3689 = vld [vmem:[#allocation11 + $0xd8] sm:$0xff]
    %v3690 = vld [vmem:[#allocation11 + $0xe0] sm:$0xff]
    %v3691 = vld [vmem:[#allocation11 + $0xe8] sm:$0xff]
    %v3692 = vld [vmem:[#allocation11 + $0xf0] sm:$0xff]
    %v3693 = vld [vmem:[#allocation11 + $0xf8] sm:$0xff]
    %v3694 = vld [vmem:[#allocation11 + $0x100] sm:$0xff]
    %v3695 = vld [vmem:[#allocation11 + $0x108] sm:$0xff]
    %v3696 = vld [vmem:[#allocation11 + $0x110] sm:$0xff]
    %v3697 = vld [vmem:[#allocation11 + $0x118] sm:$0xff]
    %v3698 = vld [vmem:[#allocation11 + $0x120] sm:$0xff]
    %v3699 = vld [vmem:[#allocation11 + $0x128] sm:$0xff]
    %v3700 = vld [vmem:[#allocation11 + $0x130] sm:$0xff]
    %v3701 = vld [vmem:[#allocation11 + $0x138] sm:$0xff]
    %v3702 = vld [vmem:[#allocation11 + $0x140] sm:$0xff]
    %v3703 = vld [vmem:[#allocation11 + $0x148] sm:$0xff]
    %v3704 = vld [vmem:[#allocation11 + $0x150] sm:$0xff]
    %v3705 = vld [vmem:[#allocation11 + $0x158] sm:$0xff]
    %v3706 = vld [vmem:[#allocation11 + $0x160] sm:$0xff]
    %v3707 = vld [vmem:[#allocation11 + $0x168] sm:$0xff]
    %v3708 = vld [vmem:[#allocation11 + $0x170] sm:$0xff]
    %v3709 = vld [vmem:[#allocation11 + $0x178] sm:$0xff]
    %v3710 = vld [vmem:[#allocation11 + $0x180] sm:$0xff]
    %v3711 = vld [vmem:[#allocation11 + $0x188] sm:$0xff]
    %v3712 = vld [vmem:[#allocation11 + $0x190] sm:$0xff]
    %v3713 = vld [vmem:[#allocation11 + $0x198] sm:$0xff]
    %v3714 = vld [vmem:[#allocation11 + $0x1a0] sm:$0xff]
    %v3715 = vld [vmem:[#allocation11 + $0x1a8] sm:$0xff]
    %v3716 = vld [vmem:[#allocation11 + $0x1b0] sm:$0xff]
    %v3717 = vld [vmem:[#allocation11 + $0x1b8] sm:$0xff]
    %v3718 = vld [vmem:[#allocation11 + $0x1c0] sm:$0xff]
    %v3719 = vld [vmem:[#allocation11 + $0x1c8] sm:$0xff]
    %v3720 = vld [vmem:[#allocation11 + $0x1d0] sm:$0xff]
    %v3721 = vld [vmem:[#allocation11 + $0x1d8] sm:$0xff]
    %v3722 = vld [vmem:[#allocation11 + $0x1e0] sm:$0xff]
    %v3723 = vld [vmem:[#allocation11 + $0x1e8] sm:$0xff]
    %v3724 = vld [vmem:[#allocation11 + $0x1f0] sm:$0xff]
    %v3725 = vld [vmem:[#allocation11 + $0x1f8] sm:$0xff]
    %v3790 = vunpack.c.l.b16 %v3662
    %v3791 = vunpack.c.h.b16 %v3662
    %v3792 = vunpack.c.l.b16 %v3663
    %v3793 = vunpack.c.h.b16 %v3663
    %v3794 = vunpack.c.l.b16 %v3664
    %v3795 = vunpack.c.h.b16 %v3664
    %v3796 = vunpack.c.l.b16 %v3665
    %v3797 = vunpack.c.h.b16 %v3665
    %v3798 = vunpack.c.l.b16 %v3666
    %v3799 = vunpack.c.h.b16 %v3666
    %v3800 = vunpack.c.l.b16 %v3667
    %v3801 = vunpack.c.h.b16 %v3667
    %v3802 = vunpack.c.l.b16 %v3668
    %v3803 = vunpack.c.h.b16 %v3668
    %v3804 = vunpack.c.l.b16 %v3669
    %v3805 = vunpack.c.h.b16 %v3669
    %v3806 = vunpack.c.l.b16 %v3670
    %v3807 = vunpack.c.h.b16 %v3670
    %v3808 = vunpack.c.l.b16 %v3671
    %v3809 = vunpack.c.h.b16 %v3671
    %v3810 = vunpack.c.l.b16 %v3672
    %v3811 = vunpack.c.h.b16 %v3672
    %v3812 = vunpack.c.l.b16 %v3673
    %v3813 = vunpack.c.h.b16 %v3673
    %v3814 = vunpack.c.l.b16 %v3674
    %v3815 = vunpack.c.h.b16 %v3674
    %v3816 = vunpack.c.l.b16 %v3675
    %v3817 = vunpack.c.h.b16 %v3675
    %v3818 = vunpack.c.l.b16 %v3676
    %v3819 = vunpack.c.h.b16 %v3676
    %v3820 = vunpack.c.l.b16 %v3677
    %v3821 = vunpack.c.h.b16 %v3677
    %v3822 = vunpack.c.l.b16 %v3678
    %v3823 = vunpack.c.h.b16 %v3678
    %v3824 = vunpack.c.l.b16 %v3679
    %v3825 = vunpack.c.h.b16 %v3679
    %v3826 = vunpack.c.l.b16 %v3680
    %v3827 = vunpack.c.h.b16 %v3680
    %v3828 = vunpack.c.l.b16 %v3681
    %v3829 = vunpack.c.h.b16 %v3681
    %v3830 = vunpack.c.l.b16 %v3682
    %v3831 = vunpack.c.h.b16 %v3682
    %v3832 = vunpack.c.l.b16 %v3683
    %v3833 = vunpack.c.h.b16 %v3683
    %v3834 = vunpack.c.l.b16 %v3684
    %v3835 = vunpack.c.h.b16 %v3684
    %v3836 = vunpack.c.l.b16 %v3685
    %v3837 = vunpack.c.h.b16 %v3685
    %v3838 = vunpack.c.l.b16 %v3686
    %v3839 = vunpack.c.h.b16 %v3686
    %v3840 = vunpack.c.l.b16 %v3687
    %v3841 = vunpack.c.h.b16 %v3687
    %v3842 = vunpack.c.l.b16 %v3688
    %v3843 = vunpack.c.h.b16 %v3688
    %v3844 = vunpack.c.l.b16 %v3689
    %v3845 = vunpack.c.h.b16 %v3689
    %v3846 = vunpack.c.l.b16 %v3690
    %v3847 = vunpack.c.h.b16 %v3690
    %v3848 = vunpack.c.l.b16 %v3691
    %v3849 = vunpack.c.h.b16 %v3691
    %v3850 = vunpack.c.l.b16 %v3692
    %v3851 = vunpack.c.h.b16 %v3692
    %v3852 = vunpack.c.l.b16 %v3693
    %v3853 = vunpack.c.h.b16 %v3693
    %v3854 = vunpack.c.l.b16 %v3694
    %v3855 = vunpack.c.h.b16 %v3694
    %v3856 = vunpack.c.l.b16 %v3695
    %v3857 = vunpack.c.h.b16 %v3695
    %v3858 = vunpack.c.l.b16 %v3696
    %v3859 = vunpack.c.h.b16 %v3696
    %v3860 = vunpack.c.l.b16 %v3697
    %v3861 = vunpack.c.h.b16 %v3697
    %v3862 = vunpack.c.l.b16 %v3698
    %v3863 = vunpack.c.h.b16 %v3698
    %v3864 = vunpack.c.l.b16 %v3699
    %v3865 = vunpack.c.h.b16 %v3699
    %v3866 = vunpack.c.l.b16 %v3700
    %v3867 = vunpack.c.h.b16 %v3700
    %v3868 = vunpack.c.l.b16 %v3701
    %v3869 = vunpack.c.h.b16 %v3701
    %v3870 = vunpack.c.l.b16 %v3702
    %v3871 = vunpack.c.h.b16 %v3702
    %v3872 = vunpack.c.l.b16 %v3703
    %v3873 = vunpack.c.h.b16 %v3703
    %v3874 = vunpack.c.l.b16 %v3704
    %v3875 = vunpack.c.h.b16 %v3704
    %v3876 = vunpack.c.l.b16 %v3705
    %v3877 = vunpack.c.h.b16 %v3705
    %v3878 = vunpack.c.l.b16 %v3706
    %v3879 = vunpack.c.h.b16 %v3706
    %v3880 = vunpack.c.l.b16 %v3707
    %v3881 = vunpack.c.h.b16 %v3707
    %v3882 = vunpack.c.l.b16 %v3708
    %v3883 = vunpack.c.h.b16 %v3708
    %v3884 = vunpack.c.l.b16 %v3709
    %v3885 = vunpack.c.h.b16 %v3709
    %v3886 = vunpack.c.l.b16 %v3710
    %v3887 = vunpack.c.h.b16 %v3710
    %v3888 = vunpack.c.l.b16 %v3711
    %v3889 = vunpack.c.h.b16 %v3711
    %v3890 = vunpack.c.l.b16 %v3712
    %v3891 = vunpack.c.h.b16 %v3712
    %v3892 = vunpack.c.l.b16 %v3713
    %v3893 = vunpack.c.h.b16 %v3713
    %v3894 = vunpack.c.l.b16 %v3714
    %v3895 = vunpack.c.h.b16 %v3714
    %v3896 = vunpack.c.l.b16 %v3715
    %v3897 = vunpack.c.h.b16 %v3715
    %v3898 = vunpack.c.l.b16 %v3716
    %v3899 = vunpack.c.h.b16 %v3716
    %v3900 = vunpack.c.l.b16 %v3717
    %v3901 = vunpack.c.h.b16 %v3717
    %v3902 = vunpack.c.l.b16 %v3718
    %v3903 = vunpack.c.h.b16 %v3718
    %v3904 = vunpack.c.l.b16 %v3719
    %v3905 = vunpack.c.h.b16 %v3719
    %v3906 = vunpack.c.l.b16 %v3720
    %v3907 = vunpack.c.h.b16 %v3720
    %v3908 = vunpack.c.l.b16 %v3721
    %v3909 = vunpack.c.h.b16 %v3721
    %v3910 = vunpack.c.l.b16 %v3722
    %v3911 = vunpack.c.h.b16 %v3722
    %v3912 = vunpack.c.l.b16 %v3723
    %v3913 = vunpack.c.h.b16 %v3723
    %v3914 = vunpack.c.l.b16 %v3724
    %v3915 = vunpack.c.h.b16 %v3724
    %v3916 = vunpack.c.l.b16 %v3725
    %v3917 = vunpack.c.h.b16 %v3725
    %v3918 = vpack.c.b16 %v3794, %v3790
    %v3919 = vpack.c.b16 %v3795, %v3791
    %v3920 = vpack.c.b16 %v3796, %v3792
    %v3921 = vpack.c.b16 %v3797, %v3793
    %v3922 = vpack.c.b16 %v3802, %v3798
    %v3923 = vpack.c.b16 %v3803, %v3799
    %v3924 = vpack.c.b16 %v3804, %v3800
    %v3925 = vpack.c.b16 %v3805, %v3801
    %v3926 = vpack.c.b16 %v3810, %v3806
    %v3927 = vpack.c.b16 %v3811, %v3807
    %v3928 = vpack.c.b16 %v3812, %v3808
    %v3929 = vpack.c.b16 %v3813, %v3809
    %v3930 = vpack.c.b16 %v3818, %v3814
    %v3931 = vpack.c.b16 %v3819, %v3815
    %v3932 = vpack.c.b16 %v3820, %v3816
    %v3933 = vpack.c.b16 %v3821, %v3817
    %v3934 = vpack.c.b16 %v3826, %v3822
    %v3935 = vpack.c.b16 %v3827, %v3823
    %v3936 = vpack.c.b16 %v3828, %v3824
    %v3937 = vpack.c.b16 %v3829, %v3825
    %v3938 = vpack.c.b16 %v3834, %v3830
    %v3939 = vpack.c.b16 %v3835, %v3831
    %v3940 = vpack.c.b16 %v3836, %v3832
    %v3941 = vpack.c.b16 %v3837, %v3833
    %v3942 = vpack.c.b16 %v3842, %v3838
    %v3943 = vpack.c.b16 %v3843, %v3839
    %v3944 = vpack.c.b16 %v3844, %v3840
    %v3945 = vpack.c.b16 %v3845, %v3841
    %v3946 = vpack.c.b16 %v3850, %v3846
    %v3947 = vpack.c.b16 %v3851, %v3847
    %v3948 = vpack.c.b16 %v3852, %v3848
    %v3949 = vpack.c.b16 %v3853, %v3849
    %v3950 = vpack.c.b16 %v3858, %v3854
    %v3951 = vpack.c.b16 %v3859, %v3855
    %v3952 = vpack.c.b16 %v3860, %v3856
    %v3953 = vpack.c.b16 %v3861, %v3857
    %v3954 = vpack.c.b16 %v3866, %v3862
    %v3955 = vpack.c.b16 %v3867, %v3863
    %v3956 = vpack.c.b16 %v3868, %v3864
    %v3957 = vpack.c.b16 %v3869, %v3865
    %v3958 = vpack.c.b16 %v3874, %v3870
    %v3959 = vpack.c.b16 %v3875, %v3871
    %v3960 = vpack.c.b16 %v3876, %v3872
    %v3961 = vpack.c.b16 %v3877, %v3873
    %v3962 = vpack.c.b16 %v3882, %v3878
    %v3963 = vpack.c.b16 %v3883, %v3879
    %v3964 = vpack.c.b16 %v3884, %v3880
    %v3965 = vpack.c.b16 %v3885, %v3881
    %v3966 = vpack.c.b16 %v3890, %v3886
    %v3967 = vpack.c.b16 %v3891, %v3887
    %v3968 = vpack.c.b16 %v3892, %v3888
    %v3969 = vpack.c.b16 %v3893, %v3889
    %v3970 = vpack.c.b16 %v3898, %v3894
    %v3971 = vpack.c.b16 %v3899, %v3895
    %v3972 = vpack.c.b16 %v3900, %v3896
    %v3973 = vpack.c.b16 %v3901, %v3897
    %v3974 = vpack.c.b16 %v3906, %v3902
    %v3975 = vpack.c.b16 %v3907, %v3903
    %v3976 = vpack.c.b16 %v3908, %v3904
    %v3977 = vpack.c.b16 %v3909, %v3905
    %v3978 = vpack.c.b16 %v3914, %v3910
    %v3979 = vpack.c.b16 %v3915, %v3911
    %v3980 = vpack.c.b16 %v3916, %v3912
    %v3981 = vpack.c.b16 %v3917, %v3913
    %v4047 = vlaneseq
    %v4048 = vshrl.u32 %v4047, 7
    %v4049 = vsub.s32 0, %v4048
    %v4050 = vrot.slane %v3248, %v4049
    %v4051 = vlaneseq
    %v4052 = vshrl.u32 %v4051, 7
    %v4053 = vsub.s32 1, %v4052
    %v4054 = vrot.slane %v3248, %v4053
    %v4055 = vlaneseq
    %v4056 = vshrl.u32 %v4055, 7
    %v4057 = vsub.s32 2, %v4056
    %v4058 = vrot.slane %v3248, %v4057
    %v4059 = vlaneseq
    %v4060 = vshrl.u32 %v4059, 7
    %v4061 = vsub.s32 3, %v4060
    %v4062 = vrot.slane %v3248, %v4061
    %4067 = vmatprep.subr.bf16.mxu0 %v3919
    %4068 = vmatpush1.bf16.msra.mxu0 %v3918
    %4069 = vmatprep.subr.bf16.mxu0 %v3923
    %4070 = vmatpush1.bf16.msra.mxu0 %v3922
    %4071 = vmatprep.subr.bf16.mxu0 %v3927
    %4072 = vmatpush1.bf16.msra.mxu0 %v3926
    %4073 = vmatprep.subr.bf16.mxu0 %v3931
    %4074 = vmatpush1.bf16.msra.mxu0 %v3930
    %4075 = vmatprep.subr.bf16.mxu0 %v3935
    %4076 = vmatpush1.bf16.msra.mxu0 %v3934
    %4077 = vmatprep.subr.bf16.mxu0 %v3939
    %4078 = vmatpush1.bf16.msra.mxu0 %v3938
    %4079 = vmatprep.subr.bf16.mxu0 %v3943
    %4080 = vmatpush1.bf16.msra.mxu0 %v3942
    %4081 = vmatprep.subr.bf16.mxu0 %v3947
    %4082 = vmatpush1.bf16.msra.mxu0 %v3946
    %4083 = vmatprep.subr.bf16.mxu0 %v3951
    %4084 = vmatpush1.bf16.msra.mxu0 %v3950
    %4085 = vmatprep.subr.bf16.mxu0 %v3955
    %4086 = vmatpush1.bf16.msra.mxu0 %v3954
    %4087 = vmatprep.subr.bf16.mxu0 %v3959
    %4088 = vmatpush1.bf16.msra.mxu0 %v3958
    %4089 = vmatprep.subr.bf16.mxu0 %v3963
    %4090 = vmatpush1.bf16.msra.mxu0 %v3962
    %4091 = vmatprep.subr.bf16.mxu0 %v3967
    %4092 = vmatpush1.bf16.msra.mxu0 %v3966
    %4093 = vmatprep.subr.bf16.mxu0 %v3971
    %4094 = vmatpush1.bf16.msra.mxu0 %v3970
    %4095 = vmatprep.subr.bf16.mxu0 %v3975
    %4096 = vmatpush1.bf16.msra.mxu0 %v3974
    %4097 = vmatprep.subr.bf16.mxu0 %v3979
    %4098 = vmatpush1.bf16.msra.mxu0 %v3978
    %4099 = vmatprep.mubr.bf16.mxu0 %v856
    %4100 = vmatmul.mubr.bf16.gmra.mrb[0].mxu0 %v3551
    %v4101 = vpop.f32.mrb[0].mxu0
    %v4102 = vadd.f32 %v4050, %v4101
    %v4103 = vpop.f32.mrb[0].mxu0
    %v4104 = vadd.f32 %v4054, %v4103
    %v4105 = vpop.f32.mrb[0].mxu0
    %v4106 = vpop.f32.mrb[0].mxu0
    %4107 = vdwg.mxu0
    %4108 = vmatprep.subr.bf16.mxu0 %v3921
    %4109 = vmatpush1.bf16.msra.mxu0 %v3920
    %4110 = vmatprep.subr.bf16.mxu0 %v3925
    %4111 = vmatpush1.bf16.msra.mxu0 %v3924
    %4112 = vmatprep.subr.bf16.mxu0 %v3929
    %4113 = vmatpush1.bf16.msra.mxu0 %v3928
    %4114 = vmatprep.subr.bf16.mxu0 %v3933
    %4115 = vmatpush1.bf16.msra.mxu0 %v3932
    %4116 = vmatprep.subr.bf16.mxu0 %v3937
    %4117 = vmatpush1.bf16.msra.mxu0 %v3936
    %4118 = vmatprep.subr.bf16.mxu0 %v3941
    %4119 = vmatpush1.bf16.msra.mxu0 %v3940
    %4120 = vmatprep.subr.bf16.mxu0 %v3945
    %4121 = vmatpush1.bf16.msra.mxu0 %v3944
    %4122 = vmatprep.subr.bf16.mxu0 %v3949
    %4123 = vmatpush1.bf16.msra.mxu0 %v3948
    %4124 = vmatprep.subr.bf16.mxu0 %v3953
    %4125 = vmatpush1.bf16.msra.mxu0 %v3952
    %4126 = vmatprep.subr.bf16.mxu0 %v3957
    %4127 = vmatpush1.bf16.msra.mxu0 %v3956
    %4128 = vmatprep.subr.bf16.mxu0 %v3961
    %4129 = vmatpush1.bf16.msra.mxu0 %v3960
    %4130 = vmatprep.subr.bf16.mxu0 %v3965
    %4131 = vmatpush1.bf16.msra.mxu0 %v3964
    %4132 = vmatprep.subr.bf16.mxu0 %v3969
    %4133 = vmatpush1.bf16.msra.mxu0 %v3968
    %4134 = vmatprep.subr.bf16.mxu0 %v3973
    %4135 = vmatpush1.bf16.msra.mxu0 %v3972
    %4136 = vmatprep.subr.bf16.mxu0 %v3977
    %4137 = vmatpush1.bf16.msra.mxu0 %v3976
    %4138 = vmatprep.subr.bf16.mxu0 %v3981
    %4139 = vmatpush1.bf16.msra.mxu0 %v3980
    %4140 = vmatprep.mubr.bf16.mxu0 %v856
    %4141 = vmatmul.mubr.bf16.gmra.mrb[0].mxu0 %v3551
    %v4142 = vpop.f32.mrb[0].mxu0
    %v4143 = vadd.f32 %v4058, %v4142
    %v4144 = vpop.f32.mrb[0].mxu0
    %v4145 = vadd.f32 %v4062, %v4144
    %v4146 = vpop.f32.mrb[0].mxu0
    %v4147 = vpop.f32.mrb[0].mxu0
    %4148 = vdwg.mxu0
    %v4149 = vxor.u32 %v4102, 2147483648
    %v4150 = vxor.u32 %v4104, 2147483648
    %v4151 = vxor.u32 %v4143, 2147483648
    %v4152 = vmul.f32 %v4149, 1.442695
    %v4153 = vpow.pop %v4152
    %v4154 = vmul.f32 %v4150, 1.442695
    %v4155 = vpow.pop %v4154
    %v4156 = vmul.f32 %v4151, 1.442695
    %v4157 = vpow.pop %v4156
    %v4158 = vadd.f32 %v4153, 1.0
    %v4159 = vadd.f32 %v4155, 1.0
    %v4160 = vadd.f32 %v4157, 1.0
    %v4161 = vrcp.pop %v4158
    %v4162 = vmul.f32 1.0, %v4161
    %v4163 = vrcp.pop %v4159
    %v4164 = vmul.f32 1.0, %v4163
    %v4165 = vrcp.pop %v4160
    %v4166 = vmul.f32 1.0, %v4165
    %v4167 = vtanh.pop %v4145
    %v4168 = vmul.f32 %v4164, 0.0
    %v4169 = vmul.f32 %v4162, %v4167
    %v4170 = vadd.f32 %v4168, %v4169
    %v4171 = vtanh.pop %v4170
    %v4172 = vmul.f32 %v4166, %v4171
    %v4173 = vpack.c.bf16 %v3661, %v3661
    %4174 = vmatprep.subr.bf16.mxu0 %v3378
    %4175 = vmatpush1.bf16.msra.mxu0 %v3377
    %4176 = vmatprep.subr.bf16.mxu0 %v3382
    %4177 = vmatpush1.bf16.msra.mxu0 %v3381
    %4178 = vmatprep.subr.bf16.mxu0 %v3386
    %4179 = vmatpush1.bf16.msra.mxu0 %v3385
    %4180 = vmatprep.subr.bf16.mxu0 %v3390
    %4181 = vmatpush1.bf16.msra.mxu0 %v3389
    %4182 = vmatprep.subr.bf16.mxu0 %v3394
    %4183 = vmatpush1.bf16.msra.mxu0 %v3393
    %4184 = vmatprep.subr.bf16.mxu0 %v3398
    %4185 = vmatpush1.bf16.msra.mxu0 %v3397
    %4186 = vmatprep.subr.bf16.mxu0 %v3402
    %4187 = vmatpush1.bf16.msra.mxu0 %v3401
    %4188 = vmatprep.subr.bf16.mxu0 %v3406
    %4189 = vmatpush1.bf16.msra.mxu0 %v3405
    %4190 = vmatprep.subr.bf16.mxu0 0
    %4191 = vmatpush1.bf16.msra.mxu0 0
    %4192 = vmatprep.subr.bf16.mxu0 0
    %4193 = vmatpush1.bf16.msra.mxu0 0
    %4194 = vmatprep.subr.bf16.mxu0 0
    %4195 = vmatpush1.bf16.msra.mxu0 0
    %4196 = vmatprep.subr.bf16.mxu0 0
    %4197 = vmatpush1.bf16.msra.mxu0 0
    %4198 = vmatprep.subr.bf16.mxu0 0
    %4199 = vmatpush1.bf16.msra.mxu0 0
    %4200 = vmatprep.subr.bf16.mxu0 0
    %4201 = vmatpush1.bf16.msra.mxu0 0
    %4202 = vmatprep.subr.bf16.mxu0 0
    %4203 = vmatpush1.bf16.msra.mxu0 0
    %4204 = vmatprep.subr.bf16.mxu0 0
    %4205 = vmatpush1.bf16.msra.mxu0 0
    %4206 = vmatprep.mubr.bf16.mxu0 0
    %4207 = vmatmul.mubr.bf16.gmra.mrb[0].mxu0 %v4173
    %v4208 = vpop.f32.mrb[0].mxu0
    %v4209 = vadd.f32 0.0, %v4208
    %v4210 = vpop.f32.mrb[0].mxu0
    %v4211 = vadd.f32 0.0, %v4210
    %v4212 = vpop.f32.mrb[0].mxu0
    %v4213 = vpop.f32.mrb[0].mxu0
    %4214 = vdwg.mxu0
    %4215 = vmatprep.subr.bf16.mxu0 %v3380
    %4216 = vmatpush1.bf16.msra.mxu0 %v3379
    %4217 = vmatprep.subr.bf16.mxu0 %v3384
    %4218 = vmatpush1.bf16.msra.mxu0 %v3383
    %4219 = vmatprep.subr.bf16.mxu0 %v3388
    %4220 = vmatpush1.bf16.msra.mxu0 %v3387
    %4221 = vmatprep.subr.bf16.mxu0 %v3392
    %4222 = vmatpush1.bf16.msra.mxu0 %v3391
    %4223 = vmatprep.subr.bf16.mxu0 %v3396
    %4224 = vmatpush1.bf16.msra.mxu0 %v3395
    %4225 = vmatprep.subr.bf16.mxu0 %v3400
    %4226 = vmatpush1.bf16.msra.mxu0 %v3399
    %4227 = vmatprep.subr.bf16.mxu0 %v3404
    %4228 = vmatpush1.bf16.msra.mxu0 %v3403
    %4229 = vmatprep.subr.bf16.mxu0 %v3408
    %4230 = vmatpush1.bf16.msra.mxu0 %v3407
    %4231 = vmatprep.subr.bf16.mxu0 0
    %4232 = vmatpush1.bf16.msra.mxu0 0
    %4233 = vmatprep.subr.bf16.mxu0 0
    %4234 = vmatpush1.bf16.msra.mxu0 0
    %4235 = vmatprep.subr.bf16.mxu0 0
    %4236 = vmatpush1.bf16.msra.mxu0 0
    %4237 = vmatprep.subr.bf16.mxu0 0
    %4238 = vmatpush1.bf16.msra.mxu0 0
    %4239 = vmatprep.subr.bf16.mxu0 0
    %4240 = vmatpush1.bf16.msra.mxu0 0
    %4241 = vmatprep.subr.bf16.mxu0 0
    %4242 = vmatpush1.bf16.msra.mxu0 0
    %4243 = vmatprep.subr.bf16.mxu0 0
    %4244 = vmatpush1.bf16.msra.mxu0 0
    %4245 = vmatprep.subr.bf16.mxu0 0
    %4246 = vmatpush1.bf16.msra.mxu0 0
    %4247 = vmatprep.mubr.bf16.mxu0 0
    %4248 = vmatmul.mubr.bf16.gmra.mrb[0].mxu0 %v4173
    %v4249 = vpop.f32.mrb[0].mxu0
    %v4250 = vadd.f32 0.0, %v4249
    %v4251 = vpop.f32.mrb[0].mxu0
    %v4252 = vadd.f32 0.0, %v4251
    %v4253 = vpop.f32.mrb[0].mxu0
    %v4254 = vpop.f32.mrb[0].mxu0
    %4255 = vdwg.mxu0
    %v4256 = vadd.f32 %v3201, %v4209
    %v4257 = vadd.f32 %v3203, %v4211
    %v4258 = vadd.f32 %v3242, %v4250
    %v4259 = vadd.f32 %v3244, %v4252
    %v4260 = vxor.u32 %v4256, 2147483648
    %v4261 = vxor.u32 %v4257, 2147483648
    %v4262 = vxor.u32 %v4258, 2147483648
    %v4263 = vmul.f32 %v4260, 1.442695
    %v4264 = vpow.pop %v4263
    %v4265 = vmul.f32 %v4261, 1.442695
    %v4266 = vpow.pop %v4265
    %v4267 = vmul.f32 %v4262, 1.442695
    %v4268 = vpow.pop %v4267
    %v4269 = vadd.f32 %v4264, 1.0
    %v4270 = vadd.f32 %v4266, 1.0
    %v4271 = vadd.f32 %v4268, 1.0
    %v4272 = vrcp.pop %v4269
    %v4273 = vmul.f32 1.0, %v4272
    %v4274 = vrcp.pop %v4270
    %v4275 = vmul.f32 1.0, %v4274
    %v4276 = vrcp.pop %v4271
    %v4277 = vmul.f32 1.0, %v4276
    %v4278 = vtanh.pop %v4259
    %v4279 = vmul.f32 %v4275, %v3659
    %v4280 = vmul.f32 %v4273, %v4278
    %v4281 = vadd.f32 %v4279, %v4280
    %v4282 = vtanh.pop %v4281
    %v4283 = vmul.f32 %v4277, %v4282
    %v4284 = vpack.c.bf16 %v4172, %v4172
    %4285 = vmatprep.subr.bf16.mxu0 %v3919
    %4286 = vmatpush1.bf16.msra.mxu0 %v3918
    %4287 = vmatprep.subr.bf16.mxu0 %v3923
    %4288 = vmatpush1.bf16.msra.mxu0 %v3922
    %4289 = vmatprep.subr.bf16.mxu0 %v3927
    %4290 = vmatpush1.bf16.msra.mxu0 %v3926
    %4291 = vmatprep.subr.bf16.mxu0 %v3931
    %4292 = vmatpush1.bf16.msra.mxu0 %v3930
    %4293 = vmatprep.subr.bf16.mxu0 %v3935
    %4294 = vmatpush1.bf16.msra.mxu0 %v3934
    %4295 = vmatprep.subr.bf16.mxu0 %v3939
    %4296 = vmatpush1.bf16.msra.mxu0 %v3938
    %4297 = vmatprep.subr.bf16.mxu0 %v3943
    %4298 = vmatpush1.bf16.msra.mxu0 %v3942
    %4299 = vmatprep.subr.bf16.mxu0 %v3947
    %4300 = vmatpush1.bf16.msra.mxu0 %v3946
    %4301 = vmatprep.subr.bf16.mxu0 %v3951
    %4302 = vmatpush1.bf16.msra.mxu0 %v3950
    %4303 = vmatprep.subr.bf16.mxu0 %v3955
    %4304 = vmatpush1.bf16.msra.mxu0 %v3954
    %4305 = vmatprep.subr.bf16.mxu0 %v3959
    %4306 = vmatpush1.bf16.msra.mxu0 %v3958
    %4307 = vmatprep.subr.bf16.mxu0 %v3963
    %4308 = vmatpush1.bf16.msra.mxu0 %v3962
    %4309 = vmatprep.subr.bf16.mxu0 %v3967
    %4310 = vmatpush1.bf16.msra.mxu0 %v3966
    %4311 = vmatprep.subr.bf16.mxu0 %v3971
    %4312 = vmatpush1.bf16.msra.mxu0 %v3970
    %4313 = vmatprep.subr.bf16.mxu0 %v3975
    %4314 = vmatpush1.bf16.msra.mxu0 %v3974
    %4315 = vmatprep.subr.bf16.mxu0 %v3979
    %4316 = vmatpush1.bf16.msra.mxu0 %v3978
    %4317 = vmatprep.mubr.bf16.mxu0 %v4284
    %4318 = vmatmul.mubr.bf16.gmra.mrb[0].mxu0 %v4173
    %v4319 = vpop.f32.mrb[0].mxu0
    %v4320 = vadd.f32 %v4050, %v4319
    %v4321 = vpop.f32.mrb[0].mxu0
    %v4322 = vadd.f32 %v4054, %v4321
    %v4323 = vpop.f32.mrb[0].mxu0
    %v4324 = vpop.f32.mrb[0].mxu0
    %4325 = vdwg.mxu0
    %4326 = vmatprep.subr.bf16.mxu0 %v3921
    %4327 = vmatpush1.bf16.msra.mxu0 %v3920
    %4328 = vmatprep.subr.bf16.mxu0 %v3925
    %4329 = vmatpush1.bf16.msra.mxu0 %v3924
    %4330 = vmatprep.subr.bf16.mxu0 %v3929
    %4331 = vmatpush1.bf16.msra.mxu0 %v3928
    %4332 = vmatprep.subr.bf16.mxu0 %v3933
    %4333 = vmatpush1.bf16.msra.mxu0 %v3932
    %4334 = vmatprep.subr.bf16.mxu0 %v3937
    %4335 = vmatpush1.bf16.msra.mxu0 %v3936
    %4336 = vmatprep.subr.bf16.mxu0 %v3941
    %4337 = vmatpush1.bf16.msra.mxu0 %v3940
    %4338 = vmatprep.subr.bf16.mxu0 %v3945
    %4339 = vmatpush1.bf16.msra.mxu0 %v3944
    %4340 = vmatprep.subr.bf16.mxu0 %v3949
    %4341 = vmatpush1.bf16.msra.mxu0 %v3948
    %4342 = vmatprep.subr.bf16.mxu0 %v3953
    %4343 = vmatpush1.bf16.msra.mxu0 %v3952
    %4344 = vmatprep.subr.bf16.mxu0 %v3957
    %4345 = vmatpush1.bf16.msra.mxu0 %v3956
    %4346 = vmatprep.subr.bf16.mxu0 %v3961
    %4347 = vmatpush1.bf16.msra.mxu0 %v3960
    %4348 = vmatprep.subr.bf16.mxu0 %v3965
    %4349 = vmatpush1.bf16.msra.mxu0 %v3964
    %4350 = vmatprep.subr.bf16.mxu0 %v3969
    %4351 = vmatpush1.bf16.msra.mxu0 %v3968
    %4352 = vmatprep.subr.bf16.mxu0 %v3973
    %4353 = vmatpush1.bf16.msra.mxu0 %v3972
    %4354 = vmatprep.subr.bf16.mxu0 %v3977
    %4355 = vmatpush1.bf16.msra.mxu0 %v3976
    %4356 = vmatprep.subr.bf16.mxu0 %v3981
    %4357 = vmatpush1.bf16.msra.mxu0 %v3980
    %4358 = vmatprep.mubr.bf16.mxu0 %v4284
    %4359 = vmatmul.mubr.bf16.gmra.mrb[0].mxu0 %v4173
    %v4360 = vpop.f32.mrb[0].mxu0
    %v4361 = vadd.f32 %v4058, %v4360
    %v4362 = vpop.f32.mrb[0].mxu0
    %v4363 = vadd.f32 %v4062, %v4362
    %v4364 = vpop.f32.mrb[0].mxu0
    %v4365 = vpop.f32.mrb[0].mxu0
    %4366 = vdwg.mxu0
    %v4367 = vxor.u32 %v4320, 2147483648
    %v4368 = vxor.u32 %v4322, 2147483648
    %v4369 = vxor.u32 %v4361, 2147483648
    %v4370 = vmul.f32 %v4367, 1.442695
    %v4371 = vpow.pop %v4370
    %v4372 = vmul.f32 %v4368, 1.442695
    %v4373 = vpow.pop %v4372
    %v4374 = vmul.f32 %v4369, 1.442695
    %v4375 = vpow.pop %v4374
    %v4376 = vadd.f32 %v4371, 1.0
    %v4377 = vadd.f32 %v4373, 1.0
    %v4378 = vadd.f32 %v4375, 1.0
    %v4379 = vrcp.pop %v4376
    %v4380 = vmul.f32 1.0, %v4379
    %v4381 = vrcp.pop %v4377
    %v4382 = vmul.f32 1.0, %v4381
    %v4383 = vrcp.pop %v4378
    %v4384 = vmul.f32 1.0, %v4383
    %v4385 = vtanh.pop %v4363
    %v4386 = vmul.f32 %v4382, %v4170
    %v4387 = vmul.f32 %v4380, %v4385
    %v4388 = vadd.f32 %v4386, %v4387
    %v4389 = vtanh.pop %v4388
    %v4390 = vmul.f32 %v4384, %v4389
    %v4391 = vpack.c.bf16 %v4283, %v4283
    %4392 = vmatprep.subr.bf16.mxu0 %v3378
    %4393 = vmatpush1.bf16.msra.mxu0 %v3377
    %4394 = vmatprep.subr.bf16.mxu0 %v3382
    %4395 = vmatpush1.bf16.msra.mxu0 %v3381
    %4396 = vmatprep.subr.bf16.mxu0 %v3386
    %4397 = vmatpush1.bf16.msra.mxu0 %v3385
    %4398 = vmatprep.subr.bf16.mxu0 %v3390
    %4399 = vmatpush1.bf16.msra.mxu0 %v3389
    %4400 = vmatprep.subr.bf16.mxu0 %v3394
    %4401 = vmatpush1.bf16.msra.mxu0 %v3393
    %4402 = vmatprep.subr.bf16.mxu0 %v3398
    %4403 = vmatpush1.bf16.msra.mxu0 %v3397
    %4404 = vmatprep.subr.bf16.mxu0 %v3402
    %4405 = vmatpush1.bf16.msra.mxu0 %v3401
    %4406 = vmatprep.subr.bf16.mxu0 %v3406
    %4407 = vmatpush1.bf16.msra.mxu0 %v3405
    %4408 = vmatprep.subr.bf16.mxu0 0
    %4409 = vmatpush1.bf16.msra.mxu0 0
    %4410 = vmatprep.subr.bf16.mxu0 0
    %4411 = vmatpush1.bf16.msra.mxu0 0
    %4412 = vmatprep.subr.bf16.mxu0 0
    %4413 = vmatpush1.bf16.msra.mxu0 0
    %4414 = vmatprep.subr.bf16.mxu0 0
    %4415 = vmatpush1.bf16.msra.mxu0 0
    %4416 = vmatprep.subr.bf16.mxu0 0
    %4417 = vmatpush1.bf16.msra.mxu0 0
    %4418 = vmatprep.subr.bf16.mxu0 0
    %4419 = vmatpush1.bf16.msra.mxu0 0
    %4420 = vmatprep.subr.bf16.mxu0 0
    %4421 = vmatpush1.bf16.msra.mxu0 0
    %4422 = vmatprep.subr.bf16.mxu0 0
    %4423 = vmatpush1.bf16.msra.mxu0 0
    %4424 = vmatprep.mubr.bf16.mxu0 0
    %4425 = vmatmul.mubr.bf16.gmra.mrb[0].mxu0 %v4391
    %v4426 = vpop.f32.mrb[0].mxu0
    %v4427 = vadd.f32 0.0, %v4426
    %v4428 = vpop.f32.mrb[0].mxu0
    %v4429 = vadd.f32 0.0, %v4428
    %v4430 = vpop.f32.mrb[0].mxu0
    %v4431 = vpop.f32.mrb[0].mxu0
    %4432 = vdwg.mxu0
    %4433 = vmatprep.subr.bf16.mxu0 %v3380
    %4434 = vmatpush1.bf16.msra.mxu0 %v3379
    %4435 = vmatprep.subr.bf16.mxu0 %v3384
    %4436 = vmatpush1.bf16.msra.mxu0 %v3383
    %4437 = vmatprep.subr.bf16.mxu0 %v3388
    %4438 = vmatpush1.bf16.msra.mxu0 %v3387
    %4439 = vmatprep.subr.bf16.mxu0 %v3392
    %4440 = vmatpush1.bf16.msra.mxu0 %v3391
    %4441 = vmatprep.subr.bf16.mxu0 %v3396
    %4442 = vmatpush1.bf16.msra.mxu0 %v3395
    %4443 = vmatprep.subr.bf16.mxu0 %v3400
    %4444 = vmatpush1.bf16.msra.mxu0 %v3399
    %4445 = vmatprep.subr.bf16.mxu0 %v3404
    %4446 = vmatpush1.bf16.msra.mxu0 %v3403
    %4447 = vmatprep.subr.bf16.mxu0 %v3408
    %4448 = vmatpush1.bf16.msra.mxu0 %v3407
    %4449 = vmatprep.subr.bf16.mxu0 0
    %4450 = vmatpush1.bf16.msra.mxu0 0
    %4451 = vmatprep.subr.bf16.mxu0 0
    %4452 = vmatpush1.bf16.msra.mxu0 0
    %4453 = vmatprep.subr.bf16.mxu0 0
    %4454 = vmatpush1.bf16.msra.mxu0 0
    %4455 = vmatprep.subr.bf16.mxu0 0
    %4456 = vmatpush1.bf16.msra.mxu0 0
    %4457 = vmatprep.subr.bf16.mxu0 0
    %4458 = vmatpush1.bf16.msra.mxu0 0
    %4459 = vmatprep.subr.bf16.mxu0 0
    %4460 = vmatpush1.bf16.msra.mxu0 0
    %4461 = vmatprep.subr.bf16.mxu0 0
    %4462 = vmatpush1.bf16.msra.mxu0 0
    %4463 = vmatprep.subr.bf16.mxu0 0
    %4464 = vmatpush1.bf16.msra.mxu0 0
    %4465 = vmatprep.mubr.bf16.mxu0 0
    %4466 = vmatmul.mubr.bf16.gmra.mrb[0].mxu0 %v4391
    %v4467 = vpop.f32.mrb[0].mxu0
    %v4468 = vadd.f32 0.0, %v4467
    %v4469 = vpop.f32.mrb[0].mxu0
    %v4470 = vadd.f32 0.0, %v4469
    %v4471 = vpop.f32.mrb[0].mxu0
    %v4472 = vpop.f32.mrb[0].mxu0
    %4473 = vdwg.mxu0
    %v4474 = vadd.f32 %v3201, %v4427
    %v4475 = vadd.f32 %v3203, %v4429
    %v4476 = vadd.f32 %v3242, %v4468
    %v4477 = vadd.f32 %v3244, %v4470
    %v4478 = vxor.u32 %v4474, 2147483648
    %v4479 = vxor.u32 %v4475, 2147483648
    %v4480 = vxor.u32 %v4476, 2147483648
    %v4481 = vmul.f32 %v4478, 1.442695
    %v4482 = vpow.pop %v4481
    %v4483 = vmul.f32 %v4479, 1.442695
    %v4484 = vpow.pop %v4483
    %v4485 = vmul.f32 %v4480, 1.442695
    %v4486 = vpow.pop %v4485
    %v4487 = vadd.f32 %v4482, 1.0
    %v4488 = vadd.f32 %v4484, 1.0
    %v4489 = vadd.f32 %v4486, 1.0
    %v4490 = vrcp.pop %v4487
    %v4491 = vmul.f32 1.0, %v4490
    %v4492 = vrcp.pop %v4488
    %v4493 = vmul.f32 1.0, %v4492
    %v4494 = vrcp.pop %v4489
    %v4495 = vmul.f32 1.0, %v4494
    %v4496 = vtanh.pop %v4477
    %v4497 = vmul.f32 %v4493, %v4281
    %v4498 = vmul.f32 %v4491, %v4496
    %v4499 = vadd.f32 %v4497, %v4498
    %v4500 = vtanh.pop %v4499
    %v4501 = vmul.f32 %v4495, %v4500
    %v4502 = vpack.c.bf16 %v4390, %v4390
    %4503 = vmatprep.subr.bf16.mxu0 %v3919
    %4504 = vmatpush1.bf16.msra.mxu0 %v3918
    %4505 = vmatprep.subr.bf16.mxu0 %v3923
    %4506 = vmatpush1.bf16.msra.mxu0 %v3922
    %4507 = vmatprep.subr.bf16.mxu0 %v3927
    %4508 = vmatpush1.bf16.msra.mxu0 %v3926
    %4509 = vmatprep.subr.bf16.mxu0 %v3931
    %4510 = vmatpush1.bf16.msra.mxu0 %v3930
    %4511 = vmatprep.subr.bf16.mxu0 %v3935
    %4512 = vmatpush1.bf16.msra.mxu0 %v3934
    %4513 = vmatprep.subr.bf16.mxu0 %v3939
    %4514 = vmatpush1.bf16.msra.mxu0 %v3938
    %4515 = vmatprep.subr.bf16.mxu0 %v3943
    %4516 = vmatpush1.bf16.msra.mxu0 %v3942
    %4517 = vmatprep.subr.bf16.mxu0 %v3947
    %4518 = vmatpush1.bf16.msra.mxu0 %v3946
    %4519 = vmatprep.subr.bf16.mxu0 %v3951
    %4520 = vmatpush1.bf16.msra.mxu0 %v3950
    %4521 = vmatprep.subr.bf16.mxu0 %v3955
    %4522 = vmatpush1.bf16.msra.mxu0 %v3954
    %4523 = vmatprep.subr.bf16.mxu0 %v3959
    %4524 = vmatpush1.bf16.msra.mxu0 %v3958
    %4525 = vmatprep.subr.bf16.mxu0 %v3963
    %4526 = vmatpush1.bf16.msra.mxu0 %v3962
    %4527 = vmatprep.subr.bf16.mxu0 %v3967
    %4528 = vmatpush1.bf16.msra.mxu0 %v3966
    %4529 = vmatprep.subr.bf16.mxu0 %v3971
    %4530 = vmatpush1.bf16.msra.mxu0 %v3970
    %4531 = vmatprep.subr.bf16.mxu0 %v3975
    %4532 = vmatpush1.bf16.msra.mxu0 %v3974
    %4533 = vmatprep.subr.bf16.mxu0 %v3979
    %4534 = vmatpush1.bf16.msra.mxu0 %v3978
    %4535 = vmatprep.mubr.bf16.mxu0 %v4502
    %4536 = vmatmul.mubr.bf16.gmra.mrb[0].mxu0 %v4391
    %v4537 = vpop.f32.mrb[0].mxu0
    %v4538 = vadd.f32 %v4050, %v4537
    %v4539 = vpop.f32.mrb[0].mxu0
    %v4540 = vadd.f32 %v4054, %v4539
    %v4541 = vpop.f32.mrb[0].mxu0
    %v4542 = vpop.f32.mrb[0].mxu0
    %4543 = vdwg.mxu0
    %4544 = vmatprep.subr.bf16.mxu0 %v3921
    %4545 = vmatpush1.bf16.msra.mxu0 %v3920
    %4546 = vmatprep.subr.bf16.mxu0 %v3925
    %4547 = vmatpush1.bf16.msra.mxu0 %v3924
    %4548 = vmatprep.subr.bf16.mxu0 %v3929
    %4549 = vmatpush1.bf16.msra.mxu0 %v3928
    %4550 = vmatprep.subr.bf16.mxu0 %v3933
    %4551 = vmatpush1.bf16.msra.mxu0 %v3932
    %4552 = vmatprep.subr.bf16.mxu0 %v3937
    %4553 = vmatpush1.bf16.msra.mxu0 %v3936
    %4554 = vmatprep.subr.bf16.mxu0 %v3941
    %4555 = vmatpush1.bf16.msra.mxu0 %v3940
    %4556 = vmatprep.subr.bf16.mxu0 %v3945
    %4557 = vmatpush1.bf16.msra.mxu0 %v3944
    %4558 = vmatprep.subr.bf16.mxu0 %v3949
    %4559 = vmatpush1.bf16.msra.mxu0 %v3948
    %4560 = vmatprep.subr.bf16.mxu0 %v3953
    %4561 = vmatpush1.bf16.msra.mxu0 %v3952
    %4562 = vmatprep.subr.bf16.mxu0 %v3957
    %4563 = vmatpush1.bf16.msra.mxu0 %v3956
    %4564 = vmatprep.subr.bf16.mxu0 %v3961
    %4565 = vmatpush1.bf16.msra.mxu0 %v3960
    %4566 = vmatprep.subr.bf16.mxu0 %v3965
    %4567 = vmatpush1.bf16.msra.mxu0 %v3964
    %4568 = vmatprep.subr.bf16.mxu0 %v3969
    %4569 = vmatpush1.bf16.msra.mxu0 %v3968
    %4570 = vmatprep.subr.bf16.mxu0 %v3973
    %4571 = vmatpush1.bf16.msra.mxu0 %v3972
    %4572 = vmatprep.subr.bf16.mxu0 %v3977
    %4573 = vmatpush1.bf16.msra.mxu0 %v3976
    %4574 = vmatprep.subr.bf16.mxu0 %v3981
    %4575 = vmatpush1.bf16.msra.mxu0 %v3980
    %4576 = vmatprep.mubr.bf16.mxu0 %v4502
    %4577 = vmatmul.mubr.bf16.gmra.mrb[0].mxu0 %v4391
    %v4578 = vpop.f32.mrb[0].mxu0
    %v4579 = vadd.f32 %v4058, %v4578
    %v4580 = vpop.f32.mrb[0].mxu0
    %v4581 = vadd.f32 %v4062, %v4580
    %v4582 = vpop.f32.mrb[0].mxu0
    %v4583 = vpop.f32.mrb[0].mxu0
    %4584 = vdwg.mxu0
    %v4585 = vxor.u32 %v4538, 2147483648
    %v4586 = vxor.u32 %v4540, 2147483648
    %v4587 = vxor.u32 %v4579, 2147483648
    %v4588 = vmul.f32 %v4585, 1.442695
    %v4589 = vpow.pop %v4588
    %v4590 = vmul.f32 %v4586, 1.442695
    %v4591 = vpow.pop %v4590
    %v4592 = vmul.f32 %v4587, 1.442695
    %v4593 = vpow.pop %v4592
    %v4594 = vadd.f32 %v4589, 1.0
    %v4595 = vadd.f32 %v4591, 1.0
    %v4596 = vadd.f32 %v4593, 1.0
    %v4597 = vrcp.pop %v4594
    %v4598 = vmul.f32 1.0, %v4597
    %v4599 = vrcp.pop %v4595
    %v4600 = vmul.f32 1.0, %v4599
    %v4601 = vrcp.pop %v4596
    %v4602 = vmul.f32 1.0, %v4601
    %v4603 = vtanh.pop %v4581
    %v4604 = vmul.f32 %v4600, %v4388
    %v4605 = vmul.f32 %v4598, %v4603
    %v4606 = vadd.f32 %v4604, %v4605
    %v4607 = vtanh.pop %v4606
    %v4608 = vmul.f32 %v4602, %v4607
    %v4609 = vpack.c.bf16 %v4501, %v4501
    %4610 = vmatprep.subr.bf16.mxu0 %v3378
    %4611 = vmatpush1.bf16.msra.mxu0 %v3377
    %4612 = vmatprep.subr.bf16.mxu0 %v3382
    %4613 = vmatpush1.bf16.msra.mxu0 %v3381
    %4614 = vmatprep.subr.bf16.mxu0 %v3386
    %4615 = vmatpush1.bf16.msra.mxu0 %v3385
    %4616 = vmatprep.subr.bf16.mxu0 %v3390
    %4617 = vmatpush1.bf16.msra.mxu0 %v3389
    %4618 = vmatprep.subr.bf16.mxu0 %v3394
    %4619 = vmatpush1.bf16.msra.mxu0 %v3393
    %4620 = vmatprep.subr.bf16.mxu0 %v3398
    %4621 = vmatpush1.bf16.msra.mxu0 %v3397
    %4622 = vmatprep.subr.bf16.mxu0 %v3402
    %4623 = vmatpush1.bf16.msra.mxu0 %v3401
    %4624 = vmatprep.subr.bf16.mxu0 %v3406
    %4625 = vmatpush1.bf16.msra.mxu0 %v3405
    %4626 = vmatprep.subr.bf16.mxu0 0
    %4627 = vmatpush1.bf16.msra.mxu0 0
    %4628 = vmatprep.subr.bf16.mxu0 0
    %4629 = vmatpush1.bf16.msra.mxu0 0
    %4630 = vmatprep.subr.bf16.mxu0 0
    %4631 = vmatpush1.bf16.msra.mxu0 0
    %4632 = vmatprep.subr.bf16.mxu0 0
    %4633 = vmatpush1.bf16.msra.mxu0 0
    %4634 = vmatprep.subr.bf16.mxu0 0
    %4635 = vmatpush1.bf16.msra.mxu0 0
    %4636 = vmatprep.subr.bf16.mxu0 0
    %4637 = vmatpush1.bf16.msra.mxu0 0
    %4638 = vmatprep.subr.bf16.mxu0 0
    %4639 = vmatpush1.bf16.msra.mxu0 0
    %4640 = vmatprep.subr.bf16.mxu0 0
    %4641 = vmatpush1.bf16.msra.mxu0 0
    %4642 = vmatprep.mubr.bf16.mxu0 0
    %4643 = vmatmul.mubr.bf16.gmra.mrb[0].mxu0 %v4609
    %v4644 = vpop.f32.mrb[0].mxu0
    %v4645 = vadd.f32 0.0, %v4644
    %v4646 = vpop.f32.mrb[0].mxu0
    %v4647 = vadd.f32 0.0, %v4646
    %v4648 = vpop.f32.mrb[0].mxu0
    %v4649 = vpop.f32.mrb[0].mxu0
    %4650 = vdwg.mxu0
    %4651 = vmatprep.subr.bf16.mxu0 %v3380
    %4652 = vmatpush1.bf16.msra.mxu0 %v3379
    %4653 = vmatprep.subr.bf16.mxu0 %v3384
    %4654 = vmatpush1.bf16.msra.mxu0 %v3383
    %4655 = vmatprep.subr.bf16.mxu0 %v3388
    %4656 = vmatpush1.bf16.msra.mxu0 %v3387
    %4657 = vmatprep.subr.bf16.mxu0 %v3392
    %4658 = vmatpush1.bf16.msra.mxu0 %v3391
    %4659 = vmatprep.subr.bf16.mxu0 %v3396
    %4660 = vmatpush1.bf16.msra.mxu0 %v3395
    %4661 = vmatprep.subr.bf16.mxu0 %v3400
    %4662 = vmatpush1.bf16.msra.mxu0 %v3399
    %4663 = vmatprep.subr.bf16.mxu0 %v3404
    %4664 = vmatpush1.bf16.msra.mxu0 %v3403
    %4665 = vmatprep.subr.bf16.mxu0 %v3408
    %4666 = vmatpush1.bf16.msra.mxu0 %v3407
    %4667 = vmatprep.subr.bf16.mxu0 0
    %4668 = vmatpush1.bf16.msra.mxu0 0
    %4669 = vmatprep.subr.bf16.mxu0 0
    %4670 = vmatpush1.bf16.msra.mxu0 0
    %4671 = vmatprep.subr.bf16.mxu0 0
    %4672 = vmatpush1.bf16.msra.mxu0 0
    %4673 = vmatprep.subr.bf16.mxu0 0
    %4674 = vmatpush1.bf16.msra.mxu0 0
    %4675 = vmatprep.subr.bf16.mxu0 0
    %4676 = vmatpush1.bf16.msra.mxu0 0
    %4677 = vmatprep.subr.bf16.mxu0 0
    %4678 = vmatpush1.bf16.msra.mxu0 0
    %4679 = vmatprep.subr.bf16.mxu0 0
    %4680 = vmatpush1.bf16.msra.mxu0 0
    %4681 = vmatprep.subr.bf16.mxu0 0
    %4682 = vmatpush1.bf16.msra.mxu0 0
    %4683 = vmatprep.mubr.bf16.mxu0 0
    %4684 = vmatmul.mubr.bf16.gmra.mrb[0].mxu0 %v4609
    %v4685 = vpop.f32.mrb[0].mxu0
    %v4686 = vadd.f32 0.0, %v4685
    %v4687 = vpop.f32.mrb[0].mxu0
    %v4688 = vadd.f32 0.0, %v4687
    %v4689 = vpop.f32.mrb[0].mxu0
    %v4690 = vpop.f32.mrb[0].mxu0
    %4691 = vdwg.mxu0
    %v4692 = vadd.f32 %v3201, %v4645
    %v4693 = vadd.f32 %v3203, %v4647
    %v4694 = vadd.f32 %v3242, %v4686
    %v4695 = vadd.f32 %v3244, %v4688
    %v4696 = vxor.u32 %v4692, 2147483648
    %v4697 = vxor.u32 %v4693, 2147483648
    %v4698 = vxor.u32 %v4694, 2147483648
    %v4699 = vmul.f32 %v4696, 1.442695
    %v4700 = vpow.pop %v4699
    %v4701 = vmul.f32 %v4697, 1.442695
    %v4702 = vpow.pop %v4701
    %v4703 = vmul.f32 %v4698, 1.442695
    %v4704 = vpow.pop %v4703
    %v4705 = vadd.f32 %v4700, 1.0
    %v4706 = vadd.f32 %v4702, 1.0
    %v4707 = vadd.f32 %v4704, 1.0
    %v4708 = vrcp.pop %v4705
    %v4709 = vmul.f32 1.0, %v4708
    %v4710 = vrcp.pop %v4706
    %v4711 = vmul.f32 1.0, %v4710
    %v4712 = vrcp.pop %v4707
    %v4713 = vmul.f32 1.0, %v4712
    %v4714 = vtanh.pop %v4695
    %v4715 = vmul.f32 %v4711, %v4499
    %v4716 = vmul.f32 %v4709, %v4714
    %v4717 = vadd.f32 %v4715, %v4716
    %v4718 = vtanh.pop %v4717
    %v4719 = vmul.f32 %v4713, %v4718
    %v4720 = vpack.c.bf16 %v4608, %v4608
    %4721 = vmatprep.subr.bf16.mxu0 %v3919
    %4722 = vmatpush1.bf16.msra.mxu0 %v3918
    %4723 = vmatprep.subr.bf16.mxu0 %v3923
    %4724 = vmatpush1.bf16.msra.mxu0 %v3922
    %4725 = vmatprep.subr.bf16.mxu0 %v3927
    %4726 = vmatpush1.bf16.msra.mxu0 %v3926
    %4727 = vmatprep.subr.bf16.mxu0 %v3931
    %4728 = vmatpush1.bf16.msra.mxu0 %v3930
    %4729 = vmatprep.subr.bf16.mxu0 %v3935
    %4730 = vmatpush1.bf16.msra.mxu0 %v3934
    %4731 = vmatprep.subr.bf16.mxu0 %v3939
    %4732 = vmatpush1.bf16.msra.mxu0 %v3938
    %4733 = vmatprep.subr.bf16.mxu0 %v3943
    %4734 = vmatpush1.bf16.msra.mxu0 %v3942
    %4735 = vmatprep.subr.bf16.mxu0 %v3947
    %4736 = vmatpush1.bf16.msra.mxu0 %v3946
    %4737 = vmatprep.subr.bf16.mxu0 %v3951
    %4738 = vmatpush1.bf16.msra.mxu0 %v3950
    %4739 = vmatprep.subr.bf16.mxu0 %v3955
    %4740 = vmatpush1.bf16.msra.mxu0 %v3954
    %4741 = vmatprep.subr.bf16.mxu0 %v3959
    %4742 = vmatpush1.bf16.msra.mxu0 %v3958
    %4743 = vmatprep.subr.bf16.mxu0 %v3963
    %4744 = vmatpush1.bf16.msra.mxu0 %v3962
    %4745 = vmatprep.subr.bf16.mxu0 %v3967
    %4746 = vmatpush1.bf16.msra.mxu0 %v3966
    %4747 = vmatprep.subr.bf16.mxu0 %v3971
    %4748 = vmatpush1.bf16.msra.mxu0 %v3970
    %4749 = vmatprep.subr.bf16.mxu0 %v3975
    %4750 = vmatpush1.bf16.msra.mxu0 %v3974
    %4751 = vmatprep.subr.bf16.mxu0 %v3979
    %4752 = vmatpush1.bf16.msra.mxu0 %v3978
    %4753 = vmatprep.mubr.bf16.mxu0 %v4720
    %4754 = vmatmul.mubr.bf16.gmra.mrb[0].mxu0 %v4609
    %v4755 = vpop.f32.mrb[0].mxu0
    %v4756 = vadd.f32 %v4050, %v4755
    %v4757 = vpop.f32.mrb[0].mxu0
    %v4758 = vadd.f32 %v4054, %v4757
    %v4759 = vpop.f32.mrb[0].mxu0
    %v4760 = vpop.f32.mrb[0].mxu0
    %4761 = vdwg.mxu0
    %4762 = vmatprep.subr.bf16.mxu0 %v3921
    %4763 = vmatpush1.bf16.msra.mxu0 %v3920
    %4764 = vmatprep.subr.bf16.mxu0 %v3925
    %4765 = vmatpush1.bf16.msra.mxu0 %v3924
    %4766 = vmatprep.subr.bf16.mxu0 %v3929
    %4767 = vmatpush1.bf16.msra.mxu0 %v3928
    %4768 = vmatprep.subr.bf16.mxu0 %v3933
    %4769 = vmatpush1.bf16.msra.mxu0 %v3932
    %4770 = vmatprep.subr.bf16.mxu0 %v3937
    %4771 = vmatpush1.bf16.msra.mxu0 %v3936
    %4772 = vmatprep.subr.bf16.mxu0 %v3941
    %4773 = vmatpush1.bf16.msra.mxu0 %v3940
    %4774 = vmatprep.subr.bf16.mxu0 %v3945
    %4775 = vmatpush1.bf16.msra.mxu0 %v3944
    %4776 = vmatprep.subr.bf16.mxu0 %v3949
    %4777 = vmatpush1.bf16.msra.mxu0 %v3948
    %4778 = vmatprep.subr.bf16.mxu0 %v3953
    %4779 = vmatpush1.bf16.msra.mxu0 %v3952
    %4780 = vmatprep.subr.bf16.mxu0 %v3957
    %4781 = vmatpush1.bf16.msra.mxu0 %v3956
    %4782 = vmatprep.subr.bf16.mxu0 %v3961
    %4783 = vmatpush1.bf16.msra.mxu0 %v3960
    %4784 = vmatprep.subr.bf16.mxu0 %v3965
    %4785 = vmatpush1.bf16.msra.mxu0 %v3964
    %4786 = vmatprep.subr.bf16.mxu0 %v3969
    %4787 = vmatpush1.bf16.msra.mxu0 %v3968
    %4788 = vmatprep.subr.bf16.mxu0 %v3973
    %4789 = vmatpush1.bf16.msra.mxu0 %v3972
    %4790 = vmatprep.subr.bf16.mxu0 %v3977
    %4791 = vmatpush1.bf16.msra.mxu0 %v3976
    %4792 = vmatprep.subr.bf16.mxu0 %v3981
    %4793 = vmatpush1.bf16.msra.mxu0 %v3980
    %4794 = vmatprep.mubr.bf16.mxu0 %v4720
    %4795 = vmatmul.mubr.bf16.gmra.mrb[0].mxu0 %v4609
    %v4796 = vpop.f32.mrb[0].mxu0
    %v4797 = vadd.f32 %v4058, %v4796
    %v4798 = vpop.f32.mrb[0].mxu0
    %v4799 = vadd.f32 %v4062, %v4798
    %v4800 = vpop.f32.mrb[0].mxu0
    %v4801 = vpop.f32.mrb[0].mxu0
    %4802 = vdwg.mxu0
    %v4803 = vxor.u32 %v4756, 2147483648
    %v4804 = vxor.u32 %v4758, 2147483648
    %v4805 = vxor.u32 %v4797, 2147483648
    %v4806 = vmul.f32 %v4803, 1.442695
    %v4807 = vpow.pop %v4806
    %v4808 = vmul.f32 %v4804, 1.442695
    %v4809 = vpow.pop %v4808
    %v4810 = vmul.f32 %v4805, 1.442695
    %v4811 = vpow.pop %v4810
    %v4812 = vadd.f32 %v4807, 1.0
    %v4813 = vadd.f32 %v4809, 1.0
    %v4814 = vadd.f32 %v4811, 1.0
    %v4815 = vrcp.pop %v4812
    %v4816 = vmul.f32 1.0, %v4815
    %v4817 = vrcp.pop %v4813
    %v4818 = vmul.f32 1.0, %v4817
    %v4819 = vrcp.pop %v4814
    %v4820 = vmul.f32 1.0, %v4819
    %v4821 = vtanh.pop %v4799
    %v4822 = vmul.f32 %v4818, %v4606
    %v4823 = vmul.f32 %v4816, %v4821
    %v4824 = vadd.f32 %v4822, %v4823
    %v4825 = vtanh.pop %v4824
    %v4826 = vmul.f32 %v4820, %v4825
    %v4827 = vpack.c.bf16 %v4719, %v4719
    %4828 = vmatprep.subr.bf16.mxu0 %v3378
    %4829 = vmatpush1.bf16.msra.mxu0 %v3377
    %4830 = vmatprep.subr.bf16.mxu0 %v3382
    %4831 = vmatpush1.bf16.msra.mxu0 %v3381
    %4832 = vmatprep.subr.bf16.mxu0 %v3386
    %4833 = vmatpush1.bf16.msra.mxu0 %v3385
    %4834 = vmatprep.subr.bf16.mxu0 %v3390
    %4835 = vmatpush1.bf16.msra.mxu0 %v3389
    %4836 = vmatprep.subr.bf16.mxu0 %v3394
    %4837 = vmatpush1.bf16.msra.mxu0 %v3393
    %4838 = vmatprep.subr.bf16.mxu0 %v3398
    %4839 = vmatpush1.bf16.msra.mxu0 %v3397
    %4840 = vmatprep.subr.bf16.mxu0 %v3402
    %4841 = vmatpush1.bf16.msra.mxu0 %v3401
    %4842 = vmatprep.subr.bf16.mxu0 %v3406
    %4843 = vmatpush1.bf16.msra.mxu0 %v3405
    %4844 = vmatprep.subr.bf16.mxu0 0
    %4845 = vmatpush1.bf16.msra.mxu0 0
    %4846 = vmatprep.subr.bf16.mxu0 0
    %4847 = vmatpush1.bf16.msra.mxu0 0
    %4848 = vmatprep.subr.bf16.mxu0 0
    %4849 = vmatpush1.bf16.msra.mxu0 0
    %4850 = vmatprep.subr.bf16.mxu0 0
    %4851 = vmatpush1.bf16.msra.mxu0 0
    %4852 = vmatprep.subr.bf16.mxu0 0
    %4853 = vmatpush1.bf16.msra.mxu0 0
    %4854 = vmatprep.subr.bf16.mxu0 0
    %4855 = vmatpush1.bf16.msra.mxu0 0
    %4856 = vmatprep.subr.bf16.mxu0 0
    %4857 = vmatpush1.bf16.msra.mxu0 0
    %4858 = vmatprep.subr.bf16.mxu0 0
    %4859 = vmatpush1.bf16.msra.mxu0 0
    %4860 = vmatprep.mubr.bf16.mxu0 0
    %4861 = vmatmul.mubr.bf16.gmra.mrb[0].mxu0 %v4827
    %v4862 = vpop.f32.mrb[0].mxu0
    %v4863 = vadd.f32 0.0, %v4862
    %v4864 = vpop.f32.mrb[0].mxu0
    %v4865 = vadd.f32 0.0, %v4864
    %v4866 = vpop.f32.mrb[0].mxu0
    %v4867 = vpop.f32.mrb[0].mxu0
    %4868 = vdwg.mxu0
    %4869 = vmatprep.subr.bf16.mxu0 %v3380
    %4870 = vmatpush1.bf16.msra.mxu0 %v3379
    %4871 = vmatprep.subr.bf16.mxu0 %v3384
    %4872 = vmatpush1.bf16.msra.mxu0 %v3383
    %4873 = vmatprep.subr.bf16.mxu0 %v3388
    %4874 = vmatpush1.bf16.msra.mxu0 %v3387
    %4875 = vmatprep.subr.bf16.mxu0 %v3392
    %4876 = vmatpush1.bf16.msra.mxu0 %v3391
    %4877 = vmatprep.subr.bf16.mxu0 %v3396
    %4878 = vmatpush1.bf16.msra.mxu0 %v3395
    %4879 = vmatprep.subr.bf16.mxu0 %v3400
    %4880 = vmatpush1.bf16.msra.mxu0 %v3399
    %4881 = vmatprep.subr.bf16.mxu0 %v3404
    %4882 = vmatpush1.bf16.msra.mxu0 %v3403
    %4883 = vmatprep.subr.bf16.mxu0 %v3408
    %4884 = vmatpush1.bf16.msra.mxu0 %v3407
    %4885 = vmatprep.subr.bf16.mxu0 0
    %4886 = vmatpush1.bf16.msra.mxu0 0
    %4887 = vmatprep.subr.bf16.mxu0 0
    %4888 = vmatpush1.bf16.msra.mxu0 0
    %4889 = vmatprep.subr.bf16.mxu0 0
    %4890 = vmatpush1.bf16.msra.mxu0 0
    %4891 = vmatprep.subr.bf16.mxu0 0
    %4892 = vmatpush1.bf16.msra.mxu0 0
    %4893 = vmatprep.subr.bf16.mxu0 0
    %4894 = vmatpush1.bf16.msra.mxu0 0
    %4895 = vmatprep.subr.bf16.mxu0 0
    %4896 = vmatpush1.bf16.msra.mxu0 0
    %4897 = vmatprep.subr.bf16.mxu0 0
    %4898 = vmatpush1.bf16.msra.mxu0 0
    %4899 = vmatprep.subr.bf16.mxu0 0
    %4900 = vmatpush1.bf16.msra.mxu0 0
    %4901 = vmatprep.mubr.bf16.mxu0 0
    %4902 = vmatmul.mubr.bf16.gmra.mrb[0].mxu0 %v4827
    %v4903 = vpop.f32.mrb[0].mxu0
    %v4904 = vadd.f32 0.0, %v4903
    %v4905 = vpop.f32.mrb[0].mxu0
    %v4906 = vadd.f32 0.0, %v4905
    %v4907 = vpop.f32.mrb[0].mxu0
    %v4908 = vpop.f32.mrb[0].mxu0
    %4909 = vdwg.mxu0
    %v4910 = vadd.f32 %v3201, %v4863
    %v4911 = vadd.f32 %v3203, %v4865
    %v4912 = vadd.f32 %v3242, %v4904
    %v4913 = vadd.f32 %v3244, %v4906
    %v4914 = vxor.u32 %v4910, 2147483648
    %v4915 = vxor.u32 %v4911, 2147483648
    %v4916 = vxor.u32 %v4912, 2147483648
    %v4917 = vmul.f32 %v4914, 1.442695
    %v4918 = vpow.pop %v4917
    %v4919 = vmul.f32 %v4915, 1.442695
    %v4920 = vpow.pop %v4919
    %v4921 = vmul.f32 %v4916, 1.442695
    %v4922 = vpow.pop %v4921
    %v4923 = vadd.f32 %v4918, 1.0
    %v4924 = vadd.f32 %v4920, 1.0
    %v4925 = vadd.f32 %v4922, 1.0
    %v4926 = vrcp.pop %v4923
    %v4927 = vmul.f32 1.0, %v4926
    %v4928 = vrcp.pop %v4924
    %v4929 = vmul.f32 1.0, %v4928
    %v4930 = vrcp.pop %v4925
    %v4931 = vmul.f32 1.0, %v4930
    %v4932 = vtanh.pop %v4913
    %v4933 = vmul.f32 %v4929, %v4717
    %v4934 = vmul.f32 %v4927, %v4932
    %v4935 = vadd.f32 %v4933, %v4934
    %v4936 = vtanh.pop %v4935
    %v4937 = vmul.f32 %v4931, %v4936
    %v4938 = vpack.c.bf16 %v4826, %v4826
    %4939 = vmatprep.subr.bf16.mxu0 %v3919
    %4940 = vmatpush1.bf16.msra.mxu0 %v3918
    %4941 = vmatprep.subr.bf16.mxu0 %v3923
    %4942 = vmatpush1.bf16.msra.mxu0 %v3922
    %4943 = vmatprep.subr.bf16.mxu0 %v3927
    %4944 = vmatpush1.bf16.msra.mxu0 %v3926
    %4945 = vmatprep.subr.bf16.mxu0 %v3931
    %4946 = vmatpush1.bf16.msra.mxu0 %v3930
    %4947 = vmatprep.subr.bf16.mxu0 %v3935
    %4948 = vmatpush1.bf16.msra.mxu0 %v3934
    %4949 = vmatprep.subr.bf16.mxu0 %v3939
    %4950 = vmatpush1.bf16.msra.mxu0 %v3938
    %4951 = vmatprep.subr.bf16.mxu0 %v3943
    %4952 = vmatpush1.bf16.msra.mxu0 %v3942
    %4953 = vmatprep.subr.bf16.mxu0 %v3947
    %4954 = vmatpush1.bf16.msra.mxu0 %v3946
    %4955 = vmatprep.subr.bf16.mxu0 %v3951
    %4956 = vmatpush1.bf16.msra.mxu0 %v3950
    %4957 = vmatprep.subr.bf16.mxu0 %v3955
    %4958 = vmatpush1.bf16.msra.mxu0 %v3954
    %4959 = vmatprep.subr.bf16.mxu0 %v3959
    %4960 = vmatpush1.bf16.msra.mxu0 %v3958
    %4961 = vmatprep.subr.bf16.mxu0 %v3963
    %4962 = vmatpush1.bf16.msra.mxu0 %v3962
    %4963 = vmatprep.subr.bf16.mxu0 %v3967
    %4964 = vmatpush1.bf16.msra.mxu0 %v3966
    %4965 = vmatprep.subr.bf16.mxu0 %v3971
    %4966 = vmatpush1.bf16.msra.mxu0 %v3970
    %4967 = vmatprep.subr.bf16.mxu0 %v3975
    %4968 = vmatpush1.bf16.msra.mxu0 %v3974
    %4969 = vmatprep.subr.bf16.mxu0 %v3979
    %4970 = vmatpush1.bf16.msra.mxu0 %v3978
    %4971 = vmatprep.mubr.bf16.mxu0 %v4938
    %4972 = vmatmul.mubr.bf16.gmra.mrb[0].mxu0 %v4827
    %v4973 = vpop.f32.mrb[0].mxu0
    %v4974 = vadd.f32 %v4050, %v4973
    %v4975 = vpop.f32.mrb[0].mxu0
    %v4976 = vadd.f32 %v4054, %v4975
    %v4977 = vpop.f32.mrb[0].mxu0
    %v4978 = vpop.f32.mrb[0].mxu0
    %4979 = vdwg.mxu0
    %4980 = vmatprep.subr.bf16.mxu0 %v3921
    %4981 = vmatpush1.bf16.msra.mxu0 %v3920
    %4982 = vmatprep.subr.bf16.mxu0 %v3925
    %4983 = vmatpush1.bf16.msra.mxu0 %v3924
    %4984 = vmatprep.subr.bf16.mxu0 %v3929
    %4985 = vmatpush1.bf16.msra.mxu0 %v3928
    %4986 = vmatprep.subr.bf16.mxu0 %v3933
    %4987 = vmatpush1.bf16.msra.mxu0 %v3932
    %4988 = vmatprep.subr.bf16.mxu0 %v3937
    %4989 = vmatpush1.bf16.msra.mxu0 %v3936
    %4990 = vmatprep.subr.bf16.mxu0 %v3941
    %4991 = vmatpush1.bf16.msra.mxu0 %v3940
    %4992 = vmatprep.subr.bf16.mxu0 %v3945
    %4993 = vmatpush1.bf16.msra.mxu0 %v3944
    %4994 = vmatprep.subr.bf16.mxu0 %v3949
    %4995 = vmatpush1.bf16.msra.mxu0 %v3948
    %4996 = vmatprep.subr.bf16.mxu0 %v3953
    %4997 = vmatpush1.bf16.msra.mxu0 %v3952
    %4998 = vmatprep.subr.bf16.mxu0 %v3957
    %4999 = vmatpush1.bf16.msra.mxu0 %v3956
    %5000 = vmatprep.subr.bf16.mxu0 %v3961
    %5001 = vmatpush1.bf16.msra.mxu0 %v3960
    %5002 = vmatprep.subr.bf16.mxu0 %v3965
    %5003 = vmatpush1.bf16.msra.mxu0 %v3964
    %5004 = vmatprep.subr.bf16.mxu0 %v3969
    %5005 = vmatpush1.bf16.msra.mxu0 %v3968
    %5006 = vmatprep.subr.bf16.mxu0 %v3973
    %5007 = vmatpush1.bf16.msra.mxu0 %v3972
    %5008 = vmatprep.subr.bf16.mxu0 %v3977
    %5009 = vmatpush1.bf16.msra.mxu0 %v3976
    %5010 = vmatprep.subr.bf16.mxu0 %v3981
    %5011 = vmatpush1.bf16.msra.mxu0 %v3980
    %5012 = vmatprep.mubr.bf16.mxu0 %v4938
    %5013 = vmatmul.mubr.bf16.gmra.mrb[0].mxu0 %v4827
    %v5014 = vpop.f32.mrb[0].mxu0
    %v5015 = vadd.f32 %v4058, %v5014
    %v5016 = vpop.f32.mrb[0].mxu0
    %v5017 = vadd.f32 %v4062, %v5016
    %v5018 = vpop.f32.mrb[0].mxu0
    %v5019 = vpop.f32.mrb[0].mxu0
    %5020 = vdwg.mxu0
    %v5021 = vxor.u32 %v4974, 2147483648
    %v5022 = vxor.u32 %v4976, 2147483648
    %v5023 = vxor.u32 %v5015, 2147483648
    %v5024 = vmul.f32 %v5021, 1.442695
    %v5025 = vpow.pop %v5024
    %v5026 = vmul.f32 %v5022, 1.442695
    %v5027 = vpow.pop %v5026
    %v5028 = vmul.f32 %v5023, 1.442695
    %v5029 = vpow.pop %v5028
    %v5030 = vadd.f32 %v5025, 1.0
    %v5031 = vadd.f32 %v5027, 1.0
    %v5032 = vadd.f32 %v5029, 1.0
    %v5033 = vrcp.pop %v5030
    %v5034 = vmul.f32 1.0, %v5033
    %v5035 = vrcp.pop %v5031
    %v5036 = vmul.f32 1.0, %v5035
    %v5037 = vrcp.pop %v5032
    %v5038 = vmul.f32 1.0, %v5037
    %v5039 = vtanh.pop %v5017
    %v5040 = vmul.f32 %v5036, %v4824
    %v5041 = vmul.f32 %v5034, %v5039
    %v5042 = vadd.f32 %v5040, %v5041
    %v5043 = vtanh.pop %v5042
    %v5044 = vmul.f32 %v5038, %v5043
    %v5045 = vpack.c.bf16 %v4937, %v4937
    %5046 = vmatprep.subr.bf16.mxu0 %v3378
    %5047 = vmatpush1.bf16.msra.mxu0 %v3377
    %5048 = vmatprep.subr.bf16.mxu0 %v3382
    %5049 = vmatpush1.bf16.msra.mxu0 %v3381
    %5050 = vmatprep.subr.bf16.mxu0 %v3386
    %5051 = vmatpush1.bf16.msra.mxu0 %v3385
    %5052 = vmatprep.subr.bf16.mxu0 %v3390
    %5053 = vmatpush1.bf16.msra.mxu0 %v3389
    %5054 = vmatprep.subr.bf16.mxu0 %v3394
    %5055 = vmatpush1.bf16.msra.mxu0 %v3393
    %5056 = vmatprep.subr.bf16.mxu0 %v3398
    %5057 = vmatpush1.bf16.msra.mxu0 %v3397
    %5058 = vmatprep.subr.bf16.mxu0 %v3402
    %5059 = vmatpush1.bf16.msra.mxu0 %v3401
    %5060 = vmatprep.subr.bf16.mxu0 %v3406
    %5061 = vmatpush1.bf16.msra.mxu0 %v3405
    %5062 = vmatprep.subr.bf16.mxu0 0
    %5063 = vmatpush1.bf16.msra.mxu0 0
    %5064 = vmatprep.subr.bf16.mxu0 0
    %5065 = vmatpush1.bf16.msra.mxu0 0
    %5066 = vmatprep.subr.bf16.mxu0 0
    %5067 = vmatpush1.bf16.msra.mxu0 0
    %5068 = vmatprep.subr.bf16.mxu0 0
    %5069 = vmatpush1.bf16.msra.mxu0 0
    %5070 = vmatprep.subr.bf16.mxu0 0
    %5071 = vmatpush1.bf16.msra.mxu0 0
    %5072 = vmatprep.subr.bf16.mxu0 0
    %5073 = vmatpush1.bf16.msra.mxu0 0
    %5074 = vmatprep.subr.bf16.mxu0 0
    %5075 = vmatpush1.bf16.msra.mxu0 0
    %5076 = vmatprep.subr.bf16.mxu0 0
    %5077 = vmatpush1.bf16.msra.mxu0 0
    %5078 = vmatprep.mubr.bf16.mxu0 0
    %5079 = vmatmul.mubr.bf16.gmra.mrb[0].mxu0 %v5045
    %v5080 = vpop.f32.mrb[0].mxu0
    %v5081 = vadd.f32 0.0, %v5080
    %v5082 = vpop.f32.mrb[0].mxu0
    %v5083 = vadd.f32 0.0, %v5082
    %v5084 = vpop.f32.mrb[0].mxu0
    %v5085 = vpop.f32.mrb[0].mxu0
    %5086 = vdwg.mxu0
    %5087 = vmatprep.subr.bf16.mxu0 %v3380
    %5088 = vmatpush1.bf16.msra.mxu0 %v3379
    %5089 = vmatprep.subr.bf16.mxu0 %v3384
    %5090 = vmatpush1.bf16.msra.mxu0 %v3383
    %5091 = vmatprep.subr.bf16.mxu0 %v3388
    %5092 = vmatpush1.bf16.msra.mxu0 %v3387
    %5093 = vmatprep.subr.bf16.mxu0 %v3392
    %5094 = vmatpush1.bf16.msra.mxu0 %v3391
    %5095 = vmatprep.subr.bf16.mxu0 %v3396
    %5096 = vmatpush1.bf16.msra.mxu0 %v3395
    %5097 = vmatprep.subr.bf16.mxu0 %v3400
    %5098 = vmatpush1.bf16.msra.mxu0 %v3399
    %5099 = vmatprep.subr.bf16.mxu0 %v3404
    %5100 = vmatpush1.bf16.msra.mxu0 %v3403
    %5101 = vmatprep.subr.bf16.mxu0 %v3408
    %5102 = vmatpush1.bf16.msra.mxu0 %v3407
    %5103 = vmatprep.subr.bf16.mxu0 0
    %5104 = vmatpush1.bf16.msra.mxu0 0
    %5105 = vmatprep.subr.bf16.mxu0 0
    %5106 = vmatpush1.bf16.msra.mxu0 0
    %5107 = vmatprep.subr.bf16.mxu0 0
    %5108 = vmatpush1.bf16.msra.mxu0 0
    %5109 = vmatprep.subr.bf16.mxu0 0
    %5110 = vmatpush1.bf16.msra.mxu0 0
    %5111 = vmatprep.subr.bf16.mxu0 0
    %5112 = vmatpush1.bf16.msra.mxu0 0
    %5113 = vmatprep.subr.bf16.mxu0 0
    %5114 = vmatpush1.bf16.msra.mxu0 0
    %5115 = vmatprep.subr.bf16.mxu0 0
    %5116 = vmatpush1.bf16.msra.mxu0 0
    %5117 = vmatprep.subr.bf16.mxu0 0
    %5118 = vmatpush1.bf16.msra.mxu0 0
    %5119 = vmatprep.mubr.bf16.mxu0 0
    %5120 = vmatmul.mubr.bf16.gmra.mrb[0].mxu0 %v5045
    %v5121 = vpop.f32.mrb[0].mxu0
    %v5122 = vadd.f32 0.0, %v5121
    %v5123 = vpop.f32.mrb[0].mxu0
    %v5124 = vadd.f32 0.0, %v5123
    %v5125 = vpop.f32.mrb[0].mxu0
    %v5126 = vpop.f32.mrb[0].mxu0
    %5127 = vdwg.mxu0
    %v5128 = vadd.f32 %v3201, %v5081
    %v5129 = vadd.f32 %v3203, %v5083
    %v5130 = vadd.f32 %v3242, %v5122
    %v5131 = vadd.f32 %v3244, %v5124
    %v5132 = vxor.u32 %v5128, 2147483648
    %v5133 = vxor.u32 %v5129, 2147483648
    %v5134 = vxor.u32 %v5130, 2147483648
    %v5135 = vmul.f32 %v5132, 1.442695
    %v5136 = vpow.pop %v5135
    %v5137 = vmul.f32 %v5133, 1.442695
    %v5138 = vpow.pop %v5137
    %v5139 = vmul.f32 %v5134, 1.442695
    %v5140 = vpow.pop %v5139
    %v5141 = vadd.f32 %v5136, 1.0
    %v5142 = vadd.f32 %v5138, 1.0
    %v5143 = vadd.f32 %v5140, 1.0
    %v5144 = vrcp.pop %v5141
    %v5145 = vmul.f32 1.0, %v5144
    %v5146 = vrcp.pop %v5142
    %v5147 = vmul.f32 1.0, %v5146
    %v5148 = vrcp.pop %v5143
    %v5149 = vmul.f32 1.0, %v5148
    %v5150 = vtanh.pop %v5131
    %v5151 = vmul.f32 %v5147, %v4935
    %v5152 = vmul.f32 %v5145, %v5150
    %v5153 = vadd.f32 %v5151, %v5152
    %v5154 = vtanh.pop %v5153
    %v5155 = vmul.f32 %v5149, %v5154
    %v5156 = vpack.c.bf16 %v5044, %v5044
    %5157 = vmatprep.subr.bf16.mxu0 %v3919
    %5158 = vmatpush1.bf16.msra.mxu0 %v3918
    %5159 = vmatprep.subr.bf16.mxu0 %v3923
    %5160 = vmatpush1.bf16.msra.mxu0 %v3922
    %5161 = vmatprep.subr.bf16.mxu0 %v3927
    %5162 = vmatpush1.bf16.msra.mxu0 %v3926
    %5163 = vmatprep.subr.bf16.mxu0 %v3931
    %5164 = vmatpush1.bf16.msra.mxu0 %v3930
    %5165 = vmatprep.subr.bf16.mxu0 %v3935
    %5166 = vmatpush1.bf16.msra.mxu0 %v3934
    %5167 = vmatprep.subr.bf16.mxu0 %v3939
    %5168 = vmatpush1.bf16.msra.mxu0 %v3938
    %5169 = vmatprep.subr.bf16.mxu0 %v3943
    %5170 = vmatpush1.bf16.msra.mxu0 %v3942
    %5171 = vmatprep.subr.bf16.mxu0 %v3947
    %5172 = vmatpush1.bf16.msra.mxu0 %v3946
    %5173 = vmatprep.subr.bf16.mxu0 %v3951
    %5174 = vmatpush1.bf16.msra.mxu0 %v3950
    %5175 = vmatprep.subr.bf16.mxu0 %v3955
    %5176 = vmatpush1.bf16.msra.mxu0 %v3954
    %5177 = vmatprep.subr.bf16.mxu0 %v3959
    %5178 = vmatpush1.bf16.msra.mxu0 %v3958
    %5179 = vmatprep.subr.bf16.mxu0 %v3963
    %5180 = vmatpush1.bf16.msra.mxu0 %v3962
    %5181 = vmatprep.subr.bf16.mxu0 %v3967
    %5182 = vmatpush1.bf16.msra.mxu0 %v3966
    %5183 = vmatprep.subr.bf16.mxu0 %v3971
    %5184 = vmatpush1.bf16.msra.mxu0 %v3970
    %5185 = vmatprep.subr.bf16.mxu0 %v3975
    %5186 = vmatpush1.bf16.msra.mxu0 %v3974
    %5187 = vmatprep.subr.bf16.mxu0 %v3979
    %5188 = vmatpush1.bf16.msra.mxu0 %v3978
    %5189 = vmatprep.mubr.bf16.mxu0 %v5156
    %5190 = vmatmul.mubr.bf16.gmra.mrb[0].mxu0 %v5045
    %v5191 = vpop.f32.mrb[0].mxu0
    %v5192 = vadd.f32 %v4050, %v5191
    %v5193 = vpop.f32.mrb[0].mxu0
    %v5194 = vadd.f32 %v4054, %v5193
    %v5195 = vpop.f32.mrb[0].mxu0
    %v5196 = vpop.f32.mrb[0].mxu0
    %5197 = vdwg.mxu0
    %5198 = vmatprep.subr.bf16.mxu0 %v3921
    %5199 = vmatpush1.bf16.msra.mxu0 %v3920
    %5200 = vmatprep.subr.bf16.mxu0 %v3925
    %5201 = vmatpush1.bf16.msra.mxu0 %v3924
    %5202 = vmatprep.subr.bf16.mxu0 %v3929
    %5203 = vmatpush1.bf16.msra.mxu0 %v3928
    %5204 = vmatprep.subr.bf16.mxu0 %v3933
    %5205 = vmatpush1.bf16.msra.mxu0 %v3932
    %5206 = vmatprep.subr.bf16.mxu0 %v3937
    %5207 = vmatpush1.bf16.msra.mxu0 %v3936
    %5208 = vmatprep.subr.bf16.mxu0 %v3941
    %5209 = vmatpush1.bf16.msra.mxu0 %v3940
    %5210 = vmatprep.subr.bf16.mxu0 %v3945
    %5211 = vmatpush1.bf16.msra.mxu0 %v3944
    %5212 = vmatprep.subr.bf16.mxu0 %v3949
    %5213 = vmatpush1.bf16.msra.mxu0 %v3948
    %5214 = vmatprep.subr.bf16.mxu0 %v3953
    %5215 = vmatpush1.bf16.msra.mxu0 %v3952
    %5216 = vmatprep.subr.bf16.mxu0 %v3957
    %5217 = vmatpush1.bf16.msra.mxu0 %v3956
    %5218 = vmatprep.subr.bf16.mxu0 %v3961
    %5219 = vmatpush1.bf16.msra.mxu0 %v3960
    %5220 = vmatprep.subr.bf16.mxu0 %v3965
    %5221 = vmatpush1.bf16.msra.mxu0 %v3964
    %5222 = vmatprep.subr.bf16.mxu0 %v3969
    %5223 = vmatpush1.bf16.msra.mxu0 %v3968
    %5224 = vmatprep.subr.bf16.mxu0 %v3973
    %5225 = vmatpush1.bf16.msra.mxu0 %v3972
    %5226 = vmatprep.subr.bf16.mxu0 %v3977
    %5227 = vmatpush1.bf16.msra.mxu0 %v3976
    %5228 = vmatprep.subr.bf16.mxu0 %v3981
    %5229 = vmatpush1.bf16.msra.mxu0 %v3980
    %5230 = vmatprep.mubr.bf16.mxu0 %v5156
    %5231 = vmatmul.mubr.bf16.gmra.mrb[0].mxu0 %v5045
    %v5232 = vpop.f32.mrb[0].mxu0
    %v5233 = vadd.f32 %v4058, %v5232
    %v5234 = vpop.f32.mrb[0].mxu0
    %v5235 = vadd.f32 %v4062, %v5234
    %v5236 = vpop.f32.mrb[0].mxu0
    %v5237 = vpop.f32.mrb[0].mxu0
    %5238 = vdwg.mxu0
    %v5239 = vxor.u32 %v5192, 2147483648
    %v5240 = vxor.u32 %v5194, 2147483648
    %v5241 = vxor.u32 %v5233, 2147483648
    %v5242 = vmul.f32 %v5239, 1.442695
    %v5243 = vpow.pop %v5242
    %v5244 = vmul.f32 %v5240, 1.442695
    %v5245 = vpow.pop %v5244
    %v5246 = vmul.f32 %v5241, 1.442695
    %v5247 = vpow.pop %v5246
    %v5248 = vadd.f32 %v5243, 1.0
    %v5249 = vadd.f32 %v5245, 1.0
    %v5250 = vadd.f32 %v5247, 1.0
    %v5251 = vrcp.pop %v5248
    %v5252 = vmul.f32 1.0, %v5251
    %v5253 = vrcp.pop %v5249
    %v5254 = vmul.f32 1.0, %v5253
    %v5255 = vrcp.pop %v5250
    %v5256 = vmul.f32 1.0, %v5255
    %v5257 = vtanh.pop %v5235
    %v5258 = vmul.f32 %v5254, %v5042
    %v5259 = vmul.f32 %v5252, %v5257
    %v5260 = vadd.f32 %v5258, %v5259
    %v5261 = vtanh.pop %v5260
    %v5262 = vmul.f32 %v5256, %v5261
    %v5263 = vpack.c.bf16 %v5155, %v5155
    %5264 = vmatprep.subr.bf16.mxu0 %v3378
    %5265 = vmatpush1.bf16.msra.mxu0 %v3377
    %5266 = vmatprep.subr.bf16.mxu0 %v3382
    %5267 = vmatpush1.bf16.msra.mxu0 %v3381
    %5268 = vmatprep.subr.bf16.mxu0 %v3386
    %5269 = vmatpush1.bf16.msra.mxu0 %v3385
    %5270 = vmatprep.subr.bf16.mxu0 %v3390
    %5271 = vmatpush1.bf16.msra.mxu0 %v3389
    %5272 = vmatprep.subr.bf16.mxu0 %v3394
    %5273 = vmatpush1.bf16.msra.mxu0 %v3393
    %5274 = vmatprep.subr.bf16.mxu0 %v3398
    %5275 = vmatpush1.bf16.msra.mxu0 %v3397
    %5276 = vmatprep.subr.bf16.mxu0 %v3402
    %5277 = vmatpush1.bf16.msra.mxu0 %v3401
    %5278 = vmatprep.subr.bf16.mxu0 %v3406
    %5279 = vmatpush1.bf16.msra.mxu0 %v3405
    %5280 = vmatprep.subr.bf16.mxu0 0
    %5281 = vmatpush1.bf16.msra.mxu0 0
    %5282 = vmatprep.subr.bf16.mxu0 0
    %5283 = vmatpush1.bf16.msra.mxu0 0
    %5284 = vmatprep.subr.bf16.mxu0 0
    %5285 = vmatpush1.bf16.msra.mxu0 0
    %5286 = vmatprep.subr.bf16.mxu0 0
    %5287 = vmatpush1.bf16.msra.mxu0 0
    %5288 = vmatprep.subr.bf16.mxu0 0
    %5289 = vmatpush1.bf16.msra.mxu0 0
    %5290 = vmatprep.subr.bf16.mxu0 0
    %5291 = vmatpush1.bf16.msra.mxu0 0
    %5292 = vmatprep.subr.bf16.mxu0 0
    %5293 = vmatpush1.bf16.msra.mxu0 0
    %5294 = vmatprep.subr.bf16.mxu0 0
    %5295 = vmatpush1.bf16.msra.mxu0 0
    %5296 = vmatprep.mubr.bf16.mxu0 0
    %5297 = vmatmul.mubr.bf16.gmra.mrb[0].mxu0 %v5263
    %v5298 = vpop.f32.mrb[0].mxu0
    %v5299 = vadd.f32 0.0, %v5298
    %v5300 = vpop.f32.mrb[0].mxu0
    %v5301 = vadd.f32 0.0, %v5300
    %v5302 = vpop.f32.mrb[0].mxu0
    %v5303 = vpop.f32.mrb[0].mxu0
    %5304 = vdwg.mxu0
    %5305 = vmatprep.subr.bf16.mxu0 %v3380
    %5306 = vmatpush1.bf16.msra.mxu0 %v3379
    %5307 = vmatprep.subr.bf16.mxu0 %v3384
    %5308 = vmatpush1.bf16.msra.mxu0 %v3383
    %5309 = vmatprep.subr.bf16.mxu0 %v3388
    %5310 = vmatpush1.bf16.msra.mxu0 %v3387
    %5311 = vmatprep.subr.bf16.mxu0 %v3392
    %5312 = vmatpush1.bf16.msra.mxu0 %v3391
    %5313 = vmatprep.subr.bf16.mxu0 %v3396
    %5314 = vmatpush1.bf16.msra.mxu0 %v3395
    %5315 = vmatprep.subr.bf16.mxu0 %v3400
    %5316 = vmatpush1.bf16.msra.mxu0 %v3399
    %5317 = vmatprep.subr.bf16.mxu0 %v3404
    %5318 = vmatpush1.bf16.msra.mxu0 %v3403
    %5319 = vmatprep.subr.bf16.mxu0 %v3408
    %5320 = vmatpush1.bf16.msra.mxu0 %v3407
    %5321 = vmatprep.subr.bf16.mxu0 0
    %5322 = vmatpush1.bf16.msra.mxu0 0
    %5323 = vmatprep.subr.bf16.mxu0 0
    %5324 = vmatpush1.bf16.msra.mxu0 0
    %5325 = vmatprep.subr.bf16.mxu0 0
    %5326 = vmatpush1.bf16.msra.mxu0 0
    %5327 = vmatprep.subr.bf16.mxu0 0
    %5328 = vmatpush1.bf16.msra.mxu0 0
    %5329 = vmatprep.subr.bf16.mxu0 0
    %5330 = vmatpush1.bf16.msra.mxu0 0
    %5331 = vmatprep.subr.bf16.mxu0 0
    %5332 = vmatpush1.bf16.msra.mxu0 0
    %5333 = vmatprep.subr.bf16.mxu0 0
    %5334 = vmatpush1.bf16.msra.mxu0 0
    %5335 = vmatprep.subr.bf16.mxu0 0
    %5336 = vmatpush1.bf16.msra.mxu0 0
    %5337 = vmatprep.mubr.bf16.mxu0 0
    %5338 = vmatmul.mubr.bf16.gmra.mrb[0].mxu0 %v5263
    %v5339 = vpop.f32.mrb[0].mxu0
    %v5340 = vadd.f32 0.0, %v5339
    %v5341 = vpop.f32.mrb[0].mxu0
    %v5342 = vadd.f32 0.0, %v5341
    %v5343 = vpop.f32.mrb[0].mxu0
    %v5344 = vpop.f32.mrb[0].mxu0
    %5345 = vdwg.mxu0
    %v5346 = vadd.f32 %v3201, %v5299
    %v5347 = vadd.f32 %v3203, %v5301
    %v5348 = vadd.f32 %v3242, %v5340
    %v5349 = vadd.f32 %v3244, %v5342
    %v5350 = vxor.u32 %v5346, 2147483648
    %v5351 = vxor.u32 %v5347, 2147483648
    %v5352 = vxor.u32 %v5348, 2147483648
    %v5353 = vmul.f32 %v5350, 1.442695
    %v5354 = vpow.pop %v5353
    %v5355 = vmul.f32 %v5351, 1.442695
    %v5356 = vpow.pop %v5355
    %v5357 = vmul.f32 %v5352, 1.442695
    %v5358 = vpow.pop %v5357
    %v5359 = vadd.f32 %v5354, 1.0
    %v5360 = vadd.f32 %v5356, 1.0
    %v5361 = vadd.f32 %v5358, 1.0
    %v5362 = vrcp.pop %v5359
    %v5363 = vmul.f32 1.0, %v5362
    %v5364 = vrcp.pop %v5360
    %v5365 = vmul.f32 1.0, %v5364
    %v5366 = vrcp.pop %v5361
    %v5367 = vmul.f32 1.0, %v5366
    %v5368 = vtanh.pop %v5349
    %v5369 = vmul.f32 %v5365, %v5153
    %v5370 = vmul.f32 %v5363, %v5368
    %v5371 = vadd.f32 %v5369, %v5370
    %v5372 = vtanh.pop %v5371
    %v5373 = vmul.f32 %v5367, %v5372
    %v5374 = vpack.c.bf16 %v5262, %v5262
    %5375 = vmatprep.subr.bf16.mxu0 %v3919
    %5376 = vmatpush1.bf16.msra.mxu0 %v3918
    %5377 = vmatprep.subr.bf16.mxu0 %v3923
    %5378 = vmatpush1.bf16.msra.mxu0 %v3922
    %5379 = vmatprep.subr.bf16.mxu0 %v3927
    %5380 = vmatpush1.bf16.msra.mxu0 %v3926
    %5381 = vmatprep.subr.bf16.mxu0 %v3931
    %5382 = vmatpush1.bf16.msra.mxu0 %v3930
    %5383 = vmatprep.subr.bf16.mxu0 %v3935
    %5384 = vmatpush1.bf16.msra.mxu0 %v3934
    %5385 = vmatprep.subr.bf16.mxu0 %v3939
    %5386 = vmatpush1.bf16.msra.mxu0 %v3938
    %5387 = vmatprep.subr.bf16.mxu0 %v3943
    %5388 = vmatpush1.bf16.msra.mxu0 %v3942
    %5389 = vmatprep.subr.bf16.mxu0 %v3947
    %5390 = vmatpush1.bf16.msra.mxu0 %v3946
    %5391 = vmatprep.subr.bf16.mxu0 %v3951
    %5392 = vmatpush1.bf16.msra.mxu0 %v3950
    %5393 = vmatprep.subr.bf16.mxu0 %v3955
    %5394 = vmatpush1.bf16.msra.mxu0 %v3954
    %5395 = vmatprep.subr.bf16.mxu0 %v3959
    %5396 = vmatpush1.bf16.msra.mxu0 %v3958
    %5397 = vmatprep.subr.bf16.mxu0 %v3963
    %5398 = vmatpush1.bf16.msra.mxu0 %v3962
    %5399 = vmatprep.subr.bf16.mxu0 %v3967
    %5400 = vmatpush1.bf16.msra.mxu0 %v3966
    %5401 = vmatprep.subr.bf16.mxu0 %v3971
    %5402 = vmatpush1.bf16.msra.mxu0 %v3970
    %5403 = vmatprep.subr.bf16.mxu0 %v3975
    %5404 = vmatpush1.bf16.msra.mxu0 %v3974
    %5405 = vmatprep.subr.bf16.mxu0 %v3979
    %5406 = vmatpush1.bf16.msra.mxu0 %v3978
    %5407 = vmatprep.mubr.bf16.mxu0 %v5374
    %5408 = vmatmul.mubr.bf16.gmra.mrb[0].mxu0 %v5263
    %v5409 = vpop.f32.mrb[0].mxu0
    %v5410 = vadd.f32 %v4050, %v5409
    %v5411 = vpop.f32.mrb[0].mxu0
    %v5412 = vadd.f32 %v4054, %v5411
    %v5413 = vpop.f32.mrb[0].mxu0
    %v5414 = vpop.f32.mrb[0].mxu0
    %5415 = vdwg.mxu0
    %5416 = vmatprep.subr.bf16.mxu0 %v3921
    %5417 = vmatpush1.bf16.msra.mxu0 %v3920
    %5418 = vmatprep.subr.bf16.mxu0 %v3925
    %5419 = vmatpush1.bf16.msra.mxu0 %v3924
    %5420 = vmatprep.subr.bf16.mxu0 %v3929
    %5421 = vmatpush1.bf16.msra.mxu0 %v3928
    %5422 = vmatprep.subr.bf16.mxu0 %v3933
    %5423 = vmatpush1.bf16.msra.mxu0 %v3932
    %5424 = vmatprep.subr.bf16.mxu0 %v3937
    %5425 = vmatpush1.bf16.msra.mxu0 %v3936
    %5426 = vmatprep.subr.bf16.mxu0 %v3941
    %5427 = vmatpush1.bf16.msra.mxu0 %v3940
    %5428 = vmatprep.subr.bf16.mxu0 %v3945
    %5429 = vmatpush1.bf16.msra.mxu0 %v3944
    %5430 = vmatprep.subr.bf16.mxu0 %v3949
    %5431 = vmatpush1.bf16.msra.mxu0 %v3948
    %5432 = vmatprep.subr.bf16.mxu0 %v3953
    %5433 = vmatpush1.bf16.msra.mxu0 %v3952
    %5434 = vmatprep.subr.bf16.mxu0 %v3957
    %5435 = vmatpush1.bf16.msra.mxu0 %v3956
    %5436 = vmatprep.subr.bf16.mxu0 %v3961
    %5437 = vmatpush1.bf16.msra.mxu0 %v3960
    %5438 = vmatprep.subr.bf16.mxu0 %v3965
    %5439 = vmatpush1.bf16.msra.mxu0 %v3964
    %5440 = vmatprep.subr.bf16.mxu0 %v3969
    %5441 = vmatpush1.bf16.msra.mxu0 %v3968
    %5442 = vmatprep.subr.bf16.mxu0 %v3973
    %5443 = vmatpush1.bf16.msra.mxu0 %v3972
    %5444 = vmatprep.subr.bf16.mxu0 %v3977
    %5445 = vmatpush1.bf16.msra.mxu0 %v3976
    %5446 = vmatprep.subr.bf16.mxu0 %v3981
    %5447 = vmatpush1.bf16.msra.mxu0 %v3980
    %5448 = vmatprep.mubr.bf16.mxu0 %v5374
    %5449 = vmatmul.mubr.bf16.gmra.mrb[0].mxu0 %v5263
    %v5450 = vpop.f32.mrb[0].mxu0
    %v5451 = vadd.f32 %v4058, %v5450
    %v5452 = vpop.f32.mrb[0].mxu0
    %v5453 = vadd.f32 %v4062, %v5452
    %v5454 = vpop.f32.mrb[0].mxu0
    %v5455 = vpop.f32.mrb[0].mxu0
    %5456 = vdwg.mxu0
    %v5457 = vxor.u32 %v5410, 2147483648
    %v5458 = vxor.u32 %v5412, 2147483648
    %v5459 = vxor.u32 %v5451, 2147483648
    %v5460 = vmul.f32 %v5457, 1.442695
    %v5461 = vpow.pop %v5460
    %v5462 = vmul.f32 %v5458, 1.442695
    %v5463 = vpow.pop %v5462
    %v5464 = vmul.f32 %v5459, 1.442695
    %v5465 = vpow.pop %v5464
    %v5466 = vadd.f32 %v5461, 1.0
    %v5467 = vadd.f32 %v5463, 1.0
    %v5468 = vadd.f32 %v5465, 1.0
    %v5469 = vrcp.pop %v5466
    %v5470 = vmul.f32 1.0, %v5469
    %v5471 = vrcp.pop %v5467
    %v5472 = vmul.f32 1.0, %v5471
    %v5473 = vrcp.pop %v5468
    %v5474 = vmul.f32 1.0, %v5473
    %v5475 = vtanh.pop %v5453
    %v5476 = vmul.f32 %v5472, %v5260
    %v5477 = vmul.f32 %v5470, %v5475
    %v5478 = vadd.f32 %v5476, %v5477
    %v5479 = vtanh.pop %v5478
    %v5480 = vmul.f32 %v5474, %v5479
    %v5481 = vpack.c.bf16 %v5373, %v5373
    %v5482 = vpack.c.bf16 %v5480, %v5480
    %5483 = vmatprep.subr.bf16.mxu0 %v3919
    %5484 = vmatpush1.bf16.msra.mxu0 %v3918
    %5485 = vmatprep.subr.bf16.mxu0 %v3923
    %5486 = vmatpush1.bf16.msra.mxu0 %v3922
    %5487 = vmatprep.subr.bf16.mxu0 %v3927
    %5488 = vmatpush1.bf16.msra.mxu0 %v3926
    %5489 = vmatprep.subr.bf16.mxu0 %v3931
    %5490 = vmatpush1.bf16.msra.mxu0 %v3930
    %5491 = vmatprep.subr.bf16.mxu0 %v3935
    %5492 = vmatpush1.bf16.msra.mxu0 %v3934
    %5493 = vmatprep.subr.bf16.mxu0 %v3939
    %5494 = vmatpush1.bf16.msra.mxu0 %v3938
    %5495 = vmatprep.subr.bf16.mxu0 %v3943
    %5496 = vmatpush1.bf16.msra.mxu0 %v3942
    %5497 = vmatprep.subr.bf16.mxu0 %v3947
    %5498 = vmatpush1.bf16.msra.mxu0 %v3946
    %5499 = vmatprep.subr.bf16.mxu0 %v3951
    %5500 = vmatpush1.bf16.msra.mxu0 %v3950
    %5501 = vmatprep.subr.bf16.mxu0 %v3955
    %5502 = vmatpush1.bf16.msra.mxu0 %v3954
    %5503 = vmatprep.subr.bf16.mxu0 %v3959
    %5504 = vmatpush1.bf16.msra.mxu0 %v3958
    %5505 = vmatprep.subr.bf16.mxu0 %v3963
    %5506 = vmatpush1.bf16.msra.mxu0 %v3962
    %5507 = vmatprep.subr.bf16.mxu0 %v3967
    %5508 = vmatpush1.bf16.msra.mxu0 %v3966
    %5509 = vmatprep.subr.bf16.mxu0 %v3971
    %5510 = vmatpush1.bf16.msra.mxu0 %v3970
    %5511 = vmatprep.subr.bf16.mxu0 %v3975
    %5512 = vmatpush1.bf16.msra.mxu0 %v3974
    %5513 = vmatprep.subr.bf16.mxu0 %v3979
    %5514 = vmatpush1.bf16.msra.mxu0 %v3978
    %5515 = vmatprep.mubr.bf16.mxu0 %v5482
    %5516 = vmatmul.mubr.bf16.gmra.mrb[0].mxu0 %v5481
    %v5517 = vpop.f32.mrb[0].mxu0
    %v5518 = vadd.f32 %v4050, %v5517
    %v5519 = vpop.f32.mrb[0].mxu0
    %v5520 = vadd.f32 %v4054, %v5519
    %v5521 = vpop.f32.mrb[0].mxu0
    %v5522 = vpop.f32.mrb[0].mxu0
    %5523 = vdwg.mxu0
    %5524 = vmatprep.subr.bf16.mxu0 %v3921
    %5525 = vmatpush1.bf16.msra.mxu0 %v3920
    %5526 = vmatprep.subr.bf16.mxu0 %v3925
    %5527 = vmatpush1.bf16.msra.mxu0 %v3924
    %5528 = vmatprep.subr.bf16.mxu0 %v3929
    %5529 = vmatpush1.bf16.msra.mxu0 %v3928
    %5530 = vmatprep.subr.bf16.mxu0 %v3933
    %5531 = vmatpush1.bf16.msra.mxu0 %v3932
    %5532 = vmatprep.subr.bf16.mxu0 %v3937
    %5533 = vmatpush1.bf16.msra.mxu0 %v3936
    %5534 = vmatprep.subr.bf16.mxu0 %v3941
    %5535 = vmatpush1.bf16.msra.mxu0 %v3940
    %5536 = vmatprep.subr.bf16.mxu0 %v3945
    %5537 = vmatpush1.bf16.msra.mxu0 %v3944
    %5538 = vmatprep.subr.bf16.mxu0 %v3949
    %5539 = vmatpush1.bf16.msra.mxu0 %v3948
    %5540 = vmatprep.subr.bf16.mxu0 %v3953
    %5541 = vmatpush1.bf16.msra.mxu0 %v3952
    %5542 = vmatprep.subr.bf16.mxu0 %v3957
    %5543 = vmatpush1.bf16.msra.mxu0 %v3956
    %5544 = vmatprep.subr.bf16.mxu0 %v3961
    %5545 = vmatpush1.bf16.msra.mxu0 %v3960
    %5546 = vmatprep.subr.bf16.mxu0 %v3965
    %5547 = vmatpush1.bf16.msra.mxu0 %v3964
    %5548 = vmatprep.subr.bf16.mxu0 %v3969
    %5549 = vmatpush1.bf16.msra.mxu0 %v3968
    %5550 = vmatprep.subr.bf16.mxu0 %v3973
    %5551 = vmatpush1.bf16.msra.mxu0 %v3972
    %5552 = vmatprep.subr.bf16.mxu0 %v3977
    %5553 = vmatpush1.bf16.msra.mxu0 %v3976
    %5554 = vmatprep.subr.bf16.mxu0 %v3981
    %5555 = vmatpush1.bf16.msra.mxu0 %v3980
    %5556 = vmatprep.mubr.bf16.mxu0 %v5482
    %5557 = vmatmul.mubr.bf16.gmra.mrb[0].mxu0 %v5481
    %v5558 = vpop.f32.mrb[0].mxu0
    %v5559 = vadd.f32 %v4058, %v5558
    %v5560 = vpop.f32.mrb[0].mxu0
    %v5561 = vadd.f32 %v4062, %v5560
    %v5562 = vpop.f32.mrb[0].mxu0
    %v5563 = vpop.f32.mrb[0].mxu0
    %5564 = vdwg.mxu0
    %v5565 = vxor.u32 %v5518, 2147483648
    %v5566 = vxor.u32 %v5520, 2147483648
    %v5567 = vxor.u32 %v5559, 2147483648
    %v5568 = vmul.f32 %v5565, 1.442695
    %v5569 = vpow.pop %v5568
    %v5570 = vmul.f32 %v5566, 1.442695
    %v5571 = vpow.pop %v5570
    %v5572 = vmul.f32 %v5567, 1.442695
    %v5573 = vpow.pop %v5572
    %v5574 = vadd.f32 %v5569, 1.0
    %v5575 = vadd.f32 %v5571, 1.0
    %v5576 = vadd.f32 %v5573, 1.0
    %v5577 = vrcp.pop %v5574
    %v5578 = vmul.f32 1.0, %v5577
    %v5579 = vrcp.pop %v5575
    %v5580 = vmul.f32 1.0, %v5579
    %v5581 = vrcp.pop %v5576
    %v5582 = vmul.f32 1.0, %v5581
    %v5583 = vtanh.pop %v5561
    %v5584 = vmul.f32 %v5580, %v5478
    %v5585 = vmul.f32 %v5578, %v5583
    %v5586 = vadd.f32 %v5584, %v5585
    %v5587 = vtanh.pop %v5586
    %v5588 = vmul.f32 %v5582, %v5587
    %v5590 = vrot.slane %v4390, 7
    %v5593 = vrot.slane %v4608, 6
    %v5596 = vrot.slane %v4826, 5
    %v5599 = vrot.slane %v5044, 4
    %v5602 = vrot.slane %v5262, 3
    %v5605 = vrot.slane %v5480, 2
    %v5608 = vrot.slane %v5588, 1
    %vm5610 = vcmask 1040384
    %v5611 = vsel %vm5610, %v4172, %v5590
    %vm5612 = vcmask 1041408
    %v5613 = vsel %vm5612, %v5611, %v5593
    %vm5614 = vcmask 1042432
    %v5615 = vsel %vm5614, %v5613, %v5596
    %vm5616 = vcmask 1043456
    %v5617 = vsel %vm5616, %v5615, %v5599
    %vm5618 = vcmask 1044480
    %v5619 = vsel %vm5618, %v5617, %v5602
    %vm5620 = vcmask 1045504
    %v5621 = vsel %vm5620, %v5619, %v5605
    %vm5622 = vcmask 1046528
    %v5623 = vsel %vm5622, %v5621, %v5608
    %v5624 = vld [vmem:[%s11] sm:$0xff]
    %v5625 = vld [vmem:[%s11 + $0x8] sm:$0xff]
    %v5626 = vld [vmem:[%s11 + $0x10] sm:$0xff]
    %v5627 = vld [vmem:[%s11 + $0x18] sm:$0xff]
    %v5628 = vld [vmem:[%s11 + $0x20] sm:$0xff]
    %v5629 = vld [vmem:[%s11 + $0x28] sm:$0xff]
    %v5630 = vld [vmem:[%s11 + $0x30] sm:$0xff]
    %v5631 = vld [vmem:[%s11 + $0x38] sm:$0xff]
    %v5632 = vld [vmem:[%s11 + $0x40] sm:$0xff]
    %v5633 = vld [vmem:[%s11 + $0x48] sm:$0xff]
    %v5634 = vld [vmem:[%s11 + $0x50] sm:$0xff]
    %v5635 = vld [vmem:[%s11 + $0x58] sm:$0xff]
    %v5636 = vld [vmem:[%s11 + $0x60] sm:$0xff]
    %v5637 = vld [vmem:[%s11 + $0x68] sm:$0xff]
    %v5638 = vld [vmem:[%s11 + $0x70] sm:$0xff]
    %v5639 = vld [vmem:[%s11 + $0x78] sm:$0xff]
    %v5640 = vld [vmem:[#allocation2] sm:$0x1]
    %v5642 = vlaneseq
    %v5643 = vshrl.u32 %v5642, 7
    %v5644 = vsub.s32 0, %v5643
    %v5645 = vrot.slane %v5640, %v5644
    %5647 = vmatprep.subr.mxu0 0.0
    %5648 = vmatpush1.msra.mxu0 %v5624
    %5649 = vmatprep.subr.mxu0 0.0
    %5650 = vmatpush1.msra.mxu0 %v5625
    %5651 = vmatprep.subr.mxu0 0.0
    %5652 = vmatpush1.msra.mxu0 %v5626
    %5653 = vmatprep.subr.mxu0 0.0
    %5654 = vmatpush1.msra.mxu0 %v5627
    %5655 = vmatprep.subr.mxu0 0.0
    %5656 = vmatpush1.msra.mxu0 %v5628
    %5657 = vmatprep.subr.mxu0 0.0
    %5658 = vmatpush1.msra.mxu0 %v5629
    %5659 = vmatprep.subr.mxu0 0.0
    %5660 = vmatpush1.msra.mxu0 %v5630
    %5661 = vmatprep.subr.mxu0 0.0
    %5662 = vmatpush1.msra.mxu0 %v5631
    %5663 = vmatprep.subr.mxu0 0.0
    %5664 = vmatpush1.msra.mxu0 %v5632
    %5665 = vmatprep.subr.mxu0 0.0
    %5666 = vmatpush1.msra.mxu0 %v5633
    %5667 = vmatprep.subr.mxu0 0.0
    %5668 = vmatpush1.msra.mxu0 %v5634
    %5669 = vmatprep.subr.mxu0 0.0
    %5670 = vmatpush1.msra.mxu0 %v5635
    %5671 = vmatprep.subr.mxu0 0.0
    %5672 = vmatpush1.msra.mxu0 %v5636
    %5673 = vmatprep.subr.mxu0 0.0
    %5674 = vmatpush1.msra.mxu0 %v5637
    %5675 = vmatprep.subr.mxu0 0.0
    %5676 = vmatpush1.msra.mxu0 %v5638
    %5677 = vmatprep.subr.mxu0 0.0
    %5678 = vmatpush1.msra.mxu0 %v5639
    %5679 = vmatprep.subr.mxu0 0.0
    %5680 = vmatpush1.msra.mxu0 0.0
    %5681 = vmatprep.subr.mxu0 0.0
    %5682 = vmatpush1.msra.mxu0 0.0
    %5683 = vmatprep.subr.mxu0 0.0
    %5684 = vmatpush1.msra.mxu0 0.0
    %5685 = vmatprep.subr.mxu0 0.0
    %5686 = vmatpush1.msra.mxu0 0.0
    %5687 = vmatprep.subr.mxu0 0.0
    %5688 = vmatpush1.msra.mxu0 0.0
    %5689 = vmatprep.subr.mxu0 0.0
    %5690 = vmatpush1.msra.mxu0 0.0
    %5691 = vmatprep.subr.mxu0 0.0
    %5692 = vmatpush1.msra.mxu0 0.0
    %5693 = vmatprep.subr.mxu0 0.0
    %5694 = vmatpush1.msra.mxu0 0.0
    %5695 = vmatprep.subr.mxu0 0.0
    %5696 = vmatpush1.msra.mxu0 0.0
    %5697 = vmatprep.subr.mxu0 0.0
    %5698 = vmatpush1.msra.mxu0 0.0
    %5699 = vmatprep.subr.mxu0 0.0
    %5700 = vmatpush1.msra.mxu0 0.0
    %5701 = vmatprep.subr.mxu0 0.0
    %5702 = vmatpush1.msra.mxu0 0.0
    %5703 = vmatprep.subr.mxu0 0.0
    %5704 = vmatpush1.msra.mxu0 0.0
    %5705 = vmatprep.subr.mxu0 0.0
    %5706 = vmatpush1.msra.mxu0 0.0
    %5707 = vmatprep.subr.mxu0 0.0
    %5708 = vmatpush1.msra.mxu0 0.0
    %5709 = vmatprep.subr.mxu0 0.0
    %5710 = vmatpush1.msra.mxu0 0.0
    %5711 = vmatprep.mubr.f32.mxu0 0.0
    %5712 = vmatmul.mubr.f32.gmra.mrb[0].mxu0 %v5623
    %v5713 = vpop.f32.mrb[0].mxu0
    %v5714 = vadd.f32 %v5645, %v5713
    %v5715 = vpop.f32.mrb[0].mxu0
    %5716 = vdwg.mxu0
    %vm5717 = vcmask 7168
    %5718 = vst.msk [vmem:[%s13] sm:$0xff] %vm5717, %v5714
    // Predicated region
    $region78: #{recurrent_autoencoder.1} parent=1 // pred_check
      _
    $region79: #{recurrent_autoencoder.1} parent=1 // pred_check_branch
      %5720 = sbr.rel (0) target = $region81
    $region80: #{recurrent_autoencoder.1} parent=1 // pred_region
      _
    $region81: #{recurrent_autoencoder.1} parent=1 // pred_fallthru
      _
    // Predicated region
    $region82: #{recurrent_autoencoder.1} parent=1 // pred_check
      _
    $region83: #{recurrent_autoencoder.1} parent=1 // pred_check_branch
      %5722 = sbr.rel (0) target = $region85
    $region84: #{recurrent_autoencoder.1} parent=1 // pred_region
      _
    $region85: #{recurrent_autoencoder.1} parent=1 // pred_fallthru
      _
    %5723 = vsyncpa [#allocation4], 1
    %5724 = vsyncpa [#allocation6], 1
    %5725 = vsyncpa [#allocation9], 1
    %5726 = vsyncpa [#allocation12], 1

</llo_original>
